<compile_context>
chip_gen: v7x
topology: tpu7x:2x2x1
jax: 0.10.0
libtpu: 0.0.40
codegen_flags: <defaults>
</compile_context>

<pallas_src>
import numpy as np
import jax
import jax.numpy as jnp
from jax.experimental import pallas as pl
from jax.experimental.pallas import tpu as pltpu

EPS = 1e-5
K = 4
STRIDE = 2
PAD = 1
NT = K * K  # 16 taps per 4x4 kernel


def _parity_taps():
    # Tap indices (kh*K + kw) grouped by output-pixel parity class (oh%2, ow%2)
    # for a k=4, stride=2, pad=1 transposed conv (oh = 2*ih + kh - 1).
    classes = []
    for ph in range(2):
        for pw in range(2):
            taps = [kh * K + kw
                    for kh in range(K) if (kh - PAD) % 2 == ph
                    for kw in range(K) if (kw - PAD) % 2 == pw]
            classes.append(taps)
    return classes


PARITY_TAPS = _parity_taps()   # [[5,7,13,15],[4,6,12,14],[1,3,9,11],[0,2,8,10]]


# ---------------------------------------------------------------------------
# Fused Pallas kernel (single invocation, everything VMEM-resident)
# ---------------------------------------------------------------------------
def _fused_kernel(p1t_ref, w1t_ref, b1_ref, g1_ref, be1_ref,
                  s2_ref, w2f_ref, b2_ref, g2_ref, be2_ref,
                  w3s_ref, s3_ref, b3_ref, g3_ref, be3_ref,
                  w4t_ref, s4p_ref, b4_ref, o_ref):
    f32, bf16 = jnp.float32, jnp.bfloat16

    def relu_bn(y, bias, gamma, beta):
        # conv-bias + ReLU + training-mode BatchNorm2d over the N*H*W lane axis.
        # Stats on the XLU (lane reductions) so the MXU issue slot stays free;
        # two-pass biased variance; affine folded into a single scale/shift.
        y = jnp.maximum(y + bias, 0.0)
        inv_m = 1.0 / y.shape[1]
        mu = jnp.sum(y, axis=-1, keepdims=True) * inv_m
        d = y - mu
        var = jnp.sum(d * d, axis=-1, keepdims=True) * inv_m     # biased, like PyTorch
        scale = gamma * jax.lax.rsqrt(var + EPS)                  # EUP
        shift = beta - mu * scale
        return (y * scale + shift).astype(bf16)

    # ---- layer 1: Conv2d(1, 64, 4, s2, p1) + ReLU + BN ---------------------
    y1 = jnp.dot(w1t_ref[...], p1t_ref[...], preferred_element_type=f32)   # (64, N*64)
    a1 = relu_bn(y1, b1_ref[...], g1_ref[...], be1_ref[...])

    # ---- layer 2: Conv2d(64, 64, 4, s2, p1) + ReLU + BN --------------------
    # On-chip im2col: one 0/1 gather matmul per tap, rows stacked (tap, cin).
    p2 = jnp.concatenate(
        [jnp.dot(a1, s2_ref[t], preferred_element_type=f32) for t in range(NT)],
        axis=0).astype(bf16)                                                # (NT*64, N*16)
    y2 = jnp.dot(w2f_ref[...], p2, preferred_element_type=f32)              # (64, N*16)
    a2 = relu_bn(y2, b2_ref[...], g2_ref[...], be2_ref[...])

    # ---- layer 3: ConvTranspose2d(64, 64, 4, s2, p1) + ReLU + BN -----------
    # Weights first on the un-dilated activation (halves the MACs), then
    # per-tap scatter-add onto the upsampled grid.
    z3 = jnp.dot(w3s_ref[...], a2, preferred_element_type=f32).astype(bf16)  # (NT*64, N*16)
    y3 = jnp.dot(z3[0:64, :], s3_ref[0], preferred_element_type=f32)
    for t in range(1, NT):
        y3 = y3 + jnp.dot(z3[t * 64:(t + 1) * 64, :], s3_ref[t],
                          preferred_element_type=f32)                        # (64, N*64)
    a3 = relu_bn(y3, b3_ref[...], g3_ref[...], be3_ref[...])

    # ---- layer 4: ConvTranspose2d(64, 1, 4, s2, p1) + sigmoid --------------
    # Weights first (one dot), then ONE flattened scatter dot per output-pixel
    # parity class (4 dots instead of 16 single-row dots); each scatter matrix
    # keeps only the columns of its parity sub-grid (4x fewer bytes).
    z4 = jnp.dot(w4t_ref[...], a3, preferred_element_type=f32)               # (16, N*64)
    rows = []
    for p, taps in enumerate(PARITY_TAPS):
        zp = jnp.concatenate([z4[t:t + 1, :] for t in taps], axis=1)         # (1, 4*N*64)
        rows.append(jnp.dot(zp.astype(bf16), s4p_ref[p],
                            preferred_element_type=f32))                     # (1, N*64)
    y4 = jnp.concatenate(rows, axis=0) + b4_ref[...]                          # (4, N*64)
    o_ref[...] = jax.nn.sigmoid(y4)


# ---------------------------------------------------------------------------
# Compile-time constant 0/1 gather / scatter matrices (numpy, trace time)
# ---------------------------------------------------------------------------
def _coords(shape):
    n, h, w = np.meshgrid(np.arange(shape[0]), np.arange(shape[1]),
                          np.arange(shape[2]), indexing="ij")
    return n.reshape(-1), h.reshape(-1), w.reshape(-1)


def _gathers_conv(in_shape, out_shape, k, stride, pad):
    # G[t][i, o] = 1 iff input pixel i is the (kh, kw)-tap contributor to output o.
    ni, hi, wi = _coords(in_shape)
    no, ho, wo = _coords(out_shape)
    mats = []
    for kh in range(k):
        for kw in range(k):
            m = ((ni[:, None] == no[None, :])
                 & (hi[:, None] == stride * ho[None, :] + kh - pad)
                 & (wi[:, None] == stride * wo[None, :] + kw - pad))
            mats.append(m)
    return np.stack(mats).astype(np.float32)               # (k*k, Mi, Mo)


def _scatters_convT(in_shape, out_shape, k, stride, pad):
    # ConvTranspose scatter: output (oh, ow) = (s*ih + kh - p, s*iw + kw - p);
    # out-of-range taps match no output column (PyTorch-style cropping).
    ni, hi, wi = _coords(in_shape)
    no, ho, wo = _coords(out_shape)
    mats = []
    for kh in range(k):
        for kw in range(k):
            m = ((ni[:, None] == no[None, :])
                 & (stride * hi[:, None] + kh - pad == ho[None, :])
                 & (stride * wi[:, None] + kw - pad == wo[None, :]))
            mats.append(m)
    return np.stack(mats).astype(np.float32)               # (k*k, Mi, Mo)


def _parity_scatters_convT(in_shape, k, stride, pad):
    # One flattened scatter per output parity class (oh%2, ow%2).
    # Rows are (tap-in-class, n, hi, wi); columns are (n, oh//2, ow//2).
    ni, hi, wi = _coords(in_shape)
    no, hs, ws = _coords(in_shape)      # parity sub-grid has the input's extent
    mats = []
    for p, taps in enumerate(PARITY_TAPS):
        ph, pw = divmod(p, 2)
        ho = stride * hs + ph
        wo = stride * ws + pw
        blocks = []
        for t in taps:
            kh, kw = divmod(t, k)
            m = ((ni[:, None] == no[None, :])
                 & (stride * hi[:, None] + kh - pad == ho[None, :])
                 & (stride * wi[:, None] + kw - pad == wo[None, :]))
            blocks.append(m)
        mats.append(np.concatenate(blocks, axis=0))
    return np.stack(mats).astype(np.float32)               # (4, 4*Mi, Mi)


# ---------------------------------------------------------------------------
# Wrapper-side glue: tiny im2col for the input layer + weight re-layout
# ---------------------------------------------------------------------------
def _im2col(x, k, stride, pad):
    # x: (N, H, W, C) -> (N*Ho*Wo, k*k*C), feature order (kh, kw, c)
    xp = jnp.pad(x, ((0, 0), (pad, pad), (pad, pad), (0, 0)))
    N, Hp, Wp, C = xp.shape
    Ho = (Hp - k) // stride + 1
    Wo = (Wp - k) // stride + 1
    cols = []
    for kh in range(k):
        for kw in range(k):
            cols.append(xp[:, kh:kh + stride * Ho:stride, kw:kw + stride * Wo:stride, :])
    patches = jnp.stack(cols, axis=3)                       # (N, Ho, Wo, k*k, C)
    return patches.reshape(N * Ho * Wo, k * k * C)


def cnn_autoencoder_forward(x_nchw, params):
    N, C, H, W = x_nchw.shape
    assert C == 1 and H % 4 == 0 and W % 4 == 0
    Hh, Wh = H // 2, W // 2            # after conv1
    Hq, Wq = H // 4, W // 4            # after conv2
    bf16 = jnp.bfloat16

    # 0/1 gather / scatter constants (bf16 to halve DMA bytes)
    s2 = jnp.asarray(_gathers_conv((N, Hh, Wh), (N, Hq, Wq), K, STRIDE, PAD), bf16)
    s3 = jnp.asarray(_scatters_convT((N, Hq, Wq), (N, Hh, Wh), K, STRIDE, PAD), bf16)
    s4p = jnp.asarray(_parity_scatters_convT((N, Hh, Wh), K, STRIDE, PAD), bf16)

    # Weight re-layouts (channels-in-sublanes / tap-major feature order)
    w1t = params["w1"].reshape(64, K * K).astype(bf16)                                  # (co, t)
    w2f = jnp.transpose(params["w2"], (0, 2, 3, 1)).reshape(64, NT * 64).astype(bf16)   # (co, (t,ci))
    w3s = jnp.transpose(params["w3"], (2, 3, 1, 0)).reshape(NT * 64, 64).astype(bf16)   # ((t,co), ci)
    w4t = jnp.transpose(params["w4"][:, 0], (1, 2, 0)).reshape(NT, 64).astype(bf16)     # (t, ci)

    col = lambda v: v.reshape(-1, 1).astype(jnp.float32)
    b1, b2, b3, b4 = col(params["b1"]), col(params["b2"]), col(params["b3"]), col(params["b4"])
    g1, g2, g3 = col(params["g1"]), col(params["g2"]), col(params["g3"])
    be1, be2, be3 = col(params["be1"]), col(params["be2"]), col(params["be3"])

    # conv1 im2col of the (tiny) input, transposed to (K*K, N*Hh*Wh)
    x_nhwc = jnp.transpose(x_nchw, (0, 2, 3, 1)).astype(jnp.float32)
    p1t = _im2col(x_nhwc, K, STRIDE, PAD).T.astype(bf16)

    vspec = pl.BlockSpec(memory_space=pltpu.MemorySpace.VMEM)
    out4 = pl.pallas_call(
        _fused_kernel,
        out_shape=jax.ShapeDtypeStruct((4, N * Hh * Wh), jnp.float32),
        in_specs=[vspec] * 18,
        out_specs=vspec,
    )(p1t, w1t, b1, g1, be1,
      s2, w2f, b2, g2, be2,
      w3s, s3, b3, g3, be3,
      w4t, s4p, b4)

    # Interleave the 4 output parity planes back to NCHW (tiny wrapper reshape).
    out = out4.reshape(2, 2, N, Hh, Wh)                      # (ph, pw, n, oh//2, ow//2)
    out = jnp.transpose(out, (2, 3, 0, 4, 1)).reshape(N, H, W)
    return out[:, None, :, :]


# ---------------------------------------------------------------------------
# Deterministic parameter init (PyTorch-like uniform(-1/sqrt(fan_in), +))
# ---------------------------------------------------------------------------
def init_params(key):
    ks = jax.random.split(key, 8)

    def u(k, shape, fan_in):
        bound = 1.0 / float(fan_in) ** 0.5
        return jax.random.uniform(k, shape, jnp.float32, -bound, bound)

    return {
        "w1": u(ks[0], (64, 1, 4, 4), 1 * 16),   "b1": u(ks[1], (64,), 1 * 16),
        "w2": u(ks[2], (64, 64, 4, 4), 64 * 16), "b2": u(ks[3], (64,), 64 * 16),
        "w3": u(ks[4], (64, 64, 4, 4), 64 * 16), "b3": u(ks[5], (64,), 64 * 16),
        "w4": u(ks[6], (64, 1, 4, 4), 64 * 16),  "b4": u(ks[7], (1,), 64 * 16),
        "g1": jnp.ones((64,), jnp.float32), "be1": jnp.zeros((64,), jnp.float32),
        "g2": jnp.ones((64,), jnp.float32), "be2": jnp.zeros((64,), jnp.float32),
        "g3": jnp.ones((64,), jnp.float32), "be3": jnp.zeros((64,), jnp.float32),
    }


if __name__ == "__main__":
    key = jax.random.PRNGKey(0)
    k_param, k_x = jax.random.split(key)
    params = init_params(k_param)
    x = jax.random.normal(k_x, (2, 1, 16, 16), jnp.float32)   # NCHW, like PyTorch

    fwd = jax.jit(cnn_autoencoder_forward)
    out = jax.block_until_ready(fwd(x, params))

    assert out.shape == (2, 1, 16, 16), out.shape
    assert bool(jnp.all(jnp.isfinite(out)))
    assert bool(jnp.all((out >= 0.0) & (out <= 1.0)))         # sigmoid output range
    print("KERNEL_OK")
</pallas_src>

<mosaic_0001>
module attributes {stable_mosaic.version = 11 : i64} {
  func.func @_fused_kernel(%arg0: memref<16x128xbf16, #tpu.memory_space<vmem>>, %arg1: memref<64x16xbf16, #tpu.memory_space<vmem>>, %arg2: memref<64x1xf32, #tpu.memory_space<vmem>>, %arg3: memref<64x1xf32, #tpu.memory_space<vmem>>, %arg4: memref<64x1xf32, #tpu.memory_space<vmem>>, %arg5: memref<16x128x32xbf16, #tpu.memory_space<vmem>>, %arg6: memref<64x1024xbf16, #tpu.memory_space<vmem>>, %arg7: memref<64x1xf32, #tpu.memory_space<vmem>>, %arg8: memref<64x1xf32, #tpu.memory_space<vmem>>, %arg9: memref<64x1xf32, #tpu.memory_space<vmem>>, %arg10: memref<1024x64xbf16, #tpu.memory_space<vmem>>, %arg11: memref<16x32x128xbf16, #tpu.memory_space<vmem>>, %arg12: memref<64x1xf32, #tpu.memory_space<vmem>>, %arg13: memref<64x1xf32, #tpu.memory_space<vmem>>, %arg14: memref<64x1xf32, #tpu.memory_space<vmem>>, %arg15: memref<16x64xbf16, #tpu.memory_space<vmem>>, %arg16: memref<4x512x128xbf16, #tpu.memory_space<vmem>>, %arg17: memref<1x1xf32, #tpu.memory_space<vmem>>, %arg18: memref<4x128xf32, #tpu.memory_space<vmem>>) attributes {dimension_semantics = [], scalar_prefetch = 0 : i64, scratch_operands = 0 : i64, tpu.core_type = #tpu.core_type<tc>} {
    %c0 = arith.constant 0 : index
    %c0_0 = arith.constant 0 : index
    %0 = vector.load %arg1[%c0, %c0_0] : memref<64x16xbf16, #tpu.memory_space<vmem>>, vector<64x16xbf16>
    %c0_1 = arith.constant 0 : index
    %c0_2 = arith.constant 0 : index
    %1 = vector.load %arg0[%c0_1, %c0_2] : memref<16x128xbf16, #tpu.memory_space<vmem>>, vector<16x128xbf16>
    %cst = arith.constant dense<0.000000e+00> : vector<64x128xf32>
    %2 = tpu.matmul %0, %1, %cst {dimension_numbers = #tpu.dot_dimension_numbers<[1], [0], [0], [1], [0, 0, 1, 1], [], []>} : vector<64x16xbf16>, vector<16x128xbf16>, vector<64x128xf32> -> vector<64x128xf32>
    %c0_3 = arith.constant 0 : index
    %c0_4 = arith.constant 0 : index
    %3 = vector.load %arg2[%c0_3, %c0_4] : memref<64x1xf32, #tpu.memory_space<vmem>>, vector<64x1xf32>
    %c0_5 = arith.constant 0 : index
    %c0_6 = arith.constant 0 : index
    %4 = vector.load %arg3[%c0_5, %c0_6] : memref<64x1xf32, #tpu.memory_space<vmem>>, vector<64x1xf32>
    %c0_7 = arith.constant 0 : index
    %c0_8 = arith.constant 0 : index
    %5 = vector.load %arg4[%c0_7, %c0_8] : memref<64x1xf32, #tpu.memory_space<vmem>>, vector<64x1xf32>
    %6 = vector.broadcast %3 : vector<64x1xf32> to vector<64x128xf32>
    %7 = arith.addf %2, %6 : vector<64x128xf32>
    %cst_9 = arith.constant 0.000000e+00 : f32
    %8 = vector.broadcast %cst_9 : f32 to vector<64x128xf32>
    %9 = arith.maximumf %7, %8 : vector<64x128xf32>
    %cst_10 = arith.constant dense<0.000000e+00> : vector<64xf32>
    %10 = vector.multi_reduction <add>, %9, %cst_10 [1] : vector<64x128xf32> to vector<64xf32>
    %11 = vector.shape_cast %10 : vector<64xf32> to vector<64x1xf32>
    %cst_11 = arith.constant 7.812500e-03 : f32
    %12 = vector.broadcast %cst_11 : f32 to vector<64x1xf32>
    %13 = arith.mulf %11, %12 : vector<64x1xf32>
    %14 = vector.broadcast %13 : vector<64x1xf32> to vector<64x128xf32>
    %15 = arith.subf %9, %14 : vector<64x128xf32>
    %16 = arith.mulf %15, %15 : vector<64x128xf32>
    %cst_12 = arith.constant dense<0.000000e+00> : vector<64xf32>
    %17 = vector.multi_reduction <add>, %16, %cst_12 [1] : vector<64x128xf32> to vector<64xf32>
    %18 = vector.shape_cast %17 : vector<64xf32> to vector<64x1xf32>
    %cst_13 = arith.constant 7.812500e-03 : f32
    %19 = vector.broadcast %cst_13 : f32 to vector<64x1xf32>
    %20 = arith.mulf %18, %19 : vector<64x1xf32>
    %cst_14 = arith.constant 9.99999974E-6 : f32
    %21 = vector.broadcast %cst_14 : f32 to vector<64x1xf32>
    %22 = arith.addf %20, %21 : vector<64x1xf32>
    %23 = math.rsqrt %22 : vector<64x1xf32>
    %24 = arith.mulf %4, %23 : vector<64x1xf32>
    %25 = arith.mulf %13, %24 : vector<64x1xf32>
    %26 = arith.subf %5, %25 : vector<64x1xf32>
    %27 = vector.broadcast %24 : vector<64x1xf32> to vector<64x128xf32>
    %28 = arith.mulf %9, %27 : vector<64x128xf32>
    %29 = vector.broadcast %26 : vector<64x1xf32> to vector<64x128xf32>
    %30 = arith.addf %28, %29 : vector<64x128xf32>
    %31 = arith.truncf %30 : vector<64x128xf32> to vector<64x128xbf16>
    %c0_15 = arith.constant 0 : index
    %c0_16 = arith.constant 0 : index
    %c0_17 = arith.constant 0 : index
    %32 = vector.load %arg5[%c0_15, %c0_16, %c0_17] : memref<16x128x32xbf16, #tpu.memory_space<vmem>>, vector<1x128x32xbf16>
    %33 = vector.shape_cast %32 : vector<1x128x32xbf16> to vector<128x32xbf16>
    %cst_18 = arith.constant dense<0.000000e+00> : vector<64x32xf32>
    %34 = tpu.matmul %31, %33, %cst_18 {dimension_numbers = #tpu.dot_dimension_numbers<[1], [0], [0], [1], [0, 0, 1, 1], [], []>} : vector<64x128xbf16>, vector<128x32xbf16>, vector<64x32xf32> -> vector<64x32xf32>
    %c1 = arith.constant 1 : index
    %c0_19 = arith.constant 0 : index
    %c0_20 = arith.constant 0 : index
    %35 = vector.load %arg5[%c1, %c0_19, %c0_20] : memref<16x128x32xbf16, #tpu.memory_space<vmem>>, vector<1x128x32xbf16>
    %36 = vector.shape_cast %35 : vector<1x128x32xbf16> to vector<128x32xbf16>
    %cst_21 = arith.constant dense<0.000000e+00> : vector<64x32xf32>
    %37 = tpu.matmul %31, %36, %cst_21 {dimension_numbers = #tpu.dot_dimension_numbers<[1], [0], [0], [1], [0, 0, 1, 1], [], []>} : vector<64x128xbf16>, vector<128x32xbf16>, vector<64x32xf32> -> vector<64x32xf32>
    %c2 = arith.constant 2 : index
    %c0_22 = arith.constant 0 : index
    %c0_23 = arith.constant 0 : index
    %38 = vector.load %arg5[%c2, %c0_22, %c0_23] : memref<16x128x32xbf16, #tpu.memory_space<vmem>>, vector<1x128x32xbf16>
    %39 = vector.shape_cast %38 : vector<1x128x32xbf16> to vector<128x32xbf16>
    %cst_24 = arith.constant dense<0.000000e+00> : vector<64x32xf32>
    %40 = tpu.matmul %31, %39, %cst_24 {dimension_numbers = #tpu.dot_dimension_numbers<[1], [0], [0], [1], [0, 0, 1, 1], [], []>} : vector<64x128xbf16>, vector<128x32xbf16>, vector<64x32xf32> -> vector<64x32xf32>
    %c3 = arith.constant 3 : index
    %c0_25 = arith.constant 0 : index
    %c0_26 = arith.constant 0 : index
    %41 = vector.load %arg5[%c3, %c0_25, %c0_26] : memref<16x128x32xbf16, #tpu.memory_space<vmem>>, vector<1x128x32xbf16>
    %42 = vector.shape_cast %41 : vector<1x128x32xbf16> to vector<128x32xbf16>
    %cst_27 = arith.constant dense<0.000000e+00> : vector<64x32xf32>
    %43 = tpu.matmul %31, %42, %cst_27 {dimension_numbers = #tpu.dot_dimension_numbers<[1], [0], [0], [1], [0, 0, 1, 1], [], []>} : vector<64x128xbf16>, vector<128x32xbf16>, vector<64x32xf32> -> vector<64x32xf32>
    %c4 = arith.constant 4 : index
    %c0_28 = arith.constant 0 : index
    %c0_29 = arith.constant 0 : index
    %44 = vector.load %arg5[%c4, %c0_28, %c0_29] : memref<16x128x32xbf16, #tpu.memory_space<vmem>>, vector<1x128x32xbf16>
    %45 = vector.shape_cast %44 : vector<1x128x32xbf16> to vector<128x32xbf16>
    %cst_30 = arith.constant dense<0.000000e+00> : vector<64x32xf32>
    %46 = tpu.matmul %31, %45, %cst_30 {dimension_numbers = #tpu.dot_dimension_numbers<[1], [0], [0], [1], [0, 0, 1, 1], [], []>} : vector<64x128xbf16>, vector<128x32xbf16>, vector<64x32xf32> -> vector<64x32xf32>
    %c5 = arith.constant 5 : index
    %c0_31 = arith.constant 0 : index
    %c0_32 = arith.constant 0 : index
    %47 = vector.load %arg5[%c5, %c0_31, %c0_32] : memref<16x128x32xbf16, #tpu.memory_space<vmem>>, vector<1x128x32xbf16>
    %48 = vector.shape_cast %47 : vector<1x128x32xbf16> to vector<128x32xbf16>
    %cst_33 = arith.constant dense<0.000000e+00> : vector<64x32xf32>
    %49 = tpu.matmul %31, %48, %cst_33 {dimension_numbers = #tpu.dot_dimension_numbers<[1], [0], [0], [1], [0, 0, 1, 1], [], []>} : vector<64x128xbf16>, vector<128x32xbf16>, vector<64x32xf32> -> vector<64x32xf32>
    %c6 = arith.constant 6 : index
    %c0_34 = arith.constant 0 : index
    %c0_35 = arith.constant 0 : index
    %50 = vector.load %arg5[%c6, %c0_34, %c0_35] : memref<16x128x32xbf16, #tpu.memory_space<vmem>>, vector<1x128x32xbf16>
    %51 = vector.shape_cast %50 : vector<1x128x32xbf16> to vector<128x32xbf16>
    %cst_36 = arith.constant dense<0.000000e+00> : vector<64x32xf32>
    %52 = tpu.matmul %31, %51, %cst_36 {dimension_numbers = #tpu.dot_dimension_numbers<[1], [0], [0], [1], [0, 0, 1, 1], [], []>} : vector<64x128xbf16>, vector<128x32xbf16>, vector<64x32xf32> -> vector<64x32xf32>
    %c7 = arith.constant 7 : index
    %c0_37 = arith.constant 0 : index
    %c0_38 = arith.constant 0 : index
    %53 = vector.load %arg5[%c7, %c0_37, %c0_38] : memref<16x128x32xbf16, #tpu.memory_space<vmem>>, vector<1x128x32xbf16>
    %54 = vector.shape_cast %53 : vector<1x128x32xbf16> to vector<128x32xbf16>
    %cst_39 = arith.constant dense<0.000000e+00> : vector<64x32xf32>
    %55 = tpu.matmul %31, %54, %cst_39 {dimension_numbers = #tpu.dot_dimension_numbers<[1], [0], [0], [1], [0, 0, 1, 1], [], []>} : vector<64x128xbf16>, vector<128x32xbf16>, vector<64x32xf32> -> vector<64x32xf32>
    %c8 = arith.constant 8 : index
    %c0_40 = arith.constant 0 : index
    %c0_41 = arith.constant 0 : index
    %56 = vector.load %arg5[%c8, %c0_40, %c0_41] : memref<16x128x32xbf16, #tpu.memory_space<vmem>>, vector<1x128x32xbf16>
    %57 = vector.shape_cast %56 : vector<1x128x32xbf16> to vector<128x32xbf16>
    %cst_42 = arith.constant dense<0.000000e+00> : vector<64x32xf32>
    %58 = tpu.matmul %31, %57, %cst_42 {dimension_numbers = #tpu.dot_dimension_numbers<[1], [0], [0], [1], [0, 0, 1, 1], [], []>} : vector<64x128xbf16>, vector<128x32xbf16>, vector<64x32xf32> -> vector<64x32xf32>
    %c9 = arith.constant 9 : index
    %c0_43 = arith.constant 0 : index
    %c0_44 = arith.constant 0 : index
    %59 = vector.load %arg5[%c9, %c0_43, %c0_44] : memref<16x128x32xbf16, #tpu.memory_space<vmem>>, vector<1x128x32xbf16>
    %60 = vector.shape_cast %59 : vector<1x128x32xbf16> to vector<128x32xbf16>
    %cst_45 = arith.constant dense<0.000000e+00> : vector<64x32xf32>
    %61 = tpu.matmul %31, %60, %cst_45 {dimension_numbers = #tpu.dot_dimension_numbers<[1], [0], [0], [1], [0, 0, 1, 1], [], []>} : vector<64x128xbf16>, vector<128x32xbf16>, vector<64x32xf32> -> vector<64x32xf32>
    %c10 = arith.constant 10 : index
    %c0_46 = arith.constant 0 : index
    %c0_47 = arith.constant 0 : index
    %62 = vector.load %arg5[%c10, %c0_46, %c0_47] : memref<16x128x32xbf16, #tpu.memory_space<vmem>>, vector<1x128x32xbf16>
    %63 = vector.shape_cast %62 : vector<1x128x32xbf16> to vector<128x32xbf16>
    %cst_48 = arith.constant dense<0.000000e+00> : vector<64x32xf32>
    %64 = tpu.matmul %31, %63, %cst_48 {dimension_numbers = #tpu.dot_dimension_numbers<[1], [0], [0], [1], [0, 0, 1, 1], [], []>} : vector<64x128xbf16>, vector<128x32xbf16>, vector<64x32xf32> -> vector<64x32xf32>
    %c11 = arith.constant 11 : index
    %c0_49 = arith.constant 0 : index
    %c0_50 = arith.constant 0 : index
    %65 = vector.load %arg5[%c11, %c0_49, %c0_50] : memref<16x128x32xbf16, #tpu.memory_space<vmem>>, vector<1x128x32xbf16>
    %66 = vector.shape_cast %65 : vector<1x128x32xbf16> to vector<128x32xbf16>
    %cst_51 = arith.constant dense<0.000000e+00> : vector<64x32xf32>
    %67 = tpu.matmul %31, %66, %cst_51 {dimension_numbers = #tpu.dot_dimension_numbers<[1], [0], [0], [1], [0, 0, 1, 1], [], []>} : vector<64x128xbf16>, vector<128x32xbf16>, vector<64x32xf32> -> vector<64x32xf32>
    %c12 = arith.constant 12 : index
    %c0_52 = arith.constant 0 : index
    %c0_53 = arith.constant 0 : index
    %68 = vector.load %arg5[%c12, %c0_52, %c0_53] : memref<16x128x32xbf16, #tpu.memory_space<vmem>>, vector<1x128x32xbf16>
    %69 = vector.shape_cast %68 : vector<1x128x32xbf16> to vector<128x32xbf16>
    %cst_54 = arith.constant dense<0.000000e+00> : vector<64x32xf32>
    %70 = tpu.matmul %31, %69, %cst_54 {dimension_numbers = #tpu.dot_dimension_numbers<[1], [0], [0], [1], [0, 0, 1, 1], [], []>} : vector<64x128xbf16>, vector<128x32xbf16>, vector<64x32xf32> -> vector<64x32xf32>
    %c13 = arith.constant 13 : index
    %c0_55 = arith.constant 0 : index
    %c0_56 = arith.constant 0 : index
    %71 = vector.load %arg5[%c13, %c0_55, %c0_56] : memref<16x128x32xbf16, #tpu.memory_space<vmem>>, vector<1x128x32xbf16>
    %72 = vector.shape_cast %71 : vector<1x128x32xbf16> to vector<128x32xbf16>
    %cst_57 = arith.constant dense<0.000000e+00> : vector<64x32xf32>
    %73 = tpu.matmul %31, %72, %cst_57 {dimension_numbers = #tpu.dot_dimension_numbers<[1], [0], [0], [1], [0, 0, 1, 1], [], []>} : vector<64x128xbf16>, vector<128x32xbf16>, vector<64x32xf32> -> vector<64x32xf32>
    %c14 = arith.constant 14 : index
    %c0_58 = arith.constant 0 : index
    %c0_59 = arith.constant 0 : index
    %74 = vector.load %arg5[%c14, %c0_58, %c0_59] : memref<16x128x32xbf16, #tpu.memory_space<vmem>>, vector<1x128x32xbf16>
    %75 = vector.shape_cast %74 : vector<1x128x32xbf16> to vector<128x32xbf16>
    %cst_60 = arith.constant dense<0.000000e+00> : vector<64x32xf32>
    %76 = tpu.matmul %31, %75, %cst_60 {dimension_numbers = #tpu.dot_dimension_numbers<[1], [0], [0], [1], [0, 0, 1, 1], [], []>} : vector<64x128xbf16>, vector<128x32xbf16>, vector<64x32xf32> -> vector<64x32xf32>
    %c15 = arith.constant 15 : index
    %c0_61 = arith.constant 0 : index
    %c0_62 = arith.constant 0 : index
    %77 = vector.load %arg5[%c15, %c0_61, %c0_62] : memref<16x128x32xbf16, #tpu.memory_space<vmem>>, vector<1x128x32xbf16>
    %78 = vector.shape_cast %77 : vector<1x128x32xbf16> to vector<128x32xbf16>
    %cst_63 = arith.constant dense<0.000000e+00> : vector<64x32xf32>
    %79 = tpu.matmul %31, %78, %cst_63 {dimension_numbers = #tpu.dot_dimension_numbers<[1], [0], [0], [1], [0, 0, 1, 1], [], []>} : vector<64x128xbf16>, vector<128x32xbf16>, vector<64x32xf32> -> vector<64x32xf32>
    %80 = tpu.concatenate %34, %37, %40, %43, %46, %49, %52, %55, %58, %61, %64, %67, %70, %73, %76, %79 in 0 : vector<64x32xf32>, vector<64x32xf32>, vector<64x32xf32>, vector<64x32xf32>, vector<64x32xf32>, vector<64x32xf32>, vector<64x32xf32>, vector<64x32xf32>, vector<64x32xf32>, vector<64x32xf32>, vector<64x32xf32>, vector<64x32xf32>, vector<64x32xf32>, vector<64x32xf32>, vector<64x32xf32>, vector<64x32xf32> -> vector<1024x32xf32>
    %81 = arith.truncf %80 : vector<1024x32xf32> to vector<1024x32xbf16>
    %c0_64 = arith.constant 0 : index
    %c0_65 = arith.constant 0 : index
    %82 = vector.load %arg6[%c0_64, %c0_65] : memref<64x1024xbf16, #tpu.memory_space<vmem>>, vector<64x1024xbf16>
    %cst_66 = arith.constant dense<0.000000e+00> : vector<64x32xf32>
    %83 = tpu.matmul %82, %81, %cst_66 {dimension_numbers = #tpu.dot_dimension_numbers<[1], [0], [0], [1], [0, 0, 1, 1], [], []>} : vector<64x1024xbf16>, vector<1024x32xbf16>, vector<64x32xf32> -> vector<64x32xf32>
    %c0_67 = arith.constant 0 : index
    %c0_68 = arith.constant 0 : index
    %84 = vector.load %arg7[%c0_67, %c0_68] : memref<64x1xf32, #tpu.memory_space<vmem>>, vector<64x1xf32>
    %c0_69 = arith.constant 0 : index
    %c0_70 = arith.constant 0 : index
    %85 = vector.load %arg8[%c0_69, %c0_70] : memref<64x1xf32, #tpu.memory_space<vmem>>, vector<64x1xf32>
    %c0_71 = arith.constant 0 : index
    %c0_72 = arith.constant 0 : index
    %86 = vector.load %arg9[%c0_71, %c0_72] : memref<64x1xf32, #tpu.memory_space<vmem>>, vector<64x1xf32>
    %87 = vector.broadcast %84 : vector<64x1xf32> to vector<64x32xf32>
    %88 = arith.addf %83, %87 : vector<64x32xf32>
    %cst_73 = arith.constant 0.000000e+00 : f32
    %89 = vector.broadcast %cst_73 : f32 to vector<64x32xf32>
    %90 = arith.maximumf %88, %89 : vector<64x32xf32>
    %cst_74 = arith.constant dense<0.000000e+00> : vector<64xf32>
    %91 = vector.multi_reduction <add>, %90, %cst_74 [1] : vector<64x32xf32> to vector<64xf32>
    %92 = vector.shape_cast %91 : vector<64xf32> to vector<64x1xf32>
    %cst_75 = arith.constant 3.125000e-02 : f32
    %93 = vector.broadcast %cst_75 : f32 to vector<64x1xf32>
    %94 = arith.mulf %92, %93 : vector<64x1xf32>
    %95 = vector.broadcast %94 : vector<64x1xf32> to vector<64x32xf32>
    %96 = arith.subf %90, %95 : vector<64x32xf32>
    %97 = arith.mulf %96, %96 : vector<64x32xf32>
    %cst_76 = arith.constant dense<0.000000e+00> : vector<64xf32>
    %98 = vector.multi_reduction <add>, %97, %cst_76 [1] : vector<64x32xf32> to vector<64xf32>
    %99 = vector.shape_cast %98 : vector<64xf32> to vector<64x1xf32>
    %cst_77 = arith.constant 3.125000e-02 : f32
    %100 = vector.broadcast %cst_77 : f32 to vector<64x1xf32>
    %101 = arith.mulf %99, %100 : vector<64x1xf32>
    %cst_78 = arith.constant 9.99999974E-6 : f32
    %102 = vector.broadcast %cst_78 : f32 to vector<64x1xf32>
    %103 = arith.addf %101, %102 : vector<64x1xf32>
    %104 = math.rsqrt %103 : vector<64x1xf32>
    %105 = arith.mulf %85, %104 : vector<64x1xf32>
    %106 = arith.mulf %94, %105 : vector<64x1xf32>
    %107 = arith.subf %86, %106 : vector<64x1xf32>
    %108 = vector.broadcast %105 : vector<64x1xf32> to vector<64x32xf32>
    %109 = arith.mulf %90, %108 : vector<64x32xf32>
    %110 = vector.broadcast %107 : vector<64x1xf32> to vector<64x32xf32>
    %111 = arith.addf %109, %110 : vector<64x32xf32>
    %112 = arith.truncf %111 : vector<64x32xf32> to vector<64x32xbf16>
    %c0_79 = arith.constant 0 : index
    %c0_80 = arith.constant 0 : index
    %113 = vector.load %arg10[%c0_79, %c0_80] : memref<1024x64xbf16, #tpu.memory_space<vmem>>, vector<1024x64xbf16>
    %cst_81 = arith.constant dense<0.000000e+00> : vector<1024x32xf32>
    %114 = tpu.matmul %113, %112, %cst_81 {dimension_numbers = #tpu.dot_dimension_numbers<[1], [0], [0], [1], [0, 0, 1, 1], [], []>} : vector<1024x64xbf16>, vector<64x32xbf16>, vector<1024x32xf32> -> vector<1024x32xf32>
    %115 = arith.truncf %114 : vector<1024x32xf32> to vector<1024x32xbf16>
    %116 = vector.extract_strided_slice %115 {offsets = [0, 0], sizes = [64, 32], strides = [1, 1]} : vector<1024x32xbf16> to vector<64x32xbf16>
    %c0_82 = arith.constant 0 : index
    %c0_83 = arith.constant 0 : index
    %c0_84 = arith.constant 0 : index
    %117 = vector.load %arg11[%c0_82, %c0_83, %c0_84] : memref<16x32x128xbf16, #tpu.memory_space<vmem>>, vector<1x32x128xbf16>
    %118 = vector.shape_cast %117 : vector<1x32x128xbf16> to vector<32x128xbf16>
    %cst_85 = arith.constant dense<0.000000e+00> : vector<64x128xf32>
    %119 = tpu.matmul %116, %118, %cst_85 {dimension_numbers = #tpu.dot_dimension_numbers<[1], [0], [0], [1], [0, 0, 1, 1], [], []>} : vector<64x32xbf16>, vector<32x128xbf16>, vector<64x128xf32> -> vector<64x128xf32>
    %120 = vector.extract_strided_slice %115 {offsets = [64, 0], sizes = [64, 32], strides = [1, 1]} : vector<1024x32xbf16> to vector<64x32xbf16>
    %c1_86 = arith.constant 1 : index
    %c0_87 = arith.constant 0 : index
    %c0_88 = arith.constant 0 : index
    %121 = vector.load %arg11[%c1_86, %c0_87, %c0_88] : memref<16x32x128xbf16, #tpu.memory_space<vmem>>, vector<1x32x128xbf16>
    %122 = vector.shape_cast %121 : vector<1x32x128xbf16> to vector<32x128xbf16>
    %cst_89 = arith.constant dense<0.000000e+00> : vector<64x128xf32>
    %123 = tpu.matmul %120, %122, %cst_89 {dimension_numbers = #tpu.dot_dimension_numbers<[1], [0], [0], [1], [0, 0, 1, 1], [], []>} : vector<64x32xbf16>, vector<32x128xbf16>, vector<64x128xf32> -> vector<64x128xf32>
    %124 = arith.addf %119, %123 : vector<64x128xf32>
    %125 = vector.extract_strided_slice %115 {offsets = [128, 0], sizes = [64, 32], strides = [1, 1]} : vector<1024x32xbf16> to vector<64x32xbf16>
    %c2_90 = arith.constant 2 : index
    %c0_91 = arith.constant 0 : index
    %c0_92 = arith.constant 0 : index
    %126 = vector.load %arg11[%c2_90, %c0_91, %c0_92] : memref<16x32x128xbf16, #tpu.memory_space<vmem>>, vector<1x32x128xbf16>
    %127 = vector.shape_cast %126 : vector<1x32x128xbf16> to vector<32x128xbf16>
    %cst_93 = arith.constant dense<0.000000e+00> : vector<64x128xf32>
    %128 = tpu.matmul %125, %127, %cst_93 {dimension_numbers = #tpu.dot_dimension_numbers<[1], [0], [0], [1], [0, 0, 1, 1], [], []>} : vector<64x32xbf16>, vector<32x128xbf16>, vector<64x128xf32> -> vector<64x128xf32>
    %129 = arith.addf %124, %128 : vector<64x128xf32>
    %130 = vector.extract_strided_slice %115 {offsets = [192, 0], sizes = [64, 32], strides = [1, 1]} : vector<1024x32xbf16> to vector<64x32xbf16>
    %c3_94 = arith.constant 3 : index
    %c0_95 = arith.constant 0 : index
    %c0_96 = arith.constant 0 : index
    %131 = vector.load %arg11[%c3_94, %c0_95, %c0_96] : memref<16x32x128xbf16, #tpu.memory_space<vmem>>, vector<1x32x128xbf16>
    %132 = vector.shape_cast %131 : vector<1x32x128xbf16> to vector<32x128xbf16>
    %cst_97 = arith.constant dense<0.000000e+00> : vector<64x128xf32>
    %133 = tpu.matmul %130, %132, %cst_97 {dimension_numbers = #tpu.dot_dimension_numbers<[1], [0], [0], [1], [0, 0, 1, 1], [], []>} : vector<64x32xbf16>, vector<32x128xbf16>, vector<64x128xf32> -> vector<64x128xf32>
    %134 = arith.addf %129, %133 : vector<64x128xf32>
    %135 = vector.extract_strided_slice %115 {offsets = [256, 0], sizes = [64, 32], strides = [1, 1]} : vector<1024x32xbf16> to vector<64x32xbf16>
    %c4_98 = arith.constant 4 : index
    %c0_99 = arith.constant 0 : index
    %c0_100 = arith.constant 0 : index
    %136 = vector.load %arg11[%c4_98, %c0_99, %c0_100] : memref<16x32x128xbf16, #tpu.memory_space<vmem>>, vector<1x32x128xbf16>
    %137 = vector.shape_cast %136 : vector<1x32x128xbf16> to vector<32x128xbf16>
    %cst_101 = arith.constant dense<0.000000e+00> : vector<64x128xf32>
    %138 = tpu.matmul %135, %137, %cst_101 {dimension_numbers = #tpu.dot_dimension_numbers<[1], [0], [0], [1], [0, 0, 1, 1], [], []>} : vector<64x32xbf16>, vector<32x128xbf16>, vector<64x128xf32> -> vector<64x128xf32>
    %139 = arith.addf %134, %138 : vector<64x128xf32>
    %140 = vector.extract_strided_slice %115 {offsets = [320, 0], sizes = [64, 32], strides = [1, 1]} : vector<1024x32xbf16> to vector<64x32xbf16>
    %c5_102 = arith.constant 5 : index
    %c0_103 = arith.constant 0 : index
    %c0_104 = arith.constant 0 : index
    %141 = vector.load %arg11[%c5_102, %c0_103, %c0_104] : memref<16x32x128xbf16, #tpu.memory_space<vmem>>, vector<1x32x128xbf16>
    %142 = vector.shape_cast %141 : vector<1x32x128xbf16> to vector<32x128xbf16>
    %cst_105 = arith.constant dense<0.000000e+00> : vector<64x128xf32>
    %143 = tpu.matmul %140, %142, %cst_105 {dimension_numbers = #tpu.dot_dimension_numbers<[1], [0], [0], [1], [0, 0, 1, 1], [], []>} : vector<64x32xbf16>, vector<32x128xbf16>, vector<64x128xf32> -> vector<64x128xf32>
    %144 = arith.addf %139, %143 : vector<64x128xf32>
    %145 = vector.extract_strided_slice %115 {offsets = [384, 0], sizes = [64, 32], strides = [1, 1]} : vector<1024x32xbf16> to vector<64x32xbf16>
    %c6_106 = arith.constant 6 : index
    %c0_107 = arith.constant 0 : index
    %c0_108 = arith.constant 0 : index
    %146 = vector.load %arg11[%c6_106, %c0_107, %c0_108] : memref<16x32x128xbf16, #tpu.memory_space<vmem>>, vector<1x32x128xbf16>
    %147 = vector.shape_cast %146 : vector<1x32x128xbf16> to vector<32x128xbf16>
    %cst_109 = arith.constant dense<0.000000e+00> : vector<64x128xf32>
    %148 = tpu.matmul %145, %147, %cst_109 {dimension_numbers = #tpu.dot_dimension_numbers<[1], [0], [0], [1], [0, 0, 1, 1], [], []>} : vector<64x32xbf16>, vector<32x128xbf16>, vector<64x128xf32> -> vector<64x128xf32>
    %149 = arith.addf %144, %148 : vector<64x128xf32>
    %150 = vector.extract_strided_slice %115 {offsets = [448, 0], sizes = [64, 32], strides = [1, 1]} : vector<1024x32xbf16> to vector<64x32xbf16>
    %c7_110 = arith.constant 7 : index
    %c0_111 = arith.constant 0 : index
    %c0_112 = arith.constant 0 : index
    %151 = vector.load %arg11[%c7_110, %c0_111, %c0_112] : memref<16x32x128xbf16, #tpu.memory_space<vmem>>, vector<1x32x128xbf16>
    %152 = vector.shape_cast %151 : vector<1x32x128xbf16> to vector<32x128xbf16>
    %cst_113 = arith.constant dense<0.000000e+00> : vector<64x128xf32>
    %153 = tpu.matmul %150, %152, %cst_113 {dimension_numbers = #tpu.dot_dimension_numbers<[1], [0], [0], [1], [0, 0, 1, 1], [], []>} : vector<64x32xbf16>, vector<32x128xbf16>, vector<64x128xf32> -> vector<64x128xf32>
    %154 = arith.addf %149, %153 : vector<64x128xf32>
    %155 = vector.extract_strided_slice %115 {offsets = [512, 0], sizes = [64, 32], strides = [1, 1]} : vector<1024x32xbf16> to vector<64x32xbf16>
    %c8_114 = arith.constant 8 : index
    %c0_115 = arith.constant 0 : index
    %c0_116 = arith.constant 0 : index
    %156 = vector.load %arg11[%c8_114, %c0_115, %c0_116] : memref<16x32x128xbf16, #tpu.memory_space<vmem>>, vector<1x32x128xbf16>
    %157 = vector.shape_cast %156 : vector<1x32x128xbf16> to vector<32x128xbf16>
    %cst_117 = arith.constant dense<0.000000e+00> : vector<64x128xf32>
    %158 = tpu.matmul %155, %157, %cst_117 {dimension_numbers = #tpu.dot_dimension_numbers<[1], [0], [0], [1], [0, 0, 1, 1], [], []>} : vector<64x32xbf16>, vector<32x128xbf16>, vector<64x128xf32> -> vector<64x128xf32>
    %159 = arith.addf %154, %158 : vector<64x128xf32>
    %160 = vector.extract_strided_slice %115 {offsets = [576, 0], sizes = [64, 32], strides = [1, 1]} : vector<1024x32xbf16> to vector<64x32xbf16>
    %c9_118 = arith.constant 9 : index
    %c0_119 = arith.constant 0 : index
    %c0_120 = arith.constant 0 : index
    %161 = vector.load %arg11[%c9_118, %c0_119, %c0_120] : memref<16x32x128xbf16, #tpu.memory_space<vmem>>, vector<1x32x128xbf16>
    %162 = vector.shape_cast %161 : vector<1x32x128xbf16> to vector<32x128xbf16>
    %cst_121 = arith.constant dense<0.000000e+00> : vector<64x128xf32>
    %163 = tpu.matmul %160, %162, %cst_121 {dimension_numbers = #tpu.dot_dimension_numbers<[1], [0], [0], [1], [0, 0, 1, 1], [], []>} : vector<64x32xbf16>, vector<32x128xbf16>, vector<64x128xf32> -> vector<64x128xf32>
    %164 = arith.addf %159, %163 : vector<64x128xf32>
    %165 = vector.extract_strided_slice %115 {offsets = [640, 0], sizes = [64, 32], strides = [1, 1]} : vector<1024x32xbf16> to vector<64x32xbf16>
    %c10_122 = arith.constant 10 : index
    %c0_123 = arith.constant 0 : index
    %c0_124 = arith.constant 0 : index
    %166 = vector.load %arg11[%c10_122, %c0_123, %c0_124] : memref<16x32x128xbf16, #tpu.memory_space<vmem>>, vector<1x32x128xbf16>
    %167 = vector.shape_cast %166 : vector<1x32x128xbf16> to vector<32x128xbf16>
    %cst_125 = arith.constant dense<0.000000e+00> : vector<64x128xf32>
    %168 = tpu.matmul %165, %167, %cst_125 {dimension_numbers = #tpu.dot_dimension_numbers<[1], [0], [0], [1], [0, 0, 1, 1], [], []>} : vector<64x32xbf16>, vector<32x128xbf16>, vector<64x128xf32> -> vector<64x128xf32>
    %169 = arith.addf %164, %168 : vector<64x128xf32>
    %170 = vector.extract_strided_slice %115 {offsets = [704, 0], sizes = [64, 32], strides = [1, 1]} : vector<1024x32xbf16> to vector<64x32xbf16>
    %c11_126 = arith.constant 11 : index
    %c0_127 = arith.constant 0 : index
    %c0_128 = arith.constant 0 : index
    %171 = vector.load %arg11[%c11_126, %c0_127, %c0_128] : memref<16x32x128xbf16, #tpu.memory_space<vmem>>, vector<1x32x128xbf16>
    %172 = vector.shape_cast %171 : vector<1x32x128xbf16> to vector<32x128xbf16>
    %cst_129 = arith.constant dense<0.000000e+00> : vector<64x128xf32>
    %173 = tpu.matmul %170, %172, %cst_129 {dimension_numbers = #tpu.dot_dimension_numbers<[1], [0], [0], [1], [0, 0, 1, 1], [], []>} : vector<64x32xbf16>, vector<32x128xbf16>, vector<64x128xf32> -> vector<64x128xf32>
    %174 = arith.addf %169, %173 : vector<64x128xf32>
    %175 = vector.extract_strided_slice %115 {offsets = [768, 0], sizes = [64, 32], strides = [1, 1]} : vector<1024x32xbf16> to vector<64x32xbf16>
    %c12_130 = arith.constant 12 : index
    %c0_131 = arith.constant 0 : index
    %c0_132 = arith.constant 0 : index
    %176 = vector.load %arg11[%c12_130, %c0_131, %c0_132] : memref<16x32x128xbf16, #tpu.memory_space<vmem>>, vector<1x32x128xbf16>
    %177 = vector.shape_cast %176 : vector<1x32x128xbf16> to vector<32x128xbf16>
    %cst_133 = arith.constant dense<0.000000e+00> : vector<64x128xf32>
    %178 = tpu.matmul %175, %177, %cst_133 {dimension_numbers = #tpu.dot_dimension_numbers<[1], [0], [0], [1], [0, 0, 1, 1], [], []>} : vector<64x32xbf16>, vector<32x128xbf16>, vector<64x128xf32> -> vector<64x128xf32>
    %179 = arith.addf %174, %178 : vector<64x128xf32>
    %180 = vector.extract_strided_slice %115 {offsets = [832, 0], sizes = [64, 32], strides = [1, 1]} : vector<1024x32xbf16> to vector<64x32xbf16>
    %c13_134 = arith.constant 13 : index
    %c0_135 = arith.constant 0 : index
    %c0_136 = arith.constant 0 : index
    %181 = vector.load %arg11[%c13_134, %c0_135, %c0_136] : memref<16x32x128xbf16, #tpu.memory_space<vmem>>, vector<1x32x128xbf16>
    %182 = vector.shape_cast %181 : vector<1x32x128xbf16> to vector<32x128xbf16>
    %cst_137 = arith.constant dense<0.000000e+00> : vector<64x128xf32>
    %183 = tpu.matmul %180, %182, %cst_137 {dimension_numbers = #tpu.dot_dimension_numbers<[1], [0], [0], [1], [0, 0, 1, 1], [], []>} : vector<64x32xbf16>, vector<32x128xbf16>, vector<64x128xf32> -> vector<64x128xf32>
    %184 = arith.addf %179, %183 : vector<64x128xf32>
    %185 = vector.extract_strided_slice %115 {offsets = [896, 0], sizes = [64, 32], strides = [1, 1]} : vector<1024x32xbf16> to vector<64x32xbf16>
    %c14_138 = arith.constant 14 : index
    %c0_139 = arith.constant 0 : index
    %c0_140 = arith.constant 0 : index
    %186 = vector.load %arg11[%c14_138, %c0_139, %c0_140] : memref<16x32x128xbf16, #tpu.memory_space<vmem>>, vector<1x32x128xbf16>
    %187 = vector.shape_cast %186 : vector<1x32x128xbf16> to vector<32x128xbf16>
    %cst_141 = arith.constant dense<0.000000e+00> : vector<64x128xf32>
    %188 = tpu.matmul %185, %187, %cst_141 {dimension_numbers = #tpu.dot_dimension_numbers<[1], [0], [0], [1], [0, 0, 1, 1], [], []>} : vector<64x32xbf16>, vector<32x128xbf16>, vector<64x128xf32> -> vector<64x128xf32>
    %189 = arith.addf %184, %188 : vector<64x128xf32>
    %190 = vector.extract_strided_slice %115 {offsets = [960, 0], sizes = [64, 32], strides = [1, 1]} : vector<1024x32xbf16> to vector<64x32xbf16>
    %c15_142 = arith.constant 15 : index
    %c0_143 = arith.constant 0 : index
    %c0_144 = arith.constant 0 : index
    %191 = vector.load %arg11[%c15_142, %c0_143, %c0_144] : memref<16x32x128xbf16, #tpu.memory_space<vmem>>, vector<1x32x128xbf16>
    %192 = vector.shape_cast %191 : vector<1x32x128xbf16> to vector<32x128xbf16>
    %cst_145 = arith.constant dense<0.000000e+00> : vector<64x128xf32>
    %193 = tpu.matmul %190, %192, %cst_145 {dimension_numbers = #tpu.dot_dimension_numbers<[1], [0], [0], [1], [0, 0, 1, 1], [], []>} : vector<64x32xbf16>, vector<32x128xbf16>, vector<64x128xf32> -> vector<64x128xf32>
    %194 = arith.addf %189, %193 : vector<64x128xf32>
    %c0_146 = arith.constant 0 : index
    %c0_147 = arith.constant 0 : index
    %195 = vector.load %arg12[%c0_146, %c0_147] : memref<64x1xf32, #tpu.memory_space<vmem>>, vector<64x1xf32>
    %c0_148 = arith.constant 0 : index
    %c0_149 = arith.constant 0 : index
    %196 = vector.load %arg13[%c0_148, %c0_149] : memref<64x1xf32, #tpu.memory_space<vmem>>, vector<64x1xf32>
    %c0_150 = arith.constant 0 : index
    %c0_151 = arith.constant 0 : index
    %197 = vector.load %arg14[%c0_150, %c0_151] : memref<64x1xf32, #tpu.memory_space<vmem>>, vector<64x1xf32>
    %198 = vector.broadcast %195 : vector<64x1xf32> to vector<64x128xf32>
    %199 = arith.addf %194, %198 : vector<64x128xf32>
    %cst_152 = arith.constant 0.000000e+00 : f32
    %200 = vector.broadcast %cst_152 : f32 to vector<64x128xf32>
    %201 = arith.maximumf %199, %200 : vector<64x128xf32>
    %cst_153 = arith.constant dense<0.000000e+00> : vector<64xf32>
    %202 = vector.multi_reduction <add>, %201, %cst_153 [1] : vector<64x128xf32> to vector<64xf32>
    %203 = vector.shape_cast %202 : vector<64xf32> to vector<64x1xf32>
    %cst_154 = arith.constant 7.812500e-03 : f32
    %204 = vector.broadcast %cst_154 : f32 to vector<64x1xf32>
    %205 = arith.mulf %203, %204 : vector<64x1xf32>
    %206 = vector.broadcast %205 : vector<64x1xf32> to vector<64x128xf32>
    %207 = arith.subf %201, %206 : vector<64x128xf32>
    %208 = arith.mulf %207, %207 : vector<64x128xf32>
    %cst_155 = arith.constant dense<0.000000e+00> : vector<64xf32>
    %209 = vector.multi_reduction <add>, %208, %cst_155 [1] : vector<64x128xf32> to vector<64xf32>
    %210 = vector.shape_cast %209 : vector<64xf32> to vector<64x1xf32>
    %cst_156 = arith.constant 7.812500e-03 : f32
    %211 = vector.broadcast %cst_156 : f32 to vector<64x1xf32>
    %212 = arith.mulf %210, %211 : vector<64x1xf32>
    %cst_157 = arith.constant 9.99999974E-6 : f32
    %213 = vector.broadcast %cst_157 : f32 to vector<64x1xf32>
    %214 = arith.addf %212, %213 : vector<64x1xf32>
    %215 = math.rsqrt %214 : vector<64x1xf32>
    %216 = arith.mulf %196, %215 : vector<64x1xf32>
    %217 = arith.mulf %205, %216 : vector<64x1xf32>
    %218 = arith.subf %197, %217 : vector<64x1xf32>
    %219 = vector.broadcast %216 : vector<64x1xf32> to vector<64x128xf32>
    %220 = arith.mulf %201, %219 : vector<64x128xf32>
    %221 = vector.broadcast %218 : vector<64x1xf32> to vector<64x128xf32>
    %222 = arith.addf %220, %221 : vector<64x128xf32>
    %223 = arith.truncf %222 : vector<64x128xf32> to vector<64x128xbf16>
    %c0_158 = arith.constant 0 : index
    %c0_159 = arith.constant 0 : index
    %224 = vector.load %arg15[%c0_158, %c0_159] : memref<16x64xbf16, #tpu.memory_space<vmem>>, vector<16x64xbf16>
    %cst_160 = arith.constant dense<0.000000e+00> : vector<16x128xf32>
    %225 = tpu.matmul %224, %223, %cst_160 {dimension_numbers = #tpu.dot_dimension_numbers<[1], [0], [0], [1], [0, 0, 1, 1], [], []>} : vector<16x64xbf16>, vector<64x128xbf16>, vector<16x128xf32> -> vector<16x128xf32>
    %226 = vector.extract_strided_slice %225 {offsets = [5, 0], sizes = [1, 128], strides = [1, 1]} : vector<16x128xf32> to vector<1x128xf32>
    %227 = vector.extract_strided_slice %225 {offsets = [7, 0], sizes = [1, 128], strides = [1, 1]} : vector<16x128xf32> to vector<1x128xf32>
    %228 = vector.extract_strided_slice %225 {offsets = [13, 0], sizes = [1, 128], strides = [1, 1]} : vector<16x128xf32> to vector<1x128xf32>
    %229 = vector.extract_strided_slice %225 {offsets = [15, 0], sizes = [1, 128], strides = [1, 1]} : vector<16x128xf32> to vector<1x128xf32>
    %230 = tpu.concatenate %226, %227, %228, %229 in 1 : vector<1x128xf32>, vector<1x128xf32>, vector<1x128xf32>, vector<1x128xf32> -> vector<1x512xf32>
    %231 = arith.truncf %230 : vector<1x512xf32> to vector<1x512xbf16>
    %c0_161 = arith.constant 0 : index
    %c0_162 = arith.constant 0 : index
    %c0_163 = arith.constant 0 : index
    %232 = vector.load %arg16[%c0_161, %c0_162, %c0_163] : memref<4x512x128xbf16, #tpu.memory_space<vmem>>, vector<1x512x128xbf16>
    %233 = vector.shape_cast %232 : vector<1x512x128xbf16> to vector<512x128xbf16>
    %cst_164 = arith.constant dense<0.000000e+00> : vector<1x128xf32>
    %234 = tpu.matmul %231, %233, %cst_164 {dimension_numbers = #tpu.dot_dimension_numbers<[1], [0], [0], [1], [0, 0, 1, 1], [], []>} : vector<1x512xbf16>, vector<512x128xbf16>, vector<1x128xf32> -> vector<1x128xf32>
    %235 = vector.extract_strided_slice %225 {offsets = [4, 0], sizes = [1, 128], strides = [1, 1]} : vector<16x128xf32> to vector<1x128xf32>
    %236 = vector.extract_strided_slice %225 {offsets = [6, 0], sizes = [1, 128], strides = [1, 1]} : vector<16x128xf32> to vector<1x128xf32>
    %237 = vector.extract_strided_slice %225 {offsets = [12, 0], sizes = [1, 128], strides = [1, 1]} : vector<16x128xf32> to vector<1x128xf32>
    %238 = vector.extract_strided_slice %225 {offsets = [14, 0], sizes = [1, 128], strides = [1, 1]} : vector<16x128xf32> to vector<1x128xf32>
    %239 = tpu.concatenate %235, %236, %237, %238 in 1 : vector<1x128xf32>, vector<1x128xf32>, vector<1x128xf32>, vector<1x128xf32> -> vector<1x512xf32>
    %240 = arith.truncf %239 : vector<1x512xf32> to vector<1x512xbf16>
    %c1_165 = arith.constant 1 : index
    %c0_166 = arith.constant 0 : index
    %c0_167 = arith.constant 0 : index
    %241 = vector.load %arg16[%c1_165, %c0_166, %c0_167] : memref<4x512x128xbf16, #tpu.memory_space<vmem>>, vector<1x512x128xbf16>
    %242 = vector.shape_cast %241 : vector<1x512x128xbf16> to vector<512x128xbf16>
    %cst_168 = arith.constant dense<0.000000e+00> : vector<1x128xf32>
    %243 = tpu.matmul %240, %242, %cst_168 {dimension_numbers = #tpu.dot_dimension_numbers<[1], [0], [0], [1], [0, 0, 1, 1], [], []>} : vector<1x512xbf16>, vector<512x128xbf16>, vector<1x128xf32> -> vector<1x128xf32>
    %244 = vector.extract_strided_slice %225 {offsets = [1, 0], sizes = [1, 128], strides = [1, 1]} : vector<16x128xf32> to vector<1x128xf32>
    %245 = vector.extract_strided_slice %225 {offsets = [3, 0], sizes = [1, 128], strides = [1, 1]} : vector<16x128xf32> to vector<1x128xf32>
    %246 = vector.extract_strided_slice %225 {offsets = [9, 0], sizes = [1, 128], strides = [1, 1]} : vector<16x128xf32> to vector<1x128xf32>
    %247 = vector.extract_strided_slice %225 {offsets = [11, 0], sizes = [1, 128], strides = [1, 1]} : vector<16x128xf32> to vector<1x128xf32>
    %248 = tpu.concatenate %244, %245, %246, %247 in 1 : vector<1x128xf32>, vector<1x128xf32>, vector<1x128xf32>, vector<1x128xf32> -> vector<1x512xf32>
    %249 = arith.truncf %248 : vector<1x512xf32> to vector<1x512xbf16>
    %c2_169 = arith.constant 2 : index
    %c0_170 = arith.constant 0 : index
    %c0_171 = arith.constant 0 : index
    %250 = vector.load %arg16[%c2_169, %c0_170, %c0_171] : memref<4x512x128xbf16, #tpu.memory_space<vmem>>, vector<1x512x128xbf16>
    %251 = vector.shape_cast %250 : vector<1x512x128xbf16> to vector<512x128xbf16>
    %cst_172 = arith.constant dense<0.000000e+00> : vector<1x128xf32>
    %252 = tpu.matmul %249, %251, %cst_172 {dimension_numbers = #tpu.dot_dimension_numbers<[1], [0], [0], [1], [0, 0, 1, 1], [], []>} : vector<1x512xbf16>, vector<512x128xbf16>, vector<1x128xf32> -> vector<1x128xf32>
    %253 = vector.extract_strided_slice %225 {offsets = [0, 0], sizes = [1, 128], strides = [1, 1]} : vector<16x128xf32> to vector<1x128xf32>
    %254 = vector.extract_strided_slice %225 {offsets = [2, 0], sizes = [1, 128], strides = [1, 1]} : vector<16x128xf32> to vector<1x128xf32>
    %255 = vector.extract_strided_slice %225 {offsets = [8, 0], sizes = [1, 128], strides = [1, 1]} : vector<16x128xf32> to vector<1x128xf32>
    %256 = vector.extract_strided_slice %225 {offsets = [10, 0], sizes = [1, 128], strides = [1, 1]} : vector<16x128xf32> to vector<1x128xf32>
    %257 = tpu.concatenate %253, %254, %255, %256 in 1 : vector<1x128xf32>, vector<1x128xf32>, vector<1x128xf32>, vector<1x128xf32> -> vector<1x512xf32>
    %258 = arith.truncf %257 : vector<1x512xf32> to vector<1x512xbf16>
    %c3_173 = arith.constant 3 : index
    %c0_174 = arith.constant 0 : index
    %c0_175 = arith.constant 0 : index
    %259 = vector.load %arg16[%c3_173, %c0_174, %c0_175] : memref<4x512x128xbf16, #tpu.memory_space<vmem>>, vector<1x512x128xbf16>
    %260 = vector.shape_cast %259 : vector<1x512x128xbf16> to vector<512x128xbf16>
    %cst_176 = arith.constant dense<0.000000e+00> : vector<1x128xf32>
    %261 = tpu.matmul %258, %260, %cst_176 {dimension_numbers = #tpu.dot_dimension_numbers<[1], [0], [0], [1], [0, 0, 1, 1], [], []>} : vector<1x512xbf16>, vector<512x128xbf16>, vector<1x128xf32> -> vector<1x128xf32>
    %262 = tpu.concatenate %234, %243, %252, %261 in 0 : vector<1x128xf32>, vector<1x128xf32>, vector<1x128xf32>, vector<1x128xf32> -> vector<4x128xf32>
    %c0_177 = arith.constant 0 : index
    %c0_178 = arith.constant 0 : index
    %263 = vector.load %arg17[%c0_177, %c0_178] : memref<1x1xf32, #tpu.memory_space<vmem>>, vector<1x1xf32>
    %264 = vector.broadcast %263 : vector<1x1xf32> to vector<4x128xf32>
    %265 = arith.addf %262, %264 : vector<4x128xf32>
    %266 = arith.negf %265 : vector<4x128xf32>
    %267 = math.exp %266 : vector<4x128xf32>
    %cst_179 = arith.constant 1.000000e+00 : f32
    %268 = vector.broadcast %cst_179 : f32 to vector<4x128xf32>
    %269 = arith.addf %268, %267 : vector<4x128xf32>
    %270 = arith.divf %268, %269 : vector<4x128xf32>
    %c0_180 = arith.constant 0 : index
    %c0_181 = arith.constant 0 : index
    %271 = vector.load %arg18[%c0_180, %c0_181] : memref<4x128xf32, #tpu.memory_space<vmem>>, vector<4x128xf32>
    tpu.vector_store %arg18[%c0_180, %c0_181], %270 {strides = array<i32>} : memref<4x128xf32, #tpu.memory_space<vmem>>, vector<4x128xf32>,
    return
  }
}

</mosaic_0001>

<llo_original>
// kernel: cnn_autoencoder_forward.1
$region0: #{cnn_autoencoder_forward.1}
  #allocation0 [shape = 'u32[]', space=smem, size = 0x4, offset = 0x4, fixed_abs, tag = 'smem constant byte address 0x4 - core index']
  #allocation1 [shape = 'u32[144,128]{1,0:T(1,128)}', space=vmem, size = 0x12000, scoped, tag = 'internal scratch']
  #allocation2 [shape = 'f32[1,1]{1,0:T(1,128)S(1)}', space=vmem, size = 0x200, scoped, tag = 'scoped memory for cnn_autoencoder_forward.1']
  %s0 = inlined_call_operand.vmem [shape: bf16[16,128], index: 0, kind: input, shape index: {}]
  %s1 = inlined_call_operand.vmem [shape: bf16[64,16], index: 1, kind: input, shape index: {}]
  %s2 = inlined_call_operand.vmem [shape: f32[64,1], index: 2, kind: input, shape index: {}]
  %s3 = inlined_call_operand.vmem [shape: f32[64,1], index: 3, kind: input, shape index: {}]
  %s4 = inlined_call_operand.vmem [shape: f32[64,1], index: 4, kind: input, shape index: {}]
  %s5 = inlined_call_operand.vmem [shape: bf16[16,128,32], index: 5, kind: input, shape index: {}]
  %s6 = inlined_call_operand.vmem [shape: bf16[64,1024], index: 6, kind: input, shape index: {}]
  %s7 = inlined_call_operand.vmem [shape: f32[64,1], index: 7, kind: input, shape index: {}]
  %s8 = inlined_call_operand.vmem [shape: f32[64,1], index: 8, kind: input, shape index: {}]
  %s9 = inlined_call_operand.vmem [shape: f32[64,1], index: 9, kind: input, shape index: {}]
  %s10 = inlined_call_operand.vmem [shape: bf16[1024,64], index: 10, kind: input, shape index: {}]
  %s11 = inlined_call_operand.vmem [shape: bf16[16,32,128], index: 11, kind: input, shape index: {}]
  %s12 = inlined_call_operand.vmem [shape: f32[64,1], index: 12, kind: input, shape index: {}]
  %s13 = inlined_call_operand.vmem [shape: f32[64,1], index: 13, kind: input, shape index: {}]
  %s14 = inlined_call_operand.vmem [shape: f32[64,1], index: 14, kind: input, shape index: {}]
  %s15 = inlined_call_operand.vmem [shape: bf16[16,64], index: 15, kind: input, shape index: {}]
  %s16 = inlined_call_operand.vmem [shape: bf16[4,512,128], index: 16, kind: input, shape index: {}]
  %s17 = inlined_call_operand.<no memory space> [shape: f32[1,1], index: 17, kind: input, shape index: {}]
  %s18 = inlined_call_operand.vmem [shape: f32[4,128], index: 18, kind: output, shape index: {}]
  %s19 = sld [smem:[#allocation0]]
  $region82: #{cnn_autoencoder_forward.1} parent=0
    _
  %s21 = ssub.s32 1, %s19
  %s22 = scalar_select 0, %s21, %s19
  %v23 = vstv %s17
  %24 = vst [vmem:[#allocation2] sm:$0x1] %v23
  // Predicated region
  $region2: #{cnn_autoencoder_forward.1} parent=0 // pred_check
    _
  $region3: #{cnn_autoencoder_forward.1} parent=0 // pred_check_branch
    %26 = sbr.rel (0) target = $region5
  $region4: #{cnn_autoencoder_forward.1} parent=0 // pred_region
    _
  $region5: #{cnn_autoencoder_forward.1} parent=0 // pred_fallthru
    _
  // Predicated region
  $region6: #{cnn_autoencoder_forward.1} parent=0 // pred_check
    _
  $region7: #{cnn_autoencoder_forward.1} parent=0 // pred_check_branch
    %28 = sbr.rel (0) target = $region9
  $region8: #{cnn_autoencoder_forward.1} parent=0 // pred_region
    _
  $region9: #{cnn_autoencoder_forward.1} parent=0 // pred_fallthru
    _
  // Predicated region
  $region10: #{cnn_autoencoder_forward.1} parent=0 // pred_check
    _
  $region11: #{cnn_autoencoder_forward.1} parent=0 // pred_check_branch
    %30 = sbr.rel (0) target = $region13
  $region12: #{cnn_autoencoder_forward.1} parent=0 // pred_region
    _
  $region13: #{cnn_autoencoder_forward.1} parent=0 // pred_fallthru
    _
  // Predicated region
  $region14: #{cnn_autoencoder_forward.1} parent=0 // pred_check
    _
  $region15: #{cnn_autoencoder_forward.1} parent=0 // pred_check_branch
    %32 = sbr.rel (0) target = $region17
  $region16: #{cnn_autoencoder_forward.1} parent=0 // pred_region
    _
  $region17: #{cnn_autoencoder_forward.1} parent=0 // pred_fallthru
    _
  // Predicated region
  $region18: #{cnn_autoencoder_forward.1} parent=0 // pred_check
    _
  $region19: #{cnn_autoencoder_forward.1} parent=0 // pred_check_branch
    %34 = sbr.rel (0) target = $region21
  $region20: #{cnn_autoencoder_forward.1} parent=0 // pred_region
    _
  $region21: #{cnn_autoencoder_forward.1} parent=0 // pred_fallthru
    _
  // Predicated region
  $region22: #{cnn_autoencoder_forward.1} parent=0 // pred_check
    _
  $region23: #{cnn_autoencoder_forward.1} parent=0 // pred_check_branch
    %36 = sbr.rel (0) target = $region25
  $region24: #{cnn_autoencoder_forward.1} parent=0 // pred_region
    _
  $region25: #{cnn_autoencoder_forward.1} parent=0 // pred_fallthru
    _
  // Predicated region
  $region26: #{cnn_autoencoder_forward.1} parent=0 // pred_check
    _
  $region27: #{cnn_autoencoder_forward.1} parent=0 // pred_check_branch
    %38 = sbr.rel (0) target = $region29
  $region28: #{cnn_autoencoder_forward.1} parent=0 // pred_region
    _
  $region29: #{cnn_autoencoder_forward.1} parent=0 // pred_fallthru
    _
  // Predicated region
  $region30: #{cnn_autoencoder_forward.1} parent=0 // pred_check
    _
  $region31: #{cnn_autoencoder_forward.1} parent=0 // pred_check_branch
    %40 = sbr.rel (0) target = $region33
  $region32: #{cnn_autoencoder_forward.1} parent=0 // pred_region
    _
  $region33: #{cnn_autoencoder_forward.1} parent=0 // pred_fallthru
    _
  // Predicated region
  $region34: #{cnn_autoencoder_forward.1} parent=0 // pred_check
    _
  $region35: #{cnn_autoencoder_forward.1} parent=0 // pred_check_branch
    %42 = sbr.rel (0) target = $region37
  $region36: #{cnn_autoencoder_forward.1} parent=0 // pred_region
    _
  $region37: #{cnn_autoencoder_forward.1} parent=0 // pred_fallthru
    _
  // Predicated region
  $region38: #{cnn_autoencoder_forward.1} parent=0 // pred_check
    _
  $region39: #{cnn_autoencoder_forward.1} parent=0 // pred_check_branch
    %44 = sbr.rel (0) target = $region41
  $region40: #{cnn_autoencoder_forward.1} parent=0 // pred_region
    _
  $region41: #{cnn_autoencoder_forward.1} parent=0 // pred_fallthru
    _
  // Predicated region
  $region42: #{cnn_autoencoder_forward.1} parent=0 // pred_check
    _
  $region43: #{cnn_autoencoder_forward.1} parent=0 // pred_check_branch
    %46 = sbr.rel (0) target = $region45
  $region44: #{cnn_autoencoder_forward.1} parent=0 // pred_region
    _
  $region45: #{cnn_autoencoder_forward.1} parent=0 // pred_fallthru
    _
  // Predicated region
  $region46: #{cnn_autoencoder_forward.1} parent=0 // pred_check
    _
  $region47: #{cnn_autoencoder_forward.1} parent=0 // pred_check_branch
    %48 = sbr.rel (0) target = $region49
  $region48: #{cnn_autoencoder_forward.1} parent=0 // pred_region
    _
  $region49: #{cnn_autoencoder_forward.1} parent=0 // pred_fallthru
    _
  // Predicated region
  $region50: #{cnn_autoencoder_forward.1} parent=0 // pred_check
    _
  $region51: #{cnn_autoencoder_forward.1} parent=0 // pred_check_branch
    %50 = sbr.rel (0) target = $region53
  $region52: #{cnn_autoencoder_forward.1} parent=0 // pred_region
    _
  $region53: #{cnn_autoencoder_forward.1} parent=0 // pred_fallthru
    _
  // Predicated region
  $region54: #{cnn_autoencoder_forward.1} parent=0 // pred_check
    _
  $region55: #{cnn_autoencoder_forward.1} parent=0 // pred_check_branch
    %52 = sbr.rel (0) target = $region57
  $region56: #{cnn_autoencoder_forward.1} parent=0 // pred_region
    _
  $region57: #{cnn_autoencoder_forward.1} parent=0 // pred_fallthru
    _
  // Predicated region
  $region58: #{cnn_autoencoder_forward.1} parent=0 // pred_check
    _
  $region59: #{cnn_autoencoder_forward.1} parent=0 // pred_check_branch
    %54 = sbr.rel (0) target = $region61
  $region60: #{cnn_autoencoder_forward.1} parent=0 // pred_region
    _
  $region61: #{cnn_autoencoder_forward.1} parent=0 // pred_fallthru
    _
  // Predicated region
  $region62: #{cnn_autoencoder_forward.1} parent=0 // pred_check
    _
  $region63: #{cnn_autoencoder_forward.1} parent=0 // pred_check_branch
    %56 = sbr.rel (0) target = $region65
  $region64: #{cnn_autoencoder_forward.1} parent=0 // pred_region
    _
  $region65: #{cnn_autoencoder_forward.1} parent=0 // pred_fallthru
    _
  // Predicated region
  $region66: #{cnn_autoencoder_forward.1} parent=0 // pred_check
    _
  $region67: #{cnn_autoencoder_forward.1} parent=0 // pred_check_branch
    %58 = sbr.rel (0) target = $region69
  $region68: #{cnn_autoencoder_forward.1} parent=0 // pred_region
    _
  $region69: #{cnn_autoencoder_forward.1} parent=0 // pred_fallthru
    _
  // Predicated region
  $region70: #{cnn_autoencoder_forward.1} parent=0 // pred_check
    _
  $region71: #{cnn_autoencoder_forward.1} parent=0 // pred_check_branch
    %60 = sbr.rel (0) target = $region73
  $region72: #{cnn_autoencoder_forward.1} parent=0 // pred_region
    _
  $region73: #{cnn_autoencoder_forward.1} parent=0 // pred_fallthru
    _
  %v62 = vld [vmem:[%s1] sm:$0xf]
  %v63 = vld [vmem:[%s1 + $0x4] sm:$0xf]
  %v64 = vld [vmem:[%s1 + $0x8] sm:$0xf]
  %v65 = vld [vmem:[%s1 + $0xc] sm:$0xf]
  %v66 = vld [vmem:[%s1 + $0x10] sm:$0xf]
  %v67 = vld [vmem:[%s1 + $0x14] sm:$0xf]
  %v68 = vld [vmem:[%s1 + $0x18] sm:$0xf]
  %v69 = vld [vmem:[%s1 + $0x1c] sm:$0xf]
  %v70 = vld [vmem:[%s0] sm:$0xf]
  %v71 = vld [vmem:[%s0 + $0x4] sm:$0xf]
  %v72 = vld [vmem:[%s2] sm:$0xff]
  %v73 = vld [vmem:[%s2 + $0x8] sm:$0xff]
  %v74 = vld [vmem:[%s2 + $0x10] sm:$0xff]
  %v75 = vld [vmem:[%s2 + $0x18] sm:$0xff]
  %v76 = vld [vmem:[%s2 + $0x20] sm:$0xff]
  %v77 = vld [vmem:[%s2 + $0x28] sm:$0xff]
  %v78 = vld [vmem:[%s2 + $0x30] sm:$0xff]
  %v79 = vld [vmem:[%s2 + $0x38] sm:$0xff]
  %v80 = vld [vmem:[%s3] sm:$0xff]
  %v81 = vld [vmem:[%s3 + $0x8] sm:$0xff]
  %v82 = vld [vmem:[%s3 + $0x10] sm:$0xff]
  %v83 = vld [vmem:[%s3 + $0x18] sm:$0xff]
  %v84 = vld [vmem:[%s3 + $0x20] sm:$0xff]
  %v85 = vld [vmem:[%s3 + $0x28] sm:$0xff]
  %v86 = vld [vmem:[%s3 + $0x30] sm:$0xff]
  %v87 = vld [vmem:[%s3 + $0x38] sm:$0xff]
  %v88 = vld [vmem:[%s4] sm:$0xff]
  %v89 = vld [vmem:[%s4 + $0x8] sm:$0xff]
  %v90 = vld [vmem:[%s4 + $0x10] sm:$0xff]
  %v91 = vld [vmem:[%s4 + $0x18] sm:$0xff]
  %v92 = vld [vmem:[%s4 + $0x20] sm:$0xff]
  %v93 = vld [vmem:[%s4 + $0x28] sm:$0xff]
  %v94 = vld [vmem:[%s4 + $0x30] sm:$0xff]
  %v95 = vld [vmem:[%s4 + $0x38] sm:$0xff]
  %97 = vset.pattern.permute.xlu0 0
  %98 = vperm.xlu0 %97, %v72
  %v99 = vpop.permute.xlu0 %98
  %102 = vset.pattern.permute.xlu0 0
  %103 = vperm.xlu0 %102, %v73
  %v104 = vpop.permute.xlu0 %103
  %107 = vset.pattern.permute.xlu0 0
  %108 = vperm.xlu0 %107, %v74
  %v109 = vpop.permute.xlu0 %108
  %112 = vset.pattern.permute.xlu0 0
  %113 = vperm.xlu0 %112, %v75
  %v114 = vpop.permute.xlu0 %113
  %117 = vset.pattern.permute.xlu0 0
  %118 = vperm.xlu0 %117, %v76
  %v119 = vpop.permute.xlu0 %118
  %122 = vset.pattern.permute.xlu0 0
  %123 = vperm.xlu0 %122, %v77
  %v124 = vpop.permute.xlu0 %123
  %127 = vset.pattern.permute.xlu0 0
  %128 = vperm.xlu0 %127, %v78
  %v129 = vpop.permute.xlu0 %128
  %132 = vset.pattern.permute.xlu0 0
  %133 = vperm.xlu0 %132, %v79
  %v134 = vpop.permute.xlu0 %133
  %v144 = vunpack.c.l.b16 %v62
  %v145 = vunpack.c.l.b16 %v63
  %v146 = vunpack.c.l.b16 %v64
  %v147 = vunpack.c.l.b16 %v65
  %v148 = vunpack.c.l.b16 %v66
  %v149 = vunpack.c.l.b16 %v67
  %v150 = vunpack.c.l.b16 %v68
  %v151 = vunpack.c.l.b16 %v69
  %v152 = vpack.c.b16 %v145, %v144
  %v153 = vpack.c.b16 %v147, %v146
  %v154 = vpack.c.b16 %v149, %v148
  %v155 = vpack.c.b16 %v151, %v150
  %v158 = vunpack.c.l.b16 %v70
  %v159 = vunpack.c.l.b16 %v71
  %v160 = vpack.c.b16 %v159, %v158
  %vm162 = vcmask 130048
  %v164 = vsel %vm162, %v152, 0
  %v167 = vsel %vm162, %v153, 0
  %v170 = vsel %vm162, %v154, 0
  %v173 = vsel %vm162, %v155, 0
  %175 = vmatprep.subr.bf16.mxu0 0
  %176 = vmatpush1.bf16.msra.mxu0 %v160
  %177 = vmatprep.subr.bf16.mxu0 0
  %178 = vmatpush1.bf16.msra.mxu0 0
  %179 = vmatprep.subr.bf16.mxu0 0
  %180 = vmatpush1.bf16.msra.mxu0 0
  %181 = vmatprep.subr.bf16.mxu0 0
  %182 = vmatpush1.bf16.msra.mxu0 0
  %183 = vmatprep.subr.bf16.mxu0 0
  %184 = vmatpush1.bf16.msra.mxu0 0
  %185 = vmatprep.subr.bf16.mxu0 0
  %186 = vmatpush1.bf16.msra.mxu0 0
  %187 = vmatprep.subr.bf16.mxu0 0
  %188 = vmatpush1.bf16.msra.mxu0 0
  %189 = vmatprep.subr.bf16.mxu0 0
  %190 = vmatpush1.bf16.msra.mxu0 0
  %191 = vmatprep.subr.bf16.mxu0 0
  %192 = vmatpush1.bf16.msra.mxu0 0
  %193 = vmatprep.subr.bf16.mxu0 0
  %194 = vmatpush1.bf16.msra.mxu0 0
  %195 = vmatprep.subr.bf16.mxu0 0
  %196 = vmatpush1.bf16.msra.mxu0 0
  %197 = vmatprep.subr.bf16.mxu0 0
  %198 = vmatpush1.bf16.msra.mxu0 0
  %199 = vmatprep.subr.bf16.mxu0 0
  %200 = vmatpush1.bf16.msra.mxu0 0
  %201 = vmatprep.subr.bf16.mxu0 0
  %202 = vmatpush1.bf16.msra.mxu0 0
  %203 = vmatprep.subr.bf16.mxu0 0
  %204 = vmatpush1.bf16.msra.mxu0 0
  %205 = vmatprep.subr.bf16.mxu0 0
  %206 = vmatpush1.bf16.msra.mxu0 0
  %207 = vmatprep.mubr.bf16.mxu0 0
  %208 = vmatmul.mubr.bf16.gmra.mrb[0].mxu0 %v164
  %v209 = vpop.f32.mrb[0].mxu0
  %v210 = vadd.f32 %v99, %v209
  %v211 = vpop.f32.mrb[0].mxu0
  %v212 = vpop.f32.mrb[0].mxu0
  %v213 = vadd.f32 %v104, %v212
  %v214 = vpop.f32.mrb[0].mxu0
  %215 = vmatprep.mubr.bf16.mxu0 0
  %216 = vmatmul.mubr.bf16.gmra.mrb[0].mxu0 %v167
  %v217 = vpop.f32.mrb[0].mxu0
  %v218 = vadd.f32 %v109, %v217
  %v219 = vpop.f32.mrb[0].mxu0
  %v220 = vpop.f32.mrb[0].mxu0
  %v221 = vadd.f32 %v114, %v220
  %v222 = vpop.f32.mrb[0].mxu0
  %223 = vmatprep.mubr.bf16.mxu0 0
  %224 = vmatmul.mubr.bf16.gmra.mrb[0].mxu0 %v170
  %v225 = vpop.f32.mrb[0].mxu0
  %v226 = vadd.f32 %v119, %v225
  %v227 = vpop.f32.mrb[0].mxu0
  %v228 = vpop.f32.mrb[0].mxu0
  %v229 = vadd.f32 %v124, %v228
  %v230 = vpop.f32.mrb[0].mxu0
  %231 = vmatprep.mubr.bf16.mxu0 0
  %232 = vmatmul.mubr.bf16.gmra.mrb[0].mxu0 %v173
  %v233 = vpop.f32.mrb[0].mxu0
  %v234 = vadd.f32 %v129, %v233
  %v235 = vpop.f32.mrb[0].mxu0
  %v236 = vpop.f32.mrb[0].mxu0
  %v237 = vadd.f32 %v134, %v236
  %v238 = vpop.f32.mrb[0].mxu0
  %239 = vdwg.mxu0
  %v240 = vmax.f32 %v210, 0.0
  %v241 = vmax.f32 %v213, 0.0
  %v242 = vmax.f32 %v218, 0.0
  %v243 = vmax.f32 %v221, 0.0
  %v244 = vmax.f32 %v226, 0.0
  %v245 = vmax.f32 %v229, 0.0
  %v246 = vmax.f32 %v234, 0.0
  %v247 = vmax.f32 %v237, 0.0
  %248 = vadd.xlane.f32.xlu0 %v240
  %v249 = vpop.xlane.xlu0 %248
  %250 = vadd.xlane.f32.xlu0 %v241
  %v251 = vpop.xlane.xlu0 %250
  %252 = vadd.xlane.f32.xlu0 %v242
  %v253 = vpop.xlane.xlu0 %252
  %254 = vadd.xlane.f32.xlu0 %v243
  %v255 = vpop.xlane.xlu0 %254
  %256 = vadd.xlane.f32.xlu0 %v244
  %v257 = vpop.xlane.xlu0 %256
  %258 = vadd.xlane.f32.xlu0 %v245
  %v259 = vpop.xlane.xlu0 %258
  %260 = vadd.xlane.f32.xlu0 %v246
  %v261 = vpop.xlane.xlu0 %260
  %262 = vadd.xlane.f32.xlu0 %v247
  %v263 = vpop.xlane.xlu0 %262
  %v264 = vmul.f32 %v249, 0.0078125
  %v265 = vmul.f32 %v251, 0.0078125
  %v266 = vmul.f32 %v253, 0.0078125
  %v267 = vmul.f32 %v255, 0.0078125
  %v268 = vmul.f32 %v257, 0.0078125
  %v269 = vmul.f32 %v259, 0.0078125
  %v270 = vmul.f32 %v261, 0.0078125
  %v271 = vmul.f32 %v263, 0.0078125
  %v272 = vsub.f32 %v240, %v264
  %v273 = vsub.f32 %v241, %v265
  %v274 = vsub.f32 %v242, %v266
  %v275 = vsub.f32 %v243, %v267
  %v276 = vsub.f32 %v244, %v268
  %v277 = vsub.f32 %v245, %v269
  %v278 = vsub.f32 %v246, %v270
  %v279 = vsub.f32 %v247, %v271
  %v280 = vmul.f32 %v272, %v272
  %v281 = vmul.f32 %v273, %v273
  %v282 = vmul.f32 %v274, %v274
  %v283 = vmul.f32 %v275, %v275
  %v284 = vmul.f32 %v276, %v276
  %v285 = vmul.f32 %v277, %v277
  %v286 = vmul.f32 %v278, %v278
  %v287 = vmul.f32 %v279, %v279
  %288 = vadd.xlane.f32.xlu0 %v280
  %v289 = vpop.xlane.xlu0 %288
  %290 = vadd.xlane.f32.xlu0 %v281
  %v291 = vpop.xlane.xlu0 %290
  %292 = vadd.xlane.f32.xlu0 %v282
  %v293 = vpop.xlane.xlu0 %292
  %294 = vadd.xlane.f32.xlu0 %v283
  %v295 = vpop.xlane.xlu0 %294
  %296 = vadd.xlane.f32.xlu0 %v284
  %v297 = vpop.xlane.xlu0 %296
  %298 = vadd.xlane.f32.xlu0 %v285
  %v299 = vpop.xlane.xlu0 %298
  %300 = vadd.xlane.f32.xlu0 %v286
  %v301 = vpop.xlane.xlu0 %300
  %302 = vadd.xlane.f32.xlu0 %v287
  %v303 = vpop.xlane.xlu0 %302
  %v304 = vmul.f32 %v289, 0.0078125
  %v305 = vmul.f32 %v291, 0.0078125
  %v306 = vmul.f32 %v293, 0.0078125
  %v307 = vmul.f32 %v295, 0.0078125
  %v308 = vmul.f32 %v297, 0.0078125
  %v309 = vmul.f32 %v299, 0.0078125
  %v310 = vmul.f32 %v301, 0.0078125
  %v311 = vmul.f32 %v303, 0.0078125
  %v312 = vadd.f32 %v304, 1e-05
  %v313 = vadd.f32 %v305, 1e-05
  %v314 = vadd.f32 %v306, 1e-05
  %v315 = vadd.f32 %v307, 1e-05
  %v316 = vadd.f32 %v308, 1e-05
  %v317 = vadd.f32 %v309, 1e-05
  %v318 = vadd.f32 %v310, 1e-05
  %v319 = vadd.f32 %v311, 1e-05
  %v320 = vrsqrt.pop %v312
  %v321 = vrsqrt.pop %v313
  %v322 = vrsqrt.pop %v314
  %v323 = vrsqrt.pop %v315
  %v324 = vrsqrt.pop %v316
  %v325 = vrsqrt.pop %v317
  %v326 = vrsqrt.pop %v318
  %v327 = vrsqrt.pop %v319
  %v328 = vmul.f32 %v80, %v320
  %v329 = vmul.f32 %v81, %v321
  %v330 = vmul.f32 %v82, %v322
  %v331 = vmul.f32 %v83, %v323
  %v332 = vmul.f32 %v84, %v324
  %v333 = vmul.f32 %v85, %v325
  %v334 = vmul.f32 %v86, %v326
  %v335 = vmul.f32 %v87, %v327
  %v336 = vmul.f32 %v264, %v328
  %v337 = vmul.f32 %v265, %v329
  %v338 = vmul.f32 %v266, %v330
  %v339 = vmul.f32 %v267, %v331
  %v340 = vmul.f32 %v268, %v332
  %v341 = vmul.f32 %v269, %v333
  %v342 = vmul.f32 %v270, %v334
  %v343 = vmul.f32 %v271, %v335
  %v344 = vsub.f32 %v88, %v336
  %v345 = vsub.f32 %v89, %v337
  %v346 = vsub.f32 %v90, %v338
  %v347 = vsub.f32 %v91, %v339
  %v348 = vsub.f32 %v92, %v340
  %v349 = vsub.f32 %v93, %v341
  %v350 = vsub.f32 %v94, %v342
  %v351 = vsub.f32 %v95, %v343
  %353 = vset.pattern.permute.xlu0 0
  %354 = vperm.xlu0 %353, %v328
  %v355 = vpop.permute.xlu0 %354
  %358 = vset.pattern.permute.xlu0 0
  %359 = vperm.xlu0 %358, %v329
  %v360 = vpop.permute.xlu0 %359
  %363 = vset.pattern.permute.xlu0 0
  %364 = vperm.xlu0 %363, %v330
  %v365 = vpop.permute.xlu0 %364
  %368 = vset.pattern.permute.xlu0 0
  %369 = vperm.xlu0 %368, %v331
  %v370 = vpop.permute.xlu0 %369
  %373 = vset.pattern.permute.xlu0 0
  %374 = vperm.xlu0 %373, %v332
  %v375 = vpop.permute.xlu0 %374
  %378 = vset.pattern.permute.xlu0 0
  %379 = vperm.xlu0 %378, %v333
  %v380 = vpop.permute.xlu0 %379
  %383 = vset.pattern.permute.xlu0 0
  %384 = vperm.xlu0 %383, %v334
  %v385 = vpop.permute.xlu0 %384
  %388 = vset.pattern.permute.xlu0 0
  %389 = vperm.xlu0 %388, %v335
  %v390 = vpop.permute.xlu0 %389
  %v392 = vmul.f32 %v240, %v355
  %v393 = vmul.f32 %v241, %v360
  %v394 = vmul.f32 %v242, %v365
  %v395 = vmul.f32 %v243, %v370
  %v396 = vmul.f32 %v244, %v375
  %v397 = vmul.f32 %v245, %v380
  %v398 = vmul.f32 %v246, %v385
  %v399 = vmul.f32 %v247, %v390
  %401 = vset.pattern.permute.xlu0 0
  %402 = vperm.xlu0 %401, %v344
  %v403 = vpop.permute.xlu0 %402
  %406 = vset.pattern.permute.xlu0 0
  %407 = vperm.xlu0 %406, %v345
  %v408 = vpop.permute.xlu0 %407
  %411 = vset.pattern.permute.xlu0 0
  %412 = vperm.xlu0 %411, %v346
  %v413 = vpop.permute.xlu0 %412
  %416 = vset.pattern.permute.xlu0 0
  %417 = vperm.xlu0 %416, %v347
  %v418 = vpop.permute.xlu0 %417
  %421 = vset.pattern.permute.xlu0 0
  %422 = vperm.xlu0 %421, %v348
  %v423 = vpop.permute.xlu0 %422
  %426 = vset.pattern.permute.xlu0 0
  %427 = vperm.xlu0 %426, %v349
  %v428 = vpop.permute.xlu0 %427
  %431 = vset.pattern.permute.xlu0 0
  %432 = vperm.xlu0 %431, %v350
  %v433 = vpop.permute.xlu0 %432
  %436 = vset.pattern.permute.xlu0 0
  %437 = vperm.xlu0 %436, %v351
  %v438 = vpop.permute.xlu0 %437
  %v440 = vadd.f32 %v392, %v403
  %v441 = vadd.f32 %v393, %v408
  %v442 = vadd.f32 %v394, %v413
  %v443 = vadd.f32 %v395, %v418
  %v444 = vadd.f32 %v396, %v423
  %v445 = vadd.f32 %v397, %v428
  %v446 = vadd.f32 %v398, %v433
  %v447 = vadd.f32 %v399, %v438
  %v448 = vpack.c.bf16 %v441, %v440
  %v449 = vpack.c.bf16 %v443, %v442
  %v450 = vpack.c.bf16 %v445, %v444
  %v451 = vpack.c.bf16 %v447, %v446
  %v452 = vld [vmem:[%s5] sm:$0xf]
  %v453 = vld [vmem:[%s5 + $0x4] sm:$0xf]
  %v454 = vld [vmem:[%s5 + $0x8] sm:$0xf]
  %v455 = vld [vmem:[%s5 + $0xc] sm:$0xf]
  %v456 = vld [vmem:[%s5 + $0x10] sm:$0xf]
  %v457 = vld [vmem:[%s5 + $0x14] sm:$0xf]
  %v458 = vld [vmem:[%s5 + $0x18] sm:$0xf]
  %v459 = vld [vmem:[%s5 + $0x1c] sm:$0xf]
  %v460 = vld [vmem:[%s5 + $0x20] sm:$0xf]
  %v461 = vld [vmem:[%s5 + $0x24] sm:$0xf]
  %v462 = vld [vmem:[%s5 + $0x28] sm:$0xf]
  %v463 = vld [vmem:[%s5 + $0x2c] sm:$0xf]
  %v464 = vld [vmem:[%s5 + $0x30] sm:$0xf]
  %v465 = vld [vmem:[%s5 + $0x34] sm:$0xf]
  %v466 = vld [vmem:[%s5 + $0x38] sm:$0xf]
  %v467 = vld [vmem:[%s5 + $0x3c] sm:$0xf]
  %v484 = vunpack.c.l.b16 %v452
  %v485 = vunpack.c.l.b16 %v453
  %v486 = vunpack.c.l.b16 %v454
  %v487 = vunpack.c.l.b16 %v455
  %v488 = vunpack.c.l.b16 %v456
  %v489 = vunpack.c.l.b16 %v457
  %v490 = vunpack.c.l.b16 %v458
  %v491 = vunpack.c.l.b16 %v459
  %v492 = vunpack.c.l.b16 %v460
  %v493 = vunpack.c.l.b16 %v461
  %v494 = vunpack.c.l.b16 %v462
  %v495 = vunpack.c.l.b16 %v463
  %v496 = vunpack.c.l.b16 %v464
  %v497 = vunpack.c.l.b16 %v465
  %v498 = vunpack.c.l.b16 %v466
  %v499 = vunpack.c.l.b16 %v467
  %v500 = vpack.c.b16 %v485, %v484
  %v501 = vpack.c.b16 %v487, %v486
  %v502 = vpack.c.b16 %v489, %v488
  %v503 = vpack.c.b16 %v491, %v490
  %v504 = vpack.c.b16 %v493, %v492
  %v505 = vpack.c.b16 %v495, %v494
  %v506 = vpack.c.b16 %v497, %v496
  %v507 = vpack.c.b16 %v499, %v498
  %516 = vmatprep.subr.bf16.mxu0 0
  %517 = vmatpush1.bf16.msra.mxu0 %v500
  %518 = vmatprep.subr.bf16.mxu0 0
  %519 = vmatpush1.bf16.msra.mxu0 %v501
  %520 = vmatprep.subr.bf16.mxu0 0
  %521 = vmatpush1.bf16.msra.mxu0 %v502
  %522 = vmatprep.subr.bf16.mxu0 0
  %523 = vmatpush1.bf16.msra.mxu0 %v503
  %524 = vmatprep.subr.bf16.mxu0 0
  %525 = vmatpush1.bf16.msra.mxu0 %v504
  %526 = vmatprep.subr.bf16.mxu0 0
  %527 = vmatpush1.bf16.msra.mxu0 %v505
  %528 = vmatprep.subr.bf16.mxu0 0
  %529 = vmatpush1.bf16.msra.mxu0 %v506
  %530 = vmatprep.subr.bf16.mxu0 0
  %531 = vmatpush1.bf16.msra.mxu0 %v507
  %532 = vmatprep.subr.bf16.mxu0 0
  %533 = vmatpush1.bf16.msra.mxu0 0
  %534 = vmatprep.subr.bf16.mxu0 0
  %535 = vmatpush1.bf16.msra.mxu0 0
  %536 = vmatprep.subr.bf16.mxu0 0
  %537 = vmatpush1.bf16.msra.mxu0 0
  %538 = vmatprep.subr.bf16.mxu0 0
  %539 = vmatpush1.bf16.msra.mxu0 0
  %540 = vmatprep.subr.bf16.mxu0 0
  %541 = vmatpush1.bf16.msra.mxu0 0
  %542 = vmatprep.subr.bf16.mxu0 0
  %543 = vmatpush1.bf16.msra.mxu0 0
  %544 = vmatprep.subr.bf16.mxu0 0
  %545 = vmatpush1.bf16.msra.mxu0 0
  %546 = vmatprep.subr.bf16.mxu0 0
  %547 = vmatpush1.bf16.msra.mxu0 0
  %548 = vmatprep.mubr.bf16.mxu0 0
  %549 = vmatmul.mubr.bf16.gmra.mrb[0].mxu0 %v448
  %v550 = vpop.f32.mrb[0].mxu0
  %v551 = vadd.f32 0.0, %v550
  %v552 = vpop.f32.mrb[0].mxu0
  %v553 = vpop.f32.mrb[0].mxu0
  %v554 = vadd.f32 0.0, %v553
  %v555 = vpop.f32.mrb[0].mxu0
  %556 = vmatprep.mubr.bf16.mxu0 0
  %557 = vmatmul.mubr.bf16.gmra.mrb[0].mxu0 %v449
  %v558 = vpop.f32.mrb[0].mxu0
  %v559 = vadd.f32 0.0, %v558
  %v560 = vpop.f32.mrb[0].mxu0
  %v561 = vpop.f32.mrb[0].mxu0
  %v562 = vadd.f32 0.0, %v561
  %v563 = vpop.f32.mrb[0].mxu0
  %564 = vmatprep.mubr.bf16.mxu0 0
  %565 = vmatmul.mubr.bf16.gmra.mrb[0].mxu0 %v450
  %v566 = vpop.f32.mrb[0].mxu0
  %v567 = vadd.f32 0.0, %v566
  %v568 = vpop.f32.mrb[0].mxu0
  %v569 = vpop.f32.mrb[0].mxu0
  %v570 = vadd.f32 0.0, %v569
  %v571 = vpop.f32.mrb[0].mxu0
  %572 = vmatprep.mubr.bf16.mxu0 0
  %573 = vmatmul.mubr.bf16.gmra.mrb[0].mxu0 %v451
  %v574 = vpop.f32.mrb[0].mxu0
  %v575 = vadd.f32 0.0, %v574
  %v576 = vpop.f32.mrb[0].mxu0
  %v577 = vpop.f32.mrb[0].mxu0
  %v578 = vadd.f32 0.0, %v577
  %v579 = vpop.f32.mrb[0].mxu0
  %580 = vdwg.mxu0
  %s581 = scalar_lea.vmem %s5, 64
  %v582 = vld [vmem:[%s581] sm:$0xf]
  %v583 = vld [vmem:[%s581 + $0x4] sm:$0xf]
  %v584 = vld [vmem:[%s581 + $0x8] sm:$0xf]
  %v585 = vld [vmem:[%s581 + $0xc] sm:$0xf]
  %v586 = vld [vmem:[%s581 + $0x10] sm:$0xf]
  %v587 = vld [vmem:[%s581 + $0x14] sm:$0xf]
  %v588 = vld [vmem:[%s581 + $0x18] sm:$0xf]
  %v589 = vld [vmem:[%s581 + $0x1c] sm:$0xf]
  %v590 = vld [vmem:[%s581 + $0x20] sm:$0xf]
  %v591 = vld [vmem:[%s581 + $0x24] sm:$0xf]
  %v592 = vld [vmem:[%s581 + $0x28] sm:$0xf]
  %v593 = vld [vmem:[%s581 + $0x2c] sm:$0xf]
  %v594 = vld [vmem:[%s581 + $0x30] sm:$0xf]
  %v595 = vld [vmem:[%s581 + $0x34] sm:$0xf]
  %v596 = vld [vmem:[%s581 + $0x38] sm:$0xf]
  %v597 = vld [vmem:[%s581 + $0x3c] sm:$0xf]
  %v614 = vunpack.c.l.b16 %v582
  %v615 = vunpack.c.l.b16 %v583
  %v616 = vunpack.c.l.b16 %v584
  %v617 = vunpack.c.l.b16 %v585
  %v618 = vunpack.c.l.b16 %v586
  %v619 = vunpack.c.l.b16 %v587
  %v620 = vunpack.c.l.b16 %v588
  %v621 = vunpack.c.l.b16 %v589
  %v622 = vunpack.c.l.b16 %v590
  %v623 = vunpack.c.l.b16 %v591
  %v624 = vunpack.c.l.b16 %v592
  %v625 = vunpack.c.l.b16 %v593
  %v626 = vunpack.c.l.b16 %v594
  %v627 = vunpack.c.l.b16 %v595
  %v628 = vunpack.c.l.b16 %v596
  %v629 = vunpack.c.l.b16 %v597
  %v630 = vpack.c.b16 %v615, %v614
  %v631 = vpack.c.b16 %v617, %v616
  %v632 = vpack.c.b16 %v619, %v618
  %v633 = vpack.c.b16 %v621, %v620
  %v634 = vpack.c.b16 %v623, %v622
  %v635 = vpack.c.b16 %v625, %v624
  %v636 = vpack.c.b16 %v627, %v626
  %v637 = vpack.c.b16 %v629, %v628
  %646 = vmatprep.subr.bf16.mxu0 0
  %647 = vmatpush1.bf16.msra.mxu0 %v630
  %648 = vmatprep.subr.bf16.mxu0 0
  %649 = vmatpush1.bf16.msra.mxu0 %v631
  %650 = vmatprep.subr.bf16.mxu0 0
  %651 = vmatpush1.bf16.msra.mxu0 %v632
  %652 = vmatprep.subr.bf16.mxu0 0
  %653 = vmatpush1.bf16.msra.mxu0 %v633
  %654 = vmatprep.subr.bf16.mxu0 0
  %655 = vmatpush1.bf16.msra.mxu0 %v634
  %656 = vmatprep.subr.bf16.mxu0 0
  %657 = vmatpush1.bf16.msra.mxu0 %v635
  %658 = vmatprep.subr.bf16.mxu0 0
  %659 = vmatpush1.bf16.msra.mxu0 %v636
  %660 = vmatprep.subr.bf16.mxu0 0
  %661 = vmatpush1.bf16.msra.mxu0 %v637
  %662 = vmatprep.subr.bf16.mxu0 0
  %663 = vmatpush1.bf16.msra.mxu0 0
  %664 = vmatprep.subr.bf16.mxu0 0
  %665 = vmatpush1.bf16.msra.mxu0 0
  %666 = vmatprep.subr.bf16.mxu0 0
  %667 = vmatpush1.bf16.msra.mxu0 0
  %668 = vmatprep.subr.bf16.mxu0 0
  %669 = vmatpush1.bf16.msra.mxu0 0
  %670 = vmatprep.subr.bf16.mxu0 0
  %671 = vmatpush1.bf16.msra.mxu0 0
  %672 = vmatprep.subr.bf16.mxu0 0
  %673 = vmatpush1.bf16.msra.mxu0 0
  %674 = vmatprep.subr.bf16.mxu0 0
  %675 = vmatpush1.bf16.msra.mxu0 0
  %676 = vmatprep.subr.bf16.mxu0 0
  %677 = vmatpush1.bf16.msra.mxu0 0
  %678 = vmatprep.mubr.bf16.mxu0 0
  %679 = vmatmul.mubr.bf16.gmra.mrb[0].mxu0 %v448
  %v680 = vpop.f32.mrb[0].mxu0
  %v681 = vadd.f32 0.0, %v680
  %v682 = vpop.f32.mrb[0].mxu0
  %v683 = vpop.f32.mrb[0].mxu0
  %v684 = vadd.f32 0.0, %v683
  %v685 = vpop.f32.mrb[0].mxu0
  %686 = vmatprep.mubr.bf16.mxu0 0
  %687 = vmatmul.mubr.bf16.gmra.mrb[0].mxu0 %v449
  %v688 = vpop.f32.mrb[0].mxu0
  %v689 = vadd.f32 0.0, %v688
  %v690 = vpop.f32.mrb[0].mxu0
  %v691 = vpop.f32.mrb[0].mxu0
  %v692 = vadd.f32 0.0, %v691
  %v693 = vpop.f32.mrb[0].mxu0
  %694 = vmatprep.mubr.bf16.mxu0 0
  %695 = vmatmul.mubr.bf16.gmra.mrb[0].mxu0 %v450
  %v696 = vpop.f32.mrb[0].mxu0
  %v697 = vadd.f32 0.0, %v696
  %v698 = vpop.f32.mrb[0].mxu0
  %v699 = vpop.f32.mrb[0].mxu0
  %v700 = vadd.f32 0.0, %v699
  %v701 = vpop.f32.mrb[0].mxu0
  %702 = vmatprep.mubr.bf16.mxu0 0
  %703 = vmatmul.mubr.bf16.gmra.mrb[0].mxu0 %v451
  %v704 = vpop.f32.mrb[0].mxu0
  %v705 = vadd.f32 0.0, %v704
  %v706 = vpop.f32.mrb[0].mxu0
  %v707 = vpop.f32.mrb[0].mxu0
  %v708 = vadd.f32 0.0, %v707
  %v709 = vpop.f32.mrb[0].mxu0
  %710 = vdwg.mxu0
  %s711 = scalar_lea.vmem %s5, 128
  %v712 = vld [vmem:[%s711] sm:$0xf]
  %v713 = vld [vmem:[%s711 + $0x4] sm:$0xf]
  %v714 = vld [vmem:[%s711 + $0x8] sm:$0xf]
  %v715 = vld [vmem:[%s711 + $0xc] sm:$0xf]
  %v716 = vld [vmem:[%s711 + $0x10] sm:$0xf]
  %v717 = vld [vmem:[%s711 + $0x14] sm:$0xf]
  %v718 = vld [vmem:[%s711 + $0x18] sm:$0xf]
  %v719 = vld [vmem:[%s711 + $0x1c] sm:$0xf]
  %v720 = vld [vmem:[%s711 + $0x20] sm:$0xf]
  %v721 = vld [vmem:[%s711 + $0x24] sm:$0xf]
  %v722 = vld [vmem:[%s711 + $0x28] sm:$0xf]
  %v723 = vld [vmem:[%s711 + $0x2c] sm:$0xf]
  %v724 = vld [vmem:[%s711 + $0x30] sm:$0xf]
  %v725 = vld [vmem:[%s711 + $0x34] sm:$0xf]
  %v726 = vld [vmem:[%s711 + $0x38] sm:$0xf]
  %v727 = vld [vmem:[%s711 + $0x3c] sm:$0xf]
  %v744 = vunpack.c.l.b16 %v712
  %v745 = vunpack.c.l.b16 %v713
  %v746 = vunpack.c.l.b16 %v714
  %v747 = vunpack.c.l.b16 %v715
  %v748 = vunpack.c.l.b16 %v716
  %v749 = vunpack.c.l.b16 %v717
  %v750 = vunpack.c.l.b16 %v718
  %v751 = vunpack.c.l.b16 %v719
  %v752 = vunpack.c.l.b16 %v720
  %v753 = vunpack.c.l.b16 %v721
  %v754 = vunpack.c.l.b16 %v722
  %v755 = vunpack.c.l.b16 %v723
  %v756 = vunpack.c.l.b16 %v724
  %v757 = vunpack.c.l.b16 %v725
  %v758 = vunpack.c.l.b16 %v726
  %v759 = vunpack.c.l.b16 %v727
  %v760 = vpack.c.b16 %v745, %v744
  %v761 = vpack.c.b16 %v747, %v746
  %v762 = vpack.c.b16 %v749, %v748
  %v763 = vpack.c.b16 %v751, %v750
  %v764 = vpack.c.b16 %v753, %v752
  %v765 = vpack.c.b16 %v755, %v754
  %v766 = vpack.c.b16 %v757, %v756
  %v767 = vpack.c.b16 %v759, %v758
  %776 = vmatprep.subr.bf16.mxu0 0
  %777 = vmatpush1.bf16.msra.mxu0 %v760
  %778 = vmatprep.subr.bf16.mxu0 0
  %779 = vmatpush1.bf16.msra.mxu0 %v761
  %780 = vmatprep.subr.bf16.mxu0 0
  %781 = vmatpush1.bf16.msra.mxu0 %v762
  %782 = vmatprep.subr.bf16.mxu0 0
  %783 = vmatpush1.bf16.msra.mxu0 %v763
  %784 = vmatprep.subr.bf16.mxu0 0
  %785 = vmatpush1.bf16.msra.mxu0 %v764
  %786 = vmatprep.subr.bf16.mxu0 0
  %787 = vmatpush1.bf16.msra.mxu0 %v765
  %788 = vmatprep.subr.bf16.mxu0 0
  %789 = vmatpush1.bf16.msra.mxu0 %v766
  %790 = vmatprep.subr.bf16.mxu0 0
  %791 = vmatpush1.bf16.msra.mxu0 %v767
  %792 = vmatprep.subr.bf16.mxu0 0
  %793 = vmatpush1.bf16.msra.mxu0 0
  %794 = vmatprep.subr.bf16.mxu0 0
  %795 = vmatpush1.bf16.msra.mxu0 0
  %796 = vmatprep.subr.bf16.mxu0 0
  %797 = vmatpush1.bf16.msra.mxu0 0
  %798 = vmatprep.subr.bf16.mxu0 0
  %799 = vmatpush1.bf16.msra.mxu0 0
  %800 = vmatprep.subr.bf16.mxu0 0
  %801 = vmatpush1.bf16.msra.mxu0 0
  %802 = vmatprep.subr.bf16.mxu0 0
  %803 = vmatpush1.bf16.msra.mxu0 0
  %804 = vmatprep.subr.bf16.mxu0 0
  %805 = vmatpush1.bf16.msra.mxu0 0
  %806 = vmatprep.subr.bf16.mxu0 0
  %807 = vmatpush1.bf16.msra.mxu0 0
  %808 = vmatprep.mubr.bf16.mxu0 0
  %809 = vmatmul.mubr.bf16.gmra.mrb[0].mxu0 %v448
  %v810 = vpop.f32.mrb[0].mxu0
  %v811 = vadd.f32 0.0, %v810
  %v812 = vpop.f32.mrb[0].mxu0
  %v813 = vpop.f32.mrb[0].mxu0
  %v814 = vadd.f32 0.0, %v813
  %v815 = vpop.f32.mrb[0].mxu0
  %816 = vmatprep.mubr.bf16.mxu0 0
  %817 = vmatmul.mubr.bf16.gmra.mrb[0].mxu0 %v449
  %v818 = vpop.f32.mrb[0].mxu0
  %v819 = vadd.f32 0.0, %v818
  %v820 = vpop.f32.mrb[0].mxu0
  %v821 = vpop.f32.mrb[0].mxu0
  %v822 = vadd.f32 0.0, %v821
  %v823 = vpop.f32.mrb[0].mxu0
  %824 = vmatprep.mubr.bf16.mxu0 0
  %825 = vmatmul.mubr.bf16.gmra.mrb[0].mxu0 %v450
  %v826 = vpop.f32.mrb[0].mxu0
  %v827 = vadd.f32 0.0, %v826
  %v828 = vpop.f32.mrb[0].mxu0
  %v829 = vpop.f32.mrb[0].mxu0
  %v830 = vadd.f32 0.0, %v829
  %v831 = vpop.f32.mrb[0].mxu0
  %832 = vmatprep.mubr.bf16.mxu0 0
  %833 = vmatmul.mubr.bf16.gmra.mrb[0].mxu0 %v451
  %v834 = vpop.f32.mrb[0].mxu0
  %v835 = vadd.f32 0.0, %v834
  %v836 = vpop.f32.mrb[0].mxu0
  %v837 = vpop.f32.mrb[0].mxu0
  %v838 = vadd.f32 0.0, %v837
  %v839 = vpop.f32.mrb[0].mxu0
  %840 = vdwg.mxu0
  %s841 = scalar_lea.vmem %s5, 192
  %v842 = vld [vmem:[%s841] sm:$0xf]
  %v843 = vld [vmem:[%s841 + $0x4] sm:$0xf]
  %v844 = vld [vmem:[%s841 + $0x8] sm:$0xf]
  %v845 = vld [vmem:[%s841 + $0xc] sm:$0xf]
  %v846 = vld [vmem:[%s841 + $0x10] sm:$0xf]
  %v847 = vld [vmem:[%s841 + $0x14] sm:$0xf]
  %v848 = vld [vmem:[%s841 + $0x18] sm:$0xf]
  %v849 = vld [vmem:[%s841 + $0x1c] sm:$0xf]
  %v850 = vld [vmem:[%s841 + $0x20] sm:$0xf]
  %v851 = vld [vmem:[%s841 + $0x24] sm:$0xf]
  %v852 = vld [vmem:[%s841 + $0x28] sm:$0xf]
  %v853 = vld [vmem:[%s841 + $0x2c] sm:$0xf]
  %v854 = vld [vmem:[%s841 + $0x30] sm:$0xf]
  %v855 = vld [vmem:[%s841 + $0x34] sm:$0xf]
  %v856 = vld [vmem:[%s841 + $0x38] sm:$0xf]
  %v857 = vld [vmem:[%s841 + $0x3c] sm:$0xf]
  %v874 = vunpack.c.l.b16 %v842
  %v875 = vunpack.c.l.b16 %v843
  %v876 = vunpack.c.l.b16 %v844
  %v877 = vunpack.c.l.b16 %v845
  %v878 = vunpack.c.l.b16 %v846
  %v879 = vunpack.c.l.b16 %v847
  %v880 = vunpack.c.l.b16 %v848
  %v881 = vunpack.c.l.b16 %v849
  %v882 = vunpack.c.l.b16 %v850
  %v883 = vunpack.c.l.b16 %v851
  %v884 = vunpack.c.l.b16 %v852
  %v885 = vunpack.c.l.b16 %v853
  %v886 = vunpack.c.l.b16 %v854
  %v887 = vunpack.c.l.b16 %v855
  %v888 = vunpack.c.l.b16 %v856
  %v889 = vunpack.c.l.b16 %v857
  %v890 = vpack.c.b16 %v875, %v874
  %v891 = vpack.c.b16 %v877, %v876
  %v892 = vpack.c.b16 %v879, %v878
  %v893 = vpack.c.b16 %v881, %v880
  %v894 = vpack.c.b16 %v883, %v882
  %v895 = vpack.c.b16 %v885, %v884
  %v896 = vpack.c.b16 %v887, %v886
  %v897 = vpack.c.b16 %v889, %v888
  %906 = vmatprep.subr.bf16.mxu0 0
  %907 = vmatpush1.bf16.msra.mxu0 %v890
  %908 = vmatprep.subr.bf16.mxu0 0
  %909 = vmatpush1.bf16.msra.mxu0 %v891
  %910 = vmatprep.subr.bf16.mxu0 0
  %911 = vmatpush1.bf16.msra.mxu0 %v892
  %912 = vmatprep.subr.bf16.mxu0 0
  %913 = vmatpush1.bf16.msra.mxu0 %v893
  %914 = vmatprep.subr.bf16.mxu0 0
  %915 = vmatpush1.bf16.msra.mxu0 %v894
  %916 = vmatprep.subr.bf16.mxu0 0
  %917 = vmatpush1.bf16.msra.mxu0 %v895
  %918 = vmatprep.subr.bf16.mxu0 0
  %919 = vmatpush1.bf16.msra.mxu0 %v896
  %920 = vmatprep.subr.bf16.mxu0 0
  %921 = vmatpush1.bf16.msra.mxu0 %v897
  %922 = vmatprep.subr.bf16.mxu0 0
  %923 = vmatpush1.bf16.msra.mxu0 0
  %924 = vmatprep.subr.bf16.mxu0 0
  %925 = vmatpush1.bf16.msra.mxu0 0
  %926 = vmatprep.subr.bf16.mxu0 0
  %927 = vmatpush1.bf16.msra.mxu0 0
  %928 = vmatprep.subr.bf16.mxu0 0
  %929 = vmatpush1.bf16.msra.mxu0 0
  %930 = vmatprep.subr.bf16.mxu0 0
  %931 = vmatpush1.bf16.msra.mxu0 0
  %932 = vmatprep.subr.bf16.mxu0 0
  %933 = vmatpush1.bf16.msra.mxu0 0
  %934 = vmatprep.subr.bf16.mxu0 0
  %935 = vmatpush1.bf16.msra.mxu0 0
  %936 = vmatprep.subr.bf16.mxu0 0
  %937 = vmatpush1.bf16.msra.mxu0 0
  %938 = vmatprep.mubr.bf16.mxu0 0
  %939 = vmatmul.mubr.bf16.gmra.mrb[0].mxu0 %v448
  %v940 = vpop.f32.mrb[0].mxu0
  %v941 = vadd.f32 0.0, %v940
  %v942 = vpop.f32.mrb[0].mxu0
  %v943 = vpop.f32.mrb[0].mxu0
  %v944 = vadd.f32 0.0, %v943
  %v945 = vpop.f32.mrb[0].mxu0
  %946 = vmatprep.mubr.bf16.mxu0 0
  %947 = vmatmul.mubr.bf16.gmra.mrb[0].mxu0 %v449
  %v948 = vpop.f32.mrb[0].mxu0
  %v949 = vadd.f32 0.0, %v948
  %v950 = vpop.f32.mrb[0].mxu0
  %v951 = vpop.f32.mrb[0].mxu0
  %v952 = vadd.f32 0.0, %v951
  %v953 = vpop.f32.mrb[0].mxu0
  %954 = vmatprep.mubr.bf16.mxu0 0
  %955 = vmatmul.mubr.bf16.gmra.mrb[0].mxu0 %v450
  %v956 = vpop.f32.mrb[0].mxu0
  %v957 = vadd.f32 0.0, %v956
  %v958 = vpop.f32.mrb[0].mxu0
  %v959 = vpop.f32.mrb[0].mxu0
  %v960 = vadd.f32 0.0, %v959
  %v961 = vpop.f32.mrb[0].mxu0
  %962 = vmatprep.mubr.bf16.mxu0 0
  %963 = vmatmul.mubr.bf16.gmra.mrb[0].mxu0 %v451
  %v964 = vpop.f32.mrb[0].mxu0
  %v965 = vadd.f32 0.0, %v964
  %v966 = vpop.f32.mrb[0].mxu0
  %v967 = vpop.f32.mrb[0].mxu0
  %v968 = vadd.f32 0.0, %v967
  %v969 = vpop.f32.mrb[0].mxu0
  %970 = vdwg.mxu0
  %s971 = scalar_lea.vmem %s5, 256
  %v972 = vld [vmem:[%s971] sm:$0xf]
  %v973 = vld [vmem:[%s971 + $0x4] sm:$0xf]
  %v974 = vld [vmem:[%s971 + $0x8] sm:$0xf]
  %v975 = vld [vmem:[%s971 + $0xc] sm:$0xf]
  %v976 = vld [vmem:[%s971 + $0x10] sm:$0xf]
  %v977 = vld [vmem:[%s971 + $0x14] sm:$0xf]
  %v978 = vld [vmem:[%s971 + $0x18] sm:$0xf]
  %v979 = vld [vmem:[%s971 + $0x1c] sm:$0xf]
  %v980 = vld [vmem:[%s971 + $0x20] sm:$0xf]
  %v981 = vld [vmem:[%s971 + $0x24] sm:$0xf]
  %v982 = vld [vmem:[%s971 + $0x28] sm:$0xf]
  %v983 = vld [vmem:[%s971 + $0x2c] sm:$0xf]
  %v984 = vld [vmem:[%s971 + $0x30] sm:$0xf]
  %v985 = vld [vmem:[%s971 + $0x34] sm:$0xf]
  %v986 = vld [vmem:[%s971 + $0x38] sm:$0xf]
  %v987 = vld [vmem:[%s971 + $0x3c] sm:$0xf]
  %v1004 = vunpack.c.l.b16 %v972
  %v1005 = vunpack.c.l.b16 %v973
  %v1006 = vunpack.c.l.b16 %v974
  %v1007 = vunpack.c.l.b16 %v975
  %v1008 = vunpack.c.l.b16 %v976
  %v1009 = vunpack.c.l.b16 %v977
  %v1010 = vunpack.c.l.b16 %v978
  %v1011 = vunpack.c.l.b16 %v979
  %v1012 = vunpack.c.l.b16 %v980
  %v1013 = vunpack.c.l.b16 %v981
  %v1014 = vunpack.c.l.b16 %v982
  %v1015 = vunpack.c.l.b16 %v983
  %v1016 = vunpack.c.l.b16 %v984
  %v1017 = vunpack.c.l.b16 %v985
  %v1018 = vunpack.c.l.b16 %v986
  %v1019 = vunpack.c.l.b16 %v987
  %v1020 = vpack.c.b16 %v1005, %v1004
  %v1021 = vpack.c.b16 %v1007, %v1006
  %v1022 = vpack.c.b16 %v1009, %v1008
  %v1023 = vpack.c.b16 %v1011, %v1010
  %v1024 = vpack.c.b16 %v1013, %v1012
  %v1025 = vpack.c.b16 %v1015, %v1014
  %v1026 = vpack.c.b16 %v1017, %v1016
  %v1027 = vpack.c.b16 %v1019, %v1018
  %1036 = vmatprep.subr.bf16.mxu0 0
  %1037 = vmatpush1.bf16.msra.mxu0 %v1020
  %1038 = vmatprep.subr.bf16.mxu0 0
  %1039 = vmatpush1.bf16.msra.mxu0 %v1021
  %1040 = vmatprep.subr.bf16.mxu0 0
  %1041 = vmatpush1.bf16.msra.mxu0 %v1022
  %1042 = vmatprep.subr.bf16.mxu0 0
  %1043 = vmatpush1.bf16.msra.mxu0 %v1023
  %1044 = vmatprep.subr.bf16.mxu0 0
  %1045 = vmatpush1.bf16.msra.mxu0 %v1024
  %1046 = vmatprep.subr.bf16.mxu0 0
  %1047 = vmatpush1.bf16.msra.mxu0 %v1025
  %1048 = vmatprep.subr.bf16.mxu0 0
  %1049 = vmatpush1.bf16.msra.mxu0 %v1026
  %1050 = vmatprep.subr.bf16.mxu0 0
  %1051 = vmatpush1.bf16.msra.mxu0 %v1027
  %1052 = vmatprep.subr.bf16.mxu0 0
  %1053 = vmatpush1.bf16.msra.mxu0 0
  %1054 = vmatprep.subr.bf16.mxu0 0
  %1055 = vmatpush1.bf16.msra.mxu0 0
  %1056 = vmatprep.subr.bf16.mxu0 0
  %1057 = vmatpush1.bf16.msra.mxu0 0
  %1058 = vmatprep.subr.bf16.mxu0 0
  %1059 = vmatpush1.bf16.msra.mxu0 0
  %1060 = vmatprep.subr.bf16.mxu0 0
  %1061 = vmatpush1.bf16.msra.mxu0 0
  %1062 = vmatprep.subr.bf16.mxu0 0
  %1063 = vmatpush1.bf16.msra.mxu0 0
  %1064 = vmatprep.subr.bf16.mxu0 0
  %1065 = vmatpush1.bf16.msra.mxu0 0
  %1066 = vmatprep.subr.bf16.mxu0 0
  %1067 = vmatpush1.bf16.msra.mxu0 0
  %1068 = vmatprep.mubr.bf16.mxu0 0
  %1069 = vmatmul.mubr.bf16.gmra.mrb[0].mxu0 %v448
  %v1070 = vpop.f32.mrb[0].mxu0
  %v1071 = vadd.f32 0.0, %v1070
  %v1072 = vpop.f32.mrb[0].mxu0
  %v1073 = vpop.f32.mrb[0].mxu0
  %v1074 = vadd.f32 0.0, %v1073
  %v1075 = vpop.f32.mrb[0].mxu0
  %1076 = vmatprep.mubr.bf16.mxu0 0
  %1077 = vmatmul.mubr.bf16.gmra.mrb[0].mxu0 %v449
  %v1078 = vpop.f32.mrb[0].mxu0
  %v1079 = vadd.f32 0.0, %v1078
  %v1080 = vpop.f32.mrb[0].mxu0
  %v1081 = vpop.f32.mrb[0].mxu0
  %v1082 = vadd.f32 0.0, %v1081
  %v1083 = vpop.f32.mrb[0].mxu0
  %1084 = vmatprep.mubr.bf16.mxu0 0
  %1085 = vmatmul.mubr.bf16.gmra.mrb[0].mxu0 %v450
  %v1086 = vpop.f32.mrb[0].mxu0
  %v1087 = vadd.f32 0.0, %v1086
  %v1088 = vpop.f32.mrb[0].mxu0
  %v1089 = vpop.f32.mrb[0].mxu0
  %v1090 = vadd.f32 0.0, %v1089
  %v1091 = vpop.f32.mrb[0].mxu0
  %1092 = vmatprep.mubr.bf16.mxu0 0
  %1093 = vmatmul.mubr.bf16.gmra.mrb[0].mxu0 %v451
  %v1094 = vpop.f32.mrb[0].mxu0
  %v1095 = vadd.f32 0.0, %v1094
  %v1096 = vpop.f32.mrb[0].mxu0
  %v1097 = vpop.f32.mrb[0].mxu0
  %v1098 = vadd.f32 0.0, %v1097
  %v1099 = vpop.f32.mrb[0].mxu0
  %1100 = vdwg.mxu0
  %s1101 = scalar_lea.vmem %s5, 320
  %v1102 = vld [vmem:[%s1101] sm:$0xf]
  %v1103 = vld [vmem:[%s1101 + $0x4] sm:$0xf]
  %v1104 = vld [vmem:[%s1101 + $0x8] sm:$0xf]
  %v1105 = vld [vmem:[%s1101 + $0xc] sm:$0xf]
  %v1106 = vld [vmem:[%s1101 + $0x10] sm:$0xf]
  %v1107 = vld [vmem:[%s1101 + $0x14] sm:$0xf]
  %v1108 = vld [vmem:[%s1101 + $0x18] sm:$0xf]
  %v1109 = vld [vmem:[%s1101 + $0x1c] sm:$0xf]
  %v1110 = vld [vmem:[%s1101 + $0x20] sm:$0xf]
  %v1111 = vld [vmem:[%s1101 + $0x24] sm:$0xf]
  %v1112 = vld [vmem:[%s1101 + $0x28] sm:$0xf]
  %v1113 = vld [vmem:[%s1101 + $0x2c] sm:$0xf]
  %v1114 = vld [vmem:[%s1101 + $0x30] sm:$0xf]
  %v1115 = vld [vmem:[%s1101 + $0x34] sm:$0xf]
  %v1116 = vld [vmem:[%s1101 + $0x38] sm:$0xf]
  %v1117 = vld [vmem:[%s1101 + $0x3c] sm:$0xf]
  %v1134 = vunpack.c.l.b16 %v1102
  %v1135 = vunpack.c.l.b16 %v1103
  %v1136 = vunpack.c.l.b16 %v1104
  %v1137 = vunpack.c.l.b16 %v1105
  %v1138 = vunpack.c.l.b16 %v1106
  %v1139 = vunpack.c.l.b16 %v1107
  %v1140 = vunpack.c.l.b16 %v1108
  %v1141 = vunpack.c.l.b16 %v1109
  %v1142 = vunpack.c.l.b16 %v1110
  %v1143 = vunpack.c.l.b16 %v1111
  %v1144 = vunpack.c.l.b16 %v1112
  %v1145 = vunpack.c.l.b16 %v1113
  %v1146 = vunpack.c.l.b16 %v1114
  %v1147 = vunpack.c.l.b16 %v1115
  %v1148 = vunpack.c.l.b16 %v1116
  %v1149 = vunpack.c.l.b16 %v1117
  %v1150 = vpack.c.b16 %v1135, %v1134
  %v1151 = vpack.c.b16 %v1137, %v1136
  %v1152 = vpack.c.b16 %v1139, %v1138
  %v1153 = vpack.c.b16 %v1141, %v1140
  %v1154 = vpack.c.b16 %v1143, %v1142
  %v1155 = vpack.c.b16 %v1145, %v1144
  %v1156 = vpack.c.b16 %v1147, %v1146
  %v1157 = vpack.c.b16 %v1149, %v1148
  %1166 = vmatprep.subr.bf16.mxu0 0
  %1167 = vmatpush1.bf16.msra.mxu0 %v1150
  %1168 = vmatprep.subr.bf16.mxu0 0
  %1169 = vmatpush1.bf16.msra.mxu0 %v1151
  %1170 = vmatprep.subr.bf16.mxu0 0
  %1171 = vmatpush1.bf16.msra.mxu0 %v1152
  %1172 = vmatprep.subr.bf16.mxu0 0
  %1173 = vmatpush1.bf16.msra.mxu0 %v1153
  %1174 = vmatprep.subr.bf16.mxu0 0
  %1175 = vmatpush1.bf16.msra.mxu0 %v1154
  %1176 = vmatprep.subr.bf16.mxu0 0
  %1177 = vmatpush1.bf16.msra.mxu0 %v1155
  %1178 = vmatprep.subr.bf16.mxu0 0
  %1179 = vmatpush1.bf16.msra.mxu0 %v1156
  %1180 = vmatprep.subr.bf16.mxu0 0
  %1181 = vmatpush1.bf16.msra.mxu0 %v1157
  %1182 = vmatprep.subr.bf16.mxu0 0
  %1183 = vmatpush1.bf16.msra.mxu0 0
  %1184 = vmatprep.subr.bf16.mxu0 0
  %1185 = vmatpush1.bf16.msra.mxu0 0
  %1186 = vmatprep.subr.bf16.mxu0 0
  %1187 = vmatpush1.bf16.msra.mxu0 0
  %1188 = vmatprep.subr.bf16.mxu0 0
  %1189 = vmatpush1.bf16.msra.mxu0 0
  %1190 = vmatprep.subr.bf16.mxu0 0
  %1191 = vmatpush1.bf16.msra.mxu0 0
  %1192 = vmatprep.subr.bf16.mxu0 0
  %1193 = vmatpush1.bf16.msra.mxu0 0
  %1194 = vmatprep.subr.bf16.mxu0 0
  %1195 = vmatpush1.bf16.msra.mxu0 0
  %1196 = vmatprep.subr.bf16.mxu0 0
  %1197 = vmatpush1.bf16.msra.mxu0 0
  %1198 = vmatprep.mubr.bf16.mxu0 0
  %1199 = vmatmul.mubr.bf16.gmra.mrb[0].mxu0 %v448
  %v1200 = vpop.f32.mrb[0].mxu0
  %v1201 = vadd.f32 0.0, %v1200
  %v1202 = vpop.f32.mrb[0].mxu0
  %v1203 = vpop.f32.mrb[0].mxu0
  %v1204 = vadd.f32 0.0, %v1203
  %v1205 = vpop.f32.mrb[0].mxu0
  %1206 = vmatprep.mubr.bf16.mxu0 0
  %1207 = vmatmul.mubr.bf16.gmra.mrb[0].mxu0 %v449
  %v1208 = vpop.f32.mrb[0].mxu0
  %v1209 = vadd.f32 0.0, %v1208
  %v1210 = vpop.f32.mrb[0].mxu0
  %v1211 = vpop.f32.mrb[0].mxu0
  %v1212 = vadd.f32 0.0, %v1211
  %v1213 = vpop.f32.mrb[0].mxu0
  %1214 = vmatprep.mubr.bf16.mxu0 0
  %1215 = vmatmul.mubr.bf16.gmra.mrb[0].mxu0 %v450
  %v1216 = vpop.f32.mrb[0].mxu0
  %v1217 = vadd.f32 0.0, %v1216
  %v1218 = vpop.f32.mrb[0].mxu0
  %v1219 = vpop.f32.mrb[0].mxu0
  %v1220 = vadd.f32 0.0, %v1219
  %v1221 = vpop.f32.mrb[0].mxu0
  %1222 = vmatprep.mubr.bf16.mxu0 0
  %1223 = vmatmul.mubr.bf16.gmra.mrb[0].mxu0 %v451
  %v1224 = vpop.f32.mrb[0].mxu0
  %v1225 = vadd.f32 0.0, %v1224
  %v1226 = vpop.f32.mrb[0].mxu0
  %v1227 = vpop.f32.mrb[0].mxu0
  %v1228 = vadd.f32 0.0, %v1227
  %v1229 = vpop.f32.mrb[0].mxu0
  %1230 = vdwg.mxu0
  %s1231 = scalar_lea.vmem %s5, 384
  %v1232 = vld [vmem:[%s1231] sm:$0xf]
  %v1233 = vld [vmem:[%s1231 + $0x4] sm:$0xf]
  %v1234 = vld [vmem:[%s1231 + $0x8] sm:$0xf]
  %v1235 = vld [vmem:[%s1231 + $0xc] sm:$0xf]
  %v1236 = vld [vmem:[%s1231 + $0x10] sm:$0xf]
  %v1237 = vld [vmem:[%s1231 + $0x14] sm:$0xf]
  %v1238 = vld [vmem:[%s1231 + $0x18] sm:$0xf]
  %v1239 = vld [vmem:[%s1231 + $0x1c] sm:$0xf]
  %v1240 = vld [vmem:[%s1231 + $0x20] sm:$0xf]
  %v1241 = vld [vmem:[%s1231 + $0x24] sm:$0xf]
  %v1242 = vld [vmem:[%s1231 + $0x28] sm:$0xf]
  %v1243 = vld [vmem:[%s1231 + $0x2c] sm:$0xf]
  %v1244 = vld [vmem:[%s1231 + $0x30] sm:$0xf]
  %v1245 = vld [vmem:[%s1231 + $0x34] sm:$0xf]
  %v1246 = vld [vmem:[%s1231 + $0x38] sm:$0xf]
  %v1247 = vld [vmem:[%s1231 + $0x3c] sm:$0xf]
  %v1264 = vunpack.c.l.b16 %v1232
  %v1265 = vunpack.c.l.b16 %v1233
  %v1266 = vunpack.c.l.b16 %v1234
  %v1267 = vunpack.c.l.b16 %v1235
  %v1268 = vunpack.c.l.b16 %v1236
  %v1269 = vunpack.c.l.b16 %v1237
  %v1270 = vunpack.c.l.b16 %v1238
  %v1271 = vunpack.c.l.b16 %v1239
  %v1272 = vunpack.c.l.b16 %v1240
  %v1273 = vunpack.c.l.b16 %v1241
  %v1274 = vunpack.c.l.b16 %v1242
  %v1275 = vunpack.c.l.b16 %v1243
  %v1276 = vunpack.c.l.b16 %v1244
  %v1277 = vunpack.c.l.b16 %v1245
  %v1278 = vunpack.c.l.b16 %v1246
  %v1279 = vunpack.c.l.b16 %v1247
  %v1280 = vpack.c.b16 %v1265, %v1264
  %v1281 = vpack.c.b16 %v1267, %v1266
  %v1282 = vpack.c.b16 %v1269, %v1268
  %v1283 = vpack.c.b16 %v1271, %v1270
  %v1284 = vpack.c.b16 %v1273, %v1272
  %v1285 = vpack.c.b16 %v1275, %v1274
  %v1286 = vpack.c.b16 %v1277, %v1276
  %v1287 = vpack.c.b16 %v1279, %v1278
  %1296 = vmatprep.subr.bf16.mxu0 0
  %1297 = vmatpush1.bf16.msra.mxu0 %v1280
  %1298 = vmatprep.subr.bf16.mxu0 0
  %1299 = vmatpush1.bf16.msra.mxu0 %v1281
  %1300 = vmatprep.subr.bf16.mxu0 0
  %1301 = vmatpush1.bf16.msra.mxu0 %v1282
  %1302 = vmatprep.subr.bf16.mxu0 0
  %1303 = vmatpush1.bf16.msra.mxu0 %v1283
  %1304 = vmatprep.subr.bf16.mxu0 0
  %1305 = vmatpush1.bf16.msra.mxu0 %v1284
  %1306 = vmatprep.subr.bf16.mxu0 0
  %1307 = vmatpush1.bf16.msra.mxu0 %v1285
  %1308 = vmatprep.subr.bf16.mxu0 0
  %1309 = vmatpush1.bf16.msra.mxu0 %v1286
  %1310 = vmatprep.subr.bf16.mxu0 0
  %1311 = vmatpush1.bf16.msra.mxu0 %v1287
  %1312 = vmatprep.subr.bf16.mxu0 0
  %1313 = vmatpush1.bf16.msra.mxu0 0
  %1314 = vmatprep.subr.bf16.mxu0 0
  %1315 = vmatpush1.bf16.msra.mxu0 0
  %1316 = vmatprep.subr.bf16.mxu0 0
  %1317 = vmatpush1.bf16.msra.mxu0 0
  %1318 = vmatprep.subr.bf16.mxu0 0
  %1319 = vmatpush1.bf16.msra.mxu0 0
  %1320 = vmatprep.subr.bf16.mxu0 0
  %1321 = vmatpush1.bf16.msra.mxu0 0
  %1322 = vmatprep.subr.bf16.mxu0 0
  %1323 = vmatpush1.bf16.msra.mxu0 0
  %1324 = vmatprep.subr.bf16.mxu0 0
  %1325 = vmatpush1.bf16.msra.mxu0 0
  %1326 = vmatprep.subr.bf16.mxu0 0
  %1327 = vmatpush1.bf16.msra.mxu0 0
  %1328 = vmatprep.mubr.bf16.mxu0 0
  %1329 = vmatmul.mubr.bf16.gmra.mrb[0].mxu0 %v448
  %v1330 = vpop.f32.mrb[0].mxu0
  %v1331 = vadd.f32 0.0, %v1330
  %v1332 = vpop.f32.mrb[0].mxu0
  %v1333 = vpop.f32.mrb[0].mxu0
  %v1334 = vadd.f32 0.0, %v1333
  %v1335 = vpop.f32.mrb[0].mxu0
  %1336 = vmatprep.mubr.bf16.mxu0 0
  %1337 = vmatmul.mubr.bf16.gmra.mrb[0].mxu0 %v449
  %v1338 = vpop.f32.mrb[0].mxu0
  %v1339 = vadd.f32 0.0, %v1338
  %v1340 = vpop.f32.mrb[0].mxu0
  %v1341 = vpop.f32.mrb[0].mxu0
  %v1342 = vadd.f32 0.0, %v1341
  %v1343 = vpop.f32.mrb[0].mxu0
  %1344 = vmatprep.mubr.bf16.mxu0 0
  %1345 = vmatmul.mubr.bf16.gmra.mrb[0].mxu0 %v450
  %v1346 = vpop.f32.mrb[0].mxu0
  %v1347 = vadd.f32 0.0, %v1346
  %v1348 = vpop.f32.mrb[0].mxu0
  %v1349 = vpop.f32.mrb[0].mxu0
  %v1350 = vadd.f32 0.0, %v1349
  %v1351 = vpop.f32.mrb[0].mxu0
  %1352 = vmatprep.mubr.bf16.mxu0 0
  %1353 = vmatmul.mubr.bf16.gmra.mrb[0].mxu0 %v451
  %v1354 = vpop.f32.mrb[0].mxu0
  %v1355 = vadd.f32 0.0, %v1354
  %v1356 = vpop.f32.mrb[0].mxu0
  %v1357 = vpop.f32.mrb[0].mxu0
  %v1358 = vadd.f32 0.0, %v1357
  %v1359 = vpop.f32.mrb[0].mxu0
  %1360 = vdwg.mxu0
  %s1361 = scalar_lea.vmem %s5, 448
  %v1362 = vld [vmem:[%s1361] sm:$0xf]
  %v1363 = vld [vmem:[%s1361 + $0x4] sm:$0xf]
  %v1364 = vld [vmem:[%s1361 + $0x8] sm:$0xf]
  %v1365 = vld [vmem:[%s1361 + $0xc] sm:$0xf]
  %v1366 = vld [vmem:[%s1361 + $0x10] sm:$0xf]
  %v1367 = vld [vmem:[%s1361 + $0x14] sm:$0xf]
  %v1368 = vld [vmem:[%s1361 + $0x18] sm:$0xf]
  %v1369 = vld [vmem:[%s1361 + $0x1c] sm:$0xf]
  %v1370 = vld [vmem:[%s1361 + $0x20] sm:$0xf]
  %v1371 = vld [vmem:[%s1361 + $0x24] sm:$0xf]
  %v1372 = vld [vmem:[%s1361 + $0x28] sm:$0xf]
  %v1373 = vld [vmem:[%s1361 + $0x2c] sm:$0xf]
  %v1374 = vld [vmem:[%s1361 + $0x30] sm:$0xf]
  %v1375 = vld [vmem:[%s1361 + $0x34] sm:$0xf]
  %v1376 = vld [vmem:[%s1361 + $0x38] sm:$0xf]
  %v1377 = vld [vmem:[%s1361 + $0x3c] sm:$0xf]
  %v1394 = vunpack.c.l.b16 %v1362
  %v1395 = vunpack.c.l.b16 %v1363
  %v1396 = vunpack.c.l.b16 %v1364
  %v1397 = vunpack.c.l.b16 %v1365
  %v1398 = vunpack.c.l.b16 %v1366
  %v1399 = vunpack.c.l.b16 %v1367
  %v1400 = vunpack.c.l.b16 %v1368
  %v1401 = vunpack.c.l.b16 %v1369
  %v1402 = vunpack.c.l.b16 %v1370
  %v1403 = vunpack.c.l.b16 %v1371
  %v1404 = vunpack.c.l.b16 %v1372
  %v1405 = vunpack.c.l.b16 %v1373
  %v1406 = vunpack.c.l.b16 %v1374
  %v1407 = vunpack.c.l.b16 %v1375
  %v1408 = vunpack.c.l.b16 %v1376
  %v1409 = vunpack.c.l.b16 %v1377
  %v1410 = vpack.c.b16 %v1395, %v1394
  %v1411 = vpack.c.b16 %v1397, %v1396
  %v1412 = vpack.c.b16 %v1399, %v1398
  %v1413 = vpack.c.b16 %v1401, %v1400
  %v1414 = vpack.c.b16 %v1403, %v1402
  %v1415 = vpack.c.b16 %v1405, %v1404
  %v1416 = vpack.c.b16 %v1407, %v1406
  %v1417 = vpack.c.b16 %v1409, %v1408
  %1426 = vmatprep.subr.bf16.mxu0 0
  %1427 = vmatpush1.bf16.msra.mxu0 %v1410
  %1428 = vmatprep.subr.bf16.mxu0 0
  %1429 = vmatpush1.bf16.msra.mxu0 %v1411
  %1430 = vmatprep.subr.bf16.mxu0 0
  %1431 = vmatpush1.bf16.msra.mxu0 %v1412
  %1432 = vmatprep.subr.bf16.mxu0 0
  %1433 = vmatpush1.bf16.msra.mxu0 %v1413
  %1434 = vmatprep.subr.bf16.mxu0 0
  %1435 = vmatpush1.bf16.msra.mxu0 %v1414
  %1436 = vmatprep.subr.bf16.mxu0 0
  %1437 = vmatpush1.bf16.msra.mxu0 %v1415
  %1438 = vmatprep.subr.bf16.mxu0 0
  %1439 = vmatpush1.bf16.msra.mxu0 %v1416
  %1440 = vmatprep.subr.bf16.mxu0 0
  %1441 = vmatpush1.bf16.msra.mxu0 %v1417
  %1442 = vmatprep.subr.bf16.mxu0 0
  %1443 = vmatpush1.bf16.msra.mxu0 0
  %1444 = vmatprep.subr.bf16.mxu0 0
  %1445 = vmatpush1.bf16.msra.mxu0 0
  %1446 = vmatprep.subr.bf16.mxu0 0
  %1447 = vmatpush1.bf16.msra.mxu0 0
  %1448 = vmatprep.subr.bf16.mxu0 0
  %1449 = vmatpush1.bf16.msra.mxu0 0
  %1450 = vmatprep.subr.bf16.mxu0 0
  %1451 = vmatpush1.bf16.msra.mxu0 0
  %1452 = vmatprep.subr.bf16.mxu0 0
  %1453 = vmatpush1.bf16.msra.mxu0 0
  %1454 = vmatprep.subr.bf16.mxu0 0
  %1455 = vmatpush1.bf16.msra.mxu0 0
  %1456 = vmatprep.subr.bf16.mxu0 0
  %1457 = vmatpush1.bf16.msra.mxu0 0
  %1458 = vmatprep.mubr.bf16.mxu0 0
  %1459 = vmatmul.mubr.bf16.gmra.mrb[0].mxu0 %v448
  %v1460 = vpop.f32.mrb[0].mxu0
  %v1461 = vadd.f32 0.0, %v1460
  %v1462 = vpop.f32.mrb[0].mxu0
  %v1463 = vpop.f32.mrb[0].mxu0
  %v1464 = vadd.f32 0.0, %v1463
  %v1465 = vpop.f32.mrb[0].mxu0
  %1466 = vmatprep.mubr.bf16.mxu0 0
  %1467 = vmatmul.mubr.bf16.gmra.mrb[0].mxu0 %v449
  %v1468 = vpop.f32.mrb[0].mxu0
  %v1469 = vadd.f32 0.0, %v1468
  %v1470 = vpop.f32.mrb[0].mxu0
  %v1471 = vpop.f32.mrb[0].mxu0
  %v1472 = vadd.f32 0.0, %v1471
  %v1473 = vpop.f32.mrb[0].mxu0
  %1474 = vmatprep.mubr.bf16.mxu0 0
  %1475 = vmatmul.mubr.bf16.gmra.mrb[0].mxu0 %v450
  %v1476 = vpop.f32.mrb[0].mxu0
  %v1477 = vadd.f32 0.0, %v1476
  %v1478 = vpop.f32.mrb[0].mxu0
  %v1479 = vpop.f32.mrb[0].mxu0
  %v1480 = vadd.f32 0.0, %v1479
  %v1481 = vpop.f32.mrb[0].mxu0
  %1482 = vmatprep.mubr.bf16.mxu0 0
  %1483 = vmatmul.mubr.bf16.gmra.mrb[0].mxu0 %v451
  %v1484 = vpop.f32.mrb[0].mxu0
  %v1485 = vadd.f32 0.0, %v1484
  %v1486 = vpop.f32.mrb[0].mxu0
  %v1487 = vpop.f32.mrb[0].mxu0
  %v1488 = vadd.f32 0.0, %v1487
  %v1489 = vpop.f32.mrb[0].mxu0
  %1490 = vdwg.mxu0
  %s1491 = scalar_lea.vmem %s5, 512
  %v1492 = vld [vmem:[%s1491] sm:$0xf]
  %v1493 = vld [vmem:[%s1491 + $0x4] sm:$0xf]
  %v1494 = vld [vmem:[%s1491 + $0x8] sm:$0xf]
  %v1495 = vld [vmem:[%s1491 + $0xc] sm:$0xf]
  %v1496 = vld [vmem:[%s1491 + $0x10] sm:$0xf]
  %v1497 = vld [vmem:[%s1491 + $0x14] sm:$0xf]
  %v1498 = vld [vmem:[%s1491 + $0x18] sm:$0xf]
  %v1499 = vld [vmem:[%s1491 + $0x1c] sm:$0xf]
  %v1500 = vld [vmem:[%s1491 + $0x20] sm:$0xf]
  %v1501 = vld [vmem:[%s1491 + $0x24] sm:$0xf]
  %v1502 = vld [vmem:[%s1491 + $0x28] sm:$0xf]
  %v1503 = vld [vmem:[%s1491 + $0x2c] sm:$0xf]
  %v1504 = vld [vmem:[%s1491 + $0x30] sm:$0xf]
  %v1505 = vld [vmem:[%s1491 + $0x34] sm:$0xf]
  %v1506 = vld [vmem:[%s1491 + $0x38] sm:$0xf]
  %v1507 = vld [vmem:[%s1491 + $0x3c] sm:$0xf]
  %v1524 = vunpack.c.l.b16 %v1492
  %v1525 = vunpack.c.l.b16 %v1493
  %v1526 = vunpack.c.l.b16 %v1494
  %v1527 = vunpack.c.l.b16 %v1495
  %v1528 = vunpack.c.l.b16 %v1496
  %v1529 = vunpack.c.l.b16 %v1497
  %v1530 = vunpack.c.l.b16 %v1498
  %v1531 = vunpack.c.l.b16 %v1499
  %v1532 = vunpack.c.l.b16 %v1500
  %v1533 = vunpack.c.l.b16 %v1501
  %v1534 = vunpack.c.l.b16 %v1502
  %v1535 = vunpack.c.l.b16 %v1503
  %v1536 = vunpack.c.l.b16 %v1504
  %v1537 = vunpack.c.l.b16 %v1505
  %v1538 = vunpack.c.l.b16 %v1506
  %v1539 = vunpack.c.l.b16 %v1507
  %v1540 = vpack.c.b16 %v1525, %v1524
  %v1541 = vpack.c.b16 %v1527, %v1526
  %v1542 = vpack.c.b16 %v1529, %v1528
  %v1543 = vpack.c.b16 %v1531, %v1530
  %v1544 = vpack.c.b16 %v1533, %v1532
  %v1545 = vpack.c.b16 %v1535, %v1534
  %v1546 = vpack.c.b16 %v1537, %v1536
  %v1547 = vpack.c.b16 %v1539, %v1538
  %1556 = vmatprep.subr.bf16.mxu0 0
  %1557 = vmatpush1.bf16.msra.mxu0 %v1540
  %1558 = vmatprep.subr.bf16.mxu0 0
  %1559 = vmatpush1.bf16.msra.mxu0 %v1541
  %1560 = vmatprep.subr.bf16.mxu0 0
  %1561 = vmatpush1.bf16.msra.mxu0 %v1542
  %1562 = vmatprep.subr.bf16.mxu0 0
  %1563 = vmatpush1.bf16.msra.mxu0 %v1543
  %1564 = vmatprep.subr.bf16.mxu0 0
  %1565 = vmatpush1.bf16.msra.mxu0 %v1544
  %1566 = vmatprep.subr.bf16.mxu0 0
  %1567 = vmatpush1.bf16.msra.mxu0 %v1545
  %1568 = vmatprep.subr.bf16.mxu0 0
  %1569 = vmatpush1.bf16.msra.mxu0 %v1546
  %1570 = vmatprep.subr.bf16.mxu0 0
  %1571 = vmatpush1.bf16.msra.mxu0 %v1547
  %1572 = vmatprep.subr.bf16.mxu0 0
  %1573 = vmatpush1.bf16.msra.mxu0 0
  %1574 = vmatprep.subr.bf16.mxu0 0
  %1575 = vmatpush1.bf16.msra.mxu0 0
  %1576 = vmatprep.subr.bf16.mxu0 0
  %1577 = vmatpush1.bf16.msra.mxu0 0
  %1578 = vmatprep.subr.bf16.mxu0 0
  %1579 = vmatpush1.bf16.msra.mxu0 0
  %1580 = vmatprep.subr.bf16.mxu0 0
  %1581 = vmatpush1.bf16.msra.mxu0 0
  %1582 = vmatprep.subr.bf16.mxu0 0
  %1583 = vmatpush1.bf16.msra.mxu0 0
  %1584 = vmatprep.subr.bf16.mxu0 0
  %1585 = vmatpush1.bf16.msra.mxu0 0
  %1586 = vmatprep.subr.bf16.mxu0 0
  %1587 = vmatpush1.bf16.msra.mxu0 0
  %1588 = vmatprep.mubr.bf16.mxu0 0
  %1589 = vmatmul.mubr.bf16.gmra.mrb[0].mxu0 %v448
  %v1590 = vpop.f32.mrb[0].mxu0
  %v1591 = vadd.f32 0.0, %v1590
  %v1592 = vpop.f32.mrb[0].mxu0
  %v1593 = vpop.f32.mrb[0].mxu0
  %v1594 = vadd.f32 0.0, %v1593
  %v1595 = vpop.f32.mrb[0].mxu0
  %1596 = vmatprep.mubr.bf16.mxu0 0
  %1597 = vmatmul.mubr.bf16.gmra.mrb[0].mxu0 %v449
  %v1598 = vpop.f32.mrb[0].mxu0
  %v1599 = vadd.f32 0.0, %v1598
  %v1600 = vpop.f32.mrb[0].mxu0
  %v1601 = vpop.f32.mrb[0].mxu0
  %v1602 = vadd.f32 0.0, %v1601
  %v1603 = vpop.f32.mrb[0].mxu0
  %1604 = vmatprep.mubr.bf16.mxu0 0
  %1605 = vmatmul.mubr.bf16.gmra.mrb[0].mxu0 %v450
  %v1606 = vpop.f32.mrb[0].mxu0
  %v1607 = vadd.f32 0.0, %v1606
  %v1608 = vpop.f32.mrb[0].mxu0
  %v1609 = vpop.f32.mrb[0].mxu0
  %v1610 = vadd.f32 0.0, %v1609
  %v1611 = vpop.f32.mrb[0].mxu0
  %1612 = vmatprep.mubr.bf16.mxu0 0
  %1613 = vmatmul.mubr.bf16.gmra.mrb[0].mxu0 %v451
  %v1614 = vpop.f32.mrb[0].mxu0
  %v1615 = vadd.f32 0.0, %v1614
  %v1616 = vpop.f32.mrb[0].mxu0
  %v1617 = vpop.f32.mrb[0].mxu0
  %v1618 = vadd.f32 0.0, %v1617
  %v1619 = vpop.f32.mrb[0].mxu0
  %1620 = vdwg.mxu0
  %s1621 = scalar_lea.vmem %s5, 576
  %v1622 = vld [vmem:[%s1621] sm:$0xf]
  %v1623 = vld [vmem:[%s1621 + $0x4] sm:$0xf]
  %v1624 = vld [vmem:[%s1621 + $0x8] sm:$0xf]
  %v1625 = vld [vmem:[%s1621 + $0xc] sm:$0xf]
  %v1626 = vld [vmem:[%s1621 + $0x10] sm:$0xf]
  %v1627 = vld [vmem:[%s1621 + $0x14] sm:$0xf]
  %v1628 = vld [vmem:[%s1621 + $0x18] sm:$0xf]
  %v1629 = vld [vmem:[%s1621 + $0x1c] sm:$0xf]
  %v1630 = vld [vmem:[%s1621 + $0x20] sm:$0xf]
  %v1631 = vld [vmem:[%s1621 + $0x24] sm:$0xf]
  %v1632 = vld [vmem:[%s1621 + $0x28] sm:$0xf]
  %v1633 = vld [vmem:[%s1621 + $0x2c] sm:$0xf]
  %v1634 = vld [vmem:[%s1621 + $0x30] sm:$0xf]
  %v1635 = vld [vmem:[%s1621 + $0x34] sm:$0xf]
  %v1636 = vld [vmem:[%s1621 + $0x38] sm:$0xf]
  %v1637 = vld [vmem:[%s1621 + $0x3c] sm:$0xf]
  %v1654 = vunpack.c.l.b16 %v1622
  %v1655 = vunpack.c.l.b16 %v1623
  %v1656 = vunpack.c.l.b16 %v1624
  %v1657 = vunpack.c.l.b16 %v1625
  %v1658 = vunpack.c.l.b16 %v1626
  %v1659 = vunpack.c.l.b16 %v1627
  %v1660 = vunpack.c.l.b16 %v1628
  %v1661 = vunpack.c.l.b16 %v1629
  %v1662 = vunpack.c.l.b16 %v1630
  %v1663 = vunpack.c.l.b16 %v1631
  %v1664 = vunpack.c.l.b16 %v1632
  %v1665 = vunpack.c.l.b16 %v1633
  %v1666 = vunpack.c.l.b16 %v1634
  %v1667 = vunpack.c.l.b16 %v1635
  %v1668 = vunpack.c.l.b16 %v1636
  %v1669 = vunpack.c.l.b16 %v1637
  %v1670 = vpack.c.b16 %v1655, %v1654
  %v1671 = vpack.c.b16 %v1657, %v1656
  %v1672 = vpack.c.b16 %v1659, %v1658
  %v1673 = vpack.c.b16 %v1661, %v1660
  %v1674 = vpack.c.b16 %v1663, %v1662
  %v1675 = vpack.c.b16 %v1665, %v1664
  %v1676 = vpack.c.b16 %v1667, %v1666
  %v1677 = vpack.c.b16 %v1669, %v1668
  %1686 = vmatprep.subr.bf16.mxu0 0
  %1687 = vmatpush1.bf16.msra.mxu0 %v1670
  %1688 = vmatprep.subr.bf16.mxu0 0
  %1689 = vmatpush1.bf16.msra.mxu0 %v1671
  %1690 = vmatprep.subr.bf16.mxu0 0
  %1691 = vmatpush1.bf16.msra.mxu0 %v1672
  %1692 = vmatprep.subr.bf16.mxu0 0
  %1693 = vmatpush1.bf16.msra.mxu0 %v1673
  %1694 = vmatprep.subr.bf16.mxu0 0
  %1695 = vmatpush1.bf16.msra.mxu0 %v1674
  %1696 = vmatprep.subr.bf16.mxu0 0
  %1697 = vmatpush1.bf16.msra.mxu0 %v1675
  %1698 = vmatprep.subr.bf16.mxu0 0
  %1699 = vmatpush1.bf16.msra.mxu0 %v1676
  %1700 = vmatprep.subr.bf16.mxu0 0
  %1701 = vmatpush1.bf16.msra.mxu0 %v1677
  %1702 = vmatprep.subr.bf16.mxu0 0
  %1703 = vmatpush1.bf16.msra.mxu0 0
  %1704 = vmatprep.subr.bf16.mxu0 0
  %1705 = vmatpush1.bf16.msra.mxu0 0
  %1706 = vmatprep.subr.bf16.mxu0 0
  %1707 = vmatpush1.bf16.msra.mxu0 0
  %1708 = vmatprep.subr.bf16.mxu0 0
  %1709 = vmatpush1.bf16.msra.mxu0 0
  %1710 = vmatprep.subr.bf16.mxu0 0
  %1711 = vmatpush1.bf16.msra.mxu0 0
  %1712 = vmatprep.subr.bf16.mxu0 0
  %1713 = vmatpush1.bf16.msra.mxu0 0
  %1714 = vmatprep.subr.bf16.mxu0 0
  %1715 = vmatpush1.bf16.msra.mxu0 0
  %1716 = vmatprep.subr.bf16.mxu0 0
  %1717 = vmatpush1.bf16.msra.mxu0 0
  %1718 = vmatprep.mubr.bf16.mxu0 0
  %1719 = vmatmul.mubr.bf16.gmra.mrb[0].mxu0 %v448
  %v1720 = vpop.f32.mrb[0].mxu0
  %v1721 = vadd.f32 0.0, %v1720
  %v1722 = vpop.f32.mrb[0].mxu0
  %v1723 = vpop.f32.mrb[0].mxu0
  %v1724 = vadd.f32 0.0, %v1723
  %v1725 = vpop.f32.mrb[0].mxu0
  %1726 = vmatprep.mubr.bf16.mxu0 0
  %1727 = vmatmul.mubr.bf16.gmra.mrb[0].mxu0 %v449
  %v1728 = vpop.f32.mrb[0].mxu0
  %v1729 = vadd.f32 0.0, %v1728
  %v1730 = vpop.f32.mrb[0].mxu0
  %v1731 = vpop.f32.mrb[0].mxu0
  %v1732 = vadd.f32 0.0, %v1731
  %v1733 = vpop.f32.mrb[0].mxu0
  %1734 = vmatprep.mubr.bf16.mxu0 0
  %1735 = vmatmul.mubr.bf16.gmra.mrb[0].mxu0 %v450
  %v1736 = vpop.f32.mrb[0].mxu0
  %v1737 = vadd.f32 0.0, %v1736
  %v1738 = vpop.f32.mrb[0].mxu0
  %v1739 = vpop.f32.mrb[0].mxu0
  %v1740 = vadd.f32 0.0, %v1739
  %v1741 = vpop.f32.mrb[0].mxu0
  %1742 = vmatprep.mubr.bf16.mxu0 0
  %1743 = vmatmul.mubr.bf16.gmra.mrb[0].mxu0 %v451
  %v1744 = vpop.f32.mrb[0].mxu0
  %v1745 = vadd.f32 0.0, %v1744
  %v1746 = vpop.f32.mrb[0].mxu0
  %v1747 = vpop.f32.mrb[0].mxu0
  %v1748 = vadd.f32 0.0, %v1747
  %v1749 = vpop.f32.mrb[0].mxu0
  %1750 = vdwg.mxu0
  %s1751 = scalar_lea.vmem %s5, 640
  %v1752 = vld [vmem:[%s1751] sm:$0xf]
  %v1753 = vld [vmem:[%s1751 + $0x4] sm:$0xf]
  %v1754 = vld [vmem:[%s1751 + $0x8] sm:$0xf]
  %v1755 = vld [vmem:[%s1751 + $0xc] sm:$0xf]
  %v1756 = vld [vmem:[%s1751 + $0x10] sm:$0xf]
  %v1757 = vld [vmem:[%s1751 + $0x14] sm:$0xf]
  %v1758 = vld [vmem:[%s1751 + $0x18] sm:$0xf]
  %v1759 = vld [vmem:[%s1751 + $0x1c] sm:$0xf]
  %v1760 = vld [vmem:[%s1751 + $0x20] sm:$0xf]
  %v1761 = vld [vmem:[%s1751 + $0x24] sm:$0xf]
  %v1762 = vld [vmem:[%s1751 + $0x28] sm:$0xf]
  %v1763 = vld [vmem:[%s1751 + $0x2c] sm:$0xf]
  %v1764 = vld [vmem:[%s1751 + $0x30] sm:$0xf]
  %v1765 = vld [vmem:[%s1751 + $0x34] sm:$0xf]
  %v1766 = vld [vmem:[%s1751 + $0x38] sm:$0xf]
  %v1767 = vld [vmem:[%s1751 + $0x3c] sm:$0xf]
  %v1784 = vunpack.c.l.b16 %v1752
  %v1785 = vunpack.c.l.b16 %v1753
  %v1786 = vunpack.c.l.b16 %v1754
  %v1787 = vunpack.c.l.b16 %v1755
  %v1788 = vunpack.c.l.b16 %v1756
  %v1789 = vunpack.c.l.b16 %v1757
  %v1790 = vunpack.c.l.b16 %v1758
  %v1791 = vunpack.c.l.b16 %v1759
  %v1792 = vunpack.c.l.b16 %v1760
  %v1793 = vunpack.c.l.b16 %v1761
  %v1794 = vunpack.c.l.b16 %v1762
  %v1795 = vunpack.c.l.b16 %v1763
  %v1796 = vunpack.c.l.b16 %v1764
  %v1797 = vunpack.c.l.b16 %v1765
  %v1798 = vunpack.c.l.b16 %v1766
  %v1799 = vunpack.c.l.b16 %v1767
  %v1800 = vpack.c.b16 %v1785, %v1784
  %v1801 = vpack.c.b16 %v1787, %v1786
  %v1802 = vpack.c.b16 %v1789, %v1788
  %v1803 = vpack.c.b16 %v1791, %v1790
  %v1804 = vpack.c.b16 %v1793, %v1792
  %v1805 = vpack.c.b16 %v1795, %v1794
  %v1806 = vpack.c.b16 %v1797, %v1796
  %v1807 = vpack.c.b16 %v1799, %v1798
  %1816 = vmatprep.subr.bf16.mxu0 0
  %1817 = vmatpush1.bf16.msra.mxu0 %v1800
  %1818 = vmatprep.subr.bf16.mxu0 0
  %1819 = vmatpush1.bf16.msra.mxu0 %v1801
  %1820 = vmatprep.subr.bf16.mxu0 0
  %1821 = vmatpush1.bf16.msra.mxu0 %v1802
  %1822 = vmatprep.subr.bf16.mxu0 0
  %1823 = vmatpush1.bf16.msra.mxu0 %v1803
  %1824 = vmatprep.subr.bf16.mxu0 0
  %1825 = vmatpush1.bf16.msra.mxu0 %v1804
  %1826 = vmatprep.subr.bf16.mxu0 0
  %1827 = vmatpush1.bf16.msra.mxu0 %v1805
  %1828 = vmatprep.subr.bf16.mxu0 0
  %1829 = vmatpush1.bf16.msra.mxu0 %v1806
  %1830 = vmatprep.subr.bf16.mxu0 0
  %1831 = vmatpush1.bf16.msra.mxu0 %v1807
  %1832 = vmatprep.subr.bf16.mxu0 0
  %1833 = vmatpush1.bf16.msra.mxu0 0
  %1834 = vmatprep.subr.bf16.mxu0 0
  %1835 = vmatpush1.bf16.msra.mxu0 0
  %1836 = vmatprep.subr.bf16.mxu0 0
  %1837 = vmatpush1.bf16.msra.mxu0 0
  %1838 = vmatprep.subr.bf16.mxu0 0
  %1839 = vmatpush1.bf16.msra.mxu0 0
  %1840 = vmatprep.subr.bf16.mxu0 0
  %1841 = vmatpush1.bf16.msra.mxu0 0
  %1842 = vmatprep.subr.bf16.mxu0 0
  %1843 = vmatpush1.bf16.msra.mxu0 0
  %1844 = vmatprep.subr.bf16.mxu0 0
  %1845 = vmatpush1.bf16.msra.mxu0 0
  %1846 = vmatprep.subr.bf16.mxu0 0
  %1847 = vmatpush1.bf16.msra.mxu0 0
  %1848 = vmatprep.mubr.bf16.mxu0 0
  %1849 = vmatmul.mubr.bf16.gmra.mrb[0].mxu0 %v448
  %v1850 = vpop.f32.mrb[0].mxu0
  %v1851 = vadd.f32 0.0, %v1850
  %v1852 = vpop.f32.mrb[0].mxu0
  %v1853 = vpop.f32.mrb[0].mxu0
  %v1854 = vadd.f32 0.0, %v1853
  %v1855 = vpop.f32.mrb[0].mxu0
  %1856 = vmatprep.mubr.bf16.mxu0 0
  %1857 = vmatmul.mubr.bf16.gmra.mrb[0].mxu0 %v449
  %v1858 = vpop.f32.mrb[0].mxu0
  %v1859 = vadd.f32 0.0, %v1858
  %v1860 = vpop.f32.mrb[0].mxu0
  %v1861 = vpop.f32.mrb[0].mxu0
  %v1862 = vadd.f32 0.0, %v1861
  %v1863 = vpop.f32.mrb[0].mxu0
  %1864 = vmatprep.mubr.bf16.mxu0 0
  %1865 = vmatmul.mubr.bf16.gmra.mrb[0].mxu0 %v450
  %v1866 = vpop.f32.mrb[0].mxu0
  %v1867 = vadd.f32 0.0, %v1866
  %v1868 = vpop.f32.mrb[0].mxu0
  %v1869 = vpop.f32.mrb[0].mxu0
  %v1870 = vadd.f32 0.0, %v1869
  %v1871 = vpop.f32.mrb[0].mxu0
  %1872 = vmatprep.mubr.bf16.mxu0 0
  %1873 = vmatmul.mubr.bf16.gmra.mrb[0].mxu0 %v451
  %v1874 = vpop.f32.mrb[0].mxu0
  %v1875 = vadd.f32 0.0, %v1874
  %v1876 = vpop.f32.mrb[0].mxu0
  %v1877 = vpop.f32.mrb[0].mxu0
  %v1878 = vadd.f32 0.0, %v1877
  %v1879 = vpop.f32.mrb[0].mxu0
  %1880 = vdwg.mxu0
  %s1881 = scalar_lea.vmem %s5, 704
  %v1882 = vld [vmem:[%s1881] sm:$0xf]
  %v1883 = vld [vmem:[%s1881 + $0x4] sm:$0xf]
  %v1884 = vld [vmem:[%s1881 + $0x8] sm:$0xf]
  %v1885 = vld [vmem:[%s1881 + $0xc] sm:$0xf]
  %v1886 = vld [vmem:[%s1881 + $0x10] sm:$0xf]
  %v1887 = vld [vmem:[%s1881 + $0x14] sm:$0xf]
  %v1888 = vld [vmem:[%s1881 + $0x18] sm:$0xf]
  %v1889 = vld [vmem:[%s1881 + $0x1c] sm:$0xf]
  %v1890 = vld [vmem:[%s1881 + $0x20] sm:$0xf]
  %v1891 = vld [vmem:[%s1881 + $0x24] sm:$0xf]
  %v1892 = vld [vmem:[%s1881 + $0x28] sm:$0xf]
  %v1893 = vld [vmem:[%s1881 + $0x2c] sm:$0xf]
  %v1894 = vld [vmem:[%s1881 + $0x30] sm:$0xf]
  %v1895 = vld [vmem:[%s1881 + $0x34] sm:$0xf]
  %v1896 = vld [vmem:[%s1881 + $0x38] sm:$0xf]
  %v1897 = vld [vmem:[%s1881 + $0x3c] sm:$0xf]
  %v1914 = vunpack.c.l.b16 %v1882
  %v1915 = vunpack.c.l.b16 %v1883
  %v1916 = vunpack.c.l.b16 %v1884
  %v1917 = vunpack.c.l.b16 %v1885
  %v1918 = vunpack.c.l.b16 %v1886
  %v1919 = vunpack.c.l.b16 %v1887
  %v1920 = vunpack.c.l.b16 %v1888
  %v1921 = vunpack.c.l.b16 %v1889
  %v1922 = vunpack.c.l.b16 %v1890
  %v1923 = vunpack.c.l.b16 %v1891
  %v1924 = vunpack.c.l.b16 %v1892
  %v1925 = vunpack.c.l.b16 %v1893
  %v1926 = vunpack.c.l.b16 %v1894
  %v1927 = vunpack.c.l.b16 %v1895
  %v1928 = vunpack.c.l.b16 %v1896
  %v1929 = vunpack.c.l.b16 %v1897
  %v1930 = vpack.c.b16 %v1915, %v1914
  %v1931 = vpack.c.b16 %v1917, %v1916
  %v1932 = vpack.c.b16 %v1919, %v1918
  %v1933 = vpack.c.b16 %v1921, %v1920
  %v1934 = vpack.c.b16 %v1923, %v1922
  %v1935 = vpack.c.b16 %v1925, %v1924
  %v1936 = vpack.c.b16 %v1927, %v1926
  %v1937 = vpack.c.b16 %v1929, %v1928
  %1946 = vmatprep.subr.bf16.mxu0 0
  %1947 = vmatpush1.bf16.msra.mxu0 %v1930
  %1948 = vmatprep.subr.bf16.mxu0 0
  %1949 = vmatpush1.bf16.msra.mxu0 %v1931
  %1950 = vmatprep.subr.bf16.mxu0 0
  %1951 = vmatpush1.bf16.msra.mxu0 %v1932
  %1952 = vmatprep.subr.bf16.mxu0 0
  %1953 = vmatpush1.bf16.msra.mxu0 %v1933
  %1954 = vmatprep.subr.bf16.mxu0 0
  %1955 = vmatpush1.bf16.msra.mxu0 %v1934
  %1956 = vmatprep.subr.bf16.mxu0 0
  %1957 = vmatpush1.bf16.msra.mxu0 %v1935
  %1958 = vmatprep.subr.bf16.mxu0 0
  %1959 = vmatpush1.bf16.msra.mxu0 %v1936
  %1960 = vmatprep.subr.bf16.mxu0 0
  %1961 = vmatpush1.bf16.msra.mxu0 %v1937
  %1962 = vmatprep.subr.bf16.mxu0 0
  %1963 = vmatpush1.bf16.msra.mxu0 0
  %1964 = vmatprep.subr.bf16.mxu0 0
  %1965 = vmatpush1.bf16.msra.mxu0 0
  %1966 = vmatprep.subr.bf16.mxu0 0
  %1967 = vmatpush1.bf16.msra.mxu0 0
  %1968 = vmatprep.subr.bf16.mxu0 0
  %1969 = vmatpush1.bf16.msra.mxu0 0
  %1970 = vmatprep.subr.bf16.mxu0 0
  %1971 = vmatpush1.bf16.msra.mxu0 0
  %1972 = vmatprep.subr.bf16.mxu0 0
  %1973 = vmatpush1.bf16.msra.mxu0 0
  %1974 = vmatprep.subr.bf16.mxu0 0
  %1975 = vmatpush1.bf16.msra.mxu0 0
  %1976 = vmatprep.subr.bf16.mxu0 0
  %1977 = vmatpush1.bf16.msra.mxu0 0
  %1978 = vmatprep.mubr.bf16.mxu0 0
  %1979 = vmatmul.mubr.bf16.gmra.mrb[0].mxu0 %v448
  %v1980 = vpop.f32.mrb[0].mxu0
  %v1981 = vadd.f32 0.0, %v1980
  %v1982 = vpop.f32.mrb[0].mxu0
  %v1983 = vpop.f32.mrb[0].mxu0
  %v1984 = vadd.f32 0.0, %v1983
  %v1985 = vpop.f32.mrb[0].mxu0
  %1986 = vmatprep.mubr.bf16.mxu0 0
  %1987 = vmatmul.mubr.bf16.gmra.mrb[0].mxu0 %v449
  %v1988 = vpop.f32.mrb[0].mxu0
  %v1989 = vadd.f32 0.0, %v1988
  %v1990 = vpop.f32.mrb[0].mxu0
  %v1991 = vpop.f32.mrb[0].mxu0
  %v1992 = vadd.f32 0.0, %v1991
  %v1993 = vpop.f32.mrb[0].mxu0
  %1994 = vmatprep.mubr.bf16.mxu0 0
  %1995 = vmatmul.mubr.bf16.gmra.mrb[0].mxu0 %v450
  %v1996 = vpop.f32.mrb[0].mxu0
  %v1997 = vadd.f32 0.0, %v1996
  %v1998 = vpop.f32.mrb[0].mxu0
  %v1999 = vpop.f32.mrb[0].mxu0
  %v2000 = vadd.f32 0.0, %v1999
  %v2001 = vpop.f32.mrb[0].mxu0
  %2002 = vmatprep.mubr.bf16.mxu0 0
  %2003 = vmatmul.mubr.bf16.gmra.mrb[0].mxu0 %v451
  %v2004 = vpop.f32.mrb[0].mxu0
  %v2005 = vadd.f32 0.0, %v2004
  %v2006 = vpop.f32.mrb[0].mxu0
  %v2007 = vpop.f32.mrb[0].mxu0
  %v2008 = vadd.f32 0.0, %v2007
  %v2009 = vpop.f32.mrb[0].mxu0
  %2010 = vdwg.mxu0
  %s2011 = scalar_lea.vmem %s5, 768
  %v2012 = vld [vmem:[%s2011] sm:$0xf]
  %v2013 = vld [vmem:[%s2011 + $0x4] sm:$0xf]
  %v2014 = vld [vmem:[%s2011 + $0x8] sm:$0xf]
  %v2015 = vld [vmem:[%s2011 + $0xc] sm:$0xf]
  %v2016 = vld [vmem:[%s2011 + $0x10] sm:$0xf]
  %v2017 = vld [vmem:[%s2011 + $0x14] sm:$0xf]
  %v2018 = vld [vmem:[%s2011 + $0x18] sm:$0xf]
  %v2019 = vld [vmem:[%s2011 + $0x1c] sm:$0xf]
  %v2020 = vld [vmem:[%s2011 + $0x20] sm:$0xf]
  %v2021 = vld [vmem:[%s2011 + $0x24] sm:$0xf]
  %v2022 = vld [vmem:[%s2011 + $0x28] sm:$0xf]
  %v2023 = vld [vmem:[%s2011 + $0x2c] sm:$0xf]
  %v2024 = vld [vmem:[%s2011 + $0x30] sm:$0xf]
  %v2025 = vld [vmem:[%s2011 + $0x34] sm:$0xf]
  %v2026 = vld [vmem:[%s2011 + $0x38] sm:$0xf]
  %v2027 = vld [vmem:[%s2011 + $0x3c] sm:$0xf]
  %v2044 = vunpack.c.l.b16 %v2012
  %v2045 = vunpack.c.l.b16 %v2013
  %v2046 = vunpack.c.l.b16 %v2014
  %v2047 = vunpack.c.l.b16 %v2015
  %v2048 = vunpack.c.l.b16 %v2016
  %v2049 = vunpack.c.l.b16 %v2017
  %v2050 = vunpack.c.l.b16 %v2018
  %v2051 = vunpack.c.l.b16 %v2019
  %v2052 = vunpack.c.l.b16 %v2020
  %v2053 = vunpack.c.l.b16 %v2021
  %v2054 = vunpack.c.l.b16 %v2022
  %v2055 = vunpack.c.l.b16 %v2023
  %v2056 = vunpack.c.l.b16 %v2024
  %v2057 = vunpack.c.l.b16 %v2025
  %v2058 = vunpack.c.l.b16 %v2026
  %v2059 = vunpack.c.l.b16 %v2027
  %v2060 = vpack.c.b16 %v2045, %v2044
  %v2061 = vpack.c.b16 %v2047, %v2046
  %v2062 = vpack.c.b16 %v2049, %v2048
  %v2063 = vpack.c.b16 %v2051, %v2050
  %v2064 = vpack.c.b16 %v2053, %v2052
  %v2065 = vpack.c.b16 %v2055, %v2054
  %v2066 = vpack.c.b16 %v2057, %v2056
  %v2067 = vpack.c.b16 %v2059, %v2058
  %2076 = vmatprep.subr.bf16.mxu0 0
  %2077 = vmatpush1.bf16.msra.mxu0 %v2060
  %2078 = vmatprep.subr.bf16.mxu0 0
  %2079 = vmatpush1.bf16.msra.mxu0 %v2061
  %2080 = vmatprep.subr.bf16.mxu0 0
  %2081 = vmatpush1.bf16.msra.mxu0 %v2062
  %2082 = vmatprep.subr.bf16.mxu0 0
  %2083 = vmatpush1.bf16.msra.mxu0 %v2063
  %2084 = vmatprep.subr.bf16.mxu0 0
  %2085 = vmatpush1.bf16.msra.mxu0 %v2064
  %2086 = vmatprep.subr.bf16.mxu0 0
  %2087 = vmatpush1.bf16.msra.mxu0 %v2065
  %2088 = vmatprep.subr.bf16.mxu0 0
  %2089 = vmatpush1.bf16.msra.mxu0 %v2066
  %2090 = vmatprep.subr.bf16.mxu0 0
  %2091 = vmatpush1.bf16.msra.mxu0 %v2067
  %2092 = vmatprep.subr.bf16.mxu0 0
  %2093 = vmatpush1.bf16.msra.mxu0 0
  %2094 = vmatprep.subr.bf16.mxu0 0
  %2095 = vmatpush1.bf16.msra.mxu0 0
  %2096 = vmatprep.subr.bf16.mxu0 0
  %2097 = vmatpush1.bf16.msra.mxu0 0
  %2098 = vmatprep.subr.bf16.mxu0 0
  %2099 = vmatpush1.bf16.msra.mxu0 0
  %2100 = vmatprep.subr.bf16.mxu0 0
  %2101 = vmatpush1.bf16.msra.mxu0 0
  %2102 = vmatprep.subr.bf16.mxu0 0
  %2103 = vmatpush1.bf16.msra.mxu0 0
  %2104 = vmatprep.subr.bf16.mxu0 0
  %2105 = vmatpush1.bf16.msra.mxu0 0
  %2106 = vmatprep.subr.bf16.mxu0 0
  %2107 = vmatpush1.bf16.msra.mxu0 0
  %2108 = vmatprep.mubr.bf16.mxu0 0
  %2109 = vmatmul.mubr.bf16.gmra.mrb[0].mxu0 %v448
  %v2110 = vpop.f32.mrb[0].mxu0
  %v2111 = vadd.f32 0.0, %v2110
  %v2112 = vpop.f32.mrb[0].mxu0
  %v2113 = vpop.f32.mrb[0].mxu0
  %v2114 = vadd.f32 0.0, %v2113
  %v2115 = vpop.f32.mrb[0].mxu0
  %2116 = vmatprep.mubr.bf16.mxu0 0
  %2117 = vmatmul.mubr.bf16.gmra.mrb[0].mxu0 %v449
  %v2118 = vpop.f32.mrb[0].mxu0
  %v2119 = vadd.f32 0.0, %v2118
  %v2120 = vpop.f32.mrb[0].mxu0
  %v2121 = vpop.f32.mrb[0].mxu0
  %v2122 = vadd.f32 0.0, %v2121
  %v2123 = vpop.f32.mrb[0].mxu0
  %2124 = vmatprep.mubr.bf16.mxu0 0
  %2125 = vmatmul.mubr.bf16.gmra.mrb[0].mxu0 %v450
  %v2126 = vpop.f32.mrb[0].mxu0
  %v2127 = vadd.f32 0.0, %v2126
  %v2128 = vpop.f32.mrb[0].mxu0
  %v2129 = vpop.f32.mrb[0].mxu0
  %v2130 = vadd.f32 0.0, %v2129
  %v2131 = vpop.f32.mrb[0].mxu0
  %2132 = vmatprep.mubr.bf16.mxu0 0
  %2133 = vmatmul.mubr.bf16.gmra.mrb[0].mxu0 %v451
  %v2134 = vpop.f32.mrb[0].mxu0
  %v2135 = vadd.f32 0.0, %v2134
  %v2136 = vpop.f32.mrb[0].mxu0
  %v2137 = vpop.f32.mrb[0].mxu0
  %v2138 = vadd.f32 0.0, %v2137
  %v2139 = vpop.f32.mrb[0].mxu0
  %2140 = vdwg.mxu0
  %s2141 = scalar_lea.vmem %s5, 832
  %v2142 = vld [vmem:[%s2141] sm:$0xf]
  %v2143 = vld [vmem:[%s2141 + $0x4] sm:$0xf]
  %v2144 = vld [vmem:[%s2141 + $0x8] sm:$0xf]
  %v2145 = vld [vmem:[%s2141 + $0xc] sm:$0xf]
  %v2146 = vld [vmem:[%s2141 + $0x10] sm:$0xf]
  %v2147 = vld [vmem:[%s2141 + $0x14] sm:$0xf]
  %v2148 = vld [vmem:[%s2141 + $0x18] sm:$0xf]
  %v2149 = vld [vmem:[%s2141 + $0x1c] sm:$0xf]
  %v2150 = vld [vmem:[%s2141 + $0x20] sm:$0xf]
  %v2151 = vld [vmem:[%s2141 + $0x24] sm:$0xf]
  %v2152 = vld [vmem:[%s2141 + $0x28] sm:$0xf]
  %v2153 = vld [vmem:[%s2141 + $0x2c] sm:$0xf]
  %v2154 = vld [vmem:[%s2141 + $0x30] sm:$0xf]
  %v2155 = vld [vmem:[%s2141 + $0x34] sm:$0xf]
  %v2156 = vld [vmem:[%s2141 + $0x38] sm:$0xf]
  %v2157 = vld [vmem:[%s2141 + $0x3c] sm:$0xf]
  %v2174 = vunpack.c.l.b16 %v2142
  %v2175 = vunpack.c.l.b16 %v2143
  %v2176 = vunpack.c.l.b16 %v2144
  %v2177 = vunpack.c.l.b16 %v2145
  %v2178 = vunpack.c.l.b16 %v2146
  %v2179 = vunpack.c.l.b16 %v2147
  %v2180 = vunpack.c.l.b16 %v2148
  %v2181 = vunpack.c.l.b16 %v2149
  %v2182 = vunpack.c.l.b16 %v2150
  %v2183 = vunpack.c.l.b16 %v2151
  %v2184 = vunpack.c.l.b16 %v2152
  %v2185 = vunpack.c.l.b16 %v2153
  %v2186 = vunpack.c.l.b16 %v2154
  %v2187 = vunpack.c.l.b16 %v2155
  %v2188 = vunpack.c.l.b16 %v2156
  %v2189 = vunpack.c.l.b16 %v2157
  %v2190 = vpack.c.b16 %v2175, %v2174
  %v2191 = vpack.c.b16 %v2177, %v2176
  %v2192 = vpack.c.b16 %v2179, %v2178
  %v2193 = vpack.c.b16 %v2181, %v2180
  %v2194 = vpack.c.b16 %v2183, %v2182
  %v2195 = vpack.c.b16 %v2185, %v2184
  %v2196 = vpack.c.b16 %v2187, %v2186
  %v2197 = vpack.c.b16 %v2189, %v2188
  %2206 = vmatprep.subr.bf16.mxu0 0
  %2207 = vmatpush1.bf16.msra.mxu0 %v2190
  %2208 = vmatprep.subr.bf16.mxu0 0
  %2209 = vmatpush1.bf16.msra.mxu0 %v2191
  %2210 = vmatprep.subr.bf16.mxu0 0
  %2211 = vmatpush1.bf16.msra.mxu0 %v2192
  %2212 = vmatprep.subr.bf16.mxu0 0
  %2213 = vmatpush1.bf16.msra.mxu0 %v2193
  %2214 = vmatprep.subr.bf16.mxu0 0
  %2215 = vmatpush1.bf16.msra.mxu0 %v2194
  %2216 = vmatprep.subr.bf16.mxu0 0
  %2217 = vmatpush1.bf16.msra.mxu0 %v2195
  %2218 = vmatprep.subr.bf16.mxu0 0
  %2219 = vmatpush1.bf16.msra.mxu0 %v2196
  %2220 = vmatprep.subr.bf16.mxu0 0
  %2221 = vmatpush1.bf16.msra.mxu0 %v2197
  %2222 = vmatprep.subr.bf16.mxu0 0
  %2223 = vmatpush1.bf16.msra.mxu0 0
  %2224 = vmatprep.subr.bf16.mxu0 0
  %2225 = vmatpush1.bf16.msra.mxu0 0
  %2226 = vmatprep.subr.bf16.mxu0 0
  %2227 = vmatpush1.bf16.msra.mxu0 0
  %2228 = vmatprep.subr.bf16.mxu0 0
  %2229 = vmatpush1.bf16.msra.mxu0 0
  %2230 = vmatprep.subr.bf16.mxu0 0
  %2231 = vmatpush1.bf16.msra.mxu0 0
  %2232 = vmatprep.subr.bf16.mxu0 0
  %2233 = vmatpush1.bf16.msra.mxu0 0
  %2234 = vmatprep.subr.bf16.mxu0 0
  %2235 = vmatpush1.bf16.msra.mxu0 0
  %2236 = vmatprep.subr.bf16.mxu0 0
  %2237 = vmatpush1.bf16.msra.mxu0 0
  %2238 = vmatprep.mubr.bf16.mxu0 0
  %2239 = vmatmul.mubr.bf16.gmra.mrb[0].mxu0 %v448
  %v2240 = vpop.f32.mrb[0].mxu0
  %v2241 = vadd.f32 0.0, %v2240
  %v2242 = vpop.f32.mrb[0].mxu0
  %v2243 = vpop.f32.mrb[0].mxu0
  %v2244 = vadd.f32 0.0, %v2243
  %v2245 = vpop.f32.mrb[0].mxu0
  %2246 = vmatprep.mubr.bf16.mxu0 0
  %2247 = vmatmul.mubr.bf16.gmra.mrb[0].mxu0 %v449
  %v2248 = vpop.f32.mrb[0].mxu0
  %v2249 = vadd.f32 0.0, %v2248
  %v2250 = vpop.f32.mrb[0].mxu0
  %v2251 = vpop.f32.mrb[0].mxu0
  %v2252 = vadd.f32 0.0, %v2251
  %v2253 = vpop.f32.mrb[0].mxu0
  %2254 = vmatprep.mubr.bf16.mxu0 0
  %2255 = vmatmul.mubr.bf16.gmra.mrb[0].mxu0 %v450
  %v2256 = vpop.f32.mrb[0].mxu0
  %v2257 = vadd.f32 0.0, %v2256
  %v2258 = vpop.f32.mrb[0].mxu0
  %v2259 = vpop.f32.mrb[0].mxu0
  %v2260 = vadd.f32 0.0, %v2259
  %v2261 = vpop.f32.mrb[0].mxu0
  %2262 = vmatprep.mubr.bf16.mxu0 0
  %2263 = vmatmul.mubr.bf16.gmra.mrb[0].mxu0 %v451
  %v2264 = vpop.f32.mrb[0].mxu0
  %v2265 = vadd.f32 0.0, %v2264
  %v2266 = vpop.f32.mrb[0].mxu0
  %v2267 = vpop.f32.mrb[0].mxu0
  %v2268 = vadd.f32 0.0, %v2267
  %v2269 = vpop.f32.mrb[0].mxu0
  %2270 = vdwg.mxu0
  %s2271 = scalar_lea.vmem %s5, 896
  %v2272 = vld [vmem:[%s2271] sm:$0xf]
  %v2273 = vld [vmem:[%s2271 + $0x4] sm:$0xf]
  %v2274 = vld [vmem:[%s2271 + $0x8] sm:$0xf]
  %v2275 = vld [vmem:[%s2271 + $0xc] sm:$0xf]
  %v2276 = vld [vmem:[%s2271 + $0x10] sm:$0xf]
  %v2277 = vld [vmem:[%s2271 + $0x14] sm:$0xf]
  %v2278 = vld [vmem:[%s2271 + $0x18] sm:$0xf]
  %v2279 = vld [vmem:[%s2271 + $0x1c] sm:$0xf]
  %v2280 = vld [vmem:[%s2271 + $0x20] sm:$0xf]
  %v2281 = vld [vmem:[%s2271 + $0x24] sm:$0xf]
  %v2282 = vld [vmem:[%s2271 + $0x28] sm:$0xf]
  %v2283 = vld [vmem:[%s2271 + $0x2c] sm:$0xf]
  %v2284 = vld [vmem:[%s2271 + $0x30] sm:$0xf]
  %v2285 = vld [vmem:[%s2271 + $0x34] sm:$0xf]
  %v2286 = vld [vmem:[%s2271 + $0x38] sm:$0xf]
  %v2287 = vld [vmem:[%s2271 + $0x3c] sm:$0xf]
  %v2304 = vunpack.c.l.b16 %v2272
  %v2305 = vunpack.c.l.b16 %v2273
  %v2306 = vunpack.c.l.b16 %v2274
  %v2307 = vunpack.c.l.b16 %v2275
  %v2308 = vunpack.c.l.b16 %v2276
  %v2309 = vunpack.c.l.b16 %v2277
  %v2310 = vunpack.c.l.b16 %v2278
  %v2311 = vunpack.c.l.b16 %v2279
  %v2312 = vunpack.c.l.b16 %v2280
  %v2313 = vunpack.c.l.b16 %v2281
  %v2314 = vunpack.c.l.b16 %v2282
  %v2315 = vunpack.c.l.b16 %v2283
  %v2316 = vunpack.c.l.b16 %v2284
  %v2317 = vunpack.c.l.b16 %v2285
  %v2318 = vunpack.c.l.b16 %v2286
  %v2319 = vunpack.c.l.b16 %v2287
  %v2320 = vpack.c.b16 %v2305, %v2304
  %v2321 = vpack.c.b16 %v2307, %v2306
  %v2322 = vpack.c.b16 %v2309, %v2308
  %v2323 = vpack.c.b16 %v2311, %v2310
  %v2324 = vpack.c.b16 %v2313, %v2312
  %v2325 = vpack.c.b16 %v2315, %v2314
  %v2326 = vpack.c.b16 %v2317, %v2316
  %v2327 = vpack.c.b16 %v2319, %v2318
  %2336 = vmatprep.subr.bf16.mxu0 0
  %2337 = vmatpush1.bf16.msra.mxu0 %v2320
  %2338 = vmatprep.subr.bf16.mxu0 0
  %2339 = vmatpush1.bf16.msra.mxu0 %v2321
  %2340 = vmatprep.subr.bf16.mxu0 0
  %2341 = vmatpush1.bf16.msra.mxu0 %v2322
  %2342 = vmatprep.subr.bf16.mxu0 0
  %2343 = vmatpush1.bf16.msra.mxu0 %v2323
  %2344 = vmatprep.subr.bf16.mxu0 0
  %2345 = vmatpush1.bf16.msra.mxu0 %v2324
  %2346 = vmatprep.subr.bf16.mxu0 0
  %2347 = vmatpush1.bf16.msra.mxu0 %v2325
  %2348 = vmatprep.subr.bf16.mxu0 0
  %2349 = vmatpush1.bf16.msra.mxu0 %v2326
  %2350 = vmatprep.subr.bf16.mxu0 0
  %2351 = vmatpush1.bf16.msra.mxu0 %v2327
  %2352 = vmatprep.subr.bf16.mxu0 0
  %2353 = vmatpush1.bf16.msra.mxu0 0
  %2354 = vmatprep.subr.bf16.mxu0 0
  %2355 = vmatpush1.bf16.msra.mxu0 0
  %2356 = vmatprep.subr.bf16.mxu0 0
  %2357 = vmatpush1.bf16.msra.mxu0 0
  %2358 = vmatprep.subr.bf16.mxu0 0
  %2359 = vmatpush1.bf16.msra.mxu0 0
  %2360 = vmatprep.subr.bf16.mxu0 0
  %2361 = vmatpush1.bf16.msra.mxu0 0
  %2362 = vmatprep.subr.bf16.mxu0 0
  %2363 = vmatpush1.bf16.msra.mxu0 0
  %2364 = vmatprep.subr.bf16.mxu0 0
  %2365 = vmatpush1.bf16.msra.mxu0 0
  %2366 = vmatprep.subr.bf16.mxu0 0
  %2367 = vmatpush1.bf16.msra.mxu0 0
  %2368 = vmatprep.mubr.bf16.mxu0 0
  %2369 = vmatmul.mubr.bf16.gmra.mrb[0].mxu0 %v448
  %v2370 = vpop.f32.mrb[0].mxu0
  %v2371 = vadd.f32 0.0, %v2370
  %v2372 = vpop.f32.mrb[0].mxu0
  %v2373 = vpop.f32.mrb[0].mxu0
  %v2374 = vadd.f32 0.0, %v2373
  %v2375 = vpop.f32.mrb[0].mxu0
  %2376 = vmatprep.mubr.bf16.mxu0 0
  %2377 = vmatmul.mubr.bf16.gmra.mrb[0].mxu0 %v449
  %v2378 = vpop.f32.mrb[0].mxu0
  %v2379 = vadd.f32 0.0, %v2378
  %v2380 = vpop.f32.mrb[0].mxu0
  %v2381 = vpop.f32.mrb[0].mxu0
  %v2382 = vadd.f32 0.0, %v2381
  %v2383 = vpop.f32.mrb[0].mxu0
  %2384 = vmatprep.mubr.bf16.mxu0 0
  %2385 = vmatmul.mubr.bf16.gmra.mrb[0].mxu0 %v450
  %v2386 = vpop.f32.mrb[0].mxu0
  %v2387 = vadd.f32 0.0, %v2386
  %v2388 = vpop.f32.mrb[0].mxu0
  %v2389 = vpop.f32.mrb[0].mxu0
  %v2390 = vadd.f32 0.0, %v2389
  %v2391 = vpop.f32.mrb[0].mxu0
  %2392 = vmatprep.mubr.bf16.mxu0 0
  %2393 = vmatmul.mubr.bf16.gmra.mrb[0].mxu0 %v451
  %v2394 = vpop.f32.mrb[0].mxu0
  %v2395 = vadd.f32 0.0, %v2394
  %v2396 = vpop.f32.mrb[0].mxu0
  %v2397 = vpop.f32.mrb[0].mxu0
  %v2398 = vadd.f32 0.0, %v2397
  %v2399 = vpop.f32.mrb[0].mxu0
  %2400 = vdwg.mxu0
  %s2401 = scalar_lea.vmem %s5, 960
  %v2402 = vld [vmem:[%s2401] sm:$0xf]
  %v2403 = vld [vmem:[%s2401 + $0x4] sm:$0xf]
  %v2404 = vld [vmem:[%s2401 + $0x8] sm:$0xf]
  %v2405 = vld [vmem:[%s2401 + $0xc] sm:$0xf]
  %v2406 = vld [vmem:[%s2401 + $0x10] sm:$0xf]
  %v2407 = vld [vmem:[%s2401 + $0x14] sm:$0xf]
  %v2408 = vld [vmem:[%s2401 + $0x18] sm:$0xf]
  %v2409 = vld [vmem:[%s2401 + $0x1c] sm:$0xf]
  %v2410 = vld [vmem:[%s2401 + $0x20] sm:$0xf]
  %v2411 = vld [vmem:[%s2401 + $0x24] sm:$0xf]
  %v2412 = vld [vmem:[%s2401 + $0x28] sm:$0xf]
  %v2413 = vld [vmem:[%s2401 + $0x2c] sm:$0xf]
  %v2414 = vld [vmem:[%s2401 + $0x30] sm:$0xf]
  %v2415 = vld [vmem:[%s2401 + $0x34] sm:$0xf]
  %v2416 = vld [vmem:[%s2401 + $0x38] sm:$0xf]
  %v2417 = vld [vmem:[%s2401 + $0x3c] sm:$0xf]
  %v2434 = vunpack.c.l.b16 %v2402
  %v2435 = vunpack.c.l.b16 %v2403
  %v2436 = vunpack.c.l.b16 %v2404
  %v2437 = vunpack.c.l.b16 %v2405
  %v2438 = vunpack.c.l.b16 %v2406
  %v2439 = vunpack.c.l.b16 %v2407
  %v2440 = vunpack.c.l.b16 %v2408
  %v2441 = vunpack.c.l.b16 %v2409
  %v2442 = vunpack.c.l.b16 %v2410
  %v2443 = vunpack.c.l.b16 %v2411
  %v2444 = vunpack.c.l.b16 %v2412
  %v2445 = vunpack.c.l.b16 %v2413
  %v2446 = vunpack.c.l.b16 %v2414
  %v2447 = vunpack.c.l.b16 %v2415
  %v2448 = vunpack.c.l.b16 %v2416
  %v2449 = vunpack.c.l.b16 %v2417
  %v2450 = vpack.c.b16 %v2435, %v2434
  %v2451 = vpack.c.b16 %v2437, %v2436
  %v2452 = vpack.c.b16 %v2439, %v2438
  %v2453 = vpack.c.b16 %v2441, %v2440
  %v2454 = vpack.c.b16 %v2443, %v2442
  %v2455 = vpack.c.b16 %v2445, %v2444
  %v2456 = vpack.c.b16 %v2447, %v2446
  %v2457 = vpack.c.b16 %v2449, %v2448
  %2466 = vmatprep.subr.bf16.mxu0 0
  %2467 = vmatpush1.bf16.msra.mxu0 %v2450
  %2468 = vmatprep.subr.bf16.mxu0 0
  %2469 = vmatpush1.bf16.msra.mxu0 %v2451
  %2470 = vmatprep.subr.bf16.mxu0 0
  %2471 = vmatpush1.bf16.msra.mxu0 %v2452
  %2472 = vmatprep.subr.bf16.mxu0 0
  %2473 = vmatpush1.bf16.msra.mxu0 %v2453
  %2474 = vmatprep.subr.bf16.mxu0 0
  %2475 = vmatpush1.bf16.msra.mxu0 %v2454
  %2476 = vmatprep.subr.bf16.mxu0 0
  %2477 = vmatpush1.bf16.msra.mxu0 %v2455
  %2478 = vmatprep.subr.bf16.mxu0 0
  %2479 = vmatpush1.bf16.msra.mxu0 %v2456
  %2480 = vmatprep.subr.bf16.mxu0 0
  %2481 = vmatpush1.bf16.msra.mxu0 %v2457
  %2482 = vmatprep.subr.bf16.mxu0 0
  %2483 = vmatpush1.bf16.msra.mxu0 0
  %2484 = vmatprep.subr.bf16.mxu0 0
  %2485 = vmatpush1.bf16.msra.mxu0 0
  %2486 = vmatprep.subr.bf16.mxu0 0
  %2487 = vmatpush1.bf16.msra.mxu0 0
  %2488 = vmatprep.subr.bf16.mxu0 0
  %2489 = vmatpush1.bf16.msra.mxu0 0
  %2490 = vmatprep.subr.bf16.mxu0 0
  %2491 = vmatpush1.bf16.msra.mxu0 0
  %2492 = vmatprep.subr.bf16.mxu0 0
  %2493 = vmatpush1.bf16.msra.mxu0 0
  %2494 = vmatprep.subr.bf16.mxu0 0
  %2495 = vmatpush1.bf16.msra.mxu0 0
  %2496 = vmatprep.subr.bf16.mxu0 0
  %2497 = vmatpush1.bf16.msra.mxu0 0
  %2498 = vmatprep.mubr.bf16.mxu0 0
  %2499 = vmatmul.mubr.bf16.gmra.mrb[0].mxu0 %v448
  %v2500 = vpop.f32.mrb[0].mxu0
  %v2501 = vadd.f32 0.0, %v2500
  %v2502 = vpop.f32.mrb[0].mxu0
  %v2503 = vpop.f32.mrb[0].mxu0
  %v2504 = vadd.f32 0.0, %v2503
  %v2505 = vpop.f32.mrb[0].mxu0
  %2506 = vmatprep.mubr.bf16.mxu0 0
  %2507 = vmatmul.mubr.bf16.gmra.mrb[0].mxu0 %v449
  %v2508 = vpop.f32.mrb[0].mxu0
  %v2509 = vadd.f32 0.0, %v2508
  %v2510 = vpop.f32.mrb[0].mxu0
  %v2511 = vpop.f32.mrb[0].mxu0
  %v2512 = vadd.f32 0.0, %v2511
  %v2513 = vpop.f32.mrb[0].mxu0
  %2514 = vmatprep.mubr.bf16.mxu0 0
  %2515 = vmatmul.mubr.bf16.gmra.mrb[0].mxu0 %v450
  %v2516 = vpop.f32.mrb[0].mxu0
  %v2517 = vadd.f32 0.0, %v2516
  %v2518 = vpop.f32.mrb[0].mxu0
  %v2519 = vpop.f32.mrb[0].mxu0
  %v2520 = vadd.f32 0.0, %v2519
  %v2521 = vpop.f32.mrb[0].mxu0
  %2522 = vmatprep.mubr.bf16.mxu0 0
  %2523 = vmatmul.mubr.bf16.gmra.mrb[0].mxu0 %v451
  %v2524 = vpop.f32.mrb[0].mxu0
  %v2525 = vadd.f32 0.0, %v2524
  %v2526 = vpop.f32.mrb[0].mxu0
  %v2527 = vpop.f32.mrb[0].mxu0
  %v2528 = vadd.f32 0.0, %v2527
  %v2529 = vpop.f32.mrb[0].mxu0
  %2530 = vdwg.mxu0
  %v2531 = vpack.c.bf16 %v554, %v551
  %v2532 = vpack.c.bf16 %v562, %v559
  %v2533 = vpack.c.bf16 %v570, %v567
  %v2534 = vpack.c.bf16 %v578, %v575
  %v2535 = vpack.c.bf16 %v684, %v681
  %v2536 = vpack.c.bf16 %v692, %v689
  %v2537 = vpack.c.bf16 %v700, %v697
  %v2538 = vpack.c.bf16 %v708, %v705
  %v2539 = vpack.c.bf16 %v814, %v811
  %v2540 = vpack.c.bf16 %v822, %v819
  %v2541 = vpack.c.bf16 %v830, %v827
  %v2542 = vpack.c.bf16 %v838, %v835
  %v2543 = vpack.c.bf16 %v944, %v941
  %v2544 = vpack.c.bf16 %v952, %v949
  %v2545 = vpack.c.bf16 %v960, %v957
  %v2546 = vpack.c.bf16 %v968, %v965
  %v2547 = vpack.c.bf16 %v1074, %v1071
  %v2548 = vpack.c.bf16 %v1082, %v1079
  %v2549 = vpack.c.bf16 %v1090, %v1087
  %v2550 = vpack.c.bf16 %v1098, %v1095
  %v2551 = vpack.c.bf16 %v1204, %v1201
  %v2552 = vpack.c.bf16 %v1212, %v1209
  %v2553 = vpack.c.bf16 %v1220, %v1217
  %v2554 = vpack.c.bf16 %v1228, %v1225
  %v2555 = vpack.c.bf16 %v1334, %v1331
  %v2556 = vpack.c.bf16 %v1342, %v1339
  %v2557 = vpack.c.bf16 %v1350, %v1347
  %v2558 = vpack.c.bf16 %v1358, %v1355
  %v2559 = vpack.c.bf16 %v1464, %v1461
  %v2560 = vpack.c.bf16 %v1472, %v1469
  %v2561 = vpack.c.bf16 %v1480, %v1477
  %v2562 = vpack.c.bf16 %v1488, %v1485
  %v2563 = vpack.c.bf16 %v1594, %v1591
  %v2564 = vpack.c.bf16 %v1602, %v1599
  %v2565 = vpack.c.bf16 %v1610, %v1607
  %v2566 = vpack.c.bf16 %v1618, %v1615
  %v2567 = vpack.c.bf16 %v1724, %v1721
  %v2568 = vpack.c.bf16 %v1732, %v1729
  %v2569 = vpack.c.bf16 %v1740, %v1737
  %v2570 = vpack.c.bf16 %v1748, %v1745
  %v2571 = vpack.c.bf16 %v1854, %v1851
  %v2572 = vpack.c.bf16 %v1862, %v1859
  %v2573 = vpack.c.bf16 %v1870, %v1867
  %v2574 = vpack.c.bf16 %v1878, %v1875
  %v2575 = vpack.c.bf16 %v1984, %v1981
  %v2576 = vpack.c.bf16 %v1992, %v1989
  %v2577 = vpack.c.bf16 %v2000, %v1997
  %v2578 = vpack.c.bf16 %v2008, %v2005
  %v2579 = vpack.c.bf16 %v2114, %v2111
  %v2580 = vpack.c.bf16 %v2122, %v2119
  %v2581 = vpack.c.bf16 %v2130, %v2127
  %v2582 = vpack.c.bf16 %v2138, %v2135
  %v2583 = vpack.c.bf16 %v2244, %v2241
  %v2584 = vpack.c.bf16 %v2252, %v2249
  %v2585 = vpack.c.bf16 %v2260, %v2257
  %v2586 = vpack.c.bf16 %v2268, %v2265
  %v2587 = vpack.c.bf16 %v2374, %v2371
  %v2588 = vpack.c.bf16 %v2382, %v2379
  %v2589 = vpack.c.bf16 %v2390, %v2387
  %v2590 = vpack.c.bf16 %v2398, %v2395
  %v2591 = vpack.c.bf16 %v2504, %v2501
  %v2592 = vpack.c.bf16 %v2512, %v2509
  %v2593 = vpack.c.bf16 %v2520, %v2517
  %v2594 = vpack.c.bf16 %v2528, %v2525
  %v2595 = vld [vmem:[%s6] sm:$0xff]
  %v2596 = vld [vmem:[%s6 + $0x8] sm:$0xff]
  %v2597 = vld [vmem:[%s6 + $0x10] sm:$0xff]
  %v2598 = vld [vmem:[%s6 + $0x18] sm:$0xff]
  %v2599 = vld [vmem:[%s6 + $0x20] sm:$0xff]
  %v2600 = vld [vmem:[%s6 + $0x28] sm:$0xff]
  %v2601 = vld [vmem:[%s6 + $0x30] sm:$0xff]
  %v2602 = vld [vmem:[%s6 + $0x38] sm:$0xff]
  %v2603 = vld [vmem:[%s6 + $0x40] sm:$0xff]
  %v2604 = vld [vmem:[%s6 + $0x48] sm:$0xff]
  %v2605 = vld [vmem:[%s6 + $0x50] sm:$0xff]
  %v2606 = vld [vmem:[%s6 + $0x58] sm:$0xff]
  %v2607 = vld [vmem:[%s6 + $0x60] sm:$0xff]
  %v2608 = vld [vmem:[%s6 + $0x68] sm:$0xff]
  %v2609 = vld [vmem:[%s6 + $0x70] sm:$0xff]
  %v2610 = vld [vmem:[%s6 + $0x78] sm:$0xff]
  %v2611 = vld [vmem:[%s6 + $0x80] sm:$0xff]
  %v2612 = vld [vmem:[%s6 + $0x88] sm:$0xff]
  %v2613 = vld [vmem:[%s6 + $0x90] sm:$0xff]
  %v2614 = vld [vmem:[%s6 + $0x98] sm:$0xff]
  %v2615 = vld [vmem:[%s6 + $0xa0] sm:$0xff]
  %v2616 = vld [vmem:[%s6 + $0xa8] sm:$0xff]
  %v2617 = vld [vmem:[%s6 + $0xb0] sm:$0xff]
  %v2618 = vld [vmem:[%s6 + $0xb8] sm:$0xff]
  %v2619 = vld [vmem:[%s6 + $0xc0] sm:$0xff]
  %v2620 = vld [vmem:[%s6 + $0xc8] sm:$0xff]
  %v2621 = vld [vmem:[%s6 + $0xd0] sm:$0xff]
  %v2622 = vld [vmem:[%s6 + $0xd8] sm:$0xff]
  %v2623 = vld [vmem:[%s6 + $0xe0] sm:$0xff]
  %v2624 = vld [vmem:[%s6 + $0xe8] sm:$0xff]
  %v2625 = vld [vmem:[%s6 + $0xf0] sm:$0xff]
  %v2626 = vld [vmem:[%s6 + $0xf8] sm:$0xff]
  %v2627 = vld [vmem:[%s7] sm:$0xff]
  %v2628 = vld [vmem:[%s7 + $0x8] sm:$0xff]
  %v2629 = vld [vmem:[%s7 + $0x10] sm:$0xff]
  %v2630 = vld [vmem:[%s7 + $0x18] sm:$0xff]
  %v2631 = vld [vmem:[%s7 + $0x20] sm:$0xff]
  %v2632 = vld [vmem:[%s7 + $0x28] sm:$0xff]
  %v2633 = vld [vmem:[%s7 + $0x30] sm:$0xff]
  %v2634 = vld [vmem:[%s7 + $0x38] sm:$0xff]
  %v2635 = vld [vmem:[%s8] sm:$0xff]
  %v2636 = vld [vmem:[%s8 + $0x8] sm:$0xff]
  %v2637 = vld [vmem:[%s8 + $0x10] sm:$0xff]
  %v2638 = vld [vmem:[%s8 + $0x18] sm:$0xff]
  %v2639 = vld [vmem:[%s8 + $0x20] sm:$0xff]
  %v2640 = vld [vmem:[%s8 + $0x28] sm:$0xff]
  %v2641 = vld [vmem:[%s8 + $0x30] sm:$0xff]
  %v2642 = vld [vmem:[%s8 + $0x38] sm:$0xff]
  %v2643 = vld [vmem:[%s9] sm:$0xff]
  %v2644 = vld [vmem:[%s9 + $0x8] sm:$0xff]
  %v2645 = vld [vmem:[%s9 + $0x10] sm:$0xff]
  %v2646 = vld [vmem:[%s9 + $0x18] sm:$0xff]
  %v2647 = vld [vmem:[%s9 + $0x20] sm:$0xff]
  %v2648 = vld [vmem:[%s9 + $0x28] sm:$0xff]
  %v2649 = vld [vmem:[%s9 + $0x30] sm:$0xff]
  %v2650 = vld [vmem:[%s9 + $0x38] sm:$0xff]
  %2652 = vset.pattern.permute.xlu0 0
  %2653 = vperm.xlu0 %2652, %v2627
  %v2654 = vpop.permute.xlu0 %2653
  %2657 = vset.pattern.permute.xlu0 0
  %2658 = vperm.xlu0 %2657, %v2628
  %v2659 = vpop.permute.xlu0 %2658
  %2662 = vset.pattern.permute.xlu0 0
  %2663 = vperm.xlu0 %2662, %v2629
  %v2664 = vpop.permute.xlu0 %2663
  %2667 = vset.pattern.permute.xlu0 0
  %2668 = vperm.xlu0 %2667, %v2630
  %v2669 = vpop.permute.xlu0 %2668
  %2672 = vset.pattern.permute.xlu0 0
  %2673 = vperm.xlu0 %2672, %v2631
  %v2674 = vpop.permute.xlu0 %2673
  %2677 = vset.pattern.permute.xlu0 0
  %2678 = vperm.xlu0 %2677, %v2632
  %v2679 = vpop.permute.xlu0 %2678
  %2682 = vset.pattern.permute.xlu0 0
  %2683 = vperm.xlu0 %2682, %v2633
  %v2684 = vpop.permute.xlu0 %2683
  %2687 = vset.pattern.permute.xlu0 0
  %2688 = vperm.xlu0 %2687, %v2634
  %v2689 = vpop.permute.xlu0 %2688
  %v2723 = vunpack.c.l.b16 %v2595
  %v2724 = vunpack.c.h.b16 %v2595
  %v2725 = vunpack.c.l.b16 %v2596
  %v2726 = vunpack.c.h.b16 %v2596
  %v2727 = vunpack.c.l.b16 %v2597
  %v2728 = vunpack.c.h.b16 %v2597
  %v2729 = vunpack.c.l.b16 %v2598
  %v2730 = vunpack.c.h.b16 %v2598
  %v2731 = vunpack.c.l.b16 %v2599
  %v2732 = vunpack.c.h.b16 %v2599
  %v2733 = vunpack.c.l.b16 %v2600
  %v2734 = vunpack.c.h.b16 %v2600
  %v2735 = vunpack.c.l.b16 %v2601
  %v2736 = vunpack.c.h.b16 %v2601
  %v2737 = vunpack.c.l.b16 %v2602
  %v2738 = vunpack.c.h.b16 %v2602
  %v2739 = vunpack.c.l.b16 %v2603
  %v2740 = vunpack.c.h.b16 %v2603
  %v2741 = vunpack.c.l.b16 %v2604
  %v2742 = vunpack.c.h.b16 %v2604
  %v2743 = vunpack.c.l.b16 %v2605
  %v2744 = vunpack.c.h.b16 %v2605
  %v2745 = vunpack.c.l.b16 %v2606
  %v2746 = vunpack.c.h.b16 %v2606
  %v2747 = vunpack.c.l.b16 %v2607
  %v2748 = vunpack.c.h.b16 %v2607
  %v2749 = vunpack.c.l.b16 %v2608
  %v2750 = vunpack.c.h.b16 %v2608
  %v2751 = vunpack.c.l.b16 %v2609
  %v2752 = vunpack.c.h.b16 %v2609
  %v2753 = vunpack.c.l.b16 %v2610
  %v2754 = vunpack.c.h.b16 %v2610
  %v2755 = vunpack.c.l.b16 %v2611
  %v2756 = vunpack.c.h.b16 %v2611
  %v2757 = vunpack.c.l.b16 %v2612
  %v2758 = vunpack.c.h.b16 %v2612
  %v2759 = vunpack.c.l.b16 %v2613
  %v2760 = vunpack.c.h.b16 %v2613
  %v2761 = vunpack.c.l.b16 %v2614
  %v2762 = vunpack.c.h.b16 %v2614
  %v2763 = vunpack.c.l.b16 %v2615
  %v2764 = vunpack.c.h.b16 %v2615
  %v2765 = vunpack.c.l.b16 %v2616
  %v2766 = vunpack.c.h.b16 %v2616
  %v2767 = vunpack.c.l.b16 %v2617
  %v2768 = vunpack.c.h.b16 %v2617
  %v2769 = vunpack.c.l.b16 %v2618
  %v2770 = vunpack.c.h.b16 %v2618
  %v2771 = vunpack.c.l.b16 %v2619
  %v2772 = vunpack.c.h.b16 %v2619
  %v2773 = vunpack.c.l.b16 %v2620
  %v2774 = vunpack.c.h.b16 %v2620
  %v2775 = vunpack.c.l.b16 %v2621
  %v2776 = vunpack.c.h.b16 %v2621
  %v2777 = vunpack.c.l.b16 %v2622
  %v2778 = vunpack.c.h.b16 %v2622
  %v2779 = vunpack.c.l.b16 %v2623
  %v2780 = vunpack.c.h.b16 %v2623
  %v2781 = vunpack.c.l.b16 %v2624
  %v2782 = vunpack.c.h.b16 %v2624
  %v2783 = vunpack.c.l.b16 %v2625
  %v2784 = vunpack.c.h.b16 %v2625
  %v2785 = vunpack.c.l.b16 %v2626
  %v2786 = vunpack.c.h.b16 %v2626
  %v2787 = vpack.c.b16 %v2731, %v2723
  %v2788 = vpack.c.b16 %v2732, %v2724
  %v2789 = vpack.c.b16 %v2733, %v2725
  %v2790 = vpack.c.b16 %v2734, %v2726
  %v2791 = vpack.c.b16 %v2735, %v2727
  %v2792 = vpack.c.b16 %v2736, %v2728
  %v2793 = vpack.c.b16 %v2737, %v2729
  %v2794 = vpack.c.b16 %v2738, %v2730
  %v2795 = vpack.c.b16 %v2747, %v2739
  %v2796 = vpack.c.b16 %v2748, %v2740
  %v2797 = vpack.c.b16 %v2749, %v2741
  %v2798 = vpack.c.b16 %v2750, %v2742
  %v2799 = vpack.c.b16 %v2751, %v2743
  %v2800 = vpack.c.b16 %v2752, %v2744
  %v2801 = vpack.c.b16 %v2753, %v2745
  %v2802 = vpack.c.b16 %v2754, %v2746
  %v2803 = vpack.c.b16 %v2763, %v2755
  %v2804 = vpack.c.b16 %v2764, %v2756
  %v2805 = vpack.c.b16 %v2765, %v2757
  %v2806 = vpack.c.b16 %v2766, %v2758
  %v2807 = vpack.c.b16 %v2767, %v2759
  %v2808 = vpack.c.b16 %v2768, %v2760
  %v2809 = vpack.c.b16 %v2769, %v2761
  %v2810 = vpack.c.b16 %v2770, %v2762
  %v2811 = vpack.c.b16 %v2779, %v2771
  %v2812 = vpack.c.b16 %v2780, %v2772
  %v2813 = vpack.c.b16 %v2781, %v2773
  %v2814 = vpack.c.b16 %v2782, %v2774
  %v2815 = vpack.c.b16 %v2783, %v2775
  %v2816 = vpack.c.b16 %v2784, %v2776
  %v2817 = vpack.c.b16 %v2785, %v2777
  %v2818 = vpack.c.b16 %v2786, %v2778
  %2851 = vmatprep.subr.bf16.mxu0 0
  %2852 = vmatpush1.bf16.msra.mxu0 %v2531
  %2853 = vmatprep.subr.bf16.mxu0 0
  %2854 = vmatpush1.bf16.msra.mxu0 %v2532
  %2855 = vmatprep.subr.bf16.mxu0 0
  %2856 = vmatpush1.bf16.msra.mxu0 %v2533
  %2857 = vmatprep.subr.bf16.mxu0 0
  %2858 = vmatpush1.bf16.msra.mxu0 %v2534
  %2859 = vmatprep.subr.bf16.mxu0 0
  %2860 = vmatpush1.bf16.msra.mxu0 %v2535
  %2861 = vmatprep.subr.bf16.mxu0 0
  %2862 = vmatpush1.bf16.msra.mxu0 %v2536
  %2863 = vmatprep.subr.bf16.mxu0 0
  %2864 = vmatpush1.bf16.msra.mxu0 %v2537
  %2865 = vmatprep.subr.bf16.mxu0 0
  %2866 = vmatpush1.bf16.msra.mxu0 %v2538
  %2867 = vmatprep.subr.bf16.mxu0 0
  %2868 = vmatpush1.bf16.msra.mxu0 %v2539
  %2869 = vmatprep.subr.bf16.mxu0 0
  %2870 = vmatpush1.bf16.msra.mxu0 %v2540
  %2871 = vmatprep.subr.bf16.mxu0 0
  %2872 = vmatpush1.bf16.msra.mxu0 %v2541
  %2873 = vmatprep.subr.bf16.mxu0 0
  %2874 = vmatpush1.bf16.msra.mxu0 %v2542
  %2875 = vmatprep.subr.bf16.mxu0 0
  %2876 = vmatpush1.bf16.msra.mxu0 %v2543
  %2877 = vmatprep.subr.bf16.mxu0 0
  %2878 = vmatpush1.bf16.msra.mxu0 %v2544
  %2879 = vmatprep.subr.bf16.mxu0 0
  %2880 = vmatpush1.bf16.msra.mxu0 %v2545
  %2881 = vmatprep.subr.bf16.mxu0 0
  %2882 = vmatpush1.bf16.msra.mxu0 %v2546
  %2883 = vmatprep.mubr.bf16.mxu0 %v2788
  %2884 = vmatmul.mubr.bf16.gmra.mrb[0].mxu0 %v2787
  %v2885 = vpop.f32.mrb[0].mxu0
  %v2886 = vadd.f32 %v2654, %v2885
  %v2887 = vpop.f32.mrb[0].mxu0
  %v2888 = vpop.f32.mrb[0].mxu0
  %v2889 = vadd.f32 %v2659, %v2888
  %v2890 = vpop.f32.mrb[0].mxu0
  %2891 = vmatprep.mubr.bf16.mxu0 %v2796
  %2892 = vmatmul.mubr.bf16.gmra.mrb[0].mxu0 %v2795
  %v2893 = vpop.f32.mrb[0].mxu0
  %v2894 = vadd.f32 %v2664, %v2893
  %v2895 = vpop.f32.mrb[0].mxu0
  %v2896 = vpop.f32.mrb[0].mxu0
  %v2897 = vadd.f32 %v2669, %v2896
  %v2898 = vpop.f32.mrb[0].mxu0
  %2899 = vmatprep.mubr.bf16.mxu0 %v2804
  %2900 = vmatmul.mubr.bf16.gmra.mrb[0].mxu0 %v2803
  %v2901 = vpop.f32.mrb[0].mxu0
  %v2902 = vadd.f32 %v2674, %v2901
  %v2903 = vpop.f32.mrb[0].mxu0
  %v2904 = vpop.f32.mrb[0].mxu0
  %v2905 = vadd.f32 %v2679, %v2904
  %v2906 = vpop.f32.mrb[0].mxu0
  %2907 = vmatprep.mubr.bf16.mxu0 %v2812
  %2908 = vmatmul.mubr.bf16.gmra.mrb[0].mxu0 %v2811
  %v2909 = vpop.f32.mrb[0].mxu0
  %v2910 = vadd.f32 %v2684, %v2909
  %v2911 = vpop.f32.mrb[0].mxu0
  %v2912 = vpop.f32.mrb[0].mxu0
  %v2913 = vadd.f32 %v2689, %v2912
  %v2914 = vpop.f32.mrb[0].mxu0
  %2915 = vdwg.mxu0
  %2916 = vmatprep.subr.bf16.mxu0 0
  %2917 = vmatpush1.bf16.msra.mxu0 %v2547
  %2918 = vmatprep.subr.bf16.mxu0 0
  %2919 = vmatpush1.bf16.msra.mxu0 %v2548
  %2920 = vmatprep.subr.bf16.mxu0 0
  %2921 = vmatpush1.bf16.msra.mxu0 %v2549
  %2922 = vmatprep.subr.bf16.mxu0 0
  %2923 = vmatpush1.bf16.msra.mxu0 %v2550
  %2924 = vmatprep.subr.bf16.mxu0 0
  %2925 = vmatpush1.bf16.msra.mxu0 %v2551
  %2926 = vmatprep.subr.bf16.mxu0 0
  %2927 = vmatpush1.bf16.msra.mxu0 %v2552
  %2928 = vmatprep.subr.bf16.mxu0 0
  %2929 = vmatpush1.bf16.msra.mxu0 %v2553
  %2930 = vmatprep.subr.bf16.mxu0 0
  %2931 = vmatpush1.bf16.msra.mxu0 %v2554
  %2932 = vmatprep.subr.bf16.mxu0 0
  %2933 = vmatpush1.bf16.msra.mxu0 %v2555
  %2934 = vmatprep.subr.bf16.mxu0 0
  %2935 = vmatpush1.bf16.msra.mxu0 %v2556
  %2936 = vmatprep.subr.bf16.mxu0 0
  %2937 = vmatpush1.bf16.msra.mxu0 %v2557
  %2938 = vmatprep.subr.bf16.mxu0 0
  %2939 = vmatpush1.bf16.msra.mxu0 %v2558
  %2940 = vmatprep.subr.bf16.mxu0 0
  %2941 = vmatpush1.bf16.msra.mxu0 %v2559
  %2942 = vmatprep.subr.bf16.mxu0 0
  %2943 = vmatpush1.bf16.msra.mxu0 %v2560
  %2944 = vmatprep.subr.bf16.mxu0 0
  %2945 = vmatpush1.bf16.msra.mxu0 %v2561
  %2946 = vmatprep.subr.bf16.mxu0 0
  %2947 = vmatpush1.bf16.msra.mxu0 %v2562
  %2948 = vmatprep.mubr.bf16.mxu0 %v2790
  %2949 = vmatmul.mubr.bf16.gmra.mrb[0].mxu0 %v2789
  %v2950 = vpop.f32.mrb[0].mxu0
  %v2951 = vadd.f32 %v2886, %v2950
  %v2952 = vpop.f32.mrb[0].mxu0
  %v2953 = vpop.f32.mrb[0].mxu0
  %v2954 = vadd.f32 %v2889, %v2953
  %v2955 = vpop.f32.mrb[0].mxu0
  %2956 = vmatprep.mubr.bf16.mxu0 %v2798
  %2957 = vmatmul.mubr.bf16.gmra.mrb[0].mxu0 %v2797
  %v2958 = vpop.f32.mrb[0].mxu0
  %v2959 = vadd.f32 %v2894, %v2958
  %v2960 = vpop.f32.mrb[0].mxu0
  %v2961 = vpop.f32.mrb[0].mxu0
  %v2962 = vadd.f32 %v2897, %v2961
  %v2963 = vpop.f32.mrb[0].mxu0
  %2964 = vmatprep.mubr.bf16.mxu0 %v2806
  %2965 = vmatmul.mubr.bf16.gmra.mrb[0].mxu0 %v2805
  %v2966 = vpop.f32.mrb[0].mxu0
  %v2967 = vadd.f32 %v2902, %v2966
  %v2968 = vpop.f32.mrb[0].mxu0
  %v2969 = vpop.f32.mrb[0].mxu0
  %v2970 = vadd.f32 %v2905, %v2969
  %v2971 = vpop.f32.mrb[0].mxu0
  %2972 = vmatprep.mubr.bf16.mxu0 %v2814
  %2973 = vmatmul.mubr.bf16.gmra.mrb[0].mxu0 %v2813
  %v2974 = vpop.f32.mrb[0].mxu0
  %v2975 = vadd.f32 %v2910, %v2974
  %v2976 = vpop.f32.mrb[0].mxu0
  %v2977 = vpop.f32.mrb[0].mxu0
  %v2978 = vadd.f32 %v2913, %v2977
  %v2979 = vpop.f32.mrb[0].mxu0
  %2980 = vdwg.mxu0
  %2981 = vmatprep.subr.bf16.mxu0 0
  %2982 = vmatpush1.bf16.msra.mxu0 %v2563
  %2983 = vmatprep.subr.bf16.mxu0 0
  %2984 = vmatpush1.bf16.msra.mxu0 %v2564
  %2985 = vmatprep.subr.bf16.mxu0 0
  %2986 = vmatpush1.bf16.msra.mxu0 %v2565
  %2987 = vmatprep.subr.bf16.mxu0 0
  %2988 = vmatpush1.bf16.msra.mxu0 %v2566
  %2989 = vmatprep.subr.bf16.mxu0 0
  %2990 = vmatpush1.bf16.msra.mxu0 %v2567
  %2991 = vmatprep.subr.bf16.mxu0 0
  %2992 = vmatpush1.bf16.msra.mxu0 %v2568
  %2993 = vmatprep.subr.bf16.mxu0 0
  %2994 = vmatpush1.bf16.msra.mxu0 %v2569
  %2995 = vmatprep.subr.bf16.mxu0 0
  %2996 = vmatpush1.bf16.msra.mxu0 %v2570
  %2997 = vmatprep.subr.bf16.mxu0 0
  %2998 = vmatpush1.bf16.msra.mxu0 %v2571
  %2999 = vmatprep.subr.bf16.mxu0 0
  %3000 = vmatpush1.bf16.msra.mxu0 %v2572
  %3001 = vmatprep.subr.bf16.mxu0 0
  %3002 = vmatpush1.bf16.msra.mxu0 %v2573
  %3003 = vmatprep.subr.bf16.mxu0 0
  %3004 = vmatpush1.bf16.msra.mxu0 %v2574
  %3005 = vmatprep.subr.bf16.mxu0 0
  %3006 = vmatpush1.bf16.msra.mxu0 %v2575
  %3007 = vmatprep.subr.bf16.mxu0 0
  %3008 = vmatpush1.bf16.msra.mxu0 %v2576
  %3009 = vmatprep.subr.bf16.mxu0 0
  %3010 = vmatpush1.bf16.msra.mxu0 %v2577
  %3011 = vmatprep.subr.bf16.mxu0 0
  %3012 = vmatpush1.bf16.msra.mxu0 %v2578
  %3013 = vmatprep.mubr.bf16.mxu0 %v2792
  %3014 = vmatmul.mubr.bf16.gmra.mrb[0].mxu0 %v2791
  %v3015 = vpop.f32.mrb[0].mxu0
  %v3016 = vadd.f32 %v2951, %v3015
  %v3017 = vpop.f32.mrb[0].mxu0
  %v3018 = vpop.f32.mrb[0].mxu0
  %v3019 = vadd.f32 %v2954, %v3018
  %v3020 = vpop.f32.mrb[0].mxu0
  %3021 = vmatprep.mubr.bf16.mxu0 %v2800
  %3022 = vmatmul.mubr.bf16.gmra.mrb[0].mxu0 %v2799
  %v3023 = vpop.f32.mrb[0].mxu0
  %v3024 = vadd.f32 %v2959, %v3023
  %v3025 = vpop.f32.mrb[0].mxu0
  %v3026 = vpop.f32.mrb[0].mxu0
  %v3027 = vadd.f32 %v2962, %v3026
  %v3028 = vpop.f32.mrb[0].mxu0
  %3029 = vmatprep.mubr.bf16.mxu0 %v2808
  %3030 = vmatmul.mubr.bf16.gmra.mrb[0].mxu0 %v2807
  %v3031 = vpop.f32.mrb[0].mxu0
  %v3032 = vadd.f32 %v2967, %v3031
  %v3033 = vpop.f32.mrb[0].mxu0
  %v3034 = vpop.f32.mrb[0].mxu0
  %v3035 = vadd.f32 %v2970, %v3034
  %v3036 = vpop.f32.mrb[0].mxu0
  %3037 = vmatprep.mubr.bf16.mxu0 %v2816
  %3038 = vmatmul.mubr.bf16.gmra.mrb[0].mxu0 %v2815
  %v3039 = vpop.f32.mrb[0].mxu0
  %v3040 = vadd.f32 %v2975, %v3039
  %v3041 = vpop.f32.mrb[0].mxu0
  %v3042 = vpop.f32.mrb[0].mxu0
  %v3043 = vadd.f32 %v2978, %v3042
  %v3044 = vpop.f32.mrb[0].mxu0
  %3045 = vdwg.mxu0
  %3046 = vmatprep.subr.bf16.mxu0 0
  %3047 = vmatpush1.bf16.msra.mxu0 %v2579
  %3048 = vmatprep.subr.bf16.mxu0 0
  %3049 = vmatpush1.bf16.msra.mxu0 %v2580
  %3050 = vmatprep.subr.bf16.mxu0 0
  %3051 = vmatpush1.bf16.msra.mxu0 %v2581
  %3052 = vmatprep.subr.bf16.mxu0 0
  %3053 = vmatpush1.bf16.msra.mxu0 %v2582
  %3054 = vmatprep.subr.bf16.mxu0 0
  %3055 = vmatpush1.bf16.msra.mxu0 %v2583
  %3056 = vmatprep.subr.bf16.mxu0 0
  %3057 = vmatpush1.bf16.msra.mxu0 %v2584
  %3058 = vmatprep.subr.bf16.mxu0 0
  %3059 = vmatpush1.bf16.msra.mxu0 %v2585
  %3060 = vmatprep.subr.bf16.mxu0 0
  %3061 = vmatpush1.bf16.msra.mxu0 %v2586
  %3062 = vmatprep.subr.bf16.mxu0 0
  %3063 = vmatpush1.bf16.msra.mxu0 %v2587
  %3064 = vmatprep.subr.bf16.mxu0 0
  %3065 = vmatpush1.bf16.msra.mxu0 %v2588
  %3066 = vmatprep.subr.bf16.mxu0 0
  %3067 = vmatpush1.bf16.msra.mxu0 %v2589
  %3068 = vmatprep.subr.bf16.mxu0 0
  %3069 = vmatpush1.bf16.msra.mxu0 %v2590
  %3070 = vmatprep.subr.bf16.mxu0 0
  %3071 = vmatpush1.bf16.msra.mxu0 %v2591
  %3072 = vmatprep.subr.bf16.mxu0 0
  %3073 = vmatpush1.bf16.msra.mxu0 %v2592
  %3074 = vmatprep.subr.bf16.mxu0 0
  %3075 = vmatpush1.bf16.msra.mxu0 %v2593
  %3076 = vmatprep.subr.bf16.mxu0 0
  %3077 = vmatpush1.bf16.msra.mxu0 %v2594
  %3078 = vmatprep.mubr.bf16.mxu0 %v2794
  %3079 = vmatmul.mubr.bf16.gmra.mrb[0].mxu0 %v2793
  %v3080 = vpop.f32.mrb[0].mxu0
  %v3081 = vadd.f32 %v3016, %v3080
  %v3082 = vpop.f32.mrb[0].mxu0
  %v3083 = vpop.f32.mrb[0].mxu0
  %v3084 = vadd.f32 %v3019, %v3083
  %v3085 = vpop.f32.mrb[0].mxu0
  %3086 = vmatprep.mubr.bf16.mxu0 %v2802
  %3087 = vmatmul.mubr.bf16.gmra.mrb[0].mxu0 %v2801
  %v3088 = vpop.f32.mrb[0].mxu0
  %v3089 = vadd.f32 %v3024, %v3088
  %v3090 = vpop.f32.mrb[0].mxu0
  %v3091 = vpop.f32.mrb[0].mxu0
  %v3092 = vadd.f32 %v3027, %v3091
  %v3093 = vpop.f32.mrb[0].mxu0
  %3094 = vmatprep.mubr.bf16.mxu0 %v2810
  %3095 = vmatmul.mubr.bf16.gmra.mrb[0].mxu0 %v2809
  %v3096 = vpop.f32.mrb[0].mxu0
  %v3097 = vadd.f32 %v3032, %v3096
  %v3098 = vpop.f32.mrb[0].mxu0
  %v3099 = vpop.f32.mrb[0].mxu0
  %v3100 = vadd.f32 %v3035, %v3099
  %v3101 = vpop.f32.mrb[0].mxu0
  %3102 = vmatprep.mubr.bf16.mxu0 %v2818
  %3103 = vmatmul.mubr.bf16.gmra.mrb[0].mxu0 %v2817
  %v3104 = vpop.f32.mrb[0].mxu0
  %v3105 = vadd.f32 %v3040, %v3104
  %v3106 = vpop.f32.mrb[0].mxu0
  %v3107 = vpop.f32.mrb[0].mxu0
  %v3108 = vadd.f32 %v3043, %v3107
  %v3109 = vpop.f32.mrb[0].mxu0
  %3110 = vdwg.mxu0
  %v3111 = vmax.f32 %v3081, 0.0
  %v3112 = vmax.f32 %v3084, 0.0
  %v3113 = vmax.f32 %v3089, 0.0
  %v3114 = vmax.f32 %v3092, 0.0
  %v3115 = vmax.f32 %v3097, 0.0
  %v3116 = vmax.f32 %v3100, 0.0
  %v3117 = vmax.f32 %v3105, 0.0
  %v3118 = vmax.f32 %v3108, 0.0
  %vm3119 = vcmask 261120
  %v3120 = vsel %vm3119, %v3111, 0.0
  %3121 = vadd.xlane.f32.xlu0 %v3120
  %v3122 = vpop.xlane.xlu0 %3121
  %v3123 = vsel %vm3119, %v3112, 0.0
  %3124 = vadd.xlane.f32.xlu0 %v3123
  %v3125 = vpop.xlane.xlu0 %3124
  %v3126 = vsel %vm3119, %v3113, 0.0
  %3127 = vadd.xlane.f32.xlu0 %v3126
  %v3128 = vpop.xlane.xlu0 %3127
  %v3129 = vsel %vm3119, %v3114, 0.0
  %3130 = vadd.xlane.f32.xlu0 %v3129
  %v3131 = vpop.xlane.xlu0 %3130
  %v3132 = vsel %vm3119, %v3115, 0.0
  %3133 = vadd.xlane.f32.xlu0 %v3132
  %v3134 = vpop.xlane.xlu0 %3133
  %v3135 = vsel %vm3119, %v3116, 0.0
  %3136 = vadd.xlane.f32.xlu0 %v3135
  %v3137 = vpop.xlane.xlu0 %3136
  %v3138 = vsel %vm3119, %v3117, 0.0
  %3139 = vadd.xlane.f32.xlu0 %v3138
  %v3140 = vpop.xlane.xlu0 %3139
  %v3141 = vsel %vm3119, %v3118, 0.0
  %3142 = vadd.xlane.f32.xlu0 %v3141
  %v3143 = vpop.xlane.xlu0 %3142
  %v3144 = vmul.f32 %v3122, 0.03125
  %v3145 = vmul.f32 %v3125, 0.03125
  %v3146 = vmul.f32 %v3128, 0.03125
  %v3147 = vmul.f32 %v3131, 0.03125
  %v3148 = vmul.f32 %v3134, 0.03125
  %v3149 = vmul.f32 %v3137, 0.03125
  %v3150 = vmul.f32 %v3140, 0.03125
  %v3151 = vmul.f32 %v3143, 0.03125
  %v3152 = vsub.f32 %v3111, %v3144
  %v3153 = vsub.f32 %v3112, %v3145
  %v3154 = vsub.f32 %v3113, %v3146
  %v3155 = vsub.f32 %v3114, %v3147
  %v3156 = vsub.f32 %v3115, %v3148
  %v3157 = vsub.f32 %v3116, %v3149
  %v3158 = vsub.f32 %v3117, %v3150
  %v3159 = vsub.f32 %v3118, %v3151
  %v3160 = vmul.f32 %v3152, %v3152
  %v3161 = vmul.f32 %v3153, %v3153
  %v3162 = vmul.f32 %v3154, %v3154
  %v3163 = vmul.f32 %v3155, %v3155
  %v3164 = vmul.f32 %v3156, %v3156
  %v3165 = vmul.f32 %v3157, %v3157
  %v3166 = vmul.f32 %v3158, %v3158
  %v3167 = vmul.f32 %v3159, %v3159
  %v3168 = vsel %vm3119, %v3160, 0.0
  %3169 = vadd.xlane.f32.xlu0 %v3168
  %v3170 = vpop.xlane.xlu0 %3169
  %v3171 = vsel %vm3119, %v3161, 0.0
  %3172 = vadd.xlane.f32.xlu0 %v3171
  %v3173 = vpop.xlane.xlu0 %3172
  %v3174 = vsel %vm3119, %v3162, 0.0
  %3175 = vadd.xlane.f32.xlu0 %v3174
  %v3176 = vpop.xlane.xlu0 %3175
  %v3177 = vsel %vm3119, %v3163, 0.0
  %3178 = vadd.xlane.f32.xlu0 %v3177
  %v3179 = vpop.xlane.xlu0 %3178
  %v3180 = vsel %vm3119, %v3164, 0.0
  %3181 = vadd.xlane.f32.xlu0 %v3180
  %v3182 = vpop.xlane.xlu0 %3181
  %v3183 = vsel %vm3119, %v3165, 0.0
  %3184 = vadd.xlane.f32.xlu0 %v3183
  %v3185 = vpop.xlane.xlu0 %3184
  %v3186 = vsel %vm3119, %v3166, 0.0
  %3187 = vadd.xlane.f32.xlu0 %v3186
  %v3188 = vpop.xlane.xlu0 %3187
  %v3189 = vsel %vm3119, %v3167, 0.0
  %3190 = vadd.xlane.f32.xlu0 %v3189
  %v3191 = vpop.xlane.xlu0 %3190
  %v3192 = vmul.f32 %v3170, 0.03125
  %v3193 = vmul.f32 %v3173, 0.03125
  %v3194 = vmul.f32 %v3176, 0.03125
  %v3195 = vmul.f32 %v3179, 0.03125
  %v3196 = vmul.f32 %v3182, 0.03125
  %v3197 = vmul.f32 %v3185, 0.03125
  %v3198 = vmul.f32 %v3188, 0.03125
  %v3199 = vmul.f32 %v3191, 0.03125
  %v3200 = vadd.f32 %v3192, 1e-05
  %v3201 = vadd.f32 %v3193, 1e-05
  %v3202 = vadd.f32 %v3194, 1e-05
  %v3203 = vadd.f32 %v3195, 1e-05
  %v3204 = vadd.f32 %v3196, 1e-05
  %v3205 = vadd.f32 %v3197, 1e-05
  %v3206 = vadd.f32 %v3198, 1e-05
  %v3207 = vadd.f32 %v3199, 1e-05
  %v3208 = vrsqrt.pop %v3200
  %v3209 = vrsqrt.pop %v3201
  %v3210 = vrsqrt.pop %v3202
  %v3211 = vrsqrt.pop %v3203
  %v3212 = vrsqrt.pop %v3204
  %v3213 = vrsqrt.pop %v3205
  %v3214 = vrsqrt.pop %v3206
  %v3215 = vrsqrt.pop %v3207
  %v3216 = vmul.f32 %v2635, %v3208
  %v3217 = vmul.f32 %v2636, %v3209
  %v3218 = vmul.f32 %v2637, %v3210
  %v3219 = vmul.f32 %v2638, %v3211
  %v3220 = vmul.f32 %v2639, %v3212
  %v3221 = vmul.f32 %v2640, %v3213
  %v3222 = vmul.f32 %v2641, %v3214
  %v3223 = vmul.f32 %v2642, %v3215
  %v3224 = vmul.f32 %v3144, %v3216
  %v3225 = vmul.f32 %v3145, %v3217
  %v3226 = vmul.f32 %v3146, %v3218
  %v3227 = vmul.f32 %v3147, %v3219
  %v3228 = vmul.f32 %v3148, %v3220
  %v3229 = vmul.f32 %v3149, %v3221
  %v3230 = vmul.f32 %v3150, %v3222
  %v3231 = vmul.f32 %v3151, %v3223
  %v3232 = vsub.f32 %v2643, %v3224
  %v3233 = vsub.f32 %v2644, %v3225
  %v3234 = vsub.f32 %v2645, %v3226
  %v3235 = vsub.f32 %v2646, %v3227
  %v3236 = vsub.f32 %v2647, %v3228
  %v3237 = vsub.f32 %v2648, %v3229
  %v3238 = vsub.f32 %v2649, %v3230
  %v3239 = vsub.f32 %v2650, %v3231
  %3241 = vset.pattern.permute.xlu0 0
  %3242 = vperm.xlu0 %3241, %v3216
  %v3243 = vpop.permute.xlu0 %3242
  %3246 = vset.pattern.permute.xlu0 0
  %3247 = vperm.xlu0 %3246, %v3217
  %v3248 = vpop.permute.xlu0 %3247
  %3251 = vset.pattern.permute.xlu0 0
  %3252 = vperm.xlu0 %3251, %v3218
  %v3253 = vpop.permute.xlu0 %3252
  %3256 = vset.pattern.permute.xlu0 0
  %3257 = vperm.xlu0 %3256, %v3219
  %v3258 = vpop.permute.xlu0 %3257
  %3261 = vset.pattern.permute.xlu0 0
  %3262 = vperm.xlu0 %3261, %v3220
  %v3263 = vpop.permute.xlu0 %3262
  %3266 = vset.pattern.permute.xlu0 0
  %3267 = vperm.xlu0 %3266, %v3221
  %v3268 = vpop.permute.xlu0 %3267
  %3271 = vset.pattern.permute.xlu0 0
  %3272 = vperm.xlu0 %3271, %v3222
  %v3273 = vpop.permute.xlu0 %3272
  %3276 = vset.pattern.permute.xlu0 0
  %3277 = vperm.xlu0 %3276, %v3223
  %v3278 = vpop.permute.xlu0 %3277
  %v3280 = vmul.f32 %v3111, %v3243
  %v3281 = vmul.f32 %v3112, %v3248
  %v3282 = vmul.f32 %v3113, %v3253
  %v3283 = vmul.f32 %v3114, %v3258
  %v3284 = vmul.f32 %v3115, %v3263
  %v3285 = vmul.f32 %v3116, %v3268
  %v3286 = vmul.f32 %v3117, %v3273
  %v3287 = vmul.f32 %v3118, %v3278
  %3289 = vset.pattern.permute.xlu0 0
  %3290 = vperm.xlu0 %3289, %v3232
  %v3291 = vpop.permute.xlu0 %3290
  %3294 = vset.pattern.permute.xlu0 0
  %3295 = vperm.xlu0 %3294, %v3233
  %v3296 = vpop.permute.xlu0 %3295
  %3299 = vset.pattern.permute.xlu0 0
  %3300 = vperm.xlu0 %3299, %v3234
  %v3301 = vpop.permute.xlu0 %3300
  %3304 = vset.pattern.permute.xlu0 0
  %3305 = vperm.xlu0 %3304, %v3235
  %v3306 = vpop.permute.xlu0 %3305
  %3309 = vset.pattern.permute.xlu0 0
  %3310 = vperm.xlu0 %3309, %v3236
  %v3311 = vpop.permute.xlu0 %3310
  %3314 = vset.pattern.permute.xlu0 0
  %3315 = vperm.xlu0 %3314, %v3237
  %v3316 = vpop.permute.xlu0 %3315
  %3319 = vset.pattern.permute.xlu0 0
  %3320 = vperm.xlu0 %3319, %v3238
  %v3321 = vpop.permute.xlu0 %3320
  %3324 = vset.pattern.permute.xlu0 0
  %3325 = vperm.xlu0 %3324, %v3239
  %v3326 = vpop.permute.xlu0 %3325
  %v3328 = vadd.f32 %v3280, %v3291
  %v3329 = vadd.f32 %v3281, %v3296
  %v3330 = vadd.f32 %v3282, %v3301
  %v3331 = vadd.f32 %v3283, %v3306
  %v3332 = vadd.f32 %v3284, %v3311
  %v3333 = vadd.f32 %v3285, %v3316
  %v3334 = vadd.f32 %v3286, %v3321
  %v3335 = vadd.f32 %v3287, %v3326
  %v3336 = vpack.c.bf16 %v3329, %v3328
  %v3337 = vpack.c.bf16 %v3331, %v3330
  %v3338 = vpack.c.bf16 %v3333, %v3332
  %v3339 = vpack.c.bf16 %v3335, %v3334
  %v3340 = vld [vmem:[%s10] sm:$0xf]
  %v3341 = vld [vmem:[%s10 + $0x4] sm:$0xf]
  %v3342 = vld [vmem:[%s10 + $0x8] sm:$0xf]
  %v3343 = vld [vmem:[%s10 + $0xc] sm:$0xf]
  %v3344 = vld [vmem:[%s10 + $0x10] sm:$0xf]
  %v3345 = vld [vmem:[%s10 + $0x14] sm:$0xf]
  %v3346 = vld [vmem:[%s10 + $0x18] sm:$0xf]
  %v3347 = vld [vmem:[%s10 + $0x1c] sm:$0xf]
  %v3348 = vld [vmem:[%s10 + $0x20] sm:$0xf]
  %v3349 = vld [vmem:[%s10 + $0x24] sm:$0xf]
  %v3350 = vld [vmem:[%s10 + $0x28] sm:$0xf]
  %v3351 = vld [vmem:[%s10 + $0x2c] sm:$0xf]
  %v3352 = vld [vmem:[%s10 + $0x30] sm:$0xf]
  %v3353 = vld [vmem:[%s10 + $0x34] sm:$0xf]
  %v3354 = vld [vmem:[%s10 + $0x38] sm:$0xf]
  %v3355 = vld [vmem:[%s10 + $0x3c] sm:$0xf]
  %v3356 = vld [vmem:[%s10 + $0x40] sm:$0xf]
  %v3357 = vld [vmem:[%s10 + $0x44] sm:$0xf]
  %v3358 = vld [vmem:[%s10 + $0x48] sm:$0xf]
  %v3359 = vld [vmem:[%s10 + $0x4c] sm:$0xf]
  %v3360 = vld [vmem:[%s10 + $0x50] sm:$0xf]
  %v3361 = vld [vmem:[%s10 + $0x54] sm:$0xf]
  %v3362 = vld [vmem:[%s10 + $0x58] sm:$0xf]
  %v3363 = vld [vmem:[%s10 + $0x5c] sm:$0xf]
  %v3364 = vld [vmem:[%s10 + $0x60] sm:$0xf]
  %v3365 = vld [vmem:[%s10 + $0x64] sm:$0xf]
  %v3366 = vld [vmem:[%s10 + $0x68] sm:$0xf]
  %v3367 = vld [vmem:[%s10 + $0x6c] sm:$0xf]
  %v3368 = vld [vmem:[%s10 + $0x70] sm:$0xf]
  %v3369 = vld [vmem:[%s10 + $0x74] sm:$0xf]
  %v3370 = vld [vmem:[%s10 + $0x78] sm:$0xf]
  %v3371 = vld [vmem:[%s10 + $0x7c] sm:$0xf]
  %v3372 = vld [vmem:[%s10 + $0x80] sm:$0xf]
  %v3373 = vld [vmem:[%s10 + $0x84] sm:$0xf]
  %v3374 = vld [vmem:[%s10 + $0x88] sm:$0xf]
  %v3375 = vld [vmem:[%s10 + $0x8c] sm:$0xf]
  %v3376 = vld [vmem:[%s10 + $0x90] sm:$0xf]
  %v3377 = vld [vmem:[%s10 + $0x94] sm:$0xf]
  %v3378 = vld [vmem:[%s10 + $0x98] sm:$0xf]
  %v3379 = vld [vmem:[%s10 + $0x9c] sm:$0xf]
  %v3380 = vld [vmem:[%s10 + $0xa0] sm:$0xf]
  %v3381 = vld [vmem:[%s10 + $0xa4] sm:$0xf]
  %v3382 = vld [vmem:[%s10 + $0xa8] sm:$0xf]
  %v3383 = vld [vmem:[%s10 + $0xac] sm:$0xf]
  %v3384 = vld [vmem:[%s10 + $0xb0] sm:$0xf]
  %v3385 = vld [vmem:[%s10 + $0xb4] sm:$0xf]
  %v3386 = vld [vmem:[%s10 + $0xb8] sm:$0xf]
  %v3387 = vld [vmem:[%s10 + $0xbc] sm:$0xf]
  %v3388 = vld [vmem:[%s10 + $0xc0] sm:$0xf]
  %v3389 = vld [vmem:[%s10 + $0xc4] sm:$0xf]
  %v3390 = vld [vmem:[%s10 + $0xc8] sm:$0xf]
  %v3391 = vld [vmem:[%s10 + $0xcc] sm:$0xf]
  %v3392 = vld [vmem:[%s10 + $0xd0] sm:$0xf]
  %v3393 = vld [vmem:[%s10 + $0xd4] sm:$0xf]
  %v3394 = vld [vmem:[%s10 + $0xd8] sm:$0xf]
  %v3395 = vld [vmem:[%s10 + $0xdc] sm:$0xf]
  %v3396 = vld [vmem:[%s10 + $0xe0] sm:$0xf]
  %v3397 = vld [vmem:[%s10 + $0xe4] sm:$0xf]
  %v3398 = vld [vmem:[%s10 + $0xe8] sm:$0xf]
  %v3399 = vld [vmem:[%s10 + $0xec] sm:$0xf]
  %v3400 = vld [vmem:[%s10 + $0xf0] sm:$0xf]
  %v3401 = vld [vmem:[%s10 + $0xf4] sm:$0xf]
  %v3402 = vld [vmem:[%s10 + $0xf8] sm:$0xf]
  %v3403 = vld [vmem:[%s10 + $0xfc] sm:$0xf]
  %v3404 = vld [vmem:[%s10 + $0x100] sm:$0xf]
  %v3405 = vld [vmem:[%s10 + $0x104] sm:$0xf]
  %v3406 = vld [vmem:[%s10 + $0x108] sm:$0xf]
  %v3407 = vld [vmem:[%s10 + $0x10c] sm:$0xf]
  %v3408 = vld [vmem:[%s10 + $0x110] sm:$0xf]
  %v3409 = vld [vmem:[%s10 + $0x114] sm:$0xf]
  %v3410 = vld [vmem:[%s10 + $0x118] sm:$0xf]
  %v3411 = vld [vmem:[%s10 + $0x11c] sm:$0xf]
  %v3412 = vld [vmem:[%s10 + $0x120] sm:$0xf]
  %v3413 = vld [vmem:[%s10 + $0x124] sm:$0xf]
  %v3414 = vld [vmem:[%s10 + $0x128] sm:$0xf]
  %v3415 = vld [vmem:[%s10 + $0x12c] sm:$0xf]
  %v3416 = vld [vmem:[%s10 + $0x130] sm:$0xf]
  %v3417 = vld [vmem:[%s10 + $0x134] sm:$0xf]
  %v3418 = vld [vmem:[%s10 + $0x138] sm:$0xf]
  %v3419 = vld [vmem:[%s10 + $0x13c] sm:$0xf]
  %v3420 = vld [vmem:[%s10 + $0x140] sm:$0xf]
  %v3421 = vld [vmem:[%s10 + $0x144] sm:$0xf]
  %v3422 = vld [vmem:[%s10 + $0x148] sm:$0xf]
  %v3423 = vld [vmem:[%s10 + $0x14c] sm:$0xf]
  %v3424 = vld [vmem:[%s10 + $0x150] sm:$0xf]
  %v3425 = vld [vmem:[%s10 + $0x154] sm:$0xf]
  %v3426 = vld [vmem:[%s10 + $0x158] sm:$0xf]
  %v3427 = vld [vmem:[%s10 + $0x15c] sm:$0xf]
  %v3428 = vld [vmem:[%s10 + $0x160] sm:$0xf]
  %v3429 = vld [vmem:[%s10 + $0x164] sm:$0xf]
  %v3430 = vld [vmem:[%s10 + $0x168] sm:$0xf]
  %v3431 = vld [vmem:[%s10 + $0x16c] sm:$0xf]
  %v3432 = vld [vmem:[%s10 + $0x170] sm:$0xf]
  %v3433 = vld [vmem:[%s10 + $0x174] sm:$0xf]
  %v3434 = vld [vmem:[%s10 + $0x178] sm:$0xf]
  %v3435 = vld [vmem:[%s10 + $0x17c] sm:$0xf]
  %v3436 = vld [vmem:[%s10 + $0x180] sm:$0xf]
  %v3437 = vld [vmem:[%s10 + $0x184] sm:$0xf]
  %v3438 = vld [vmem:[%s10 + $0x188] sm:$0xf]
  %v3439 = vld [vmem:[%s10 + $0x18c] sm:$0xf]
  %v3440 = vld [vmem:[%s10 + $0x190] sm:$0xf]
  %v3441 = vld [vmem:[%s10 + $0x194] sm:$0xf]
  %v3442 = vld [vmem:[%s10 + $0x198] sm:$0xf]
  %v3443 = vld [vmem:[%s10 + $0x19c] sm:$0xf]
  %v3444 = vld [vmem:[%s10 + $0x1a0] sm:$0xf]
  %v3445 = vld [vmem:[%s10 + $0x1a4] sm:$0xf]
  %v3446 = vld [vmem:[%s10 + $0x1a8] sm:$0xf]
  %v3447 = vld [vmem:[%s10 + $0x1ac] sm:$0xf]
  %v3448 = vld [vmem:[%s10 + $0x1b0] sm:$0xf]
  %v3449 = vld [vmem:[%s10 + $0x1b4] sm:$0xf]
  %v3450 = vld [vmem:[%s10 + $0x1b8] sm:$0xf]
  %v3451 = vld [vmem:[%s10 + $0x1bc] sm:$0xf]
  %v3452 = vld [vmem:[%s10 + $0x1c0] sm:$0xf]
  %v3453 = vld [vmem:[%s10 + $0x1c4] sm:$0xf]
  %v3454 = vld [vmem:[%s10 + $0x1c8] sm:$0xf]
  %v3455 = vld [vmem:[%s10 + $0x1cc] sm:$0xf]
  %v3456 = vld [vmem:[%s10 + $0x1d0] sm:$0xf]
  %v3457 = vld [vmem:[%s10 + $0x1d4] sm:$0xf]
  %v3458 = vld [vmem:[%s10 + $0x1d8] sm:$0xf]
  %v3459 = vld [vmem:[%s10 + $0x1dc] sm:$0xf]
  %v3460 = vld [vmem:[%s10 + $0x1e0] sm:$0xf]
  %v3461 = vld [vmem:[%s10 + $0x1e4] sm:$0xf]
  %v3462 = vld [vmem:[%s10 + $0x1e8] sm:$0xf]
  %v3463 = vld [vmem:[%s10 + $0x1ec] sm:$0xf]
  %v3464 = vld [vmem:[%s10 + $0x1f0] sm:$0xf]
  %v3465 = vld [vmem:[%s10 + $0x1f4] sm:$0xf]
  %v3466 = vld [vmem:[%s10 + $0x1f8] sm:$0xf]
  %v3467 = vld [vmem:[%s10 + $0x1fc] sm:$0xf]
  %v3596 = vunpack.c.l.b16 %v3340
  %v3597 = vunpack.c.l.b16 %v3341
  %v3598 = vunpack.c.l.b16 %v3342
  %v3599 = vunpack.c.l.b16 %v3343
  %v3600 = vunpack.c.l.b16 %v3344
  %v3601 = vunpack.c.l.b16 %v3345
  %v3602 = vunpack.c.l.b16 %v3346
  %v3603 = vunpack.c.l.b16 %v3347
  %v3604 = vunpack.c.l.b16 %v3348
  %v3605 = vunpack.c.l.b16 %v3349
  %v3606 = vunpack.c.l.b16 %v3350
  %v3607 = vunpack.c.l.b16 %v3351
  %v3608 = vunpack.c.l.b16 %v3352
  %v3609 = vunpack.c.l.b16 %v3353
  %v3610 = vunpack.c.l.b16 %v3354
  %v3611 = vunpack.c.l.b16 %v3355
  %v3612 = vunpack.c.l.b16 %v3356
  %v3613 = vunpack.c.l.b16 %v3357
  %v3614 = vunpack.c.l.b16 %v3358
  %v3615 = vunpack.c.l.b16 %v3359
  %v3616 = vunpack.c.l.b16 %v3360
  %v3617 = vunpack.c.l.b16 %v3361
  %v3618 = vunpack.c.l.b16 %v3362
  %v3619 = vunpack.c.l.b16 %v3363
  %v3620 = vunpack.c.l.b16 %v3364
  %v3621 = vunpack.c.l.b16 %v3365
  %v3622 = vunpack.c.l.b16 %v3366
  %v3623 = vunpack.c.l.b16 %v3367
  %v3624 = vunpack.c.l.b16 %v3368
  %v3625 = vunpack.c.l.b16 %v3369
  %v3626 = vunpack.c.l.b16 %v3370
  %v3627 = vunpack.c.l.b16 %v3371
  %v3628 = vunpack.c.l.b16 %v3372
  %v3629 = vunpack.c.l.b16 %v3373
  %v3630 = vunpack.c.l.b16 %v3374
  %v3631 = vunpack.c.l.b16 %v3375
  %v3632 = vunpack.c.l.b16 %v3376
  %v3633 = vunpack.c.l.b16 %v3377
  %v3634 = vunpack.c.l.b16 %v3378
  %v3635 = vunpack.c.l.b16 %v3379
  %v3636 = vunpack.c.l.b16 %v3380
  %v3637 = vunpack.c.l.b16 %v3381
  %v3638 = vunpack.c.l.b16 %v3382
  %v3639 = vunpack.c.l.b16 %v3383
  %v3640 = vunpack.c.l.b16 %v3384
  %v3641 = vunpack.c.l.b16 %v3385
  %v3642 = vunpack.c.l.b16 %v3386
  %v3643 = vunpack.c.l.b16 %v3387
  %v3644 = vunpack.c.l.b16 %v3388
  %v3645 = vunpack.c.l.b16 %v3389
  %v3646 = vunpack.c.l.b16 %v3390
  %v3647 = vunpack.c.l.b16 %v3391
  %v3648 = vunpack.c.l.b16 %v3392
  %v3649 = vunpack.c.l.b16 %v3393
  %v3650 = vunpack.c.l.b16 %v3394
  %v3651 = vunpack.c.l.b16 %v3395
  %v3652 = vunpack.c.l.b16 %v3396
  %v3653 = vunpack.c.l.b16 %v3397
  %v3654 = vunpack.c.l.b16 %v3398
  %v3655 = vunpack.c.l.b16 %v3399
  %v3656 = vunpack.c.l.b16 %v3400
  %v3657 = vunpack.c.l.b16 %v3401
  %v3658 = vunpack.c.l.b16 %v3402
  %v3659 = vunpack.c.l.b16 %v3403
  %v3660 = vunpack.c.l.b16 %v3404
  %v3661 = vunpack.c.l.b16 %v3405
  %v3662 = vunpack.c.l.b16 %v3406
  %v3663 = vunpack.c.l.b16 %v3407
  %v3664 = vunpack.c.l.b16 %v3408
  %v3665 = vunpack.c.l.b16 %v3409
  %v3666 = vunpack.c.l.b16 %v3410
  %v3667 = vunpack.c.l.b16 %v3411
  %v3668 = vunpack.c.l.b16 %v3412
  %v3669 = vunpack.c.l.b16 %v3413
  %v3670 = vunpack.c.l.b16 %v3414
  %v3671 = vunpack.c.l.b16 %v3415
  %v3672 = vunpack.c.l.b16 %v3416
  %v3673 = vunpack.c.l.b16 %v3417
  %v3674 = vunpack.c.l.b16 %v3418
  %v3675 = vunpack.c.l.b16 %v3419
  %v3676 = vunpack.c.l.b16 %v3420
  %v3677 = vunpack.c.l.b16 %v3421
  %v3678 = vunpack.c.l.b16 %v3422
  %v3679 = vunpack.c.l.b16 %v3423
  %v3680 = vunpack.c.l.b16 %v3424
  %v3681 = vunpack.c.l.b16 %v3425
  %v3682 = vunpack.c.l.b16 %v3426
  %v3683 = vunpack.c.l.b16 %v3427
  %v3684 = vunpack.c.l.b16 %v3428
  %v3685 = vunpack.c.l.b16 %v3429
  %v3686 = vunpack.c.l.b16 %v3430
  %v3687 = vunpack.c.l.b16 %v3431
  %v3688 = vunpack.c.l.b16 %v3432
  %v3689 = vunpack.c.l.b16 %v3433
  %v3690 = vunpack.c.l.b16 %v3434
  %v3691 = vunpack.c.l.b16 %v3435
  %v3692 = vunpack.c.l.b16 %v3436
  %v3693 = vunpack.c.l.b16 %v3437
  %v3694 = vunpack.c.l.b16 %v3438
  %v3695 = vunpack.c.l.b16 %v3439
  %v3696 = vunpack.c.l.b16 %v3440
  %v3697 = vunpack.c.l.b16 %v3441
  %v3698 = vunpack.c.l.b16 %v3442
  %v3699 = vunpack.c.l.b16 %v3443
  %v3700 = vunpack.c.l.b16 %v3444
  %v3701 = vunpack.c.l.b16 %v3445
  %v3702 = vunpack.c.l.b16 %v3446
  %v3703 = vunpack.c.l.b16 %v3447
  %v3704 = vunpack.c.l.b16 %v3448
  %v3705 = vunpack.c.l.b16 %v3449
  %v3706 = vunpack.c.l.b16 %v3450
  %v3707 = vunpack.c.l.b16 %v3451
  %v3708 = vunpack.c.l.b16 %v3452
  %v3709 = vunpack.c.l.b16 %v3453
  %v3710 = vunpack.c.l.b16 %v3454
  %v3711 = vunpack.c.l.b16 %v3455
  %v3712 = vunpack.c.l.b16 %v3456
  %v3713 = vunpack.c.l.b16 %v3457
  %v3714 = vunpack.c.l.b16 %v3458
  %v3715 = vunpack.c.l.b16 %v3459
  %v3716 = vunpack.c.l.b16 %v3460
  %v3717 = vunpack.c.l.b16 %v3461
  %v3718 = vunpack.c.l.b16 %v3462
  %v3719 = vunpack.c.l.b16 %v3463
  %v3720 = vunpack.c.l.b16 %v3464
  %v3721 = vunpack.c.l.b16 %v3465
  %v3722 = vunpack.c.l.b16 %v3466
  %v3723 = vunpack.c.l.b16 %v3467
  %v3724 = vpack.c.b16 %v3597, %v3596
  %v3725 = vpack.c.b16 %v3599, %v3598
  %v3726 = vpack.c.b16 %v3601, %v3600
  %v3727 = vpack.c.b16 %v3603, %v3602
  %v3728 = vpack.c.b16 %v3605, %v3604
  %v3729 = vpack.c.b16 %v3607, %v3606
  %v3730 = vpack.c.b16 %v3609, %v3608
  %v3731 = vpack.c.b16 %v3611, %v3610
  %v3732 = vpack.c.b16 %v3613, %v3612
  %v3733 = vpack.c.b16 %v3615, %v3614
  %v3734 = vpack.c.b16 %v3617, %v3616
  %v3735 = vpack.c.b16 %v3619, %v3618
  %v3736 = vpack.c.b16 %v3621, %v3620
  %v3737 = vpack.c.b16 %v3623, %v3622
  %v3738 = vpack.c.b16 %v3625, %v3624
  %v3739 = vpack.c.b16 %v3627, %v3626
  %v3740 = vpack.c.b16 %v3629, %v3628
  %v3741 = vpack.c.b16 %v3631, %v3630
  %v3742 = vpack.c.b16 %v3633, %v3632
  %v3743 = vpack.c.b16 %v3635, %v3634
  %v3744 = vpack.c.b16 %v3637, %v3636
  %v3745 = vpack.c.b16 %v3639, %v3638
  %v3746 = vpack.c.b16 %v3641, %v3640
  %v3747 = vpack.c.b16 %v3643, %v3642
  %v3748 = vpack.c.b16 %v3645, %v3644
  %v3749 = vpack.c.b16 %v3647, %v3646
  %v3750 = vpack.c.b16 %v3649, %v3648
  %v3751 = vpack.c.b16 %v3651, %v3650
  %v3752 = vpack.c.b16 %v3653, %v3652
  %v3753 = vpack.c.b16 %v3655, %v3654
  %v3754 = vpack.c.b16 %v3657, %v3656
  %v3755 = vpack.c.b16 %v3659, %v3658
  %v3756 = vpack.c.b16 %v3661, %v3660
  %v3757 = vpack.c.b16 %v3663, %v3662
  %v3758 = vpack.c.b16 %v3665, %v3664
  %v3759 = vpack.c.b16 %v3667, %v3666
  %v3760 = vpack.c.b16 %v3669, %v3668
  %v3761 = vpack.c.b16 %v3671, %v3670
  %v3762 = vpack.c.b16 %v3673, %v3672
  %v3763 = vpack.c.b16 %v3675, %v3674
  %v3764 = vpack.c.b16 %v3677, %v3676
  %v3765 = vpack.c.b16 %v3679, %v3678
  %v3766 = vpack.c.b16 %v3681, %v3680
  %v3767 = vpack.c.b16 %v3683, %v3682
  %v3768 = vpack.c.b16 %v3685, %v3684
  %v3769 = vpack.c.b16 %v3687, %v3686
  %v3770 = vpack.c.b16 %v3689, %v3688
  %v3771 = vpack.c.b16 %v3691, %v3690
  %v3772 = vpack.c.b16 %v3693, %v3692
  %v3773 = vpack.c.b16 %v3695, %v3694
  %v3774 = vpack.c.b16 %v3697, %v3696
  %v3775 = vpack.c.b16 %v3699, %v3698
  %v3776 = vpack.c.b16 %v3701, %v3700
  %v3777 = vpack.c.b16 %v3703, %v3702
  %v3778 = vpack.c.b16 %v3705, %v3704
  %v3779 = vpack.c.b16 %v3707, %v3706
  %v3780 = vpack.c.b16 %v3709, %v3708
  %v3781 = vpack.c.b16 %v3711, %v3710
  %v3782 = vpack.c.b16 %v3713, %v3712
  %v3783 = vpack.c.b16 %v3715, %v3714
  %v3784 = vpack.c.b16 %v3717, %v3716
  %v3785 = vpack.c.b16 %v3719, %v3718
  %v3786 = vpack.c.b16 %v3721, %v3720
  %v3787 = vpack.c.b16 %v3723, %v3722
  %vm3788 = vcmask 523264
  %v3790 = vsel %vm3788, %v3724, 0
  %v3793 = vsel %vm3788, %v3725, 0
  %v3796 = vsel %vm3788, %v3726, 0
  %v3799 = vsel %vm3788, %v3727, 0
  %v3802 = vsel %vm3788, %v3728, 0
  %v3805 = vsel %vm3788, %v3729, 0
  %v3808 = vsel %vm3788, %v3730, 0
  %v3811 = vsel %vm3788, %v3731, 0
  %v3814 = vsel %vm3788, %v3732, 0
  %v3817 = vsel %vm3788, %v3733, 0
  %v3820 = vsel %vm3788, %v3734, 0
  %v3823 = vsel %vm3788, %v3735, 0
  %v3826 = vsel %vm3788, %v3736, 0
  %v3829 = vsel %vm3788, %v3737, 0
  %v3832 = vsel %vm3788, %v3738, 0
  %v3835 = vsel %vm3788, %v3739, 0
  %v3838 = vsel %vm3788, %v3740, 0
  %v3841 = vsel %vm3788, %v3741, 0
  %v3844 = vsel %vm3788, %v3742, 0
  %v3847 = vsel %vm3788, %v3743, 0
  %v3850 = vsel %vm3788, %v3744, 0
  %v3853 = vsel %vm3788, %v3745, 0
  %v3856 = vsel %vm3788, %v3746, 0
  %v3859 = vsel %vm3788, %v3747, 0
  %v3862 = vsel %vm3788, %v3748, 0
  %v3865 = vsel %vm3788, %v3749, 0
  %v3868 = vsel %vm3788, %v3750, 0
  %v3871 = vsel %vm3788, %v3751, 0
  %v3874 = vsel %vm3788, %v3752, 0
  %v3877 = vsel %vm3788, %v3753, 0
  %v3880 = vsel %vm3788, %v3754, 0
  %v3883 = vsel %vm3788, %v3755, 0
  %v3886 = vsel %vm3788, %v3756, 0
  %v3889 = vsel %vm3788, %v3757, 0
  %v3892 = vsel %vm3788, %v3758, 0
  %v3895 = vsel %vm3788, %v3759, 0
  %v3898 = vsel %vm3788, %v3760, 0
  %v3901 = vsel %vm3788, %v3761, 0
  %v3904 = vsel %vm3788, %v3762, 0
  %v3907 = vsel %vm3788, %v3763, 0
  %v3910 = vsel %vm3788, %v3764, 0
  %v3913 = vsel %vm3788, %v3765, 0
  %v3916 = vsel %vm3788, %v3766, 0
  %v3919 = vsel %vm3788, %v3767, 0
  %v3922 = vsel %vm3788, %v3768, 0
  %v3925 = vsel %vm3788, %v3769, 0
  %v3928 = vsel %vm3788, %v3770, 0
  %v3931 = vsel %vm3788, %v3771, 0
  %v3934 = vsel %vm3788, %v3772, 0
  %v3937 = vsel %vm3788, %v3773, 0
  %v3940 = vsel %vm3788, %v3774, 0
  %v3943 = vsel %vm3788, %v3775, 0
  %v3946 = vsel %vm3788, %v3776, 0
  %v3949 = vsel %vm3788, %v3777, 0
  %v3952 = vsel %vm3788, %v3778, 0
  %v3955 = vsel %vm3788, %v3779, 0
  %v3958 = vsel %vm3788, %v3780, 0
  %v3961 = vsel %vm3788, %v3781, 0
  %v3964 = vsel %vm3788, %v3782, 0
  %v3967 = vsel %vm3788, %v3783, 0
  %v3970 = vsel %vm3788, %v3784, 0
  %v3973 = vsel %vm3788, %v3785, 0
  %v3976 = vsel %vm3788, %v3786, 0
  %v3979 = vsel %vm3788, %v3787, 0
  %3981 = vmatprep.subr.bf16.mxu0 0
  %3982 = vmatpush1.bf16.msra.mxu0 %v3336
  %3983 = vmatprep.subr.bf16.mxu0 0
  %3984 = vmatpush1.bf16.msra.mxu0 %v3337
  %3985 = vmatprep.subr.bf16.mxu0 0
  %3986 = vmatpush1.bf16.msra.mxu0 %v3338
  %3987 = vmatprep.subr.bf16.mxu0 0
  %3988 = vmatpush1.bf16.msra.mxu0 %v3339
  %3989 = vmatprep.subr.bf16.mxu0 0
  %3990 = vmatpush1.bf16.msra.mxu0 0
  %3991 = vmatprep.subr.bf16.mxu0 0
  %3992 = vmatpush1.bf16.msra.mxu0 0
  %3993 = vmatprep.subr.bf16.mxu0 0
  %3994 = vmatpush1.bf16.msra.mxu0 0
  %3995 = vmatprep.subr.bf16.mxu0 0
  %3996 = vmatpush1.bf16.msra.mxu0 0
  %3997 = vmatprep.subr.bf16.mxu0 0
  %3998 = vmatpush1.bf16.msra.mxu0 0
  %3999 = vmatprep.subr.bf16.mxu0 0
  %4000 = vmatpush1.bf16.msra.mxu0 0
  %4001 = vmatprep.subr.bf16.mxu0 0
  %4002 = vmatpush1.bf16.msra.mxu0 0
  %4003 = vmatprep.subr.bf16.mxu0 0
  %4004 = vmatpush1.bf16.msra.mxu0 0
  %4005 = vmatprep.subr.bf16.mxu0 0
  %4006 = vmatpush1.bf16.msra.mxu0 0
  %4007 = vmatprep.subr.bf16.mxu0 0
  %4008 = vmatpush1.bf16.msra.mxu0 0
  %4009 = vmatprep.subr.bf16.mxu0 0
  %4010 = vmatpush1.bf16.msra.mxu0 0
  %4011 = vmatprep.subr.bf16.mxu0 0
  %4012 = vmatpush1.bf16.msra.mxu0 0
  %4013 = vmatprep.mubr.bf16.mxu0 0
  %4014 = vmatmul.mubr.bf16.gmra.mrb[0].mxu0 %v3790
  %v4015 = vpop.f32.mrb[0].mxu0
  %v4016 = vadd.f32 0.0, %v4015
  %v4017 = vpop.f32.mrb[0].mxu0
  %v4018 = vpop.f32.mrb[0].mxu0
  %v4019 = vadd.f32 0.0, %v4018
  %v4020 = vpop.f32.mrb[0].mxu0
  %4021 = vmatprep.mubr.bf16.mxu0 0
  %4022 = vmatmul.mubr.bf16.gmra.mrb[0].mxu0 %v3793
  %v4023 = vpop.f32.mrb[0].mxu0
  %v4024 = vadd.f32 0.0, %v4023
  %v4025 = vpop.f32.mrb[0].mxu0
  %v4026 = vpop.f32.mrb[0].mxu0
  %v4027 = vadd.f32 0.0, %v4026
  %v4028 = vpop.f32.mrb[0].mxu0
  %4029 = vmatprep.mubr.bf16.mxu0 0
  %4030 = vmatmul.mubr.bf16.gmra.mrb[0].mxu0 %v3796
  %v4031 = vpop.f32.mrb[0].mxu0
  %v4032 = vadd.f32 0.0, %v4031
  %v4033 = vpop.f32.mrb[0].mxu0
  %v4034 = vpop.f32.mrb[0].mxu0
  %v4035 = vadd.f32 0.0, %v4034
  %v4036 = vpop.f32.mrb[0].mxu0
  %4037 = vmatprep.mubr.bf16.mxu0 0
  %4038 = vmatmul.mubr.bf16.gmra.mrb[0].mxu0 %v3799
  %v4039 = vpop.f32.mrb[0].mxu0
  %v4040 = vadd.f32 0.0, %v4039
  %v4041 = vpop.f32.mrb[0].mxu0
  %v4042 = vpop.f32.mrb[0].mxu0
  %v4043 = vadd.f32 0.0, %v4042
  %v4044 = vpop.f32.mrb[0].mxu0
  %4045 = vmatprep.mubr.bf16.mxu0 0
  %4046 = vmatmul.mubr.bf16.gmra.mrb[0].mxu0 %v3802
  %v4047 = vpop.f32.mrb[0].mxu0
  %v4048 = vadd.f32 0.0, %v4047
  %v4049 = vpop.f32.mrb[0].mxu0
  %v4050 = vpop.f32.mrb[0].mxu0
  %v4051 = vadd.f32 0.0, %v4050
  %v4052 = vpop.f32.mrb[0].mxu0
  %4053 = vmatprep.mubr.bf16.mxu0 0
  %4054 = vmatmul.mubr.bf16.gmra.mrb[0].mxu0 %v3805
  %v4055 = vpop.f32.mrb[0].mxu0
  %v4056 = vadd.f32 0.0, %v4055
  %v4057 = vpop.f32.mrb[0].mxu0
  %v4058 = vpop.f32.mrb[0].mxu0
  %v4059 = vadd.f32 0.0, %v4058
  %v4060 = vpop.f32.mrb[0].mxu0
  %4061 = vmatprep.mubr.bf16.mxu0 0
  %4062 = vmatmul.mubr.bf16.gmra.mrb[0].mxu0 %v3808
  %v4063 = vpop.f32.mrb[0].mxu0
  %v4064 = vadd.f32 0.0, %v4063
  %v4065 = vpop.f32.mrb[0].mxu0
  %v4066 = vpop.f32.mrb[0].mxu0
  %v4067 = vadd.f32 0.0, %v4066
  %v4068 = vpop.f32.mrb[0].mxu0
  %4069 = vmatprep.mubr.bf16.mxu0 0
  %4070 = vmatmul.mubr.bf16.gmra.mrb[0].mxu0 %v3811
  %v4071 = vpop.f32.mrb[0].mxu0
  %v4072 = vadd.f32 0.0, %v4071
  %v4073 = vpop.f32.mrb[0].mxu0
  %v4074 = vpop.f32.mrb[0].mxu0
  %v4075 = vadd.f32 0.0, %v4074
  %v4076 = vpop.f32.mrb[0].mxu0
  %4077 = vmatprep.mubr.bf16.mxu0 0
  %4078 = vmatmul.mubr.bf16.gmra.mrb[0].mxu0 %v3814
  %v4079 = vpop.f32.mrb[0].mxu0
  %v4080 = vadd.f32 0.0, %v4079
  %v4081 = vpop.f32.mrb[0].mxu0
  %v4082 = vpop.f32.mrb[0].mxu0
  %v4083 = vadd.f32 0.0, %v4082
  %v4084 = vpop.f32.mrb[0].mxu0
  %4085 = vmatprep.mubr.bf16.mxu0 0
  %4086 = vmatmul.mubr.bf16.gmra.mrb[0].mxu0 %v3817
  %v4087 = vpop.f32.mrb[0].mxu0
  %v4088 = vadd.f32 0.0, %v4087
  %v4089 = vpop.f32.mrb[0].mxu0
  %v4090 = vpop.f32.mrb[0].mxu0
  %v4091 = vadd.f32 0.0, %v4090
  %v4092 = vpop.f32.mrb[0].mxu0
  %4093 = vmatprep.mubr.bf16.mxu0 0
  %4094 = vmatmul.mubr.bf16.gmra.mrb[0].mxu0 %v3820
  %v4095 = vpop.f32.mrb[0].mxu0
  %v4096 = vadd.f32 0.0, %v4095
  %v4097 = vpop.f32.mrb[0].mxu0
  %v4098 = vpop.f32.mrb[0].mxu0
  %v4099 = vadd.f32 0.0, %v4098
  %v4100 = vpop.f32.mrb[0].mxu0
  %4101 = vmatprep.mubr.bf16.mxu0 0
  %4102 = vmatmul.mubr.bf16.gmra.mrb[0].mxu0 %v3823
  %v4103 = vpop.f32.mrb[0].mxu0
  %v4104 = vadd.f32 0.0, %v4103
  %v4105 = vpop.f32.mrb[0].mxu0
  %v4106 = vpop.f32.mrb[0].mxu0
  %v4107 = vadd.f32 0.0, %v4106
  %v4108 = vpop.f32.mrb[0].mxu0
  %4109 = vmatprep.mubr.bf16.mxu0 0
  %4110 = vmatmul.mubr.bf16.gmra.mrb[0].mxu0 %v3826
  %v4111 = vpop.f32.mrb[0].mxu0
  %v4112 = vadd.f32 0.0, %v4111
  %v4113 = vpop.f32.mrb[0].mxu0
  %v4114 = vpop.f32.mrb[0].mxu0
  %v4115 = vadd.f32 0.0, %v4114
  %v4116 = vpop.f32.mrb[0].mxu0
  %4117 = vmatprep.mubr.bf16.mxu0 0
  %4118 = vmatmul.mubr.bf16.gmra.mrb[0].mxu0 %v3829
  %v4119 = vpop.f32.mrb[0].mxu0
  %v4120 = vadd.f32 0.0, %v4119
  %v4121 = vpop.f32.mrb[0].mxu0
  %v4122 = vpop.f32.mrb[0].mxu0
  %v4123 = vadd.f32 0.0, %v4122
  %v4124 = vpop.f32.mrb[0].mxu0
  %4125 = vmatprep.mubr.bf16.mxu0 0
  %4126 = vmatmul.mubr.bf16.gmra.mrb[0].mxu0 %v3832
  %v4127 = vpop.f32.mrb[0].mxu0
  %v4128 = vadd.f32 0.0, %v4127
  %v4129 = vpop.f32.mrb[0].mxu0
  %v4130 = vpop.f32.mrb[0].mxu0
  %v4131 = vadd.f32 0.0, %v4130
  %v4132 = vpop.f32.mrb[0].mxu0
  %4133 = vmatprep.mubr.bf16.mxu0 0
  %4134 = vmatmul.mubr.bf16.gmra.mrb[0].mxu0 %v3835
  %v4135 = vpop.f32.mrb[0].mxu0
  %v4136 = vadd.f32 0.0, %v4135
  %v4137 = vpop.f32.mrb[0].mxu0
  %v4138 = vpop.f32.mrb[0].mxu0
  %v4139 = vadd.f32 0.0, %v4138
  %v4140 = vpop.f32.mrb[0].mxu0
  %4141 = vmatprep.mubr.bf16.mxu0 0
  %4142 = vmatmul.mubr.bf16.gmra.mrb[0].mxu0 %v3838
  %v4143 = vpop.f32.mrb[0].mxu0
  %v4144 = vadd.f32 0.0, %v4143
  %v4145 = vpop.f32.mrb[0].mxu0
  %v4146 = vpop.f32.mrb[0].mxu0
  %v4147 = vadd.f32 0.0, %v4146
  %v4148 = vpop.f32.mrb[0].mxu0
  %4149 = vmatprep.mubr.bf16.mxu0 0
  %4150 = vmatmul.mubr.bf16.gmra.mrb[0].mxu0 %v3841
  %v4151 = vpop.f32.mrb[0].mxu0
  %v4152 = vadd.f32 0.0, %v4151
  %v4153 = vpop.f32.mrb[0].mxu0
  %v4154 = vpop.f32.mrb[0].mxu0
  %v4155 = vadd.f32 0.0, %v4154
  %v4156 = vpop.f32.mrb[0].mxu0
  %4157 = vmatprep.mubr.bf16.mxu0 0
  %4158 = vmatmul.mubr.bf16.gmra.mrb[0].mxu0 %v3844
  %v4159 = vpop.f32.mrb[0].mxu0
  %v4160 = vadd.f32 0.0, %v4159
  %v4161 = vpop.f32.mrb[0].mxu0
  %v4162 = vpop.f32.mrb[0].mxu0
  %v4163 = vadd.f32 0.0, %v4162
  %v4164 = vpop.f32.mrb[0].mxu0
  %4165 = vmatprep.mubr.bf16.mxu0 0
  %4166 = vmatmul.mubr.bf16.gmra.mrb[0].mxu0 %v3847
  %v4167 = vpop.f32.mrb[0].mxu0
  %v4168 = vadd.f32 0.0, %v4167
  %v4169 = vpop.f32.mrb[0].mxu0
  %v4170 = vpop.f32.mrb[0].mxu0
  %v4171 = vadd.f32 0.0, %v4170
  %v4172 = vpop.f32.mrb[0].mxu0
  %4173 = vmatprep.mubr.bf16.mxu0 0
  %4174 = vmatmul.mubr.bf16.gmra.mrb[0].mxu0 %v3850
  %v4175 = vpop.f32.mrb[0].mxu0
  %v4176 = vadd.f32 0.0, %v4175
  %v4177 = vpop.f32.mrb[0].mxu0
  %v4178 = vpop.f32.mrb[0].mxu0
  %v4179 = vadd.f32 0.0, %v4178
  %v4180 = vpop.f32.mrb[0].mxu0
  %4181 = vmatprep.mubr.bf16.mxu0 0
  %4182 = vmatmul.mubr.bf16.gmra.mrb[0].mxu0 %v3853
  %v4183 = vpop.f32.mrb[0].mxu0
  %v4184 = vadd.f32 0.0, %v4183
  %v4185 = vpop.f32.mrb[0].mxu0
  %v4186 = vpop.f32.mrb[0].mxu0
  %v4187 = vadd.f32 0.0, %v4186
  %v4188 = vpop.f32.mrb[0].mxu0
  %4189 = vmatprep.mubr.bf16.mxu0 0
  %4190 = vmatmul.mubr.bf16.gmra.mrb[0].mxu0 %v3856
  %v4191 = vpop.f32.mrb[0].mxu0
  %v4192 = vadd.f32 0.0, %v4191
  %v4193 = vpop.f32.mrb[0].mxu0
  %v4194 = vpop.f32.mrb[0].mxu0
  %v4195 = vadd.f32 0.0, %v4194
  %v4196 = vpop.f32.mrb[0].mxu0
  %4197 = vmatprep.mubr.bf16.mxu0 0
  %4198 = vmatmul.mubr.bf16.gmra.mrb[0].mxu0 %v3859
  %v4199 = vpop.f32.mrb[0].mxu0
  %v4200 = vadd.f32 0.0, %v4199
  %v4201 = vpop.f32.mrb[0].mxu0
  %v4202 = vpop.f32.mrb[0].mxu0
  %v4203 = vadd.f32 0.0, %v4202
  %v4204 = vpop.f32.mrb[0].mxu0
  %4205 = vmatprep.mubr.bf16.mxu0 0
  %4206 = vmatmul.mubr.bf16.gmra.mrb[0].mxu0 %v3862
  %v4207 = vpop.f32.mrb[0].mxu0
  %v4208 = vadd.f32 0.0, %v4207
  %v4209 = vpop.f32.mrb[0].mxu0
  %v4210 = vpop.f32.mrb[0].mxu0
  %v4211 = vadd.f32 0.0, %v4210
  %v4212 = vpop.f32.mrb[0].mxu0
  %4213 = vmatprep.mubr.bf16.mxu0 0
  %4214 = vmatmul.mubr.bf16.gmra.mrb[0].mxu0 %v3865
  %v4215 = vpop.f32.mrb[0].mxu0
  %v4216 = vadd.f32 0.0, %v4215
  %v4217 = vpop.f32.mrb[0].mxu0
  %v4218 = vpop.f32.mrb[0].mxu0
  %v4219 = vadd.f32 0.0, %v4218
  %v4220 = vpop.f32.mrb[0].mxu0
  %4221 = vmatprep.mubr.bf16.mxu0 0
  %4222 = vmatmul.mubr.bf16.gmra.mrb[0].mxu0 %v3868
  %v4223 = vpop.f32.mrb[0].mxu0
  %v4224 = vadd.f32 0.0, %v4223
  %v4225 = vpop.f32.mrb[0].mxu0
  %v4226 = vpop.f32.mrb[0].mxu0
  %v4227 = vadd.f32 0.0, %v4226
  %v4228 = vpop.f32.mrb[0].mxu0
  %4229 = vmatprep.mubr.bf16.mxu0 0
  %4230 = vmatmul.mubr.bf16.gmra.mrb[0].mxu0 %v3871
  %v4231 = vpop.f32.mrb[0].mxu0
  %v4232 = vadd.f32 0.0, %v4231
  %v4233 = vpop.f32.mrb[0].mxu0
  %v4234 = vpop.f32.mrb[0].mxu0
  %v4235 = vadd.f32 0.0, %v4234
  %v4236 = vpop.f32.mrb[0].mxu0
  %4237 = vmatprep.mubr.bf16.mxu0 0
  %4238 = vmatmul.mubr.bf16.gmra.mrb[0].mxu0 %v3874
  %v4239 = vpop.f32.mrb[0].mxu0
  %v4240 = vadd.f32 0.0, %v4239
  %v4241 = vpop.f32.mrb[0].mxu0
  %v4242 = vpop.f32.mrb[0].mxu0
  %v4243 = vadd.f32 0.0, %v4242
  %v4244 = vpop.f32.mrb[0].mxu0
  %4245 = vmatprep.mubr.bf16.mxu0 0
  %4246 = vmatmul.mubr.bf16.gmra.mrb[0].mxu0 %v3877
  %v4247 = vpop.f32.mrb[0].mxu0
  %v4248 = vadd.f32 0.0, %v4247
  %v4249 = vpop.f32.mrb[0].mxu0
  %v4250 = vpop.f32.mrb[0].mxu0
  %v4251 = vadd.f32 0.0, %v4250
  %v4252 = vpop.f32.mrb[0].mxu0
  %4253 = vmatprep.mubr.bf16.mxu0 0
  %4254 = vmatmul.mubr.bf16.gmra.mrb[0].mxu0 %v3880
  %v4255 = vpop.f32.mrb[0].mxu0
  %v4256 = vadd.f32 0.0, %v4255
  %v4257 = vpop.f32.mrb[0].mxu0
  %v4258 = vpop.f32.mrb[0].mxu0
  %v4259 = vadd.f32 0.0, %v4258
  %v4260 = vpop.f32.mrb[0].mxu0
  %4261 = vmatprep.mubr.bf16.mxu0 0
  %4262 = vmatmul.mubr.bf16.gmra.mrb[0].mxu0 %v3883
  %v4263 = vpop.f32.mrb[0].mxu0
  %v4264 = vadd.f32 0.0, %v4263
  %v4265 = vpop.f32.mrb[0].mxu0
  %v4266 = vpop.f32.mrb[0].mxu0
  %v4267 = vadd.f32 0.0, %v4266
  %v4268 = vpop.f32.mrb[0].mxu0
  %4269 = vmatprep.mubr.bf16.mxu0 0
  %4270 = vmatmul.mubr.bf16.gmra.mrb[0].mxu0 %v3886
  %v4271 = vpop.f32.mrb[0].mxu0
  %v4272 = vadd.f32 0.0, %v4271
  %v4273 = vpop.f32.mrb[0].mxu0
  %v4274 = vpop.f32.mrb[0].mxu0
  %v4275 = vadd.f32 0.0, %v4274
  %v4276 = vpop.f32.mrb[0].mxu0
  %4277 = vmatprep.mubr.bf16.mxu0 0
  %4278 = vmatmul.mubr.bf16.gmra.mrb[0].mxu0 %v3889
  %v4279 = vpop.f32.mrb[0].mxu0
  %v4280 = vadd.f32 0.0, %v4279
  %v4281 = vpop.f32.mrb[0].mxu0
  %v4282 = vpop.f32.mrb[0].mxu0
  %v4283 = vadd.f32 0.0, %v4282
  %v4284 = vpop.f32.mrb[0].mxu0
  %4285 = vmatprep.mubr.bf16.mxu0 0
  %4286 = vmatmul.mubr.bf16.gmra.mrb[0].mxu0 %v3892
  %v4287 = vpop.f32.mrb[0].mxu0
  %v4288 = vadd.f32 0.0, %v4287
  %v4289 = vpop.f32.mrb[0].mxu0
  %v4290 = vpop.f32.mrb[0].mxu0
  %v4291 = vadd.f32 0.0, %v4290
  %v4292 = vpop.f32.mrb[0].mxu0
  %4293 = vmatprep.mubr.bf16.mxu0 0
  %4294 = vmatmul.mubr.bf16.gmra.mrb[0].mxu0 %v3895
  %v4295 = vpop.f32.mrb[0].mxu0
  %v4296 = vadd.f32 0.0, %v4295
  %v4297 = vpop.f32.mrb[0].mxu0
  %v4298 = vpop.f32.mrb[0].mxu0
  %v4299 = vadd.f32 0.0, %v4298
  %v4300 = vpop.f32.mrb[0].mxu0
  %4301 = vmatprep.mubr.bf16.mxu0 0
  %4302 = vmatmul.mubr.bf16.gmra.mrb[0].mxu0 %v3898
  %v4303 = vpop.f32.mrb[0].mxu0
  %v4304 = vadd.f32 0.0, %v4303
  %v4305 = vpop.f32.mrb[0].mxu0
  %v4306 = vpop.f32.mrb[0].mxu0
  %v4307 = vadd.f32 0.0, %v4306
  %v4308 = vpop.f32.mrb[0].mxu0
  %4309 = vmatprep.mubr.bf16.mxu0 0
  %4310 = vmatmul.mubr.bf16.gmra.mrb[0].mxu0 %v3901
  %v4311 = vpop.f32.mrb[0].mxu0
  %v4312 = vadd.f32 0.0, %v4311
  %v4313 = vpop.f32.mrb[0].mxu0
  %v4314 = vpop.f32.mrb[0].mxu0
  %v4315 = vadd.f32 0.0, %v4314
  %v4316 = vpop.f32.mrb[0].mxu0
  %4317 = vmatprep.mubr.bf16.mxu0 0
  %4318 = vmatmul.mubr.bf16.gmra.mrb[0].mxu0 %v3904
  %v4319 = vpop.f32.mrb[0].mxu0
  %v4320 = vadd.f32 0.0, %v4319
  %v4321 = vpop.f32.mrb[0].mxu0
  %v4322 = vpop.f32.mrb[0].mxu0
  %v4323 = vadd.f32 0.0, %v4322
  %v4324 = vpop.f32.mrb[0].mxu0
  %4325 = vmatprep.mubr.bf16.mxu0 0
  %4326 = vmatmul.mubr.bf16.gmra.mrb[0].mxu0 %v3907
  %v4327 = vpop.f32.mrb[0].mxu0
  %v4328 = vadd.f32 0.0, %v4327
  %v4329 = vpop.f32.mrb[0].mxu0
  %v4330 = vpop.f32.mrb[0].mxu0
  %v4331 = vadd.f32 0.0, %v4330
  %v4332 = vpop.f32.mrb[0].mxu0
  %4333 = vmatprep.mubr.bf16.mxu0 0
  %4334 = vmatmul.mubr.bf16.gmra.mrb[0].mxu0 %v3910
  %v4335 = vpop.f32.mrb[0].mxu0
  %v4336 = vadd.f32 0.0, %v4335
  %v4337 = vpop.f32.mrb[0].mxu0
  %v4338 = vpop.f32.mrb[0].mxu0
  %v4339 = vadd.f32 0.0, %v4338
  %v4340 = vpop.f32.mrb[0].mxu0
  %4341 = vmatprep.mubr.bf16.mxu0 0
  %4342 = vmatmul.mubr.bf16.gmra.mrb[0].mxu0 %v3913
  %v4343 = vpop.f32.mrb[0].mxu0
  %v4344 = vadd.f32 0.0, %v4343
  %v4345 = vpop.f32.mrb[0].mxu0
  %v4346 = vpop.f32.mrb[0].mxu0
  %v4347 = vadd.f32 0.0, %v4346
  %v4348 = vpop.f32.mrb[0].mxu0
  %4349 = vmatprep.mubr.bf16.mxu0 0
  %4350 = vmatmul.mubr.bf16.gmra.mrb[0].mxu0 %v3916
  %v4351 = vpop.f32.mrb[0].mxu0
  %v4352 = vadd.f32 0.0, %v4351
  %v4353 = vpop.f32.mrb[0].mxu0
  %v4354 = vpop.f32.mrb[0].mxu0
  %v4355 = vadd.f32 0.0, %v4354
  %v4356 = vpop.f32.mrb[0].mxu0
  %4357 = vmatprep.mubr.bf16.mxu0 0
  %4358 = vmatmul.mubr.bf16.gmra.mrb[0].mxu0 %v3919
  %v4359 = vpop.f32.mrb[0].mxu0
  %v4360 = vadd.f32 0.0, %v4359
  %v4361 = vpop.f32.mrb[0].mxu0
  %v4362 = vpop.f32.mrb[0].mxu0
  %v4363 = vadd.f32 0.0, %v4362
  %v4364 = vpop.f32.mrb[0].mxu0
  %4365 = vmatprep.mubr.bf16.mxu0 0
  %4366 = vmatmul.mubr.bf16.gmra.mrb[0].mxu0 %v3922
  %v4367 = vpop.f32.mrb[0].mxu0
  %v4368 = vadd.f32 0.0, %v4367
  %v4369 = vpop.f32.mrb[0].mxu0
  %v4370 = vpop.f32.mrb[0].mxu0
  %v4371 = vadd.f32 0.0, %v4370
  %v4372 = vpop.f32.mrb[0].mxu0
  %4373 = vmatprep.mubr.bf16.mxu0 0
  %4374 = vmatmul.mubr.bf16.gmra.mrb[0].mxu0 %v3925
  %v4375 = vpop.f32.mrb[0].mxu0
  %v4376 = vadd.f32 0.0, %v4375
  %v4377 = vpop.f32.mrb[0].mxu0
  %v4378 = vpop.f32.mrb[0].mxu0
  %v4379 = vadd.f32 0.0, %v4378
  %v4380 = vpop.f32.mrb[0].mxu0
  %4381 = vmatprep.mubr.bf16.mxu0 0
  %4382 = vmatmul.mubr.bf16.gmra.mrb[0].mxu0 %v3928
  %v4383 = vpop.f32.mrb[0].mxu0
  %v4384 = vadd.f32 0.0, %v4383
  %v4385 = vpop.f32.mrb[0].mxu0
  %v4386 = vpop.f32.mrb[0].mxu0
  %v4387 = vadd.f32 0.0, %v4386
  %v4388 = vpop.f32.mrb[0].mxu0
  %4389 = vmatprep.mubr.bf16.mxu0 0
  %4390 = vmatmul.mubr.bf16.gmra.mrb[0].mxu0 %v3931
  %v4391 = vpop.f32.mrb[0].mxu0
  %v4392 = vadd.f32 0.0, %v4391
  %v4393 = vpop.f32.mrb[0].mxu0
  %v4394 = vpop.f32.mrb[0].mxu0
  %v4395 = vadd.f32 0.0, %v4394
  %v4396 = vpop.f32.mrb[0].mxu0
  %4397 = vmatprep.mubr.bf16.mxu0 0
  %4398 = vmatmul.mubr.bf16.gmra.mrb[0].mxu0 %v3934
  %v4399 = vpop.f32.mrb[0].mxu0
  %v4400 = vadd.f32 0.0, %v4399
  %v4401 = vpop.f32.mrb[0].mxu0
  %v4402 = vpop.f32.mrb[0].mxu0
  %v4403 = vadd.f32 0.0, %v4402
  %v4404 = vpop.f32.mrb[0].mxu0
  %4405 = vmatprep.mubr.bf16.mxu0 0
  %4406 = vmatmul.mubr.bf16.gmra.mrb[0].mxu0 %v3937
  %v4407 = vpop.f32.mrb[0].mxu0
  %v4408 = vadd.f32 0.0, %v4407
  %v4409 = vpop.f32.mrb[0].mxu0
  %v4410 = vpop.f32.mrb[0].mxu0
  %v4411 = vadd.f32 0.0, %v4410
  %v4412 = vpop.f32.mrb[0].mxu0
  %4413 = vmatprep.mubr.bf16.mxu0 0
  %4414 = vmatmul.mubr.bf16.gmra.mrb[0].mxu0 %v3940
  %v4415 = vpop.f32.mrb[0].mxu0
  %v4416 = vadd.f32 0.0, %v4415
  %v4417 = vpop.f32.mrb[0].mxu0
  %v4418 = vpop.f32.mrb[0].mxu0
  %v4419 = vadd.f32 0.0, %v4418
  %v4420 = vpop.f32.mrb[0].mxu0
  %4421 = vmatprep.mubr.bf16.mxu0 0
  %4422 = vmatmul.mubr.bf16.gmra.mrb[0].mxu0 %v3943
  %v4423 = vpop.f32.mrb[0].mxu0
  %v4424 = vadd.f32 0.0, %v4423
  %v4425 = vpop.f32.mrb[0].mxu0
  %v4426 = vpop.f32.mrb[0].mxu0
  %v4427 = vadd.f32 0.0, %v4426
  %v4428 = vpop.f32.mrb[0].mxu0
  %4429 = vmatprep.mubr.bf16.mxu0 0
  %4430 = vmatmul.mubr.bf16.gmra.mrb[0].mxu0 %v3946
  %v4431 = vpop.f32.mrb[0].mxu0
  %v4432 = vadd.f32 0.0, %v4431
  %v4433 = vpop.f32.mrb[0].mxu0
  %v4434 = vpop.f32.mrb[0].mxu0
  %v4435 = vadd.f32 0.0, %v4434
  %v4436 = vpop.f32.mrb[0].mxu0
  %4437 = vmatprep.mubr.bf16.mxu0 0
  %4438 = vmatmul.mubr.bf16.gmra.mrb[0].mxu0 %v3949
  %v4439 = vpop.f32.mrb[0].mxu0
  %v4440 = vadd.f32 0.0, %v4439
  %v4441 = vpop.f32.mrb[0].mxu0
  %v4442 = vpop.f32.mrb[0].mxu0
  %v4443 = vadd.f32 0.0, %v4442
  %v4444 = vpop.f32.mrb[0].mxu0
  %4445 = vmatprep.mubr.bf16.mxu0 0
  %4446 = vmatmul.mubr.bf16.gmra.mrb[0].mxu0 %v3952
  %v4447 = vpop.f32.mrb[0].mxu0
  %v4448 = vadd.f32 0.0, %v4447
  %v4449 = vpop.f32.mrb[0].mxu0
  %v4450 = vpop.f32.mrb[0].mxu0
  %v4451 = vadd.f32 0.0, %v4450
  %v4452 = vpop.f32.mrb[0].mxu0
  %4453 = vmatprep.mubr.bf16.mxu0 0
  %4454 = vmatmul.mubr.bf16.gmra.mrb[0].mxu0 %v3955
  %v4455 = vpop.f32.mrb[0].mxu0
  %v4456 = vadd.f32 0.0, %v4455
  %v4457 = vpop.f32.mrb[0].mxu0
  %v4458 = vpop.f32.mrb[0].mxu0
  %v4459 = vadd.f32 0.0, %v4458
  %v4460 = vpop.f32.mrb[0].mxu0
  %4461 = vmatprep.mubr.bf16.mxu0 0
  %4462 = vmatmul.mubr.bf16.gmra.mrb[0].mxu0 %v3958
  %v4463 = vpop.f32.mrb[0].mxu0
  %v4464 = vadd.f32 0.0, %v4463
  %v4465 = vpop.f32.mrb[0].mxu0
  %v4466 = vpop.f32.mrb[0].mxu0
  %v4467 = vadd.f32 0.0, %v4466
  %v4468 = vpop.f32.mrb[0].mxu0
  %4469 = vmatprep.mubr.bf16.mxu0 0
  %4470 = vmatmul.mubr.bf16.gmra.mrb[0].mxu0 %v3961
  %v4471 = vpop.f32.mrb[0].mxu0
  %v4472 = vadd.f32 0.0, %v4471
  %v4473 = vpop.f32.mrb[0].mxu0
  %v4474 = vpop.f32.mrb[0].mxu0
  %v4475 = vadd.f32 0.0, %v4474
  %v4476 = vpop.f32.mrb[0].mxu0
  %4477 = vmatprep.mubr.bf16.mxu0 0
  %4478 = vmatmul.mubr.bf16.gmra.mrb[0].mxu0 %v3964
  %v4479 = vpop.f32.mrb[0].mxu0
  %v4480 = vadd.f32 0.0, %v4479
  %v4481 = vpop.f32.mrb[0].mxu0
  %v4482 = vpop.f32.mrb[0].mxu0
  %v4483 = vadd.f32 0.0, %v4482
  %v4484 = vpop.f32.mrb[0].mxu0
  %4485 = vmatprep.mubr.bf16.mxu0 0
  %4486 = vmatmul.mubr.bf16.gmra.mrb[0].mxu0 %v3967
  %v4487 = vpop.f32.mrb[0].mxu0
  %v4488 = vadd.f32 0.0, %v4487
  %v4489 = vpop.f32.mrb[0].mxu0
  %v4490 = vpop.f32.mrb[0].mxu0
  %v4491 = vadd.f32 0.0, %v4490
  %v4492 = vpop.f32.mrb[0].mxu0
  %4493 = vmatprep.mubr.bf16.mxu0 0
  %4494 = vmatmul.mubr.bf16.gmra.mrb[0].mxu0 %v3970
  %v4495 = vpop.f32.mrb[0].mxu0
  %v4496 = vadd.f32 0.0, %v4495
  %v4497 = vpop.f32.mrb[0].mxu0
  %v4498 = vpop.f32.mrb[0].mxu0
  %v4499 = vadd.f32 0.0, %v4498
  %v4500 = vpop.f32.mrb[0].mxu0
  %4501 = vmatprep.mubr.bf16.mxu0 0
  %4502 = vmatmul.mubr.bf16.gmra.mrb[0].mxu0 %v3973
  %v4503 = vpop.f32.mrb[0].mxu0
  %v4504 = vadd.f32 0.0, %v4503
  %v4505 = vpop.f32.mrb[0].mxu0
  %v4506 = vpop.f32.mrb[0].mxu0
  %v4507 = vadd.f32 0.0, %v4506
  %v4508 = vpop.f32.mrb[0].mxu0
  %4509 = vmatprep.mubr.bf16.mxu0 0
  %4510 = vmatmul.mubr.bf16.gmra.mrb[0].mxu0 %v3976
  %v4511 = vpop.f32.mrb[0].mxu0
  %v4512 = vadd.f32 0.0, %v4511
  %v4513 = vpop.f32.mrb[0].mxu0
  %v4514 = vpop.f32.mrb[0].mxu0
  %v4515 = vadd.f32 0.0, %v4514
  %v4516 = vpop.f32.mrb[0].mxu0
  %4517 = vmatprep.mubr.bf16.mxu0 0
  %4518 = vmatmul.mubr.bf16.gmra.mrb[0].mxu0 %v3979
  %v4519 = vpop.f32.mrb[0].mxu0
  %v4520 = vadd.f32 0.0, %v4519
  %v4521 = vpop.f32.mrb[0].mxu0
  %v4522 = vpop.f32.mrb[0].mxu0
  %v4523 = vadd.f32 0.0, %v4522
  %v4524 = vpop.f32.mrb[0].mxu0
  %4525 = vdwg.mxu0
  %v4526 = vpack.c.bf16 %v4019, %v4016
  %v4527 = vpack.c.bf16 %v4027, %v4024
  %v4528 = vpack.c.bf16 %v4035, %v4032
  %v4529 = vpack.c.bf16 %v4043, %v4040
  %v4530 = vpack.c.bf16 %v4051, %v4048
  %v4531 = vpack.c.bf16 %v4059, %v4056
  %v4532 = vpack.c.bf16 %v4067, %v4064
  %v4533 = vpack.c.bf16 %v4075, %v4072
  %v4534 = vpack.c.bf16 %v4083, %v4080
  %v4535 = vpack.c.bf16 %v4091, %v4088
  %v4536 = vpack.c.bf16 %v4099, %v4096
  %v4537 = vpack.c.bf16 %v4107, %v4104
  %v4538 = vpack.c.bf16 %v4115, %v4112
  %v4539 = vpack.c.bf16 %v4123, %v4120
  %v4540 = vpack.c.bf16 %v4131, %v4128
  %v4541 = vpack.c.bf16 %v4139, %v4136
  %v4542 = vpack.c.bf16 %v4147, %v4144
  %v4543 = vpack.c.bf16 %v4155, %v4152
  %v4544 = vpack.c.bf16 %v4163, %v4160
  %v4545 = vpack.c.bf16 %v4171, %v4168
  %v4546 = vpack.c.bf16 %v4179, %v4176
  %v4547 = vpack.c.bf16 %v4187, %v4184
  %v4548 = vpack.c.bf16 %v4195, %v4192
  %v4549 = vpack.c.bf16 %v4203, %v4200
  %v4550 = vpack.c.bf16 %v4211, %v4208
  %v4551 = vpack.c.bf16 %v4219, %v4216
  %v4552 = vpack.c.bf16 %v4227, %v4224
  %v4553 = vpack.c.bf16 %v4235, %v4232
  %v4554 = vpack.c.bf16 %v4243, %v4240
  %v4555 = vpack.c.bf16 %v4251, %v4248
  %v4556 = vpack.c.bf16 %v4259, %v4256
  %v4557 = vpack.c.bf16 %v4267, %v4264
  %v4558 = vpack.c.bf16 %v4275, %v4272
  %v4559 = vpack.c.bf16 %v4283, %v4280
  %v4560 = vpack.c.bf16 %v4291, %v4288
  %v4561 = vpack.c.bf16 %v4299, %v4296
  %v4562 = vpack.c.bf16 %v4307, %v4304
  %v4563 = vpack.c.bf16 %v4315, %v4312
  %v4564 = vpack.c.bf16 %v4323, %v4320
  %v4565 = vpack.c.bf16 %v4331, %v4328
  %v4566 = vpack.c.bf16 %v4339, %v4336
  %v4567 = vpack.c.bf16 %v4347, %v4344
  %v4568 = vpack.c.bf16 %v4355, %v4352
  %v4569 = vpack.c.bf16 %v4363, %v4360
  %v4570 = vpack.c.bf16 %v4371, %v4368
  %v4571 = vpack.c.bf16 %v4379, %v4376
  %v4572 = vpack.c.bf16 %v4387, %v4384
  %v4573 = vpack.c.bf16 %v4395, %v4392
  %v4574 = vpack.c.bf16 %v4403, %v4400
  %v4575 = vpack.c.bf16 %v4411, %v4408
  %v4576 = vpack.c.bf16 %v4419, %v4416
  %v4577 = vpack.c.bf16 %v4427, %v4424
  %v4578 = vpack.c.bf16 %v4435, %v4432
  %v4579 = vpack.c.bf16 %v4443, %v4440
  %v4580 = vpack.c.bf16 %v4451, %v4448
  %v4581 = vpack.c.bf16 %v4459, %v4456
  %v4582 = vpack.c.bf16 %v4467, %v4464
  %v4583 = vpack.c.bf16 %v4475, %v4472
  %v4584 = vpack.c.bf16 %v4483, %v4480
  %v4585 = vpack.c.bf16 %v4491, %v4488
  %v4586 = vpack.c.bf16 %v4499, %v4496
  %v4587 = vpack.c.bf16 %v4507, %v4504
  %v4588 = vpack.c.bf16 %v4515, %v4512
  %v4589 = vpack.c.bf16 %v4523, %v4520
  %v4590 = vld [vmem:[%s11] sm:$0xf]
  %v4591 = vld [vmem:[%s11 + $0x4] sm:$0xf]
  %v4592 = vld [vmem:[%s11 + $0x8] sm:$0xf]
  %v4593 = vld [vmem:[%s11 + $0xc] sm:$0xf]
  %s4594 = scalar_lea.vmem %s11, 16
  %v4595 = vld [vmem:[%s4594] sm:$0xf]
  %v4596 = vld [vmem:[%s4594 + $0x4] sm:$0xf]
  %v4597 = vld [vmem:[%s4594 + $0x8] sm:$0xf]
  %v4598 = vld [vmem:[%s4594 + $0xc] sm:$0xf]
  %v4603 = vunpack.c.l.b16 %v4595
  %v4604 = vunpack.c.l.b16 %v4596
  %v4605 = vunpack.c.l.b16 %v4597
  %v4606 = vunpack.c.l.b16 %v4598
  %v4607 = vpack.c.b16 %v4604, %v4603
  %v4608 = vpack.c.b16 %v4606, %v4605
  %v4612 = vsel %vm3119, %v4530, 0
  %v4615 = vsel %vm3119, %v4531, 0
  %v4618 = vsel %vm3119, %v4532, 0
  %v4621 = vsel %vm3119, %v4533, 0
  %4623 = vmatprep.subr.bf16.mxu0 0
  %4624 = vmatpush1.bf16.msra.mxu0 %v4607
  %4625 = vmatprep.subr.bf16.mxu0 0
  %4626 = vmatpush1.bf16.msra.mxu0 %v4608
  %4627 = vmatprep.subr.bf16.mxu0 0
  %4628 = vmatpush1.bf16.msra.mxu0 0
  %4629 = vmatprep.subr.bf16.mxu0 0
  %4630 = vmatpush1.bf16.msra.mxu0 0
  %4631 = vmatprep.subr.bf16.mxu0 0
  %4632 = vmatpush1.bf16.msra.mxu0 0
  %4633 = vmatprep.subr.bf16.mxu0 0
  %4634 = vmatpush1.bf16.msra.mxu0 0
  %4635 = vmatprep.subr.bf16.mxu0 0
  %4636 = vmatpush1.bf16.msra.mxu0 0
  %4637 = vmatprep.subr.bf16.mxu0 0
  %4638 = vmatpush1.bf16.msra.mxu0 0
  %4639 = vmatprep.subr.bf16.mxu0 0
  %4640 = vmatpush1.bf16.msra.mxu0 0
  %4641 = vmatprep.subr.bf16.mxu0 0
  %4642 = vmatpush1.bf16.msra.mxu0 0
  %4643 = vmatprep.subr.bf16.mxu0 0
  %4644 = vmatpush1.bf16.msra.mxu0 0
  %4645 = vmatprep.subr.bf16.mxu0 0
  %4646 = vmatpush1.bf16.msra.mxu0 0
  %4647 = vmatprep.subr.bf16.mxu0 0
  %4648 = vmatpush1.bf16.msra.mxu0 0
  %4649 = vmatprep.subr.bf16.mxu0 0
  %4650 = vmatpush1.bf16.msra.mxu0 0
  %4651 = vmatprep.subr.bf16.mxu0 0
  %4652 = vmatpush1.bf16.msra.mxu0 0
  %4653 = vmatprep.subr.bf16.mxu0 0
  %4654 = vmatpush1.bf16.msra.mxu0 0
  %4655 = vmatprep.mubr.bf16.mxu0 0
  %4656 = vmatmul.mubr.bf16.gmra.mrb[0].mxu0 %v4612
  %v4657 = vpop.f32.mrb[0].mxu0
  %v4658 = vadd.f32 0.0, %v4657
  %v4659 = vpop.f32.mrb[0].mxu0
  %v4660 = vpop.f32.mrb[0].mxu0
  %v4661 = vadd.f32 0.0, %v4660
  %v4662 = vpop.f32.mrb[0].mxu0
  %4663 = vmatprep.mubr.bf16.mxu0 0
  %4664 = vmatmul.mubr.bf16.gmra.mrb[0].mxu0 %v4615
  %v4665 = vpop.f32.mrb[0].mxu0
  %v4666 = vadd.f32 0.0, %v4665
  %v4667 = vpop.f32.mrb[0].mxu0
  %v4668 = vpop.f32.mrb[0].mxu0
  %v4669 = vadd.f32 0.0, %v4668
  %v4670 = vpop.f32.mrb[0].mxu0
  %4671 = vmatprep.mubr.bf16.mxu0 0
  %4672 = vmatmul.mubr.bf16.gmra.mrb[0].mxu0 %v4618
  %v4673 = vpop.f32.mrb[0].mxu0
  %v4674 = vadd.f32 0.0, %v4673
  %v4675 = vpop.f32.mrb[0].mxu0
  %v4676 = vpop.f32.mrb[0].mxu0
  %v4677 = vadd.f32 0.0, %v4676
  %v4678 = vpop.f32.mrb[0].mxu0
  %4679 = vmatprep.mubr.bf16.mxu0 0
  %4680 = vmatmul.mubr.bf16.gmra.mrb[0].mxu0 %v4621
  %v4681 = vpop.f32.mrb[0].mxu0
  %v4682 = vadd.f32 0.0, %v4681
  %v4683 = vpop.f32.mrb[0].mxu0
  %v4684 = vpop.f32.mrb[0].mxu0
  %v4685 = vadd.f32 0.0, %v4684
  %v4686 = vpop.f32.mrb[0].mxu0
  %4687 = vdwg.mxu0
  %v4692 = vunpack.c.l.b16 %v4590
  %v4693 = vunpack.c.l.b16 %v4591
  %v4694 = vunpack.c.l.b16 %v4592
  %v4695 = vunpack.c.l.b16 %v4593
  %v4696 = vpack.c.b16 %v4693, %v4692
  %v4697 = vpack.c.b16 %v4695, %v4694
  %v4701 = vsel %vm3119, %v4526, 0
  %v4704 = vsel %vm3119, %v4527, 0
  %v4707 = vsel %vm3119, %v4528, 0
  %v4710 = vsel %vm3119, %v4529, 0
  %4712 = vmatprep.subr.bf16.mxu0 0
  %4713 = vmatpush1.bf16.msra.mxu0 %v4696
  %4714 = vmatprep.subr.bf16.mxu0 0
  %4715 = vmatpush1.bf16.msra.mxu0 %v4697
  %4716 = vmatprep.subr.bf16.mxu0 0
  %4717 = vmatpush1.bf16.msra.mxu0 0
  %4718 = vmatprep.subr.bf16.mxu0 0
  %4719 = vmatpush1.bf16.msra.mxu0 0
  %4720 = vmatprep.subr.bf16.mxu0 0
  %4721 = vmatpush1.bf16.msra.mxu0 0
  %4722 = vmatprep.subr.bf16.mxu0 0
  %4723 = vmatpush1.bf16.msra.mxu0 0
  %4724 = vmatprep.subr.bf16.mxu0 0
  %4725 = vmatpush1.bf16.msra.mxu0 0
  %4726 = vmatprep.subr.bf16.mxu0 0
  %4727 = vmatpush1.bf16.msra.mxu0 0
  %4728 = vmatprep.subr.bf16.mxu0 0
  %4729 = vmatpush1.bf16.msra.mxu0 0
  %4730 = vmatprep.subr.bf16.mxu0 0
  %4731 = vmatpush1.bf16.msra.mxu0 0
  %4732 = vmatprep.subr.bf16.mxu0 0
  %4733 = vmatpush1.bf16.msra.mxu0 0
  %4734 = vmatprep.subr.bf16.mxu0 0
  %4735 = vmatpush1.bf16.msra.mxu0 0
  %4736 = vmatprep.subr.bf16.mxu0 0
  %4737 = vmatpush1.bf16.msra.mxu0 0
  %4738 = vmatprep.subr.bf16.mxu0 0
  %4739 = vmatpush1.bf16.msra.mxu0 0
  %4740 = vmatprep.subr.bf16.mxu0 0
  %4741 = vmatpush1.bf16.msra.mxu0 0
  %4742 = vmatprep.subr.bf16.mxu0 0
  %4743 = vmatpush1.bf16.msra.mxu0 0
  %4744 = vmatprep.mubr.bf16.mxu0 0
  %4745 = vmatmul.mubr.bf16.gmra.mrb[0].mxu0 %v4701
  %v4746 = vpop.f32.mrb[0].mxu0
  %v4747 = vadd.f32 %v4658, %v4746
  %v4748 = vpop.f32.mrb[0].mxu0
  %v4749 = vpop.f32.mrb[0].mxu0
  %v4750 = vadd.f32 %v4661, %v4749
  %v4751 = vpop.f32.mrb[0].mxu0
  %4752 = vmatprep.mubr.bf16.mxu0 0
  %4753 = vmatmul.mubr.bf16.gmra.mrb[0].mxu0 %v4704
  %v4754 = vpop.f32.mrb[0].mxu0
  %v4755 = vadd.f32 %v4666, %v4754
  %v4756 = vpop.f32.mrb[0].mxu0
  %v4757 = vpop.f32.mrb[0].mxu0
  %v4758 = vadd.f32 %v4669, %v4757
  %v4759 = vpop.f32.mrb[0].mxu0
  %4760 = vmatprep.mubr.bf16.mxu0 0
  %4761 = vmatmul.mubr.bf16.gmra.mrb[0].mxu0 %v4707
  %v4762 = vpop.f32.mrb[0].mxu0
  %v4763 = vadd.f32 %v4674, %v4762
  %v4764 = vpop.f32.mrb[0].mxu0
  %v4765 = vpop.f32.mrb[0].mxu0
  %v4766 = vadd.f32 %v4677, %v4765
  %v4767 = vpop.f32.mrb[0].mxu0
  %4768 = vmatprep.mubr.bf16.mxu0 0
  %4769 = vmatmul.mubr.bf16.gmra.mrb[0].mxu0 %v4710
  %v4770 = vpop.f32.mrb[0].mxu0
  %v4771 = vadd.f32 %v4682, %v4770
  %v4772 = vpop.f32.mrb[0].mxu0
  %v4773 = vpop.f32.mrb[0].mxu0
  %v4774 = vadd.f32 %v4685, %v4773
  %v4775 = vpop.f32.mrb[0].mxu0
  %4776 = vdwg.mxu0
  %s4777 = scalar_lea.vmem %s11, 32
  %v4778 = vld [vmem:[%s4777] sm:$0xf]
  %v4779 = vld [vmem:[%s4777 + $0x4] sm:$0xf]
  %v4780 = vld [vmem:[%s4777 + $0x8] sm:$0xf]
  %v4781 = vld [vmem:[%s4777 + $0xc] sm:$0xf]
  %v4786 = vunpack.c.l.b16 %v4778
  %v4787 = vunpack.c.l.b16 %v4779
  %v4788 = vunpack.c.l.b16 %v4780
  %v4789 = vunpack.c.l.b16 %v4781
  %v4790 = vpack.c.b16 %v4787, %v4786
  %v4791 = vpack.c.b16 %v4789, %v4788
  %v4795 = vsel %vm3119, %v4534, 0
  %v4798 = vsel %vm3119, %v4535, 0
  %v4801 = vsel %vm3119, %v4536, 0
  %v4804 = vsel %vm3119, %v4537, 0
  %4806 = vmatprep.subr.bf16.mxu0 0
  %4807 = vmatpush1.bf16.msra.mxu0 %v4790
  %4808 = vmatprep.subr.bf16.mxu0 0
  %4809 = vmatpush1.bf16.msra.mxu0 %v4791
  %4810 = vmatprep.subr.bf16.mxu0 0
  %4811 = vmatpush1.bf16.msra.mxu0 0
  %4812 = vmatprep.subr.bf16.mxu0 0
  %4813 = vmatpush1.bf16.msra.mxu0 0
  %4814 = vmatprep.subr.bf16.mxu0 0
  %4815 = vmatpush1.bf16.msra.mxu0 0
  %4816 = vmatprep.subr.bf16.mxu0 0
  %4817 = vmatpush1.bf16.msra.mxu0 0
  %4818 = vmatprep.subr.bf16.mxu0 0
  %4819 = vmatpush1.bf16.msra.mxu0 0
  %4820 = vmatprep.subr.bf16.mxu0 0
  %4821 = vmatpush1.bf16.msra.mxu0 0
  %4822 = vmatprep.subr.bf16.mxu0 0
  %4823 = vmatpush1.bf16.msra.mxu0 0
  %4824 = vmatprep.subr.bf16.mxu0 0
  %4825 = vmatpush1.bf16.msra.mxu0 0
  %4826 = vmatprep.subr.bf16.mxu0 0
  %4827 = vmatpush1.bf16.msra.mxu0 0
  %4828 = vmatprep.subr.bf16.mxu0 0
  %4829 = vmatpush1.bf16.msra.mxu0 0
  %4830 = vmatprep.subr.bf16.mxu0 0
  %4831 = vmatpush1.bf16.msra.mxu0 0
  %4832 = vmatprep.subr.bf16.mxu0 0
  %4833 = vmatpush1.bf16.msra.mxu0 0
  %4834 = vmatprep.subr.bf16.mxu0 0
  %4835 = vmatpush1.bf16.msra.mxu0 0
  %4836 = vmatprep.subr.bf16.mxu0 0
  %4837 = vmatpush1.bf16.msra.mxu0 0
  %4838 = vmatprep.mubr.bf16.mxu0 0
  %4839 = vmatmul.mubr.bf16.gmra.mrb[0].mxu0 %v4795
  %v4840 = vpop.f32.mrb[0].mxu0
  %v4841 = vadd.f32 0.0, %v4840
  %v4842 = vpop.f32.mrb[0].mxu0
  %v4843 = vpop.f32.mrb[0].mxu0
  %v4844 = vadd.f32 0.0, %v4843
  %v4845 = vpop.f32.mrb[0].mxu0
  %4846 = vmatprep.mubr.bf16.mxu0 0
  %4847 = vmatmul.mubr.bf16.gmra.mrb[0].mxu0 %v4798
  %v4848 = vpop.f32.mrb[0].mxu0
  %v4849 = vadd.f32 0.0, %v4848
  %v4850 = vpop.f32.mrb[0].mxu0
  %v4851 = vpop.f32.mrb[0].mxu0
  %v4852 = vadd.f32 0.0, %v4851
  %v4853 = vpop.f32.mrb[0].mxu0
  %4854 = vmatprep.mubr.bf16.mxu0 0
  %4855 = vmatmul.mubr.bf16.gmra.mrb[0].mxu0 %v4801
  %v4856 = vpop.f32.mrb[0].mxu0
  %v4857 = vadd.f32 0.0, %v4856
  %v4858 = vpop.f32.mrb[0].mxu0
  %v4859 = vpop.f32.mrb[0].mxu0
  %v4860 = vadd.f32 0.0, %v4859
  %v4861 = vpop.f32.mrb[0].mxu0
  %4862 = vmatprep.mubr.bf16.mxu0 0
  %4863 = vmatmul.mubr.bf16.gmra.mrb[0].mxu0 %v4804
  %v4864 = vpop.f32.mrb[0].mxu0
  %v4865 = vadd.f32 0.0, %v4864
  %v4866 = vpop.f32.mrb[0].mxu0
  %v4867 = vpop.f32.mrb[0].mxu0
  %v4868 = vadd.f32 0.0, %v4867
  %v4869 = vpop.f32.mrb[0].mxu0
  %4870 = vdwg.mxu0
  %v4871 = vadd.f32 %v4747, %v4841
  %v4872 = vadd.f32 %v4750, %v4844
  %v4873 = vadd.f32 %v4755, %v4849
  %v4874 = vadd.f32 %v4758, %v4852
  %v4875 = vadd.f32 %v4763, %v4857
  %v4876 = vadd.f32 %v4766, %v4860
  %v4877 = vadd.f32 %v4771, %v4865
  %v4878 = vadd.f32 %v4774, %v4868
  %s4879 = scalar_lea.vmem %s11, 48
  %v4880 = vld [vmem:[%s4879] sm:$0xf]
  %v4881 = vld [vmem:[%s4879 + $0x4] sm:$0xf]
  %v4882 = vld [vmem:[%s4879 + $0x8] sm:$0xf]
  %v4883 = vld [vmem:[%s4879 + $0xc] sm:$0xf]
  %v4888 = vunpack.c.l.b16 %v4880
  %v4889 = vunpack.c.l.b16 %v4881
  %v4890 = vunpack.c.l.b16 %v4882
  %v4891 = vunpack.c.l.b16 %v4883
  %v4892 = vpack.c.b16 %v4889, %v4888
  %v4893 = vpack.c.b16 %v4891, %v4890
  %v4897 = vsel %vm3119, %v4538, 0
  %v4900 = vsel %vm3119, %v4539, 0
  %v4903 = vsel %vm3119, %v4540, 0
  %v4906 = vsel %vm3119, %v4541, 0
  %4908 = vmatprep.subr.bf16.mxu0 0
  %4909 = vmatpush1.bf16.msra.mxu0 %v4892
  %4910 = vmatprep.subr.bf16.mxu0 0
  %4911 = vmatpush1.bf16.msra.mxu0 %v4893
  %4912 = vmatprep.subr.bf16.mxu0 0
  %4913 = vmatpush1.bf16.msra.mxu0 0
  %4914 = vmatprep.subr.bf16.mxu0 0
  %4915 = vmatpush1.bf16.msra.mxu0 0
  %4916 = vmatprep.subr.bf16.mxu0 0
  %4917 = vmatpush1.bf16.msra.mxu0 0
  %4918 = vmatprep.subr.bf16.mxu0 0
  %4919 = vmatpush1.bf16.msra.mxu0 0
  %4920 = vmatprep.subr.bf16.mxu0 0
  %4921 = vmatpush1.bf16.msra.mxu0 0
  %4922 = vmatprep.subr.bf16.mxu0 0
  %4923 = vmatpush1.bf16.msra.mxu0 0
  %4924 = vmatprep.subr.bf16.mxu0 0
  %4925 = vmatpush1.bf16.msra.mxu0 0
  %4926 = vmatprep.subr.bf16.mxu0 0
  %4927 = vmatpush1.bf16.msra.mxu0 0
  %4928 = vmatprep.subr.bf16.mxu0 0
  %4929 = vmatpush1.bf16.msra.mxu0 0
  %4930 = vmatprep.subr.bf16.mxu0 0
  %4931 = vmatpush1.bf16.msra.mxu0 0
  %4932 = vmatprep.subr.bf16.mxu0 0
  %4933 = vmatpush1.bf16.msra.mxu0 0
  %4934 = vmatprep.subr.bf16.mxu0 0
  %4935 = vmatpush1.bf16.msra.mxu0 0
  %4936 = vmatprep.subr.bf16.mxu0 0
  %4937 = vmatpush1.bf16.msra.mxu0 0
  %4938 = vmatprep.subr.bf16.mxu0 0
  %4939 = vmatpush1.bf16.msra.mxu0 0
  %4940 = vmatprep.mubr.bf16.mxu0 0
  %4941 = vmatmul.mubr.bf16.gmra.mrb[0].mxu0 %v4897
  %v4942 = vpop.f32.mrb[0].mxu0
  %v4943 = vadd.f32 0.0, %v4942
  %v4944 = vpop.f32.mrb[0].mxu0
  %v4945 = vpop.f32.mrb[0].mxu0
  %v4946 = vadd.f32 0.0, %v4945
  %v4947 = vpop.f32.mrb[0].mxu0
  %4948 = vmatprep.mubr.bf16.mxu0 0
  %4949 = vmatmul.mubr.bf16.gmra.mrb[0].mxu0 %v4900
  %v4950 = vpop.f32.mrb[0].mxu0
  %v4951 = vadd.f32 0.0, %v4950
  %v4952 = vpop.f32.mrb[0].mxu0
  %v4953 = vpop.f32.mrb[0].mxu0
  %v4954 = vadd.f32 0.0, %v4953
  %v4955 = vpop.f32.mrb[0].mxu0
  %4956 = vmatprep.mubr.bf16.mxu0 0
  %4957 = vmatmul.mubr.bf16.gmra.mrb[0].mxu0 %v4903
  %v4958 = vpop.f32.mrb[0].mxu0
  %v4959 = vadd.f32 0.0, %v4958
  %v4960 = vpop.f32.mrb[0].mxu0
  %v4961 = vpop.f32.mrb[0].mxu0
  %v4962 = vadd.f32 0.0, %v4961
  %v4963 = vpop.f32.mrb[0].mxu0
  %4964 = vmatprep.mubr.bf16.mxu0 0
  %4965 = vmatmul.mubr.bf16.gmra.mrb[0].mxu0 %v4906
  %v4966 = vpop.f32.mrb[0].mxu0
  %v4967 = vadd.f32 0.0, %v4966
  %v4968 = vpop.f32.mrb[0].mxu0
  %v4969 = vpop.f32.mrb[0].mxu0
  %v4970 = vadd.f32 0.0, %v4969
  %v4971 = vpop.f32.mrb[0].mxu0
  %4972 = vdwg.mxu0
  %v4973 = vadd.f32 %v4871, %v4943
  %v4974 = vadd.f32 %v4872, %v4946
  %v4975 = vadd.f32 %v4873, %v4951
  %v4976 = vadd.f32 %v4874, %v4954
  %v4977 = vadd.f32 %v4875, %v4959
  %v4978 = vadd.f32 %v4876, %v4962
  %v4979 = vadd.f32 %v4877, %v4967
  %v4980 = vadd.f32 %v4878, %v4970
  %s4981 = scalar_lea.vmem %s11, 64
  %v4982 = vld [vmem:[%s4981] sm:$0xf]
  %v4983 = vld [vmem:[%s4981 + $0x4] sm:$0xf]
  %v4984 = vld [vmem:[%s4981 + $0x8] sm:$0xf]
  %v4985 = vld [vmem:[%s4981 + $0xc] sm:$0xf]
  %v4990 = vunpack.c.l.b16 %v4982
  %v4991 = vunpack.c.l.b16 %v4983
  %v4992 = vunpack.c.l.b16 %v4984
  %v4993 = vunpack.c.l.b16 %v4985
  %v4994 = vpack.c.b16 %v4991, %v4990
  %v4995 = vpack.c.b16 %v4993, %v4992
  %v4999 = vsel %vm3119, %v4542, 0
  %v5002 = vsel %vm3119, %v4543, 0
  %v5005 = vsel %vm3119, %v4544, 0
  %v5008 = vsel %vm3119, %v4545, 0
  %5010 = vmatprep.subr.bf16.mxu0 0
  %5011 = vmatpush1.bf16.msra.mxu0 %v4994
  %5012 = vmatprep.subr.bf16.mxu0 0
  %5013 = vmatpush1.bf16.msra.mxu0 %v4995
  %5014 = vmatprep.subr.bf16.mxu0 0
  %5015 = vmatpush1.bf16.msra.mxu0 0
  %5016 = vmatprep.subr.bf16.mxu0 0
  %5017 = vmatpush1.bf16.msra.mxu0 0
  %5018 = vmatprep.subr.bf16.mxu0 0
  %5019 = vmatpush1.bf16.msra.mxu0 0
  %5020 = vmatprep.subr.bf16.mxu0 0
  %5021 = vmatpush1.bf16.msra.mxu0 0
  %5022 = vmatprep.subr.bf16.mxu0 0
  %5023 = vmatpush1.bf16.msra.mxu0 0
  %5024 = vmatprep.subr.bf16.mxu0 0
  %5025 = vmatpush1.bf16.msra.mxu0 0
  %5026 = vmatprep.subr.bf16.mxu0 0
  %5027 = vmatpush1.bf16.msra.mxu0 0
  %5028 = vmatprep.subr.bf16.mxu0 0
  %5029 = vmatpush1.bf16.msra.mxu0 0
  %5030 = vmatprep.subr.bf16.mxu0 0
  %5031 = vmatpush1.bf16.msra.mxu0 0
  %5032 = vmatprep.subr.bf16.mxu0 0
  %5033 = vmatpush1.bf16.msra.mxu0 0
  %5034 = vmatprep.subr.bf16.mxu0 0
  %5035 = vmatpush1.bf16.msra.mxu0 0
  %5036 = vmatprep.subr.bf16.mxu0 0
  %5037 = vmatpush1.bf16.msra.mxu0 0
  %5038 = vmatprep.subr.bf16.mxu0 0
  %5039 = vmatpush1.bf16.msra.mxu0 0
  %5040 = vmatprep.subr.bf16.mxu0 0
  %5041 = vmatpush1.bf16.msra.mxu0 0
  %5042 = vmatprep.mubr.bf16.mxu0 0
  %5043 = vmatmul.mubr.bf16.gmra.mrb[0].mxu0 %v4999
  %v5044 = vpop.f32.mrb[0].mxu0
  %v5045 = vadd.f32 0.0, %v5044
  %v5046 = vpop.f32.mrb[0].mxu0
  %v5047 = vpop.f32.mrb[0].mxu0
  %v5048 = vadd.f32 0.0, %v5047
  %v5049 = vpop.f32.mrb[0].mxu0
  %5050 = vmatprep.mubr.bf16.mxu0 0
  %5051 = vmatmul.mubr.bf16.gmra.mrb[0].mxu0 %v5002
  %v5052 = vpop.f32.mrb[0].mxu0
  %v5053 = vadd.f32 0.0, %v5052
  %v5054 = vpop.f32.mrb[0].mxu0
  %v5055 = vpop.f32.mrb[0].mxu0
  %v5056 = vadd.f32 0.0, %v5055
  %v5057 = vpop.f32.mrb[0].mxu0
  %5058 = vmatprep.mubr.bf16.mxu0 0
  %5059 = vmatmul.mubr.bf16.gmra.mrb[0].mxu0 %v5005
  %v5060 = vpop.f32.mrb[0].mxu0
  %v5061 = vadd.f32 0.0, %v5060
  %v5062 = vpop.f32.mrb[0].mxu0
  %v5063 = vpop.f32.mrb[0].mxu0
  %v5064 = vadd.f32 0.0, %v5063
  %v5065 = vpop.f32.mrb[0].mxu0
  %5066 = vmatprep.mubr.bf16.mxu0 0
  %5067 = vmatmul.mubr.bf16.gmra.mrb[0].mxu0 %v5008
  %v5068 = vpop.f32.mrb[0].mxu0
  %v5069 = vadd.f32 0.0, %v5068
  %v5070 = vpop.f32.mrb[0].mxu0
  %v5071 = vpop.f32.mrb[0].mxu0
  %v5072 = vadd.f32 0.0, %v5071
  %v5073 = vpop.f32.mrb[0].mxu0
  %5074 = vdwg.mxu0
  %v5075 = vadd.f32 %v4973, %v5045
  %v5076 = vadd.f32 %v4974, %v5048
  %v5077 = vadd.f32 %v4975, %v5053
  %v5078 = vadd.f32 %v4976, %v5056
  %v5079 = vadd.f32 %v4977, %v5061
  %v5080 = vadd.f32 %v4978, %v5064
  %v5081 = vadd.f32 %v4979, %v5069
  %v5082 = vadd.f32 %v4980, %v5072
  %s5083 = scalar_lea.vmem %s11, 80
  %v5084 = vld [vmem:[%s5083] sm:$0xf]
  %v5085 = vld [vmem:[%s5083 + $0x4] sm:$0xf]
  %v5086 = vld [vmem:[%s5083 + $0x8] sm:$0xf]
  %v5087 = vld [vmem:[%s5083 + $0xc] sm:$0xf]
  %v5092 = vunpack.c.l.b16 %v5084
  %v5093 = vunpack.c.l.b16 %v5085
  %v5094 = vunpack.c.l.b16 %v5086
  %v5095 = vunpack.c.l.b16 %v5087
  %v5096 = vpack.c.b16 %v5093, %v5092
  %v5097 = vpack.c.b16 %v5095, %v5094
  %v5101 = vsel %vm3119, %v4546, 0
  %v5104 = vsel %vm3119, %v4547, 0
  %v5107 = vsel %vm3119, %v4548, 0
  %v5110 = vsel %vm3119, %v4549, 0
  %5112 = vmatprep.subr.bf16.mxu0 0
  %5113 = vmatpush1.bf16.msra.mxu0 %v5096
  %5114 = vmatprep.subr.bf16.mxu0 0
  %5115 = vmatpush1.bf16.msra.mxu0 %v5097
  %5116 = vmatprep.subr.bf16.mxu0 0
  %5117 = vmatpush1.bf16.msra.mxu0 0
  %5118 = vmatprep.subr.bf16.mxu0 0
  %5119 = vmatpush1.bf16.msra.mxu0 0
  %5120 = vmatprep.subr.bf16.mxu0 0
  %5121 = vmatpush1.bf16.msra.mxu0 0
  %5122 = vmatprep.subr.bf16.mxu0 0
  %5123 = vmatpush1.bf16.msra.mxu0 0
  %5124 = vmatprep.subr.bf16.mxu0 0
  %5125 = vmatpush1.bf16.msra.mxu0 0
  %5126 = vmatprep.subr.bf16.mxu0 0
  %5127 = vmatpush1.bf16.msra.mxu0 0
  %5128 = vmatprep.subr.bf16.mxu0 0
  %5129 = vmatpush1.bf16.msra.mxu0 0
  %5130 = vmatprep.subr.bf16.mxu0 0
  %5131 = vmatpush1.bf16.msra.mxu0 0
  %5132 = vmatprep.subr.bf16.mxu0 0
  %5133 = vmatpush1.bf16.msra.mxu0 0
  %5134 = vmatprep.subr.bf16.mxu0 0
  %5135 = vmatpush1.bf16.msra.mxu0 0
  %5136 = vmatprep.subr.bf16.mxu0 0
  %5137 = vmatpush1.bf16.msra.mxu0 0
  %5138 = vmatprep.subr.bf16.mxu0 0
  %5139 = vmatpush1.bf16.msra.mxu0 0
  %5140 = vmatprep.subr.bf16.mxu0 0
  %5141 = vmatpush1.bf16.msra.mxu0 0
  %5142 = vmatprep.subr.bf16.mxu0 0
  %5143 = vmatpush1.bf16.msra.mxu0 0
  %5144 = vmatprep.mubr.bf16.mxu0 0
  %5145 = vmatmul.mubr.bf16.gmra.mrb[0].mxu0 %v5101
  %v5146 = vpop.f32.mrb[0].mxu0
  %v5147 = vadd.f32 0.0, %v5146
  %v5148 = vpop.f32.mrb[0].mxu0
  %v5149 = vpop.f32.mrb[0].mxu0
  %v5150 = vadd.f32 0.0, %v5149
  %v5151 = vpop.f32.mrb[0].mxu0
  %5152 = vmatprep.mubr.bf16.mxu0 0
  %5153 = vmatmul.mubr.bf16.gmra.mrb[0].mxu0 %v5104
  %v5154 = vpop.f32.mrb[0].mxu0
  %v5155 = vadd.f32 0.0, %v5154
  %v5156 = vpop.f32.mrb[0].mxu0
  %v5157 = vpop.f32.mrb[0].mxu0
  %v5158 = vadd.f32 0.0, %v5157
  %v5159 = vpop.f32.mrb[0].mxu0
  %5160 = vmatprep.mubr.bf16.mxu0 0
  %5161 = vmatmul.mubr.bf16.gmra.mrb[0].mxu0 %v5107
  %v5162 = vpop.f32.mrb[0].mxu0
  %v5163 = vadd.f32 0.0, %v5162
  %v5164 = vpop.f32.mrb[0].mxu0
  %v5165 = vpop.f32.mrb[0].mxu0
  %v5166 = vadd.f32 0.0, %v5165
  %v5167 = vpop.f32.mrb[0].mxu0
  %5168 = vmatprep.mubr.bf16.mxu0 0
  %5169 = vmatmul.mubr.bf16.gmra.mrb[0].mxu0 %v5110
  %v5170 = vpop.f32.mrb[0].mxu0
  %v5171 = vadd.f32 0.0, %v5170
  %v5172 = vpop.f32.mrb[0].mxu0
  %v5173 = vpop.f32.mrb[0].mxu0
  %v5174 = vadd.f32 0.0, %v5173
  %v5175 = vpop.f32.mrb[0].mxu0
  %5176 = vdwg.mxu0
  %v5177 = vadd.f32 %v5075, %v5147
  %v5178 = vadd.f32 %v5076, %v5150
  %v5179 = vadd.f32 %v5077, %v5155
  %v5180 = vadd.f32 %v5078, %v5158
  %v5181 = vadd.f32 %v5079, %v5163
  %v5182 = vadd.f32 %v5080, %v5166
  %v5183 = vadd.f32 %v5081, %v5171
  %v5184 = vadd.f32 %v5082, %v5174
  %s5185 = scalar_lea.vmem %s11, 96
  %v5186 = vld [vmem:[%s5185] sm:$0xf]
  %v5187 = vld [vmem:[%s5185 + $0x4] sm:$0xf]
  %v5188 = vld [vmem:[%s5185 + $0x8] sm:$0xf]
  %v5189 = vld [vmem:[%s5185 + $0xc] sm:$0xf]
  %v5194 = vunpack.c.l.b16 %v5186
  %v5195 = vunpack.c.l.b16 %v5187
  %v5196 = vunpack.c.l.b16 %v5188
  %v5197 = vunpack.c.l.b16 %v5189
  %v5198 = vpack.c.b16 %v5195, %v5194
  %v5199 = vpack.c.b16 %v5197, %v5196
  %v5203 = vsel %vm3119, %v4550, 0
  %v5206 = vsel %vm3119, %v4551, 0
  %v5209 = vsel %vm3119, %v4552, 0
  %v5212 = vsel %vm3119, %v4553, 0
  %5214 = vmatprep.subr.bf16.mxu0 0
  %5215 = vmatpush1.bf16.msra.mxu0 %v5198
  %5216 = vmatprep.subr.bf16.mxu0 0
  %5217 = vmatpush1.bf16.msra.mxu0 %v5199
  %5218 = vmatprep.subr.bf16.mxu0 0
  %5219 = vmatpush1.bf16.msra.mxu0 0
  %5220 = vmatprep.subr.bf16.mxu0 0
  %5221 = vmatpush1.bf16.msra.mxu0 0
  %5222 = vmatprep.subr.bf16.mxu0 0
  %5223 = vmatpush1.bf16.msra.mxu0 0
  %5224 = vmatprep.subr.bf16.mxu0 0
  %5225 = vmatpush1.bf16.msra.mxu0 0
  %5226 = vmatprep.subr.bf16.mxu0 0
  %5227 = vmatpush1.bf16.msra.mxu0 0
  %5228 = vmatprep.subr.bf16.mxu0 0
  %5229 = vmatpush1.bf16.msra.mxu0 0
  %5230 = vmatprep.subr.bf16.mxu0 0
  %5231 = vmatpush1.bf16.msra.mxu0 0
  %5232 = vmatprep.subr.bf16.mxu0 0
  %5233 = vmatpush1.bf16.msra.mxu0 0
  %5234 = vmatprep.subr.bf16.mxu0 0
  %5235 = vmatpush1.bf16.msra.mxu0 0
  %5236 = vmatprep.subr.bf16.mxu0 0
  %5237 = vmatpush1.bf16.msra.mxu0 0
  %5238 = vmatprep.subr.bf16.mxu0 0
  %5239 = vmatpush1.bf16.msra.mxu0 0
  %5240 = vmatprep.subr.bf16.mxu0 0
  %5241 = vmatpush1.bf16.msra.mxu0 0
  %5242 = vmatprep.subr.bf16.mxu0 0
  %5243 = vmatpush1.bf16.msra.mxu0 0
  %5244 = vmatprep.subr.bf16.mxu0 0
  %5245 = vmatpush1.bf16.msra.mxu0 0
  %5246 = vmatprep.mubr.bf16.mxu0 0
  %5247 = vmatmul.mubr.bf16.gmra.mrb[0].mxu0 %v5203
  %v5248 = vpop.f32.mrb[0].mxu0
  %v5249 = vadd.f32 0.0, %v5248
  %v5250 = vpop.f32.mrb[0].mxu0
  %v5251 = vpop.f32.mrb[0].mxu0
  %v5252 = vadd.f32 0.0, %v5251
  %v5253 = vpop.f32.mrb[0].mxu0
  %5254 = vmatprep.mubr.bf16.mxu0 0
  %5255 = vmatmul.mubr.bf16.gmra.mrb[0].mxu0 %v5206
  %v5256 = vpop.f32.mrb[0].mxu0
  %v5257 = vadd.f32 0.0, %v5256
  %v5258 = vpop.f32.mrb[0].mxu0
  %v5259 = vpop.f32.mrb[0].mxu0
  %v5260 = vadd.f32 0.0, %v5259
  %v5261 = vpop.f32.mrb[0].mxu0
  %5262 = vmatprep.mubr.bf16.mxu0 0
  %5263 = vmatmul.mubr.bf16.gmra.mrb[0].mxu0 %v5209
  %v5264 = vpop.f32.mrb[0].mxu0
  %v5265 = vadd.f32 0.0, %v5264
  %v5266 = vpop.f32.mrb[0].mxu0
  %v5267 = vpop.f32.mrb[0].mxu0
  %v5268 = vadd.f32 0.0, %v5267
  %v5269 = vpop.f32.mrb[0].mxu0
  %5270 = vmatprep.mubr.bf16.mxu0 0
  %5271 = vmatmul.mubr.bf16.gmra.mrb[0].mxu0 %v5212
  %v5272 = vpop.f32.mrb[0].mxu0
  %v5273 = vadd.f32 0.0, %v5272
  %v5274 = vpop.f32.mrb[0].mxu0
  %v5275 = vpop.f32.mrb[0].mxu0
  %v5276 = vadd.f32 0.0, %v5275
  %v5277 = vpop.f32.mrb[0].mxu0
  %5278 = vdwg.mxu0
  %v5279 = vadd.f32 %v5177, %v5249
  %v5280 = vadd.f32 %v5178, %v5252
  %v5281 = vadd.f32 %v5179, %v5257
  %v5282 = vadd.f32 %v5180, %v5260
  %v5283 = vadd.f32 %v5181, %v5265
  %v5284 = vadd.f32 %v5182, %v5268
  %v5285 = vadd.f32 %v5183, %v5273
  %v5286 = vadd.f32 %v5184, %v5276
  %s5287 = scalar_lea.vmem %s11, 112
  %v5288 = vld [vmem:[%s5287] sm:$0xf]
  %v5289 = vld [vmem:[%s5287 + $0x4] sm:$0xf]
  %v5290 = vld [vmem:[%s5287 + $0x8] sm:$0xf]
  %v5291 = vld [vmem:[%s5287 + $0xc] sm:$0xf]
  %v5296 = vunpack.c.l.b16 %v5288
  %v5297 = vunpack.c.l.b16 %v5289
  %v5298 = vunpack.c.l.b16 %v5290
  %v5299 = vunpack.c.l.b16 %v5291
  %v5300 = vpack.c.b16 %v5297, %v5296
  %v5301 = vpack.c.b16 %v5299, %v5298
  %v5305 = vsel %vm3119, %v4554, 0
  %v5308 = vsel %vm3119, %v4555, 0
  %v5311 = vsel %vm3119, %v4556, 0
  %v5314 = vsel %vm3119, %v4557, 0
  %5316 = vmatprep.subr.bf16.mxu0 0
  %5317 = vmatpush1.bf16.msra.mxu0 %v5300
  %5318 = vmatprep.subr.bf16.mxu0 0
  %5319 = vmatpush1.bf16.msra.mxu0 %v5301
  %5320 = vmatprep.subr.bf16.mxu0 0
  %5321 = vmatpush1.bf16.msra.mxu0 0
  %5322 = vmatprep.subr.bf16.mxu0 0
  %5323 = vmatpush1.bf16.msra.mxu0 0
  %5324 = vmatprep.subr.bf16.mxu0 0
  %5325 = vmatpush1.bf16.msra.mxu0 0
  %5326 = vmatprep.subr.bf16.mxu0 0
  %5327 = vmatpush1.bf16.msra.mxu0 0
  %5328 = vmatprep.subr.bf16.mxu0 0
  %5329 = vmatpush1.bf16.msra.mxu0 0
  %5330 = vmatprep.subr.bf16.mxu0 0
  %5331 = vmatpush1.bf16.msra.mxu0 0
  %5332 = vmatprep.subr.bf16.mxu0 0
  %5333 = vmatpush1.bf16.msra.mxu0 0
  %5334 = vmatprep.subr.bf16.mxu0 0
  %5335 = vmatpush1.bf16.msra.mxu0 0
  %5336 = vmatprep.subr.bf16.mxu0 0
  %5337 = vmatpush1.bf16.msra.mxu0 0
  %5338 = vmatprep.subr.bf16.mxu0 0
  %5339 = vmatpush1.bf16.msra.mxu0 0
  %5340 = vmatprep.subr.bf16.mxu0 0
  %5341 = vmatpush1.bf16.msra.mxu0 0
  %5342 = vmatprep.subr.bf16.mxu0 0
  %5343 = vmatpush1.bf16.msra.mxu0 0
  %5344 = vmatprep.subr.bf16.mxu0 0
  %5345 = vmatpush1.bf16.msra.mxu0 0
  %5346 = vmatprep.subr.bf16.mxu0 0
  %5347 = vmatpush1.bf16.msra.mxu0 0
  %5348 = vmatprep.mubr.bf16.mxu0 0
  %5349 = vmatmul.mubr.bf16.gmra.mrb[0].mxu0 %v5305
  %v5350 = vpop.f32.mrb[0].mxu0
  %v5351 = vadd.f32 0.0, %v5350
  %v5352 = vpop.f32.mrb[0].mxu0
  %v5353 = vpop.f32.mrb[0].mxu0
  %v5354 = vadd.f32 0.0, %v5353
  %v5355 = vpop.f32.mrb[0].mxu0
  %5356 = vmatprep.mubr.bf16.mxu0 0
  %5357 = vmatmul.mubr.bf16.gmra.mrb[0].mxu0 %v5308
  %v5358 = vpop.f32.mrb[0].mxu0
  %v5359 = vadd.f32 0.0, %v5358
  %v5360 = vpop.f32.mrb[0].mxu0
  %v5361 = vpop.f32.mrb[0].mxu0
  %v5362 = vadd.f32 0.0, %v5361
  %v5363 = vpop.f32.mrb[0].mxu0
  %5364 = vmatprep.mubr.bf16.mxu0 0
  %5365 = vmatmul.mubr.bf16.gmra.mrb[0].mxu0 %v5311
  %v5366 = vpop.f32.mrb[0].mxu0
  %v5367 = vadd.f32 0.0, %v5366
  %v5368 = vpop.f32.mrb[0].mxu0
  %v5369 = vpop.f32.mrb[0].mxu0
  %v5370 = vadd.f32 0.0, %v5369
  %v5371 = vpop.f32.mrb[0].mxu0
  %5372 = vmatprep.mubr.bf16.mxu0 0
  %5373 = vmatmul.mubr.bf16.gmra.mrb[0].mxu0 %v5314
  %v5374 = vpop.f32.mrb[0].mxu0
  %v5375 = vadd.f32 0.0, %v5374
  %v5376 = vpop.f32.mrb[0].mxu0
  %v5377 = vpop.f32.mrb[0].mxu0
  %v5378 = vadd.f32 0.0, %v5377
  %v5379 = vpop.f32.mrb[0].mxu0
  %5380 = vdwg.mxu0
  %v5381 = vadd.f32 %v5279, %v5351
  %v5382 = vadd.f32 %v5280, %v5354
  %v5383 = vadd.f32 %v5281, %v5359
  %v5384 = vadd.f32 %v5282, %v5362
  %v5385 = vadd.f32 %v5283, %v5367
  %v5386 = vadd.f32 %v5284, %v5370
  %v5387 = vadd.f32 %v5285, %v5375
  %v5388 = vadd.f32 %v5286, %v5378
  %s5389 = scalar_lea.vmem %s11, 128
  %v5390 = vld [vmem:[%s5389] sm:$0xf]
  %v5391 = vld [vmem:[%s5389 + $0x4] sm:$0xf]
  %v5392 = vld [vmem:[%s5389 + $0x8] sm:$0xf]
  %v5393 = vld [vmem:[%s5389 + $0xc] sm:$0xf]
  %v5398 = vunpack.c.l.b16 %v5390
  %v5399 = vunpack.c.l.b16 %v5391
  %v5400 = vunpack.c.l.b16 %v5392
  %v5401 = vunpack.c.l.b16 %v5393
  %v5402 = vpack.c.b16 %v5399, %v5398
  %v5403 = vpack.c.b16 %v5401, %v5400
  %v5407 = vsel %vm3119, %v4558, 0
  %v5410 = vsel %vm3119, %v4559, 0
  %v5413 = vsel %vm3119, %v4560, 0
  %v5416 = vsel %vm3119, %v4561, 0
  %5418 = vmatprep.subr.bf16.mxu0 0
  %5419 = vmatpush1.bf16.msra.mxu0 %v5402
  %5420 = vmatprep.subr.bf16.mxu0 0
  %5421 = vmatpush1.bf16.msra.mxu0 %v5403
  %5422 = vmatprep.subr.bf16.mxu0 0
  %5423 = vmatpush1.bf16.msra.mxu0 0
  %5424 = vmatprep.subr.bf16.mxu0 0
  %5425 = vmatpush1.bf16.msra.mxu0 0
  %5426 = vmatprep.subr.bf16.mxu0 0
  %5427 = vmatpush1.bf16.msra.mxu0 0
  %5428 = vmatprep.subr.bf16.mxu0 0
  %5429 = vmatpush1.bf16.msra.mxu0 0
  %5430 = vmatprep.subr.bf16.mxu0 0
  %5431 = vmatpush1.bf16.msra.mxu0 0
  %5432 = vmatprep.subr.bf16.mxu0 0
  %5433 = vmatpush1.bf16.msra.mxu0 0
  %5434 = vmatprep.subr.bf16.mxu0 0
  %5435 = vmatpush1.bf16.msra.mxu0 0
  %5436 = vmatprep.subr.bf16.mxu0 0
  %5437 = vmatpush1.bf16.msra.mxu0 0
  %5438 = vmatprep.subr.bf16.mxu0 0
  %5439 = vmatpush1.bf16.msra.mxu0 0
  %5440 = vmatprep.subr.bf16.mxu0 0
  %5441 = vmatpush1.bf16.msra.mxu0 0
  %5442 = vmatprep.subr.bf16.mxu0 0
  %5443 = vmatpush1.bf16.msra.mxu0 0
  %5444 = vmatprep.subr.bf16.mxu0 0
  %5445 = vmatpush1.bf16.msra.mxu0 0
  %5446 = vmatprep.subr.bf16.mxu0 0
  %5447 = vmatpush1.bf16.msra.mxu0 0
  %5448 = vmatprep.subr.bf16.mxu0 0
  %5449 = vmatpush1.bf16.msra.mxu0 0
  %5450 = vmatprep.mubr.bf16.mxu0 0
  %5451 = vmatmul.mubr.bf16.gmra.mrb[0].mxu0 %v5407
  %v5452 = vpop.f32.mrb[0].mxu0
  %v5453 = vadd.f32 0.0, %v5452
  %v5454 = vpop.f32.mrb[0].mxu0
  %v5455 = vpop.f32.mrb[0].mxu0
  %v5456 = vadd.f32 0.0, %v5455
  %v5457 = vpop.f32.mrb[0].mxu0
  %5458 = vmatprep.mubr.bf16.mxu0 0
  %5459 = vmatmul.mubr.bf16.gmra.mrb[0].mxu0 %v5410
  %v5460 = vpop.f32.mrb[0].mxu0
  %v5461 = vadd.f32 0.0, %v5460
  %v5462 = vpop.f32.mrb[0].mxu0
  %v5463 = vpop.f32.mrb[0].mxu0
  %v5464 = vadd.f32 0.0, %v5463
  %v5465 = vpop.f32.mrb[0].mxu0
  %5466 = vmatprep.mubr.bf16.mxu0 0
  %5467 = vmatmul.mubr.bf16.gmra.mrb[0].mxu0 %v5413
  %v5468 = vpop.f32.mrb[0].mxu0
  %v5469 = vadd.f32 0.0, %v5468
  %v5470 = vpop.f32.mrb[0].mxu0
  %v5471 = vpop.f32.mrb[0].mxu0
  %v5472 = vadd.f32 0.0, %v5471
  %v5473 = vpop.f32.mrb[0].mxu0
  %5474 = vmatprep.mubr.bf16.mxu0 0
  %5475 = vmatmul.mubr.bf16.gmra.mrb[0].mxu0 %v5416
  %v5476 = vpop.f32.mrb[0].mxu0
  %v5477 = vadd.f32 0.0, %v5476
  %v5478 = vpop.f32.mrb[0].mxu0
  %v5479 = vpop.f32.mrb[0].mxu0
  %v5480 = vadd.f32 0.0, %v5479
  %v5481 = vpop.f32.mrb[0].mxu0
  %5482 = vdwg.mxu0
  %v5483 = vadd.f32 %v5381, %v5453
  %v5484 = vadd.f32 %v5382, %v5456
  %v5485 = vadd.f32 %v5383, %v5461
  %v5486 = vadd.f32 %v5384, %v5464
  %v5487 = vadd.f32 %v5385, %v5469
  %v5488 = vadd.f32 %v5386, %v5472
  %v5489 = vadd.f32 %v5387, %v5477
  %v5490 = vadd.f32 %v5388, %v5480
  %s5491 = scalar_lea.vmem %s11, 144
  %v5492 = vld [vmem:[%s5491] sm:$0xf]
  %v5493 = vld [vmem:[%s5491 + $0x4] sm:$0xf]
  %v5494 = vld [vmem:[%s5491 + $0x8] sm:$0xf]
  %v5495 = vld [vmem:[%s5491 + $0xc] sm:$0xf]
  %v5500 = vunpack.c.l.b16 %v5492
  %v5501 = vunpack.c.l.b16 %v5493
  %v5502 = vunpack.c.l.b16 %v5494
  %v5503 = vunpack.c.l.b16 %v5495
  %v5504 = vpack.c.b16 %v5501, %v5500
  %v5505 = vpack.c.b16 %v5503, %v5502
  %v5509 = vsel %vm3119, %v4562, 0
  %v5512 = vsel %vm3119, %v4563, 0
  %v5515 = vsel %vm3119, %v4564, 0
  %v5518 = vsel %vm3119, %v4565, 0
  %5520 = vmatprep.subr.bf16.mxu0 0
  %5521 = vmatpush1.bf16.msra.mxu0 %v5504
  %5522 = vmatprep.subr.bf16.mxu0 0
  %5523 = vmatpush1.bf16.msra.mxu0 %v5505
  %5524 = vmatprep.subr.bf16.mxu0 0
  %5525 = vmatpush1.bf16.msra.mxu0 0
  %5526 = vmatprep.subr.bf16.mxu0 0
  %5527 = vmatpush1.bf16.msra.mxu0 0
  %5528 = vmatprep.subr.bf16.mxu0 0
  %5529 = vmatpush1.bf16.msra.mxu0 0
  %5530 = vmatprep.subr.bf16.mxu0 0
  %5531 = vmatpush1.bf16.msra.mxu0 0
  %5532 = vmatprep.subr.bf16.mxu0 0
  %5533 = vmatpush1.bf16.msra.mxu0 0
  %5534 = vmatprep.subr.bf16.mxu0 0
  %5535 = vmatpush1.bf16.msra.mxu0 0
  %5536 = vmatprep.subr.bf16.mxu0 0
  %5537 = vmatpush1.bf16.msra.mxu0 0
  %5538 = vmatprep.subr.bf16.mxu0 0
  %5539 = vmatpush1.bf16.msra.mxu0 0
  %5540 = vmatprep.subr.bf16.mxu0 0
  %5541 = vmatpush1.bf16.msra.mxu0 0
  %5542 = vmatprep.subr.bf16.mxu0 0
  %5543 = vmatpush1.bf16.msra.mxu0 0
  %5544 = vmatprep.subr.bf16.mxu0 0
  %5545 = vmatpush1.bf16.msra.mxu0 0
  %5546 = vmatprep.subr.bf16.mxu0 0
  %5547 = vmatpush1.bf16.msra.mxu0 0
  %5548 = vmatprep.subr.bf16.mxu0 0
  %5549 = vmatpush1.bf16.msra.mxu0 0
  %5550 = vmatprep.subr.bf16.mxu0 0
  %5551 = vmatpush1.bf16.msra.mxu0 0
  %5552 = vmatprep.mubr.bf16.mxu0 0
  %5553 = vmatmul.mubr.bf16.gmra.mrb[0].mxu0 %v5509
  %v5554 = vpop.f32.mrb[0].mxu0
  %v5555 = vadd.f32 0.0, %v5554
  %v5556 = vpop.f32.mrb[0].mxu0
  %v5557 = vpop.f32.mrb[0].mxu0
  %v5558 = vadd.f32 0.0, %v5557
  %v5559 = vpop.f32.mrb[0].mxu0
  %5560 = vmatprep.mubr.bf16.mxu0 0
  %5561 = vmatmul.mubr.bf16.gmra.mrb[0].mxu0 %v5512
  %v5562 = vpop.f32.mrb[0].mxu0
  %v5563 = vadd.f32 0.0, %v5562
  %v5564 = vpop.f32.mrb[0].mxu0
  %v5565 = vpop.f32.mrb[0].mxu0
  %v5566 = vadd.f32 0.0, %v5565
  %v5567 = vpop.f32.mrb[0].mxu0
  %5568 = vmatprep.mubr.bf16.mxu0 0
  %5569 = vmatmul.mubr.bf16.gmra.mrb[0].mxu0 %v5515
  %v5570 = vpop.f32.mrb[0].mxu0
  %v5571 = vadd.f32 0.0, %v5570
  %v5572 = vpop.f32.mrb[0].mxu0
  %v5573 = vpop.f32.mrb[0].mxu0
  %v5574 = vadd.f32 0.0, %v5573
  %v5575 = vpop.f32.mrb[0].mxu0
  %5576 = vmatprep.mubr.bf16.mxu0 0
  %5577 = vmatmul.mubr.bf16.gmra.mrb[0].mxu0 %v5518
  %v5578 = vpop.f32.mrb[0].mxu0
  %v5579 = vadd.f32 0.0, %v5578
  %v5580 = vpop.f32.mrb[0].mxu0
  %v5581 = vpop.f32.mrb[0].mxu0
  %v5582 = vadd.f32 0.0, %v5581
  %v5583 = vpop.f32.mrb[0].mxu0
  %5584 = vdwg.mxu0
  %v5585 = vadd.f32 %v5483, %v5555
  %v5586 = vadd.f32 %v5484, %v5558
  %v5587 = vadd.f32 %v5485, %v5563
  %v5588 = vadd.f32 %v5486, %v5566
  %v5589 = vadd.f32 %v5487, %v5571
  %v5590 = vadd.f32 %v5488, %v5574
  %v5591 = vadd.f32 %v5489, %v5579
  %v5592 = vadd.f32 %v5490, %v5582
  %s5593 = scalar_lea.vmem %s11, 160
  %v5594 = vld [vmem:[%s5593] sm:$0xf]
  %v5595 = vld [vmem:[%s5593 + $0x4] sm:$0xf]
  %v5596 = vld [vmem:[%s5593 + $0x8] sm:$0xf]
  %v5597 = vld [vmem:[%s5593 + $0xc] sm:$0xf]
  %v5602 = vunpack.c.l.b16 %v5594
  %v5603 = vunpack.c.l.b16 %v5595
  %v5604 = vunpack.c.l.b16 %v5596
  %v5605 = vunpack.c.l.b16 %v5597
  %v5606 = vpack.c.b16 %v5603, %v5602
  %v5607 = vpack.c.b16 %v5605, %v5604
  %v5611 = vsel %vm3119, %v4566, 0
  %v5614 = vsel %vm3119, %v4567, 0
  %v5617 = vsel %vm3119, %v4568, 0
  %v5620 = vsel %vm3119, %v4569, 0
  %5622 = vmatprep.subr.bf16.mxu0 0
  %5623 = vmatpush1.bf16.msra.mxu0 %v5606
  %5624 = vmatprep.subr.bf16.mxu0 0
  %5625 = vmatpush1.bf16.msra.mxu0 %v5607
  %5626 = vmatprep.subr.bf16.mxu0 0
  %5627 = vmatpush1.bf16.msra.mxu0 0
  %5628 = vmatprep.subr.bf16.mxu0 0
  %5629 = vmatpush1.bf16.msra.mxu0 0
  %5630 = vmatprep.subr.bf16.mxu0 0
  %5631 = vmatpush1.bf16.msra.mxu0 0
  %5632 = vmatprep.subr.bf16.mxu0 0
  %5633 = vmatpush1.bf16.msra.mxu0 0
  %5634 = vmatprep.subr.bf16.mxu0 0
  %5635 = vmatpush1.bf16.msra.mxu0 0
  %5636 = vmatprep.subr.bf16.mxu0 0
  %5637 = vmatpush1.bf16.msra.mxu0 0
  %5638 = vmatprep.subr.bf16.mxu0 0
  %5639 = vmatpush1.bf16.msra.mxu0 0
  %5640 = vmatprep.subr.bf16.mxu0 0
  %5641 = vmatpush1.bf16.msra.mxu0 0
  %5642 = vmatprep.subr.bf16.mxu0 0
  %5643 = vmatpush1.bf16.msra.mxu0 0
  %5644 = vmatprep.subr.bf16.mxu0 0
  %5645 = vmatpush1.bf16.msra.mxu0 0
  %5646 = vmatprep.subr.bf16.mxu0 0
  %5647 = vmatpush1.bf16.msra.mxu0 0
  %5648 = vmatprep.subr.bf16.mxu0 0
  %5649 = vmatpush1.bf16.msra.mxu0 0
  %5650 = vmatprep.subr.bf16.mxu0 0
  %5651 = vmatpush1.bf16.msra.mxu0 0
  %5652 = vmatprep.subr.bf16.mxu0 0
  %5653 = vmatpush1.bf16.msra.mxu0 0
  %5654 = vmatprep.mubr.bf16.mxu0 0
  %5655 = vmatmul.mubr.bf16.gmra.mrb[0].mxu0 %v5611
  %v5656 = vpop.f32.mrb[0].mxu0
  %v5657 = vadd.f32 0.0, %v5656
  %v5658 = vpop.f32.mrb[0].mxu0
  %v5659 = vpop.f32.mrb[0].mxu0
  %v5660 = vadd.f32 0.0, %v5659
  %v5661 = vpop.f32.mrb[0].mxu0
  %5662 = vmatprep.mubr.bf16.mxu0 0
  %5663 = vmatmul.mubr.bf16.gmra.mrb[0].mxu0 %v5614
  %v5664 = vpop.f32.mrb[0].mxu0
  %v5665 = vadd.f32 0.0, %v5664
  %v5666 = vpop.f32.mrb[0].mxu0
  %v5667 = vpop.f32.mrb[0].mxu0
  %v5668 = vadd.f32 0.0, %v5667
  %v5669 = vpop.f32.mrb[0].mxu0
  %5670 = vmatprep.mubr.bf16.mxu0 0
  %5671 = vmatmul.mubr.bf16.gmra.mrb[0].mxu0 %v5617
  %v5672 = vpop.f32.mrb[0].mxu0
  %v5673 = vadd.f32 0.0, %v5672
  %v5674 = vpop.f32.mrb[0].mxu0
  %v5675 = vpop.f32.mrb[0].mxu0
  %v5676 = vadd.f32 0.0, %v5675
  %v5677 = vpop.f32.mrb[0].mxu0
  %5678 = vmatprep.mubr.bf16.mxu0 0
  %5679 = vmatmul.mubr.bf16.gmra.mrb[0].mxu0 %v5620
  %v5680 = vpop.f32.mrb[0].mxu0
  %v5681 = vadd.f32 0.0, %v5680
  %v5682 = vpop.f32.mrb[0].mxu0
  %v5683 = vpop.f32.mrb[0].mxu0
  %v5684 = vadd.f32 0.0, %v5683
  %v5685 = vpop.f32.mrb[0].mxu0
  %5686 = vdwg.mxu0
  %v5687 = vadd.f32 %v5585, %v5657
  %v5688 = vadd.f32 %v5586, %v5660
  %v5689 = vadd.f32 %v5587, %v5665
  %v5690 = vadd.f32 %v5588, %v5668
  %v5691 = vadd.f32 %v5589, %v5673
  %v5692 = vadd.f32 %v5590, %v5676
  %v5693 = vadd.f32 %v5591, %v5681
  %v5694 = vadd.f32 %v5592, %v5684
  %s5695 = scalar_lea.vmem %s11, 176
  %v5696 = vld [vmem:[%s5695] sm:$0xf]
  %v5697 = vld [vmem:[%s5695 + $0x4] sm:$0xf]
  %v5698 = vld [vmem:[%s5695 + $0x8] sm:$0xf]
  %v5699 = vld [vmem:[%s5695 + $0xc] sm:$0xf]
  %v5704 = vunpack.c.l.b16 %v5696
  %v5705 = vunpack.c.l.b16 %v5697
  %v5706 = vunpack.c.l.b16 %v5698
  %v5707 = vunpack.c.l.b16 %v5699
  %v5708 = vpack.c.b16 %v5705, %v5704
  %v5709 = vpack.c.b16 %v5707, %v5706
  %v5713 = vsel %vm3119, %v4570, 0
  %v5716 = vsel %vm3119, %v4571, 0
  %v5719 = vsel %vm3119, %v4572, 0
  %v5722 = vsel %vm3119, %v4573, 0
  %5724 = vmatprep.subr.bf16.mxu0 0
  %5725 = vmatpush1.bf16.msra.mxu0 %v5708
  %5726 = vmatprep.subr.bf16.mxu0 0
  %5727 = vmatpush1.bf16.msra.mxu0 %v5709
  %5728 = vmatprep.subr.bf16.mxu0 0
  %5729 = vmatpush1.bf16.msra.mxu0 0
  %5730 = vmatprep.subr.bf16.mxu0 0
  %5731 = vmatpush1.bf16.msra.mxu0 0
  %5732 = vmatprep.subr.bf16.mxu0 0
  %5733 = vmatpush1.bf16.msra.mxu0 0
  %5734 = vmatprep.subr.bf16.mxu0 0
  %5735 = vmatpush1.bf16.msra.mxu0 0
  %5736 = vmatprep.subr.bf16.mxu0 0
  %5737 = vmatpush1.bf16.msra.mxu0 0
  %5738 = vmatprep.subr.bf16.mxu0 0
  %5739 = vmatpush1.bf16.msra.mxu0 0
  %5740 = vmatprep.subr.bf16.mxu0 0
  %5741 = vmatpush1.bf16.msra.mxu0 0
  %5742 = vmatprep.subr.bf16.mxu0 0
  %5743 = vmatpush1.bf16.msra.mxu0 0
  %5744 = vmatprep.subr.bf16.mxu0 0
  %5745 = vmatpush1.bf16.msra.mxu0 0
  %5746 = vmatprep.subr.bf16.mxu0 0
  %5747 = vmatpush1.bf16.msra.mxu0 0
  %5748 = vmatprep.subr.bf16.mxu0 0
  %5749 = vmatpush1.bf16.msra.mxu0 0
  %5750 = vmatprep.subr.bf16.mxu0 0
  %5751 = vmatpush1.bf16.msra.mxu0 0
  %5752 = vmatprep.subr.bf16.mxu0 0
  %5753 = vmatpush1.bf16.msra.mxu0 0
  %5754 = vmatprep.subr.bf16.mxu0 0
  %5755 = vmatpush1.bf16.msra.mxu0 0
  %5756 = vmatprep.mubr.bf16.mxu0 0
  %5757 = vmatmul.mubr.bf16.gmra.mrb[0].mxu0 %v5713
  %v5758 = vpop.f32.mrb[0].mxu0
  %v5759 = vadd.f32 0.0, %v5758
  %v5760 = vpop.f32.mrb[0].mxu0
  %v5761 = vpop.f32.mrb[0].mxu0
  %v5762 = vadd.f32 0.0, %v5761
  %v5763 = vpop.f32.mrb[0].mxu0
  %5764 = vmatprep.mubr.bf16.mxu0 0
  %5765 = vmatmul.mubr.bf16.gmra.mrb[0].mxu0 %v5716
  %v5766 = vpop.f32.mrb[0].mxu0
  %v5767 = vadd.f32 0.0, %v5766
  %v5768 = vpop.f32.mrb[0].mxu0
  %v5769 = vpop.f32.mrb[0].mxu0
  %v5770 = vadd.f32 0.0, %v5769
  %v5771 = vpop.f32.mrb[0].mxu0
  %5772 = vmatprep.mubr.bf16.mxu0 0
  %5773 = vmatmul.mubr.bf16.gmra.mrb[0].mxu0 %v5719
  %v5774 = vpop.f32.mrb[0].mxu0
  %v5775 = vadd.f32 0.0, %v5774
  %v5776 = vpop.f32.mrb[0].mxu0
  %v5777 = vpop.f32.mrb[0].mxu0
  %v5778 = vadd.f32 0.0, %v5777
  %v5779 = vpop.f32.mrb[0].mxu0
  %5780 = vmatprep.mubr.bf16.mxu0 0
  %5781 = vmatmul.mubr.bf16.gmra.mrb[0].mxu0 %v5722
  %v5782 = vpop.f32.mrb[0].mxu0
  %v5783 = vadd.f32 0.0, %v5782
  %v5784 = vpop.f32.mrb[0].mxu0
  %v5785 = vpop.f32.mrb[0].mxu0
  %v5786 = vadd.f32 0.0, %v5785
  %v5787 = vpop.f32.mrb[0].mxu0
  %5788 = vdwg.mxu0
  %v5789 = vadd.f32 %v5687, %v5759
  %v5790 = vadd.f32 %v5688, %v5762
  %v5791 = vadd.f32 %v5689, %v5767
  %v5792 = vadd.f32 %v5690, %v5770
  %v5793 = vadd.f32 %v5691, %v5775
  %v5794 = vadd.f32 %v5692, %v5778
  %v5795 = vadd.f32 %v5693, %v5783
  %v5796 = vadd.f32 %v5694, %v5786
  %s5797 = scalar_lea.vmem %s11, 192
  %v5798 = vld [vmem:[%s5797] sm:$0xf]
  %v5799 = vld [vmem:[%s5797 + $0x4] sm:$0xf]
  %v5800 = vld [vmem:[%s5797 + $0x8] sm:$0xf]
  %v5801 = vld [vmem:[%s5797 + $0xc] sm:$0xf]
  %v5806 = vunpack.c.l.b16 %v5798
  %v5807 = vunpack.c.l.b16 %v5799
  %v5808 = vunpack.c.l.b16 %v5800
  %v5809 = vunpack.c.l.b16 %v5801
  %v5810 = vpack.c.b16 %v5807, %v5806
  %v5811 = vpack.c.b16 %v5809, %v5808
  %v5815 = vsel %vm3119, %v4574, 0
  %v5818 = vsel %vm3119, %v4575, 0
  %v5821 = vsel %vm3119, %v4576, 0
  %v5824 = vsel %vm3119, %v4577, 0
  %5826 = vmatprep.subr.bf16.mxu0 0
  %5827 = vmatpush1.bf16.msra.mxu0 %v5810
  %5828 = vmatprep.subr.bf16.mxu0 0
  %5829 = vmatpush1.bf16.msra.mxu0 %v5811
  %5830 = vmatprep.subr.bf16.mxu0 0
  %5831 = vmatpush1.bf16.msra.mxu0 0
  %5832 = vmatprep.subr.bf16.mxu0 0
  %5833 = vmatpush1.bf16.msra.mxu0 0
  %5834 = vmatprep.subr.bf16.mxu0 0
  %5835 = vmatpush1.bf16.msra.mxu0 0
  %5836 = vmatprep.subr.bf16.mxu0 0
  %5837 = vmatpush1.bf16.msra.mxu0 0
  %5838 = vmatprep.subr.bf16.mxu0 0
  %5839 = vmatpush1.bf16.msra.mxu0 0
  %5840 = vmatprep.subr.bf16.mxu0 0
  %5841 = vmatpush1.bf16.msra.mxu0 0
  %5842 = vmatprep.subr.bf16.mxu0 0
  %5843 = vmatpush1.bf16.msra.mxu0 0
  %5844 = vmatprep.subr.bf16.mxu0 0
  %5845 = vmatpush1.bf16.msra.mxu0 0
  %5846 = vmatprep.subr.bf16.mxu0 0
  %5847 = vmatpush1.bf16.msra.mxu0 0
  %5848 = vmatprep.subr.bf16.mxu0 0
  %5849 = vmatpush1.bf16.msra.mxu0 0
  %5850 = vmatprep.subr.bf16.mxu0 0
  %5851 = vmatpush1.bf16.msra.mxu0 0
  %5852 = vmatprep.subr.bf16.mxu0 0
  %5853 = vmatpush1.bf16.msra.mxu0 0
  %5854 = vmatprep.subr.bf16.mxu0 0
  %5855 = vmatpush1.bf16.msra.mxu0 0
  %5856 = vmatprep.subr.bf16.mxu0 0
  %5857 = vmatpush1.bf16.msra.mxu0 0
  %5858 = vmatprep.mubr.bf16.mxu0 0
  %5859 = vmatmul.mubr.bf16.gmra.mrb[0].mxu0 %v5815
  %v5860 = vpop.f32.mrb[0].mxu0
  %v5861 = vadd.f32 0.0, %v5860
  %v5862 = vpop.f32.mrb[0].mxu0
  %v5863 = vpop.f32.mrb[0].mxu0
  %v5864 = vadd.f32 0.0, %v5863
  %v5865 = vpop.f32.mrb[0].mxu0
  %5866 = vmatprep.mubr.bf16.mxu0 0
  %5867 = vmatmul.mubr.bf16.gmra.mrb[0].mxu0 %v5818
  %v5868 = vpop.f32.mrb[0].mxu0
  %v5869 = vadd.f32 0.0, %v5868
  %v5870 = vpop.f32.mrb[0].mxu0
  %v5871 = vpop.f32.mrb[0].mxu0
  %v5872 = vadd.f32 0.0, %v5871
  %v5873 = vpop.f32.mrb[0].mxu0
  %5874 = vmatprep.mubr.bf16.mxu0 0
  %5875 = vmatmul.mubr.bf16.gmra.mrb[0].mxu0 %v5821
  %v5876 = vpop.f32.mrb[0].mxu0
  %v5877 = vadd.f32 0.0, %v5876
  %v5878 = vpop.f32.mrb[0].mxu0
  %v5879 = vpop.f32.mrb[0].mxu0
  %v5880 = vadd.f32 0.0, %v5879
  %v5881 = vpop.f32.mrb[0].mxu0
  %5882 = vmatprep.mubr.bf16.mxu0 0
  %5883 = vmatmul.mubr.bf16.gmra.mrb[0].mxu0 %v5824
  %v5884 = vpop.f32.mrb[0].mxu0
  %v5885 = vadd.f32 0.0, %v5884
  %v5886 = vpop.f32.mrb[0].mxu0
  %v5887 = vpop.f32.mrb[0].mxu0
  %v5888 = vadd.f32 0.0, %v5887
  %v5889 = vpop.f32.mrb[0].mxu0
  %5890 = vdwg.mxu0
  %v5891 = vadd.f32 %v5789, %v5861
  %v5892 = vadd.f32 %v5790, %v5864
  %v5893 = vadd.f32 %v5791, %v5869
  %v5894 = vadd.f32 %v5792, %v5872
  %v5895 = vadd.f32 %v5793, %v5877
  %v5896 = vadd.f32 %v5794, %v5880
  %v5897 = vadd.f32 %v5795, %v5885
  %v5898 = vadd.f32 %v5796, %v5888
  %s5899 = scalar_lea.vmem %s11, 208
  %v5900 = vld [vmem:[%s5899] sm:$0xf]
  %v5901 = vld [vmem:[%s5899 + $0x4] sm:$0xf]
  %v5902 = vld [vmem:[%s5899 + $0x8] sm:$0xf]
  %v5903 = vld [vmem:[%s5899 + $0xc] sm:$0xf]
  %v5908 = vunpack.c.l.b16 %v5900
  %v5909 = vunpack.c.l.b16 %v5901
  %v5910 = vunpack.c.l.b16 %v5902
  %v5911 = vunpack.c.l.b16 %v5903
  %v5912 = vpack.c.b16 %v5909, %v5908
  %v5913 = vpack.c.b16 %v5911, %v5910
  %v5917 = vsel %vm3119, %v4578, 0
  %v5920 = vsel %vm3119, %v4579, 0
  %v5923 = vsel %vm3119, %v4580, 0
  %v5926 = vsel %vm3119, %v4581, 0
  %5928 = vmatprep.subr.bf16.mxu0 0
  %5929 = vmatpush1.bf16.msra.mxu0 %v5912
  %5930 = vmatprep.subr.bf16.mxu0 0
  %5931 = vmatpush1.bf16.msra.mxu0 %v5913
  %5932 = vmatprep.subr.bf16.mxu0 0
  %5933 = vmatpush1.bf16.msra.mxu0 0
  %5934 = vmatprep.subr.bf16.mxu0 0
  %5935 = vmatpush1.bf16.msra.mxu0 0
  %5936 = vmatprep.subr.bf16.mxu0 0
  %5937 = vmatpush1.bf16.msra.mxu0 0
  %5938 = vmatprep.subr.bf16.mxu0 0
  %5939 = vmatpush1.bf16.msra.mxu0 0
  %5940 = vmatprep.subr.bf16.mxu0 0
  %5941 = vmatpush1.bf16.msra.mxu0 0
  %5942 = vmatprep.subr.bf16.mxu0 0
  %5943 = vmatpush1.bf16.msra.mxu0 0
  %5944 = vmatprep.subr.bf16.mxu0 0
  %5945 = vmatpush1.bf16.msra.mxu0 0
  %5946 = vmatprep.subr.bf16.mxu0 0
  %5947 = vmatpush1.bf16.msra.mxu0 0
  %5948 = vmatprep.subr.bf16.mxu0 0
  %5949 = vmatpush1.bf16.msra.mxu0 0
  %5950 = vmatprep.subr.bf16.mxu0 0
  %5951 = vmatpush1.bf16.msra.mxu0 0
  %5952 = vmatprep.subr.bf16.mxu0 0
  %5953 = vmatpush1.bf16.msra.mxu0 0
  %5954 = vmatprep.subr.bf16.mxu0 0
  %5955 = vmatpush1.bf16.msra.mxu0 0
  %5956 = vmatprep.subr.bf16.mxu0 0
  %5957 = vmatpush1.bf16.msra.mxu0 0
  %5958 = vmatprep.subr.bf16.mxu0 0
  %5959 = vmatpush1.bf16.msra.mxu0 0
  %5960 = vmatprep.mubr.bf16.mxu0 0
  %5961 = vmatmul.mubr.bf16.gmra.mrb[0].mxu0 %v5917
  %v5962 = vpop.f32.mrb[0].mxu0
  %v5963 = vadd.f32 0.0, %v5962
  %v5964 = vpop.f32.mrb[0].mxu0
  %v5965 = vpop.f32.mrb[0].mxu0
  %v5966 = vadd.f32 0.0, %v5965
  %v5967 = vpop.f32.mrb[0].mxu0
  %5968 = vmatprep.mubr.bf16.mxu0 0
  %5969 = vmatmul.mubr.bf16.gmra.mrb[0].mxu0 %v5920
  %v5970 = vpop.f32.mrb[0].mxu0
  %v5971 = vadd.f32 0.0, %v5970
  %v5972 = vpop.f32.mrb[0].mxu0
  %v5973 = vpop.f32.mrb[0].mxu0
  %v5974 = vadd.f32 0.0, %v5973
  %v5975 = vpop.f32.mrb[0].mxu0
  %5976 = vmatprep.mubr.bf16.mxu0 0
  %5977 = vmatmul.mubr.bf16.gmra.mrb[0].mxu0 %v5923
  %v5978 = vpop.f32.mrb[0].mxu0
  %v5979 = vadd.f32 0.0, %v5978
  %v5980 = vpop.f32.mrb[0].mxu0
  %v5981 = vpop.f32.mrb[0].mxu0
  %v5982 = vadd.f32 0.0, %v5981
  %v5983 = vpop.f32.mrb[0].mxu0
  %5984 = vmatprep.mubr.bf16.mxu0 0
  %5985 = vmatmul.mubr.bf16.gmra.mrb[0].mxu0 %v5926
  %v5986 = vpop.f32.mrb[0].mxu0
  %v5987 = vadd.f32 0.0, %v5986
  %v5988 = vpop.f32.mrb[0].mxu0
  %v5989 = vpop.f32.mrb[0].mxu0
  %v5990 = vadd.f32 0.0, %v5989
  %v5991 = vpop.f32.mrb[0].mxu0
  %5992 = vdwg.mxu0
  %v5993 = vadd.f32 %v5891, %v5963
  %v5994 = vadd.f32 %v5892, %v5966
  %v5995 = vadd.f32 %v5893, %v5971
  %v5996 = vadd.f32 %v5894, %v5974
  %v5997 = vadd.f32 %v5895, %v5979
  %v5998 = vadd.f32 %v5896, %v5982
  %v5999 = vadd.f32 %v5897, %v5987
  %v6000 = vadd.f32 %v5898, %v5990
  %s6001 = scalar_lea.vmem %s11, 224
  %v6002 = vld [vmem:[%s6001] sm:$0xf]
  %v6003 = vld [vmem:[%s6001 + $0x4] sm:$0xf]
  %v6004 = vld [vmem:[%s6001 + $0x8] sm:$0xf]
  %v6005 = vld [vmem:[%s6001 + $0xc] sm:$0xf]
  %v6010 = vunpack.c.l.b16 %v6002
  %v6011 = vunpack.c.l.b16 %v6003
  %v6012 = vunpack.c.l.b16 %v6004
  %v6013 = vunpack.c.l.b16 %v6005
  %v6014 = vpack.c.b16 %v6011, %v6010
  %v6015 = vpack.c.b16 %v6013, %v6012
  %v6019 = vsel %vm3119, %v4582, 0
  %v6022 = vsel %vm3119, %v4583, 0
  %v6025 = vsel %vm3119, %v4584, 0
  %v6028 = vsel %vm3119, %v4585, 0
  %6030 = vmatprep.subr.bf16.mxu0 0
  %6031 = vmatpush1.bf16.msra.mxu0 %v6014
  %6032 = vmatprep.subr.bf16.mxu0 0
  %6033 = vmatpush1.bf16.msra.mxu0 %v6015
  %6034 = vmatprep.subr.bf16.mxu0 0
  %6035 = vmatpush1.bf16.msra.mxu0 0
  %6036 = vmatprep.subr.bf16.mxu0 0
  %6037 = vmatpush1.bf16.msra.mxu0 0
  %6038 = vmatprep.subr.bf16.mxu0 0
  %6039 = vmatpush1.bf16.msra.mxu0 0
  %6040 = vmatprep.subr.bf16.mxu0 0
  %6041 = vmatpush1.bf16.msra.mxu0 0
  %6042 = vmatprep.subr.bf16.mxu0 0
  %6043 = vmatpush1.bf16.msra.mxu0 0
  %6044 = vmatprep.subr.bf16.mxu0 0
  %6045 = vmatpush1.bf16.msra.mxu0 0
  %6046 = vmatprep.subr.bf16.mxu0 0
  %6047 = vmatpush1.bf16.msra.mxu0 0
  %6048 = vmatprep.subr.bf16.mxu0 0
  %6049 = vmatpush1.bf16.msra.mxu0 0
  %6050 = vmatprep.subr.bf16.mxu0 0
  %6051 = vmatpush1.bf16.msra.mxu0 0
  %6052 = vmatprep.subr.bf16.mxu0 0
  %6053 = vmatpush1.bf16.msra.mxu0 0
  %6054 = vmatprep.subr.bf16.mxu0 0
  %6055 = vmatpush1.bf16.msra.mxu0 0
  %6056 = vmatprep.subr.bf16.mxu0 0
  %6057 = vmatpush1.bf16.msra.mxu0 0
  %6058 = vmatprep.subr.bf16.mxu0 0
  %6059 = vmatpush1.bf16.msra.mxu0 0
  %6060 = vmatprep.subr.bf16.mxu0 0
  %6061 = vmatpush1.bf16.msra.mxu0 0
  %6062 = vmatprep.mubr.bf16.mxu0 0
  %6063 = vmatmul.mubr.bf16.gmra.mrb[0].mxu0 %v6019
  %v6064 = vpop.f32.mrb[0].mxu0
  %v6065 = vadd.f32 0.0, %v6064
  %v6066 = vpop.f32.mrb[0].mxu0
  %v6067 = vpop.f32.mrb[0].mxu0
  %v6068 = vadd.f32 0.0, %v6067
  %v6069 = vpop.f32.mrb[0].mxu0
  %6070 = vmatprep.mubr.bf16.mxu0 0
  %6071 = vmatmul.mubr.bf16.gmra.mrb[0].mxu0 %v6022
  %v6072 = vpop.f32.mrb[0].mxu0
  %v6073 = vadd.f32 0.0, %v6072
  %v6074 = vpop.f32.mrb[0].mxu0
  %v6075 = vpop.f32.mrb[0].mxu0
  %v6076 = vadd.f32 0.0, %v6075
  %v6077 = vpop.f32.mrb[0].mxu0
  %6078 = vmatprep.mubr.bf16.mxu0 0
  %6079 = vmatmul.mubr.bf16.gmra.mrb[0].mxu0 %v6025
  %v6080 = vpop.f32.mrb[0].mxu0
  %v6081 = vadd.f32 0.0, %v6080
  %v6082 = vpop.f32.mrb[0].mxu0
  %v6083 = vpop.f32.mrb[0].mxu0
  %v6084 = vadd.f32 0.0, %v6083
  %v6085 = vpop.f32.mrb[0].mxu0
  %6086 = vmatprep.mubr.bf16.mxu0 0
  %6087 = vmatmul.mubr.bf16.gmra.mrb[0].mxu0 %v6028
  %v6088 = vpop.f32.mrb[0].mxu0
  %v6089 = vadd.f32 0.0, %v6088
  %v6090 = vpop.f32.mrb[0].mxu0
  %v6091 = vpop.f32.mrb[0].mxu0
  %v6092 = vadd.f32 0.0, %v6091
  %v6093 = vpop.f32.mrb[0].mxu0
  %6094 = vdwg.mxu0
  %v6095 = vadd.f32 %v5993, %v6065
  %v6096 = vadd.f32 %v5994, %v6068
  %v6097 = vadd.f32 %v5995, %v6073
  %v6098 = vadd.f32 %v5996, %v6076
  %v6099 = vadd.f32 %v5997, %v6081
  %v6100 = vadd.f32 %v5998, %v6084
  %v6101 = vadd.f32 %v5999, %v6089
  %v6102 = vadd.f32 %v6000, %v6092
  %s6103 = scalar_lea.vmem %s11, 240
  %v6104 = vld [vmem:[%s6103] sm:$0xf]
  %v6105 = vld [vmem:[%s6103 + $0x4] sm:$0xf]
  %v6106 = vld [vmem:[%s6103 + $0x8] sm:$0xf]
  %v6107 = vld [vmem:[%s6103 + $0xc] sm:$0xf]
  %v6112 = vunpack.c.l.b16 %v6104
  %v6113 = vunpack.c.l.b16 %v6105
  %v6114 = vunpack.c.l.b16 %v6106
  %v6115 = vunpack.c.l.b16 %v6107
  %v6116 = vpack.c.b16 %v6113, %v6112
  %v6117 = vpack.c.b16 %v6115, %v6114
  %v6121 = vsel %vm3119, %v4586, 0
  %v6124 = vsel %vm3119, %v4587, 0
  %v6127 = vsel %vm3119, %v4588, 0
  %v6130 = vsel %vm3119, %v4589, 0
  %6132 = vmatprep.subr.bf16.mxu0 0
  %6133 = vmatpush1.bf16.msra.mxu0 %v6116
  %6134 = vmatprep.subr.bf16.mxu0 0
  %6135 = vmatpush1.bf16.msra.mxu0 %v6117
  %6136 = vmatprep.subr.bf16.mxu0 0
  %6137 = vmatpush1.bf16.msra.mxu0 0
  %6138 = vmatprep.subr.bf16.mxu0 0
  %6139 = vmatpush1.bf16.msra.mxu0 0
  %6140 = vmatprep.subr.bf16.mxu0 0
  %6141 = vmatpush1.bf16.msra.mxu0 0
  %6142 = vmatprep.subr.bf16.mxu0 0
  %6143 = vmatpush1.bf16.msra.mxu0 0
  %6144 = vmatprep.subr.bf16.mxu0 0
  %6145 = vmatpush1.bf16.msra.mxu0 0
  %6146 = vmatprep.subr.bf16.mxu0 0
  %6147 = vmatpush1.bf16.msra.mxu0 0
  %6148 = vmatprep.subr.bf16.mxu0 0
  %6149 = vmatpush1.bf16.msra.mxu0 0
  %6150 = vmatprep.subr.bf16.mxu0 0
  %6151 = vmatpush1.bf16.msra.mxu0 0
  %6152 = vmatprep.subr.bf16.mxu0 0
  %6153 = vmatpush1.bf16.msra.mxu0 0
  %6154 = vmatprep.subr.bf16.mxu0 0
  %6155 = vmatpush1.bf16.msra.mxu0 0
  %6156 = vmatprep.subr.bf16.mxu0 0
  %6157 = vmatpush1.bf16.msra.mxu0 0
  %6158 = vmatprep.subr.bf16.mxu0 0
  %6159 = vmatpush1.bf16.msra.mxu0 0
  %6160 = vmatprep.subr.bf16.mxu0 0
  %6161 = vmatpush1.bf16.msra.mxu0 0
  %6162 = vmatprep.subr.bf16.mxu0 0
  %6163 = vmatpush1.bf16.msra.mxu0 0
  %6164 = vmatprep.mubr.bf16.mxu0 0
  %6165 = vmatmul.mubr.bf16.gmra.mrb[0].mxu0 %v6121
  %v6166 = vpop.f32.mrb[0].mxu0
  %v6167 = vadd.f32 0.0, %v6166
  %v6168 = vpop.f32.mrb[0].mxu0
  %v6169 = vpop.f32.mrb[0].mxu0
  %v6170 = vadd.f32 0.0, %v6169
  %v6171 = vpop.f32.mrb[0].mxu0
  %6172 = vmatprep.mubr.bf16.mxu0 0
  %6173 = vmatmul.mubr.bf16.gmra.mrb[0].mxu0 %v6124
  %v6174 = vpop.f32.mrb[0].mxu0
  %v6175 = vadd.f32 0.0, %v6174
  %v6176 = vpop.f32.mrb[0].mxu0
  %v6177 = vpop.f32.mrb[0].mxu0
  %v6178 = vadd.f32 0.0, %v6177
  %v6179 = vpop.f32.mrb[0].mxu0
  %6180 = vmatprep.mubr.bf16.mxu0 0
  %6181 = vmatmul.mubr.bf16.gmra.mrb[0].mxu0 %v6127
  %v6182 = vpop.f32.mrb[0].mxu0
  %v6183 = vadd.f32 0.0, %v6182
  %v6184 = vpop.f32.mrb[0].mxu0
  %v6185 = vpop.f32.mrb[0].mxu0
  %v6186 = vadd.f32 0.0, %v6185
  %v6187 = vpop.f32.mrb[0].mxu0
  %6188 = vmatprep.mubr.bf16.mxu0 0
  %6189 = vmatmul.mubr.bf16.gmra.mrb[0].mxu0 %v6130
  %v6190 = vpop.f32.mrb[0].mxu0
  %v6191 = vadd.f32 0.0, %v6190
  %v6192 = vpop.f32.mrb[0].mxu0
  %v6193 = vpop.f32.mrb[0].mxu0
  %v6194 = vadd.f32 0.0, %v6193
  %v6195 = vpop.f32.mrb[0].mxu0
  %6196 = vdwg.mxu0
  %v6197 = vadd.f32 %v6095, %v6167
  %v6198 = vadd.f32 %v6096, %v6170
  %v6199 = vadd.f32 %v6097, %v6175
  %v6200 = vadd.f32 %v6098, %v6178
  %v6201 = vadd.f32 %v6099, %v6183
  %v6202 = vadd.f32 %v6100, %v6186
  %v6203 = vadd.f32 %v6101, %v6191
  %v6204 = vadd.f32 %v6102, %v6194
  %v6205 = vld [vmem:[%s12] sm:$0xff]
  %v6206 = vld [vmem:[%s12 + $0x8] sm:$0xff]
  %v6207 = vld [vmem:[%s12 + $0x10] sm:$0xff]
  %v6208 = vld [vmem:[%s12 + $0x18] sm:$0xff]
  %v6209 = vld [vmem:[%s12 + $0x20] sm:$0xff]
  %v6210 = vld [vmem:[%s12 + $0x28] sm:$0xff]
  %v6211 = vld [vmem:[%s12 + $0x30] sm:$0xff]
  %v6212 = vld [vmem:[%s12 + $0x38] sm:$0xff]
  %v6213 = vld [vmem:[%s13] sm:$0xff]
  %v6214 = vld [vmem:[%s13 + $0x8] sm:$0xff]
  %v6215 = vld [vmem:[%s13 + $0x10] sm:$0xff]
  %v6216 = vld [vmem:[%s13 + $0x18] sm:$0xff]
  %v6217 = vld [vmem:[%s13 + $0x20] sm:$0xff]
  %v6218 = vld [vmem:[%s13 + $0x28] sm:$0xff]
  %v6219 = vld [vmem:[%s13 + $0x30] sm:$0xff]
  %v6220 = vld [vmem:[%s13 + $0x38] sm:$0xff]
  %v6221 = vld [vmem:[%s14] sm:$0xff]
  %v6222 = vld [vmem:[%s14 + $0x8] sm:$0xff]
  %v6223 = vld [vmem:[%s14 + $0x10] sm:$0xff]
  %v6224 = vld [vmem:[%s14 + $0x18] sm:$0xff]
  %v6225 = vld [vmem:[%s14 + $0x20] sm:$0xff]
  %v6226 = vld [vmem:[%s14 + $0x28] sm:$0xff]
  %v6227 = vld [vmem:[%s14 + $0x30] sm:$0xff]
  %v6228 = vld [vmem:[%s14 + $0x38] sm:$0xff]
  %6230 = vset.pattern.permute.xlu0 0
  %6231 = vperm.xlu0 %6230, %v6205
  %v6232 = vpop.permute.xlu0 %6231
  %6235 = vset.pattern.permute.xlu0 0
  %6236 = vperm.xlu0 %6235, %v6206
  %v6237 = vpop.permute.xlu0 %6236
  %6240 = vset.pattern.permute.xlu0 0
  %6241 = vperm.xlu0 %6240, %v6207
  %v6242 = vpop.permute.xlu0 %6241
  %6245 = vset.pattern.permute.xlu0 0
  %6246 = vperm.xlu0 %6245, %v6208
  %v6247 = vpop.permute.xlu0 %6246
  %6250 = vset.pattern.permute.xlu0 0
  %6251 = vperm.xlu0 %6250, %v6209
  %v6252 = vpop.permute.xlu0 %6251
  %6255 = vset.pattern.permute.xlu0 0
  %6256 = vperm.xlu0 %6255, %v6210
  %v6257 = vpop.permute.xlu0 %6256
  %6260 = vset.pattern.permute.xlu0 0
  %6261 = vperm.xlu0 %6260, %v6211
  %v6262 = vpop.permute.xlu0 %6261
  %6265 = vset.pattern.permute.xlu0 0
  %6266 = vperm.xlu0 %6265, %v6212
  %v6267 = vpop.permute.xlu0 %6266
  %v6269 = vadd.f32 %v6197, %v6232
  %v6270 = vadd.f32 %v6198, %v6237
  %v6271 = vadd.f32 %v6199, %v6242
  %v6272 = vadd.f32 %v6200, %v6247
  %v6273 = vadd.f32 %v6201, %v6252
  %v6274 = vadd.f32 %v6202, %v6257
  %v6275 = vadd.f32 %v6203, %v6262
  %v6276 = vadd.f32 %v6204, %v6267
  %v6277 = vmax.f32 %v6269, 0.0
  %v6278 = vmax.f32 %v6270, 0.0
  %v6279 = vmax.f32 %v6271, 0.0
  %v6280 = vmax.f32 %v6272, 0.0
  %v6281 = vmax.f32 %v6273, 0.0
  %v6282 = vmax.f32 %v6274, 0.0
  %v6283 = vmax.f32 %v6275, 0.0
  %v6284 = vmax.f32 %v6276, 0.0
  %6285 = vadd.xlane.f32.xlu0 %v6277
  %v6286 = vpop.xlane.xlu0 %6285
  %6287 = vadd.xlane.f32.xlu0 %v6278
  %v6288 = vpop.xlane.xlu0 %6287
  %6289 = vadd.xlane.f32.xlu0 %v6279
  %v6290 = vpop.xlane.xlu0 %6289
  %6291 = vadd.xlane.f32.xlu0 %v6280
  %v6292 = vpop.xlane.xlu0 %6291
  %6293 = vadd.xlane.f32.xlu0 %v6281
  %v6294 = vpop.xlane.xlu0 %6293
  %6295 = vadd.xlane.f32.xlu0 %v6282
  %v6296 = vpop.xlane.xlu0 %6295
  %6297 = vadd.xlane.f32.xlu0 %v6283
  %v6298 = vpop.xlane.xlu0 %6297
  %6299 = vadd.xlane.f32.xlu0 %v6284
  %v6300 = vpop.xlane.xlu0 %6299
  %v6301 = vmul.f32 %v6286, 0.0078125
  %v6302 = vmul.f32 %v6288, 0.0078125
  %v6303 = vmul.f32 %v6290, 0.0078125
  %v6304 = vmul.f32 %v6292, 0.0078125
  %v6305 = vmul.f32 %v6294, 0.0078125
  %v6306 = vmul.f32 %v6296, 0.0078125
  %v6307 = vmul.f32 %v6298, 0.0078125
  %v6308 = vmul.f32 %v6300, 0.0078125
  %v6309 = vsub.f32 %v6277, %v6301
  %v6310 = vsub.f32 %v6278, %v6302
  %v6311 = vsub.f32 %v6279, %v6303
  %v6312 = vsub.f32 %v6280, %v6304
  %v6313 = vsub.f32 %v6281, %v6305
  %v6314 = vsub.f32 %v6282, %v6306
  %v6315 = vsub.f32 %v6283, %v6307
  %v6316 = vsub.f32 %v6284, %v6308
  %v6317 = vmul.f32 %v6309, %v6309
  %v6318 = vmul.f32 %v6310, %v6310
  %v6319 = vmul.f32 %v6311, %v6311
  %v6320 = vmul.f32 %v6312, %v6312
  %v6321 = vmul.f32 %v6313, %v6313
  %v6322 = vmul.f32 %v6314, %v6314
  %v6323 = vmul.f32 %v6315, %v6315
  %v6324 = vmul.f32 %v6316, %v6316
  %6325 = vadd.xlane.f32.xlu0 %v6317
  %v6326 = vpop.xlane.xlu0 %6325
  %6327 = vadd.xlane.f32.xlu0 %v6318
  %v6328 = vpop.xlane.xlu0 %6327
  %6329 = vadd.xlane.f32.xlu0 %v6319
  %v6330 = vpop.xlane.xlu0 %6329
  %6331 = vadd.xlane.f32.xlu0 %v6320
  %v6332 = vpop.xlane.xlu0 %6331
  %6333 = vadd.xlane.f32.xlu0 %v6321
  %v6334 = vpop.xlane.xlu0 %6333
  %6335 = vadd.xlane.f32.xlu0 %v6322
  %v6336 = vpop.xlane.xlu0 %6335
  %6337 = vadd.xlane.f32.xlu0 %v6323
  %v6338 = vpop.xlane.xlu0 %6337
  %6339 = vadd.xlane.f32.xlu0 %v6324
  %v6340 = vpop.xlane.xlu0 %6339
  %v6341 = vmul.f32 %v6326, 0.0078125
  %v6342 = vmul.f32 %v6328, 0.0078125
  %v6343 = vmul.f32 %v6330, 0.0078125
  %v6344 = vmul.f32 %v6332, 0.0078125
  %v6345 = vmul.f32 %v6334, 0.0078125
  %v6346 = vmul.f32 %v6336, 0.0078125
  %v6347 = vmul.f32 %v6338, 0.0078125
  %v6348 = vmul.f32 %v6340, 0.0078125
  %v6349 = vadd.f32 %v6341, 1e-05
  %v6350 = vadd.f32 %v6342, 1e-05
  %v6351 = vadd.f32 %v6343, 1e-05
  %v6352 = vadd.f32 %v6344, 1e-05
  %v6353 = vadd.f32 %v6345, 1e-05
  %v6354 = vadd.f32 %v6346, 1e-05
  %v6355 = vadd.f32 %v6347, 1e-05
  %v6356 = vadd.f32 %v6348, 1e-05
  %v6357 = vrsqrt.pop %v6349
  %v6358 = vrsqrt.pop %v6350
  %v6359 = vrsqrt.pop %v6351
  %v6360 = vrsqrt.pop %v6352
  %v6361 = vrsqrt.pop %v6353
  %v6362 = vrsqrt.pop %v6354
  %v6363 = vrsqrt.pop %v6355
  %v6364 = vrsqrt.pop %v6356
  %v6365 = vmul.f32 %v6213, %v6357
  %v6366 = vmul.f32 %v6214, %v6358
  %v6367 = vmul.f32 %v6215, %v6359
  %v6368 = vmul.f32 %v6216, %v6360
  %v6369 = vmul.f32 %v6217, %v6361
  %v6370 = vmul.f32 %v6218, %v6362
  %v6371 = vmul.f32 %v6219, %v6363
  %v6372 = vmul.f32 %v6220, %v6364
  %v6373 = vmul.f32 %v6301, %v6365
  %v6374 = vmul.f32 %v6302, %v6366
  %v6375 = vmul.f32 %v6303, %v6367
  %v6376 = vmul.f32 %v6304, %v6368
  %v6377 = vmul.f32 %v6305, %v6369
  %v6378 = vmul.f32 %v6306, %v6370
  %v6379 = vmul.f32 %v6307, %v6371
  %v6380 = vmul.f32 %v6308, %v6372
  %v6381 = vsub.f32 %v6221, %v6373
  %v6382 = vsub.f32 %v6222, %v6374
  %v6383 = vsub.f32 %v6223, %v6375
  %v6384 = vsub.f32 %v6224, %v6376
  %v6385 = vsub.f32 %v6225, %v6377
  %v6386 = vsub.f32 %v6226, %v6378
  %v6387 = vsub.f32 %v6227, %v6379
  %v6388 = vsub.f32 %v6228, %v6380
  %6390 = vset.pattern.permute.xlu0 0
  %6391 = vperm.xlu0 %6390, %v6365
  %v6392 = vpop.permute.xlu0 %6391
  %6395 = vset.pattern.permute.xlu0 0
  %6396 = vperm.xlu0 %6395, %v6366
  %v6397 = vpop.permute.xlu0 %6396
  %6400 = vset.pattern.permute.xlu0 0
  %6401 = vperm.xlu0 %6400, %v6367
  %v6402 = vpop.permute.xlu0 %6401
  %6405 = vset.pattern.permute.xlu0 0
  %6406 = vperm.xlu0 %6405, %v6368
  %v6407 = vpop.permute.xlu0 %6406
  %6410 = vset.pattern.permute.xlu0 0
  %6411 = vperm.xlu0 %6410, %v6369
  %v6412 = vpop.permute.xlu0 %6411
  %6415 = vset.pattern.permute.xlu0 0
  %6416 = vperm.xlu0 %6415, %v6370
  %v6417 = vpop.permute.xlu0 %6416
  %6420 = vset.pattern.permute.xlu0 0
  %6421 = vperm.xlu0 %6420, %v6371
  %v6422 = vpop.permute.xlu0 %6421
  %6425 = vset.pattern.permute.xlu0 0
  %6426 = vperm.xlu0 %6425, %v6372
  %v6427 = vpop.permute.xlu0 %6426
  %v6429 = vmul.f32 %v6277, %v6392
  %v6430 = vmul.f32 %v6278, %v6397
  %v6431 = vmul.f32 %v6279, %v6402
  %v6432 = vmul.f32 %v6280, %v6407
  %v6433 = vmul.f32 %v6281, %v6412
  %v6434 = vmul.f32 %v6282, %v6417
  %v6435 = vmul.f32 %v6283, %v6422
  %v6436 = vmul.f32 %v6284, %v6427
  %6438 = vset.pattern.permute.xlu0 0
  %6439 = vperm.xlu0 %6438, %v6381
  %v6440 = vpop.permute.xlu0 %6439
  %6443 = vset.pattern.permute.xlu0 0
  %6444 = vperm.xlu0 %6443, %v6382
  %v6445 = vpop.permute.xlu0 %6444
  %6448 = vset.pattern.permute.xlu0 0
  %6449 = vperm.xlu0 %6448, %v6383
  %v6450 = vpop.permute.xlu0 %6449
  %6453 = vset.pattern.permute.xlu0 0
  %6454 = vperm.xlu0 %6453, %v6384
  %v6455 = vpop.permute.xlu0 %6454
  %6458 = vset.pattern.permute.xlu0 0
  %6459 = vperm.xlu0 %6458, %v6385
  %v6460 = vpop.permute.xlu0 %6459
  %6463 = vset.pattern.permute.xlu0 0
  %6464 = vperm.xlu0 %6463, %v6386
  %v6465 = vpop.permute.xlu0 %6464
  %6468 = vset.pattern.permute.xlu0 0
  %6469 = vperm.xlu0 %6468, %v6387
  %v6470 = vpop.permute.xlu0 %6469
  %6473 = vset.pattern.permute.xlu0 0
  %6474 = vperm.xlu0 %6473, %v6388
  %v6475 = vpop.permute.xlu0 %6474
  %v6477 = vadd.f32 %v6429, %v6440
  %v6478 = vadd.f32 %v6430, %v6445
  %v6479 = vadd.f32 %v6431, %v6450
  %v6480 = vadd.f32 %v6432, %v6455
  %v6481 = vadd.f32 %v6433, %v6460
  %v6482 = vadd.f32 %v6434, %v6465
  %v6483 = vadd.f32 %v6435, %v6470
  %v6484 = vadd.f32 %v6436, %v6475
  %v6485 = vpack.c.bf16 %v6478, %v6477
  %v6486 = vpack.c.bf16 %v6480, %v6479
  %v6487 = vpack.c.bf16 %v6482, %v6481
  %v6488 = vpack.c.bf16 %v6484, %v6483
  %v6489 = vld [vmem:[%s15] sm:$0xf]
  %v6490 = vld [vmem:[%s15 + $0x4] sm:$0xf]
  %v6493 = vunpack.c.l.b16 %v6489
  %v6494 = vunpack.c.l.b16 %v6490
  %v6495 = vpack.c.b16 %v6494, %v6493
  %v6497 = vsel %vm3788, %v6495, 0
  %6499 = vmatprep.subr.bf16.mxu0 0
  %6500 = vmatpush1.bf16.msra.mxu0 %v6485
  %6501 = vmatprep.subr.bf16.mxu0 0
  %6502 = vmatpush1.bf16.msra.mxu0 %v6486
  %6503 = vmatprep.subr.bf16.mxu0 0
  %6504 = vmatpush1.bf16.msra.mxu0 %v6487
  %6505 = vmatprep.subr.bf16.mxu0 0
  %6506 = vmatpush1.bf16.msra.mxu0 %v6488
  %6507 = vmatprep.subr.bf16.mxu0 0
  %6508 = vmatpush1.bf16.msra.mxu0 0
  %6509 = vmatprep.subr.bf16.mxu0 0
  %6510 = vmatpush1.bf16.msra.mxu0 0
  %6511 = vmatprep.subr.bf16.mxu0 0
  %6512 = vmatpush1.bf16.msra.mxu0 0
  %6513 = vmatprep.subr.bf16.mxu0 0
  %6514 = vmatpush1.bf16.msra.mxu0 0
  %6515 = vmatprep.subr.bf16.mxu0 0
  %6516 = vmatpush1.bf16.msra.mxu0 0
  %6517 = vmatprep.subr.bf16.mxu0 0
  %6518 = vmatpush1.bf16.msra.mxu0 0
  %6519 = vmatprep.subr.bf16.mxu0 0
  %6520 = vmatpush1.bf16.msra.mxu0 0
  %6521 = vmatprep.subr.bf16.mxu0 0
  %6522 = vmatpush1.bf16.msra.mxu0 0
  %6523 = vmatprep.subr.bf16.mxu0 0
  %6524 = vmatpush1.bf16.msra.mxu0 0
  %6525 = vmatprep.subr.bf16.mxu0 0
  %6526 = vmatpush1.bf16.msra.mxu0 0
  %6527 = vmatprep.subr.bf16.mxu0 0
  %6528 = vmatpush1.bf16.msra.mxu0 0
  %6529 = vmatprep.subr.bf16.mxu0 0
  %6530 = vmatpush1.bf16.msra.mxu0 0
  %6531 = vmatprep.mubr.bf16.mxu0 0
  %6532 = vmatmul.mubr.bf16.gmra.mrb[0].mxu0 %v6497
  %v6533 = vpop.f32.mrb[0].mxu0
  %v6534 = vadd.f32 0.0, %v6533
  %v6535 = vpop.f32.mrb[0].mxu0
  %v6536 = vpop.f32.mrb[0].mxu0
  %v6537 = vadd.f32 0.0, %v6536
  %v6538 = vpop.f32.mrb[0].mxu0
  %6539 = vdwg.mxu0
  %v6541 = vrot.slane %v6534, 2
  %v6544 = vrot.slane %v6537, 2
  %v6546 = vpack.c.bf16 %v6534, %v6534
  %v6547 = vpack.c.bf16 %v6541, %v6541
  %v6548 = vpack.c.bf16 %v6537, %v6537
  %v6549 = vpack.c.bf16 %v6544, %v6544
  %v6550 = vld [vmem:[%s16] sm:$0xf]
  %v6551 = vld [vmem:[%s16 + $0x4] sm:$0xf]
  %v6552 = vld [vmem:[%s16 + $0x8] sm:$0xf]
  %v6553 = vld [vmem:[%s16 + $0xc] sm:$0xf]
  %v6554 = vld [vmem:[%s16 + $0x10] sm:$0xf]
  %v6555 = vld [vmem:[%s16 + $0x14] sm:$0xf]
  %v6556 = vld [vmem:[%s16 + $0x18] sm:$0xf]
  %v6557 = vld [vmem:[%s16 + $0x1c] sm:$0xf]
  %v6558 = vld [vmem:[%s16 + $0x20] sm:$0xf]
  %v6559 = vld [vmem:[%s16 + $0x24] sm:$0xf]
  %v6560 = vld [vmem:[%s16 + $0x28] sm:$0xf]
  %v6561 = vld [vmem:[%s16 + $0x2c] sm:$0xf]
  %v6562 = vld [vmem:[%s16 + $0x30] sm:$0xf]
  %v6563 = vld [vmem:[%s16 + $0x34] sm:$0xf]
  %v6564 = vld [vmem:[%s16 + $0x38] sm:$0xf]
  %v6565 = vld [vmem:[%s16 + $0x3c] sm:$0xf]
  %v6566 = vld [vmem:[%s16 + $0x40] sm:$0xf]
  %v6567 = vld [vmem:[%s16 + $0x44] sm:$0xf]
  %v6568 = vld [vmem:[%s16 + $0x48] sm:$0xf]
  %v6569 = vld [vmem:[%s16 + $0x4c] sm:$0xf]
  %v6570 = vld [vmem:[%s16 + $0x50] sm:$0xf]
  %v6571 = vld [vmem:[%s16 + $0x54] sm:$0xf]
  %v6572 = vld [vmem:[%s16 + $0x58] sm:$0xf]
  %v6573 = vld [vmem:[%s16 + $0x5c] sm:$0xf]
  %v6574 = vld [vmem:[%s16 + $0x60] sm:$0xf]
  %v6575 = vld [vmem:[%s16 + $0x64] sm:$0xf]
  %v6576 = vld [vmem:[%s16 + $0x68] sm:$0xf]
  %v6577 = vld [vmem:[%s16 + $0x6c] sm:$0xf]
  %v6578 = vld [vmem:[%s16 + $0x70] sm:$0xf]
  %v6579 = vld [vmem:[%s16 + $0x74] sm:$0xf]
  %v6580 = vld [vmem:[%s16 + $0x78] sm:$0xf]
  %v6581 = vld [vmem:[%s16 + $0x7c] sm:$0xf]
  %v6582 = vld [vmem:[%s16 + $0x80] sm:$0xf]
  %v6583 = vld [vmem:[%s16 + $0x84] sm:$0xf]
  %v6584 = vld [vmem:[%s16 + $0x88] sm:$0xf]
  %v6585 = vld [vmem:[%s16 + $0x8c] sm:$0xf]
  %v6586 = vld [vmem:[%s16 + $0x90] sm:$0xf]
  %v6587 = vld [vmem:[%s16 + $0x94] sm:$0xf]
  %v6588 = vld [vmem:[%s16 + $0x98] sm:$0xf]
  %v6589 = vld [vmem:[%s16 + $0x9c] sm:$0xf]
  %v6590 = vld [vmem:[%s16 + $0xa0] sm:$0xf]
  %v6591 = vld [vmem:[%s16 + $0xa4] sm:$0xf]
  %v6592 = vld [vmem:[%s16 + $0xa8] sm:$0xf]
  %v6593 = vld [vmem:[%s16 + $0xac] sm:$0xf]
  %v6594 = vld [vmem:[%s16 + $0xb0] sm:$0xf]
  %v6595 = vld [vmem:[%s16 + $0xb4] sm:$0xf]
  %v6596 = vld [vmem:[%s16 + $0xb8] sm:$0xf]
  %v6597 = vld [vmem:[%s16 + $0xbc] sm:$0xf]
  %v6598 = vld [vmem:[%s16 + $0xc0] sm:$0xf]
  %v6599 = vld [vmem:[%s16 + $0xc4] sm:$0xf]
  %v6600 = vld [vmem:[%s16 + $0xc8] sm:$0xf]
  %v6601 = vld [vmem:[%s16 + $0xcc] sm:$0xf]
  %v6602 = vld [vmem:[%s16 + $0xd0] sm:$0xf]
  %v6603 = vld [vmem:[%s16 + $0xd4] sm:$0xf]
  %v6604 = vld [vmem:[%s16 + $0xd8] sm:$0xf]
  %v6605 = vld [vmem:[%s16 + $0xdc] sm:$0xf]
  %v6606 = vld [vmem:[%s16 + $0xe0] sm:$0xf]
  %v6607 = vld [vmem:[%s16 + $0xe4] sm:$0xf]
  %v6608 = vld [vmem:[%s16 + $0xe8] sm:$0xf]
  %v6609 = vld [vmem:[%s16 + $0xec] sm:$0xf]
  %v6610 = vld [vmem:[%s16 + $0xf0] sm:$0xf]
  %v6611 = vld [vmem:[%s16 + $0xf4] sm:$0xf]
  %v6612 = vld [vmem:[%s16 + $0xf8] sm:$0xf]
  %v6613 = vld [vmem:[%s16 + $0xfc] sm:$0xf]
  %v6615 = vshrl.u32 %v6546, 16
  %v6617 = vrot.slane %v6615, 2
  %v6619 = vshrl.u32 %v6547, 16
  %v6621 = vrot.slane %v6619, 2
  %v6623 = vshrl.u32 %v6548, 16
  %v6625 = vrot.slane %v6623, 2
  %v6627 = vshrl.u32 %v6549, 16
  %v6629 = vrot.slane %v6627, 2
  %v6698 = vunpack.c.l.b16 %v6550
  %v6699 = vunpack.c.l.b16 %v6551
  %v6700 = vunpack.c.l.b16 %v6552
  %v6701 = vunpack.c.l.b16 %v6553
  %v6702 = vunpack.c.l.b16 %v6554
  %v6703 = vunpack.c.l.b16 %v6555
  %v6704 = vunpack.c.l.b16 %v6556
  %v6705 = vunpack.c.l.b16 %v6557
  %v6706 = vunpack.c.l.b16 %v6558
  %v6707 = vunpack.c.l.b16 %v6559
  %v6708 = vunpack.c.l.b16 %v6560
  %v6709 = vunpack.c.l.b16 %v6561
  %v6710 = vunpack.c.l.b16 %v6562
  %v6711 = vunpack.c.l.b16 %v6563
  %v6712 = vunpack.c.l.b16 %v6564
  %v6713 = vunpack.c.l.b16 %v6565
  %v6714 = vunpack.c.l.b16 %v6566
  %v6715 = vunpack.c.l.b16 %v6567
  %v6716 = vunpack.c.l.b16 %v6568
  %v6717 = vunpack.c.l.b16 %v6569
  %v6718 = vunpack.c.l.b16 %v6570
  %v6719 = vunpack.c.l.b16 %v6571
  %v6720 = vunpack.c.l.b16 %v6572
  %v6721 = vunpack.c.l.b16 %v6573
  %v6722 = vunpack.c.l.b16 %v6574
  %v6723 = vunpack.c.l.b16 %v6575
  %v6724 = vunpack.c.l.b16 %v6576
  %v6725 = vunpack.c.l.b16 %v6577
  %v6726 = vunpack.c.l.b16 %v6578
  %v6727 = vunpack.c.l.b16 %v6579
  %v6728 = vunpack.c.l.b16 %v6580
  %v6729 = vunpack.c.l.b16 %v6581
  %v6730 = vunpack.c.l.b16 %v6582
  %v6731 = vunpack.c.l.b16 %v6583
  %v6732 = vunpack.c.l.b16 %v6584
  %v6733 = vunpack.c.l.b16 %v6585
  %v6734 = vunpack.c.l.b16 %v6586
  %v6735 = vunpack.c.l.b16 %v6587
  %v6736 = vunpack.c.l.b16 %v6588
  %v6737 = vunpack.c.l.b16 %v6589
  %v6738 = vunpack.c.l.b16 %v6590
  %v6739 = vunpack.c.l.b16 %v6591
  %v6740 = vunpack.c.l.b16 %v6592
  %v6741 = vunpack.c.l.b16 %v6593
  %v6742 = vunpack.c.l.b16 %v6594
  %v6743 = vunpack.c.l.b16 %v6595
  %v6744 = vunpack.c.l.b16 %v6596
  %v6745 = vunpack.c.l.b16 %v6597
  %v6746 = vunpack.c.l.b16 %v6598
  %v6747 = vunpack.c.l.b16 %v6599
  %v6748 = vunpack.c.l.b16 %v6600
  %v6749 = vunpack.c.l.b16 %v6601
  %v6750 = vunpack.c.l.b16 %v6602
  %v6751 = vunpack.c.l.b16 %v6603
  %v6752 = vunpack.c.l.b16 %v6604
  %v6753 = vunpack.c.l.b16 %v6605
  %v6754 = vunpack.c.l.b16 %v6606
  %v6755 = vunpack.c.l.b16 %v6607
  %v6756 = vunpack.c.l.b16 %v6608
  %v6757 = vunpack.c.l.b16 %v6609
  %v6758 = vunpack.c.l.b16 %v6610
  %v6759 = vunpack.c.l.b16 %v6611
  %v6760 = vunpack.c.l.b16 %v6612
  %v6761 = vunpack.c.l.b16 %v6613
  %v6762 = vpack.c.b16 %v6699, %v6698
  %v6763 = vpack.c.b16 %v6701, %v6700
  %v6764 = vpack.c.b16 %v6703, %v6702
  %v6765 = vpack.c.b16 %v6705, %v6704
  %v6766 = vpack.c.b16 %v6707, %v6706
  %v6767 = vpack.c.b16 %v6709, %v6708
  %v6768 = vpack.c.b16 %v6711, %v6710
  %v6769 = vpack.c.b16 %v6713, %v6712
  %v6770 = vpack.c.b16 %v6715, %v6714
  %v6771 = vpack.c.b16 %v6717, %v6716
  %v6772 = vpack.c.b16 %v6719, %v6718
  %v6773 = vpack.c.b16 %v6721, %v6720
  %v6774 = vpack.c.b16 %v6723, %v6722
  %v6775 = vpack.c.b16 %v6725, %v6724
  %v6776 = vpack.c.b16 %v6727, %v6726
  %v6777 = vpack.c.b16 %v6729, %v6728
  %v6778 = vpack.c.b16 %v6731, %v6730
  %v6779 = vpack.c.b16 %v6733, %v6732
  %v6780 = vpack.c.b16 %v6735, %v6734
  %v6781 = vpack.c.b16 %v6737, %v6736
  %v6782 = vpack.c.b16 %v6739, %v6738
  %v6783 = vpack.c.b16 %v6741, %v6740
  %v6784 = vpack.c.b16 %v6743, %v6742
  %v6785 = vpack.c.b16 %v6745, %v6744
  %v6786 = vpack.c.b16 %v6747, %v6746
  %v6787 = vpack.c.b16 %v6749, %v6748
  %v6788 = vpack.c.b16 %v6751, %v6750
  %v6789 = vpack.c.b16 %v6753, %v6752
  %v6790 = vpack.c.b16 %v6755, %v6754
  %v6791 = vpack.c.b16 %v6757, %v6756
  %v6792 = vpack.c.b16 %v6759, %v6758
  %v6793 = vpack.c.b16 %v6761, %v6760
  %6826 = vmatprep.subr.bf16.mxu0 0
  %6827 = vmatpush1.bf16.msra.mxu0 %v6762
  %6828 = vmatprep.subr.bf16.mxu0 0
  %6829 = vmatpush1.bf16.msra.mxu0 %v6763
  %6830 = vmatprep.subr.bf16.mxu0 0
  %6831 = vmatpush1.bf16.msra.mxu0 %v6764
  %6832 = vmatprep.subr.bf16.mxu0 0
  %6833 = vmatpush1.bf16.msra.mxu0 %v6765
  %6834 = vmatprep.subr.bf16.mxu0 0
  %6835 = vmatpush1.bf16.msra.mxu0 %v6766
  %6836 = vmatprep.subr.bf16.mxu0 0
  %6837 = vmatpush1.bf16.msra.mxu0 %v6767
  %6838 = vmatprep.subr.bf16.mxu0 0
  %6839 = vmatpush1.bf16.msra.mxu0 %v6768
  %6840 = vmatprep.subr.bf16.mxu0 0
  %6841 = vmatpush1.bf16.msra.mxu0 %v6769
  %6842 = vmatprep.subr.bf16.mxu0 0
  %6843 = vmatpush1.bf16.msra.mxu0 %v6770
  %6844 = vmatprep.subr.bf16.mxu0 0
  %6845 = vmatpush1.bf16.msra.mxu0 %v6771
  %6846 = vmatprep.subr.bf16.mxu0 0
  %6847 = vmatpush1.bf16.msra.mxu0 %v6772
  %6848 = vmatprep.subr.bf16.mxu0 0
  %6849 = vmatpush1.bf16.msra.mxu0 %v6773
  %6850 = vmatprep.subr.bf16.mxu0 0
  %6851 = vmatpush1.bf16.msra.mxu0 %v6774
  %6852 = vmatprep.subr.bf16.mxu0 0
  %6853 = vmatpush1.bf16.msra.mxu0 %v6775
  %6854 = vmatprep.subr.bf16.mxu0 0
  %6855 = vmatpush1.bf16.msra.mxu0 %v6776
  %6856 = vmatprep.subr.bf16.mxu0 0
  %6857 = vmatpush1.bf16.msra.mxu0 %v6777
  %6858 = vmatprep.mubr.bf16.mxu0 %v6621
  %6859 = vmatmul.mubr.bf16.gmra.mrb[0].mxu0 %v6617
  %v6860 = vpop.f32.mrb[0].mxu0
  %v6861 = vadd.f32 0.0, %v6860
  %v6862 = vpop.f32.mrb[0].mxu0
  %v6863 = vpop.f32.mrb[0].mxu0
  %v6864 = vpop.f32.mrb[0].mxu0
  %6865 = vdwg.mxu0
  %6866 = vmatprep.subr.bf16.mxu0 0
  %6867 = vmatpush1.bf16.msra.mxu0 %v6778
  %6868 = vmatprep.subr.bf16.mxu0 0
  %6869 = vmatpush1.bf16.msra.mxu0 %v6779
  %6870 = vmatprep.subr.bf16.mxu0 0
  %6871 = vmatpush1.bf16.msra.mxu0 %v6780
  %6872 = vmatprep.subr.bf16.mxu0 0
  %6873 = vmatpush1.bf16.msra.mxu0 %v6781
  %6874 = vmatprep.subr.bf16.mxu0 0
  %6875 = vmatpush1.bf16.msra.mxu0 %v6782
  %6876 = vmatprep.subr.bf16.mxu0 0
  %6877 = vmatpush1.bf16.msra.mxu0 %v6783
  %6878 = vmatprep.subr.bf16.mxu0 0
  %6879 = vmatpush1.bf16.msra.mxu0 %v6784
  %6880 = vmatprep.subr.bf16.mxu0 0
  %6881 = vmatpush1.bf16.msra.mxu0 %v6785
  %6882 = vmatprep.subr.bf16.mxu0 0
  %6883 = vmatpush1.bf16.msra.mxu0 %v6786
  %6884 = vmatprep.subr.bf16.mxu0 0
  %6885 = vmatpush1.bf16.msra.mxu0 %v6787
  %6886 = vmatprep.subr.bf16.mxu0 0
  %6887 = vmatpush1.bf16.msra.mxu0 %v6788
  %6888 = vmatprep.subr.bf16.mxu0 0
  %6889 = vmatpush1.bf16.msra.mxu0 %v6789
  %6890 = vmatprep.subr.bf16.mxu0 0
  %6891 = vmatpush1.bf16.msra.mxu0 %v6790
  %6892 = vmatprep.subr.bf16.mxu0 0
  %6893 = vmatpush1.bf16.msra.mxu0 %v6791
  %6894 = vmatprep.subr.bf16.mxu0 0
  %6895 = vmatpush1.bf16.msra.mxu0 %v6792
  %6896 = vmatprep.subr.bf16.mxu0 0
  %6897 = vmatpush1.bf16.msra.mxu0 %v6793
  %6898 = vmatprep.mubr.bf16.mxu0 %v6629
  %6899 = vmatmul.mubr.bf16.gmra.mrb[0].mxu0 %v6625
  %v6900 = vpop.f32.mrb[0].mxu0
  %v6901 = vadd.f32 %v6861, %v6900
  %v6902 = vpop.f32.mrb[0].mxu0
  %v6903 = vpop.f32.mrb[0].mxu0
  %v6904 = vpop.f32.mrb[0].mxu0
  %6905 = vdwg.mxu0
  %s6906 = scalar_lea.vmem %s16, 256
  %v6907 = vld [vmem:[%s6906] sm:$0xf]
  %v6908 = vld [vmem:[%s6906 + $0x4] sm:$0xf]
  %v6909 = vld [vmem:[%s6906 + $0x8] sm:$0xf]
  %v6910 = vld [vmem:[%s6906 + $0xc] sm:$0xf]
  %v6911 = vld [vmem:[%s6906 + $0x10] sm:$0xf]
  %v6912 = vld [vmem:[%s6906 + $0x14] sm:$0xf]
  %v6913 = vld [vmem:[%s6906 + $0x18] sm:$0xf]
  %v6914 = vld [vmem:[%s6906 + $0x1c] sm:$0xf]
  %v6915 = vld [vmem:[%s6906 + $0x20] sm:$0xf]
  %v6916 = vld [vmem:[%s6906 + $0x24] sm:$0xf]
  %v6917 = vld [vmem:[%s6906 + $0x28] sm:$0xf]
  %v6918 = vld [vmem:[%s6906 + $0x2c] sm:$0xf]
  %v6919 = vld [vmem:[%s6906 + $0x30] sm:$0xf]
  %v6920 = vld [vmem:[%s6906 + $0x34] sm:$0xf]
  %v6921 = vld [vmem:[%s6906 + $0x38] sm:$0xf]
  %v6922 = vld [vmem:[%s6906 + $0x3c] sm:$0xf]
  %v6923 = vld [vmem:[%s6906 + $0x40] sm:$0xf]
  %v6924 = vld [vmem:[%s6906 + $0x44] sm:$0xf]
  %v6925 = vld [vmem:[%s6906 + $0x48] sm:$0xf]
  %v6926 = vld [vmem:[%s6906 + $0x4c] sm:$0xf]
  %v6927 = vld [vmem:[%s6906 + $0x50] sm:$0xf]
  %v6928 = vld [vmem:[%s6906 + $0x54] sm:$0xf]
  %v6929 = vld [vmem:[%s6906 + $0x58] sm:$0xf]
  %v6930 = vld [vmem:[%s6906 + $0x5c] sm:$0xf]
  %v6931 = vld [vmem:[%s6906 + $0x60] sm:$0xf]
  %v6932 = vld [vmem:[%s6906 + $0x64] sm:$0xf]
  %v6933 = vld [vmem:[%s6906 + $0x68] sm:$0xf]
  %v6934 = vld [vmem:[%s6906 + $0x6c] sm:$0xf]
  %v6935 = vld [vmem:[%s6906 + $0x70] sm:$0xf]
  %v6936 = vld [vmem:[%s6906 + $0x74] sm:$0xf]
  %v6937 = vld [vmem:[%s6906 + $0x78] sm:$0xf]
  %v6938 = vld [vmem:[%s6906 + $0x7c] sm:$0xf]
  %v6939 = vld [vmem:[%s6906 + $0x80] sm:$0xf]
  %v6940 = vld [vmem:[%s6906 + $0x84] sm:$0xf]
  %v6941 = vld [vmem:[%s6906 + $0x88] sm:$0xf]
  %v6942 = vld [vmem:[%s6906 + $0x8c] sm:$0xf]
  %v6943 = vld [vmem:[%s6906 + $0x90] sm:$0xf]
  %v6944 = vld [vmem:[%s6906 + $0x94] sm:$0xf]
  %v6945 = vld [vmem:[%s6906 + $0x98] sm:$0xf]
  %v6946 = vld [vmem:[%s6906 + $0x9c] sm:$0xf]
  %v6947 = vld [vmem:[%s6906 + $0xa0] sm:$0xf]
  %v6948 = vld [vmem:[%s6906 + $0xa4] sm:$0xf]
  %v6949 = vld [vmem:[%s6906 + $0xa8] sm:$0xf]
  %v6950 = vld [vmem:[%s6906 + $0xac] sm:$0xf]
  %v6951 = vld [vmem:[%s6906 + $0xb0] sm:$0xf]
  %v6952 = vld [vmem:[%s6906 + $0xb4] sm:$0xf]
  %v6953 = vld [vmem:[%s6906 + $0xb8] sm:$0xf]
  %v6954 = vld [vmem:[%s6906 + $0xbc] sm:$0xf]
  %v6955 = vld [vmem:[%s6906 + $0xc0] sm:$0xf]
  %v6956 = vld [vmem:[%s6906 + $0xc4] sm:$0xf]
  %v6957 = vld [vmem:[%s6906 + $0xc8] sm:$0xf]
  %v6958 = vld [vmem:[%s6906 + $0xcc] sm:$0xf]
  %v6959 = vld [vmem:[%s6906 + $0xd0] sm:$0xf]
  %v6960 = vld [vmem:[%s6906 + $0xd4] sm:$0xf]
  %v6961 = vld [vmem:[%s6906 + $0xd8] sm:$0xf]
  %v6962 = vld [vmem:[%s6906 + $0xdc] sm:$0xf]
  %v6963 = vld [vmem:[%s6906 + $0xe0] sm:$0xf]
  %v6964 = vld [vmem:[%s6906 + $0xe4] sm:$0xf]
  %v6965 = vld [vmem:[%s6906 + $0xe8] sm:$0xf]
  %v6966 = vld [vmem:[%s6906 + $0xec] sm:$0xf]
  %v6967 = vld [vmem:[%s6906 + $0xf0] sm:$0xf]
  %v6968 = vld [vmem:[%s6906 + $0xf4] sm:$0xf]
  %v6969 = vld [vmem:[%s6906 + $0xf8] sm:$0xf]
  %v6970 = vld [vmem:[%s6906 + $0xfc] sm:$0xf]
  %v6975 = vrot.slane %v6546, 2
  %v6976 = vrot.slane %v6547, 2
  %v6977 = vrot.slane %v6548, 2
  %v6978 = vrot.slane %v6549, 2
  %v7047 = vunpack.c.l.b16 %v6907
  %v7048 = vunpack.c.l.b16 %v6908
  %v7049 = vunpack.c.l.b16 %v6909
  %v7050 = vunpack.c.l.b16 %v6910
  %v7051 = vunpack.c.l.b16 %v6911
  %v7052 = vunpack.c.l.b16 %v6912
  %v7053 = vunpack.c.l.b16 %v6913
  %v7054 = vunpack.c.l.b16 %v6914
  %v7055 = vunpack.c.l.b16 %v6915
  %v7056 = vunpack.c.l.b16 %v6916
  %v7057 = vunpack.c.l.b16 %v6917
  %v7058 = vunpack.c.l.b16 %v6918
  %v7059 = vunpack.c.l.b16 %v6919
  %v7060 = vunpack.c.l.b16 %v6920
  %v7061 = vunpack.c.l.b16 %v6921
  %v7062 = vunpack.c.l.b16 %v6922
  %v7063 = vunpack.c.l.b16 %v6923
  %v7064 = vunpack.c.l.b16 %v6924
  %v7065 = vunpack.c.l.b16 %v6925
  %v7066 = vunpack.c.l.b16 %v6926
  %v7067 = vunpack.c.l.b16 %v6927
  %v7068 = vunpack.c.l.b16 %v6928
  %v7069 = vunpack.c.l.b16 %v6929
  %v7070 = vunpack.c.l.b16 %v6930
  %v7071 = vunpack.c.l.b16 %v6931
  %v7072 = vunpack.c.l.b16 %v6932
  %v7073 = vunpack.c.l.b16 %v6933
  %v7074 = vunpack.c.l.b16 %v6934
  %v7075 = vunpack.c.l.b16 %v6935
  %v7076 = vunpack.c.l.b16 %v6936
  %v7077 = vunpack.c.l.b16 %v6937
  %v7078 = vunpack.c.l.b16 %v6938
  %v7079 = vunpack.c.l.b16 %v6939
  %v7080 = vunpack.c.l.b16 %v6940
  %v7081 = vunpack.c.l.b16 %v6941
  %v7082 = vunpack.c.l.b16 %v6942
  %v7083 = vunpack.c.l.b16 %v6943
  %v7084 = vunpack.c.l.b16 %v6944
  %v7085 = vunpack.c.l.b16 %v6945
  %v7086 = vunpack.c.l.b16 %v6946
  %v7087 = vunpack.c.l.b16 %v6947
  %v7088 = vunpack.c.l.b16 %v6948
  %v7089 = vunpack.c.l.b16 %v6949
  %v7090 = vunpack.c.l.b16 %v6950
  %v7091 = vunpack.c.l.b16 %v6951
  %v7092 = vunpack.c.l.b16 %v6952
  %v7093 = vunpack.c.l.b16 %v6953
  %v7094 = vunpack.c.l.b16 %v6954
  %v7095 = vunpack.c.l.b16 %v6955
  %v7096 = vunpack.c.l.b16 %v6956
  %v7097 = vunpack.c.l.b16 %v6957
  %v7098 = vunpack.c.l.b16 %v6958
  %v7099 = vunpack.c.l.b16 %v6959
  %v7100 = vunpack.c.l.b16 %v6960
  %v7101 = vunpack.c.l.b16 %v6961
  %v7102 = vunpack.c.l.b16 %v6962
  %v7103 = vunpack.c.l.b16 %v6963
  %v7104 = vunpack.c.l.b16 %v6964
  %v7105 = vunpack.c.l.b16 %v6965
  %v7106 = vunpack.c.l.b16 %v6966
  %v7107 = vunpack.c.l.b16 %v6967
  %v7108 = vunpack.c.l.b16 %v6968
  %v7109 = vunpack.c.l.b16 %v6969
  %v7110 = vunpack.c.l.b16 %v6970
  %v7111 = vpack.c.b16 %v7048, %v7047
  %v7112 = vpack.c.b16 %v7050, %v7049
  %v7113 = vpack.c.b16 %v7052, %v7051
  %v7114 = vpack.c.b16 %v7054, %v7053
  %v7115 = vpack.c.b16 %v7056, %v7055
  %v7116 = vpack.c.b16 %v7058, %v7057
  %v7117 = vpack.c.b16 %v7060, %v7059
  %v7118 = vpack.c.b16 %v7062, %v7061
  %v7119 = vpack.c.b16 %v7064, %v7063
  %v7120 = vpack.c.b16 %v7066, %v7065
  %v7121 = vpack.c.b16 %v7068, %v7067
  %v7122 = vpack.c.b16 %v7070, %v7069
  %v7123 = vpack.c.b16 %v7072, %v7071
  %v7124 = vpack.c.b16 %v7074, %v7073
  %v7125 = vpack.c.b16 %v7076, %v7075
  %v7126 = vpack.c.b16 %v7078, %v7077
  %v7127 = vpack.c.b16 %v7080, %v7079
  %v7128 = vpack.c.b16 %v7082, %v7081
  %v7129 = vpack.c.b16 %v7084, %v7083
  %v7130 = vpack.c.b16 %v7086, %v7085
  %v7131 = vpack.c.b16 %v7088, %v7087
  %v7132 = vpack.c.b16 %v7090, %v7089
  %v7133 = vpack.c.b16 %v7092, %v7091
  %v7134 = vpack.c.b16 %v7094, %v7093
  %v7135 = vpack.c.b16 %v7096, %v7095
  %v7136 = vpack.c.b16 %v7098, %v7097
  %v7137 = vpack.c.b16 %v7100, %v7099
  %v7138 = vpack.c.b16 %v7102, %v7101
  %v7139 = vpack.c.b16 %v7104, %v7103
  %v7140 = vpack.c.b16 %v7106, %v7105
  %v7141 = vpack.c.b16 %v7108, %v7107
  %v7142 = vpack.c.b16 %v7110, %v7109
  %7175 = vmatprep.subr.bf16.mxu0 0
  %7176 = vmatpush1.bf16.msra.mxu0 %v7111
  %7177 = vmatprep.subr.bf16.mxu0 0
  %7178 = vmatpush1.bf16.msra.mxu0 %v7112
  %7179 = vmatprep.subr.bf16.mxu0 0
  %7180 = vmatpush1.bf16.msra.mxu0 %v7113
  %7181 = vmatprep.subr.bf16.mxu0 0
  %7182 = vmatpush1.bf16.msra.mxu0 %v7114
  %7183 = vmatprep.subr.bf16.mxu0 0
  %7184 = vmatpush1.bf16.msra.mxu0 %v7115
  %7185 = vmatprep.subr.bf16.mxu0 0
  %7186 = vmatpush1.bf16.msra.mxu0 %v7116
  %7187 = vmatprep.subr.bf16.mxu0 0
  %7188 = vmatpush1.bf16.msra.mxu0 %v7117
  %7189 = vmatprep.subr.bf16.mxu0 0
  %7190 = vmatpush1.bf16.msra.mxu0 %v7118
  %7191 = vmatprep.subr.bf16.mxu0 0
  %7192 = vmatpush1.bf16.msra.mxu0 %v7119
  %7193 = vmatprep.subr.bf16.mxu0 0
  %7194 = vmatpush1.bf16.msra.mxu0 %v7120
  %7195 = vmatprep.subr.bf16.mxu0 0
  %7196 = vmatpush1.bf16.msra.mxu0 %v7121
  %7197 = vmatprep.subr.bf16.mxu0 0
  %7198 = vmatpush1.bf16.msra.mxu0 %v7122
  %7199 = vmatprep.subr.bf16.mxu0 0
  %7200 = vmatpush1.bf16.msra.mxu0 %v7123
  %7201 = vmatprep.subr.bf16.mxu0 0
  %7202 = vmatpush1.bf16.msra.mxu0 %v7124
  %7203 = vmatprep.subr.bf16.mxu0 0
  %7204 = vmatpush1.bf16.msra.mxu0 %v7125
  %7205 = vmatprep.subr.bf16.mxu0 0
  %7206 = vmatpush1.bf16.msra.mxu0 %v7126
  %7207 = vmatprep.mubr.bf16.mxu0 %v6976
  %7208 = vmatmul.mubr.bf16.gmra.mrb[0].mxu0 %v6975
  %v7209 = vpop.f32.mrb[0].mxu0
  %v7210 = vadd.f32 0.0, %v7209
  %v7211 = vpop.f32.mrb[0].mxu0
  %v7212 = vpop.f32.mrb[0].mxu0
  %v7213 = vpop.f32.mrb[0].mxu0
  %7214 = vdwg.mxu0
  %7215 = vmatprep.subr.bf16.mxu0 0
  %7216 = vmatpush1.bf16.msra.mxu0 %v7127
  %7217 = vmatprep.subr.bf16.mxu0 0
  %7218 = vmatpush1.bf16.msra.mxu0 %v7128
  %7219 = vmatprep.subr.bf16.mxu0 0
  %7220 = vmatpush1.bf16.msra.mxu0 %v7129
  %7221 = vmatprep.subr.bf16.mxu0 0
  %7222 = vmatpush1.bf16.msra.mxu0 %v7130
  %7223 = vmatprep.subr.bf16.mxu0 0
  %7224 = vmatpush1.bf16.msra.mxu0 %v7131
  %7225 = vmatprep.subr.bf16.mxu0 0
  %7226 = vmatpush1.bf16.msra.mxu0 %v7132
  %7227 = vmatprep.subr.bf16.mxu0 0
  %7228 = vmatpush1.bf16.msra.mxu0 %v7133
  %7229 = vmatprep.subr.bf16.mxu0 0
  %7230 = vmatpush1.bf16.msra.mxu0 %v7134
  %7231 = vmatprep.subr.bf16.mxu0 0
  %7232 = vmatpush1.bf16.msra.mxu0 %v7135
  %7233 = vmatprep.subr.bf16.mxu0 0
  %7234 = vmatpush1.bf16.msra.mxu0 %v7136
  %7235 = vmatprep.subr.bf16.mxu0 0
  %7236 = vmatpush1.bf16.msra.mxu0 %v7137
  %7237 = vmatprep.subr.bf16.mxu0 0
  %7238 = vmatpush1.bf16.msra.mxu0 %v7138
  %7239 = vmatprep.subr.bf16.mxu0 0
  %7240 = vmatpush1.bf16.msra.mxu0 %v7139
  %7241 = vmatprep.subr.bf16.mxu0 0
  %7242 = vmatpush1.bf16.msra.mxu0 %v7140
  %7243 = vmatprep.subr.bf16.mxu0 0
  %7244 = vmatpush1.bf16.msra.mxu0 %v7141
  %7245 = vmatprep.subr.bf16.mxu0 0
  %7246 = vmatpush1.bf16.msra.mxu0 %v7142
  %7247 = vmatprep.mubr.bf16.mxu0 %v6978
  %7248 = vmatmul.mubr.bf16.gmra.mrb[0].mxu0 %v6977
  %v7249 = vpop.f32.mrb[0].mxu0
  %v7250 = vadd.f32 %v7210, %v7249
  %v7251 = vpop.f32.mrb[0].mxu0
  %v7252 = vpop.f32.mrb[0].mxu0
  %v7253 = vpop.f32.mrb[0].mxu0
  %7254 = vdwg.mxu0
  %s7255 = scalar_lea.vmem %s16, 512
  %v7256 = vld [vmem:[%s7255] sm:$0xf]
  %v7257 = vld [vmem:[%s7255 + $0x4] sm:$0xf]
  %v7258 = vld [vmem:[%s7255 + $0x8] sm:$0xf]
  %v7259 = vld [vmem:[%s7255 + $0xc] sm:$0xf]
  %v7260 = vld [vmem:[%s7255 + $0x10] sm:$0xf]
  %v7261 = vld [vmem:[%s7255 + $0x14] sm:$0xf]
  %v7262 = vld [vmem:[%s7255 + $0x18] sm:$0xf]
  %v7263 = vld [vmem:[%s7255 + $0x1c] sm:$0xf]
  %v7264 = vld [vmem:[%s7255 + $0x20] sm:$0xf]
  %v7265 = vld [vmem:[%s7255 + $0x24] sm:$0xf]
  %v7266 = vld [vmem:[%s7255 + $0x28] sm:$0xf]
  %v7267 = vld [vmem:[%s7255 + $0x2c] sm:$0xf]
  %v7268 = vld [vmem:[%s7255 + $0x30] sm:$0xf]
  %v7269 = vld [vmem:[%s7255 + $0x34] sm:$0xf]
  %v7270 = vld [vmem:[%s7255 + $0x38] sm:$0xf]
  %v7271 = vld [vmem:[%s7255 + $0x3c] sm:$0xf]
  %v7272 = vld [vmem:[%s7255 + $0x40] sm:$0xf]
  %v7273 = vld [vmem:[%s7255 + $0x44] sm:$0xf]
  %v7274 = vld [vmem:[%s7255 + $0x48] sm:$0xf]
  %v7275 = vld [vmem:[%s7255 + $0x4c] sm:$0xf]
  %v7276 = vld [vmem:[%s7255 + $0x50] sm:$0xf]
  %v7277 = vld [vmem:[%s7255 + $0x54] sm:$0xf]
  %v7278 = vld [vmem:[%s7255 + $0x58] sm:$0xf]
  %v7279 = vld [vmem:[%s7255 + $0x5c] sm:$0xf]
  %v7280 = vld [vmem:[%s7255 + $0x60] sm:$0xf]
  %v7281 = vld [vmem:[%s7255 + $0x64] sm:$0xf]
  %v7282 = vld [vmem:[%s7255 + $0x68] sm:$0xf]
  %v7283 = vld [vmem:[%s7255 + $0x6c] sm:$0xf]
  %v7284 = vld [vmem:[%s7255 + $0x70] sm:$0xf]
  %v7285 = vld [vmem:[%s7255 + $0x74] sm:$0xf]
  %v7286 = vld [vmem:[%s7255 + $0x78] sm:$0xf]
  %v7287 = vld [vmem:[%s7255 + $0x7c] sm:$0xf]
  %v7288 = vld [vmem:[%s7255 + $0x80] sm:$0xf]
  %v7289 = vld [vmem:[%s7255 + $0x84] sm:$0xf]
  %v7290 = vld [vmem:[%s7255 + $0x88] sm:$0xf]
  %v7291 = vld [vmem:[%s7255 + $0x8c] sm:$0xf]
  %v7292 = vld [vmem:[%s7255 + $0x90] sm:$0xf]
  %v7293 = vld [vmem:[%s7255 + $0x94] sm:$0xf]
  %v7294 = vld [vmem:[%s7255 + $0x98] sm:$0xf]
  %v7295 = vld [vmem:[%s7255 + $0x9c] sm:$0xf]
  %v7296 = vld [vmem:[%s7255 + $0xa0] sm:$0xf]
  %v7297 = vld [vmem:[%s7255 + $0xa4] sm:$0xf]
  %v7298 = vld [vmem:[%s7255 + $0xa8] sm:$0xf]
  %v7299 = vld [vmem:[%s7255 + $0xac] sm:$0xf]
  %v7300 = vld [vmem:[%s7255 + $0xb0] sm:$0xf]
  %v7301 = vld [vmem:[%s7255 + $0xb4] sm:$0xf]
  %v7302 = vld [vmem:[%s7255 + $0xb8] sm:$0xf]
  %v7303 = vld [vmem:[%s7255 + $0xbc] sm:$0xf]
  %v7304 = vld [vmem:[%s7255 + $0xc0] sm:$0xf]
  %v7305 = vld [vmem:[%s7255 + $0xc4] sm:$0xf]
  %v7306 = vld [vmem:[%s7255 + $0xc8] sm:$0xf]
  %v7307 = vld [vmem:[%s7255 + $0xcc] sm:$0xf]
  %v7308 = vld [vmem:[%s7255 + $0xd0] sm:$0xf]
  %v7309 = vld [vmem:[%s7255 + $0xd4] sm:$0xf]
  %v7310 = vld [vmem:[%s7255 + $0xd8] sm:$0xf]
  %v7311 = vld [vmem:[%s7255 + $0xdc] sm:$0xf]
  %v7312 = vld [vmem:[%s7255 + $0xe0] sm:$0xf]
  %v7313 = vld [vmem:[%s7255 + $0xe4] sm:$0xf]
  %v7314 = vld [vmem:[%s7255 + $0xe8] sm:$0xf]
  %v7315 = vld [vmem:[%s7255 + $0xec] sm:$0xf]
  %v7316 = vld [vmem:[%s7255 + $0xf0] sm:$0xf]
  %v7317 = vld [vmem:[%s7255 + $0xf4] sm:$0xf]
  %v7318 = vld [vmem:[%s7255 + $0xf8] sm:$0xf]
  %v7319 = vld [vmem:[%s7255 + $0xfc] sm:$0xf]
  %v7388 = vunpack.c.l.b16 %v7256
  %v7389 = vunpack.c.l.b16 %v7257
  %v7390 = vunpack.c.l.b16 %v7258
  %v7391 = vunpack.c.l.b16 %v7259
  %v7392 = vunpack.c.l.b16 %v7260
  %v7393 = vunpack.c.l.b16 %v7261
  %v7394 = vunpack.c.l.b16 %v7262
  %v7395 = vunpack.c.l.b16 %v7263
  %v7396 = vunpack.c.l.b16 %v7264
  %v7397 = vunpack.c.l.b16 %v7265
  %v7398 = vunpack.c.l.b16 %v7266
  %v7399 = vunpack.c.l.b16 %v7267
  %v7400 = vunpack.c.l.b16 %v7268
  %v7401 = vunpack.c.l.b16 %v7269
  %v7402 = vunpack.c.l.b16 %v7270
  %v7403 = vunpack.c.l.b16 %v7271
  %v7404 = vunpack.c.l.b16 %v7272
  %v7405 = vunpack.c.l.b16 %v7273
  %v7406 = vunpack.c.l.b16 %v7274
  %v7407 = vunpack.c.l.b16 %v7275
  %v7408 = vunpack.c.l.b16 %v7276
  %v7409 = vunpack.c.l.b16 %v7277
  %v7410 = vunpack.c.l.b16 %v7278
  %v7411 = vunpack.c.l.b16 %v7279
  %v7412 = vunpack.c.l.b16 %v7280
  %v7413 = vunpack.c.l.b16 %v7281
  %v7414 = vunpack.c.l.b16 %v7282
  %v7415 = vunpack.c.l.b16 %v7283
  %v7416 = vunpack.c.l.b16 %v7284
  %v7417 = vunpack.c.l.b16 %v7285
  %v7418 = vunpack.c.l.b16 %v7286
  %v7419 = vunpack.c.l.b16 %v7287
  %v7420 = vunpack.c.l.b16 %v7288
  %v7421 = vunpack.c.l.b16 %v7289
  %v7422 = vunpack.c.l.b16 %v7290
  %v7423 = vunpack.c.l.b16 %v7291
  %v7424 = vunpack.c.l.b16 %v7292
  %v7425 = vunpack.c.l.b16 %v7293
  %v7426 = vunpack.c.l.b16 %v7294
  %v7427 = vunpack.c.l.b16 %v7295
  %v7428 = vunpack.c.l.b16 %v7296
  %v7429 = vunpack.c.l.b16 %v7297
  %v7430 = vunpack.c.l.b16 %v7298
  %v7431 = vunpack.c.l.b16 %v7299
  %v7432 = vunpack.c.l.b16 %v7300
  %v7433 = vunpack.c.l.b16 %v7301
  %v7434 = vunpack.c.l.b16 %v7302
  %v7435 = vunpack.c.l.b16 %v7303
  %v7436 = vunpack.c.l.b16 %v7304
  %v7437 = vunpack.c.l.b16 %v7305
  %v7438 = vunpack.c.l.b16 %v7306
  %v7439 = vunpack.c.l.b16 %v7307
  %v7440 = vunpack.c.l.b16 %v7308
  %v7441 = vunpack.c.l.b16 %v7309
  %v7442 = vunpack.c.l.b16 %v7310
  %v7443 = vunpack.c.l.b16 %v7311
  %v7444 = vunpack.c.l.b16 %v7312
  %v7445 = vunpack.c.l.b16 %v7313
  %v7446 = vunpack.c.l.b16 %v7314
  %v7447 = vunpack.c.l.b16 %v7315
  %v7448 = vunpack.c.l.b16 %v7316
  %v7449 = vunpack.c.l.b16 %v7317
  %v7450 = vunpack.c.l.b16 %v7318
  %v7451 = vunpack.c.l.b16 %v7319
  %v7452 = vpack.c.b16 %v7389, %v7388
  %v7453 = vpack.c.b16 %v7391, %v7390
  %v7454 = vpack.c.b16 %v7393, %v7392
  %v7455 = vpack.c.b16 %v7395, %v7394
  %v7456 = vpack.c.b16 %v7397, %v7396
  %v7457 = vpack.c.b16 %v7399, %v7398
  %v7458 = vpack.c.b16 %v7401, %v7400
  %v7459 = vpack.c.b16 %v7403, %v7402
  %v7460 = vpack.c.b16 %v7405, %v7404
  %v7461 = vpack.c.b16 %v7407, %v7406
  %v7462 = vpack.c.b16 %v7409, %v7408
  %v7463 = vpack.c.b16 %v7411, %v7410
  %v7464 = vpack.c.b16 %v7413, %v7412
  %v7465 = vpack.c.b16 %v7415, %v7414
  %v7466 = vpack.c.b16 %v7417, %v7416
  %v7467 = vpack.c.b16 %v7419, %v7418
  %v7468 = vpack.c.b16 %v7421, %v7420
  %v7469 = vpack.c.b16 %v7423, %v7422
  %v7470 = vpack.c.b16 %v7425, %v7424
  %v7471 = vpack.c.b16 %v7427, %v7426
  %v7472 = vpack.c.b16 %v7429, %v7428
  %v7473 = vpack.c.b16 %v7431, %v7430
  %v7474 = vpack.c.b16 %v7433, %v7432
  %v7475 = vpack.c.b16 %v7435, %v7434
  %v7476 = vpack.c.b16 %v7437, %v7436
  %v7477 = vpack.c.b16 %v7439, %v7438
  %v7478 = vpack.c.b16 %v7441, %v7440
  %v7479 = vpack.c.b16 %v7443, %v7442
  %v7480 = vpack.c.b16 %v7445, %v7444
  %v7481 = vpack.c.b16 %v7447, %v7446
  %v7482 = vpack.c.b16 %v7449, %v7448
  %v7483 = vpack.c.b16 %v7451, %v7450
  %7516 = vmatprep.subr.bf16.mxu0 0
  %7517 = vmatpush1.bf16.msra.mxu0 %v7452
  %7518 = vmatprep.subr.bf16.mxu0 0
  %7519 = vmatpush1.bf16.msra.mxu0 %v7453
  %7520 = vmatprep.subr.bf16.mxu0 0
  %7521 = vmatpush1.bf16.msra.mxu0 %v7454
  %7522 = vmatprep.subr.bf16.mxu0 0
  %7523 = vmatpush1.bf16.msra.mxu0 %v7455
  %7524 = vmatprep.subr.bf16.mxu0 0
  %7525 = vmatpush1.bf16.msra.mxu0 %v7456
  %7526 = vmatprep.subr.bf16.mxu0 0
  %7527 = vmatpush1.bf16.msra.mxu0 %v7457
  %7528 = vmatprep.subr.bf16.mxu0 0
  %7529 = vmatpush1.bf16.msra.mxu0 %v7458
  %7530 = vmatprep.subr.bf16.mxu0 0
  %7531 = vmatpush1.bf16.msra.mxu0 %v7459
  %7532 = vmatprep.subr.bf16.mxu0 0
  %7533 = vmatpush1.bf16.msra.mxu0 %v7460
  %7534 = vmatprep.subr.bf16.mxu0 0
  %7535 = vmatpush1.bf16.msra.mxu0 %v7461
  %7536 = vmatprep.subr.bf16.mxu0 0
  %7537 = vmatpush1.bf16.msra.mxu0 %v7462
  %7538 = vmatprep.subr.bf16.mxu0 0
  %7539 = vmatpush1.bf16.msra.mxu0 %v7463
  %7540 = vmatprep.subr.bf16.mxu0 0
  %7541 = vmatpush1.bf16.msra.mxu0 %v7464
  %7542 = vmatprep.subr.bf16.mxu0 0
  %7543 = vmatpush1.bf16.msra.mxu0 %v7465
  %7544 = vmatprep.subr.bf16.mxu0 0
  %7545 = vmatpush1.bf16.msra.mxu0 %v7466
  %7546 = vmatprep.subr.bf16.mxu0 0
  %7547 = vmatpush1.bf16.msra.mxu0 %v7467
  %7548 = vmatprep.mubr.bf16.mxu0 %v6619
  %7549 = vmatmul.mubr.bf16.gmra.mrb[0].mxu0 %v6615
  %v7550 = vpop.f32.mrb[0].mxu0
  %v7551 = vadd.f32 0.0, %v7550
  %v7552 = vpop.f32.mrb[0].mxu0
  %v7553 = vpop.f32.mrb[0].mxu0
  %v7554 = vpop.f32.mrb[0].mxu0
  %7555 = vdwg.mxu0
  %7556 = vmatprep.subr.bf16.mxu0 0
  %7557 = vmatpush1.bf16.msra.mxu0 %v7468
  %7558 = vmatprep.subr.bf16.mxu0 0
  %7559 = vmatpush1.bf16.msra.mxu0 %v7469
  %7560 = vmatprep.subr.bf16.mxu0 0
  %7561 = vmatpush1.bf16.msra.mxu0 %v7470
  %7562 = vmatprep.subr.bf16.mxu0 0
  %7563 = vmatpush1.bf16.msra.mxu0 %v7471
  %7564 = vmatprep.subr.bf16.mxu0 0
  %7565 = vmatpush1.bf16.msra.mxu0 %v7472
  %7566 = vmatprep.subr.bf16.mxu0 0
  %7567 = vmatpush1.bf16.msra.mxu0 %v7473
  %7568 = vmatprep.subr.bf16.mxu0 0
  %7569 = vmatpush1.bf16.msra.mxu0 %v7474
  %7570 = vmatprep.subr.bf16.mxu0 0
  %7571 = vmatpush1.bf16.msra.mxu0 %v7475
  %7572 = vmatprep.subr.bf16.mxu0 0
  %7573 = vmatpush1.bf16.msra.mxu0 %v7476
  %7574 = vmatprep.subr.bf16.mxu0 0
  %7575 = vmatpush1.bf16.msra.mxu0 %v7477
  %7576 = vmatprep.subr.bf16.mxu0 0
  %7577 = vmatpush1.bf16.msra.mxu0 %v7478
  %7578 = vmatprep.subr.bf16.mxu0 0
  %7579 = vmatpush1.bf16.msra.mxu0 %v7479
  %7580 = vmatprep.subr.bf16.mxu0 0
  %7581 = vmatpush1.bf16.msra.mxu0 %v7480
  %7582 = vmatprep.subr.bf16.mxu0 0
  %7583 = vmatpush1.bf16.msra.mxu0 %v7481
  %7584 = vmatprep.subr.bf16.mxu0 0
  %7585 = vmatpush1.bf16.msra.mxu0 %v7482
  %7586 = vmatprep.subr.bf16.mxu0 0
  %7587 = vmatpush1.bf16.msra.mxu0 %v7483
  %7588 = vmatprep.mubr.bf16.mxu0 %v6627
  %7589 = vmatmul.mubr.bf16.gmra.mrb[0].mxu0 %v6623
  %v7590 = vpop.f32.mrb[0].mxu0
  %v7591 = vadd.f32 %v7551, %v7590
  %v7592 = vpop.f32.mrb[0].mxu0
  %v7593 = vpop.f32.mrb[0].mxu0
  %v7594 = vpop.f32.mrb[0].mxu0
  %7595 = vdwg.mxu0
  %s7596 = scalar_lea.vmem %s16, 768
  %v7597 = vld [vmem:[%s7596] sm:$0xf]
  %v7598 = vld [vmem:[%s7596 + $0x4] sm:$0xf]
  %v7599 = vld [vmem:[%s7596 + $0x8] sm:$0xf]
  %v7600 = vld [vmem:[%s7596 + $0xc] sm:$0xf]
  %v7601 = vld [vmem:[%s7596 + $0x10] sm:$0xf]
  %v7602 = vld [vmem:[%s7596 + $0x14] sm:$0xf]
  %v7603 = vld [vmem:[%s7596 + $0x18] sm:$0xf]
  %v7604 = vld [vmem:[%s7596 + $0x1c] sm:$0xf]
  %v7605 = vld [vmem:[%s7596 + $0x20] sm:$0xf]
  %v7606 = vld [vmem:[%s7596 + $0x24] sm:$0xf]
  %v7607 = vld [vmem:[%s7596 + $0x28] sm:$0xf]
  %v7608 = vld [vmem:[%s7596 + $0x2c] sm:$0xf]
  %v7609 = vld [vmem:[%s7596 + $0x30] sm:$0xf]
  %v7610 = vld [vmem:[%s7596 + $0x34] sm:$0xf]
  %v7611 = vld [vmem:[%s7596 + $0x38] sm:$0xf]
  %v7612 = vld [vmem:[%s7596 + $0x3c] sm:$0xf]
  %v7613 = vld [vmem:[%s7596 + $0x40] sm:$0xf]
  %v7614 = vld [vmem:[%s7596 + $0x44] sm:$0xf]
  %v7615 = vld [vmem:[%s7596 + $0x48] sm:$0xf]
  %v7616 = vld [vmem:[%s7596 + $0x4c] sm:$0xf]
  %v7617 = vld [vmem:[%s7596 + $0x50] sm:$0xf]
  %v7618 = vld [vmem:[%s7596 + $0x54] sm:$0xf]
  %v7619 = vld [vmem:[%s7596 + $0x58] sm:$0xf]
  %v7620 = vld [vmem:[%s7596 + $0x5c] sm:$0xf]
  %v7621 = vld [vmem:[%s7596 + $0x60] sm:$0xf]
  %v7622 = vld [vmem:[%s7596 + $0x64] sm:$0xf]
  %v7623 = vld [vmem:[%s7596 + $0x68] sm:$0xf]
  %v7624 = vld [vmem:[%s7596 + $0x6c] sm:$0xf]
  %v7625 = vld [vmem:[%s7596 + $0x70] sm:$0xf]
  %v7626 = vld [vmem:[%s7596 + $0x74] sm:$0xf]
  %v7627 = vld [vmem:[%s7596 + $0x78] sm:$0xf]
  %v7628 = vld [vmem:[%s7596 + $0x7c] sm:$0xf]
  %v7629 = vld [vmem:[%s7596 + $0x80] sm:$0xf]
  %v7630 = vld [vmem:[%s7596 + $0x84] sm:$0xf]
  %v7631 = vld [vmem:[%s7596 + $0x88] sm:$0xf]
  %v7632 = vld [vmem:[%s7596 + $0x8c] sm:$0xf]
  %v7633 = vld [vmem:[%s7596 + $0x90] sm:$0xf]
  %v7634 = vld [vmem:[%s7596 + $0x94] sm:$0xf]
  %v7635 = vld [vmem:[%s7596 + $0x98] sm:$0xf]
  %v7636 = vld [vmem:[%s7596 + $0x9c] sm:$0xf]
  %v7637 = vld [vmem:[%s7596 + $0xa0] sm:$0xf]
  %v7638 = vld [vmem:[%s7596 + $0xa4] sm:$0xf]
  %v7639 = vld [vmem:[%s7596 + $0xa8] sm:$0xf]
  %v7640 = vld [vmem:[%s7596 + $0xac] sm:$0xf]
  %v7641 = vld [vmem:[%s7596 + $0xb0] sm:$0xf]
  %v7642 = vld [vmem:[%s7596 + $0xb4] sm:$0xf]
  %v7643 = vld [vmem:[%s7596 + $0xb8] sm:$0xf]
  %v7644 = vld [vmem:[%s7596 + $0xbc] sm:$0xf]
  %v7645 = vld [vmem:[%s7596 + $0xc0] sm:$0xf]
  %v7646 = vld [vmem:[%s7596 + $0xc4] sm:$0xf]
  %v7647 = vld [vmem:[%s7596 + $0xc8] sm:$0xf]
  %v7648 = vld [vmem:[%s7596 + $0xcc] sm:$0xf]
  %v7649 = vld [vmem:[%s7596 + $0xd0] sm:$0xf]
  %v7650 = vld [vmem:[%s7596 + $0xd4] sm:$0xf]
  %v7651 = vld [vmem:[%s7596 + $0xd8] sm:$0xf]
  %v7652 = vld [vmem:[%s7596 + $0xdc] sm:$0xf]
  %v7653 = vld [vmem:[%s7596 + $0xe0] sm:$0xf]
  %v7654 = vld [vmem:[%s7596 + $0xe4] sm:$0xf]
  %v7655 = vld [vmem:[%s7596 + $0xe8] sm:$0xf]
  %v7656 = vld [vmem:[%s7596 + $0xec] sm:$0xf]
  %v7657 = vld [vmem:[%s7596 + $0xf0] sm:$0xf]
  %v7658 = vld [vmem:[%s7596 + $0xf4] sm:$0xf]
  %v7659 = vld [vmem:[%s7596 + $0xf8] sm:$0xf]
  %v7660 = vld [vmem:[%s7596 + $0xfc] sm:$0xf]
  %v7725 = vunpack.c.l.b16 %v7597
  %v7726 = vunpack.c.l.b16 %v7598
  %v7727 = vunpack.c.l.b16 %v7599
  %v7728 = vunpack.c.l.b16 %v7600
  %v7729 = vunpack.c.l.b16 %v7601
  %v7730 = vunpack.c.l.b16 %v7602
  %v7731 = vunpack.c.l.b16 %v7603
  %v7732 = vunpack.c.l.b16 %v7604
  %v7733 = vunpack.c.l.b16 %v7605
  %v7734 = vunpack.c.l.b16 %v7606
  %v7735 = vunpack.c.l.b16 %v7607
  %v7736 = vunpack.c.l.b16 %v7608
  %v7737 = vunpack.c.l.b16 %v7609
  %v7738 = vunpack.c.l.b16 %v7610
  %v7739 = vunpack.c.l.b16 %v7611
  %v7740 = vunpack.c.l.b16 %v7612
  %v7741 = vunpack.c.l.b16 %v7613
  %v7742 = vunpack.c.l.b16 %v7614
  %v7743 = vunpack.c.l.b16 %v7615
  %v7744 = vunpack.c.l.b16 %v7616
  %v7745 = vunpack.c.l.b16 %v7617
  %v7746 = vunpack.c.l.b16 %v7618
  %v7747 = vunpack.c.l.b16 %v7619
  %v7748 = vunpack.c.l.b16 %v7620
  %v7749 = vunpack.c.l.b16 %v7621
  %v7750 = vunpack.c.l.b16 %v7622
  %v7751 = vunpack.c.l.b16 %v7623
  %v7752 = vunpack.c.l.b16 %v7624
  %v7753 = vunpack.c.l.b16 %v7625
  %v7754 = vunpack.c.l.b16 %v7626
  %v7755 = vunpack.c.l.b16 %v7627
  %v7756 = vunpack.c.l.b16 %v7628
  %v7757 = vunpack.c.l.b16 %v7629
  %v7758 = vunpack.c.l.b16 %v7630
  %v7759 = vunpack.c.l.b16 %v7631
  %v7760 = vunpack.c.l.b16 %v7632
  %v7761 = vunpack.c.l.b16 %v7633
  %v7762 = vunpack.c.l.b16 %v7634
  %v7763 = vunpack.c.l.b16 %v7635
  %v7764 = vunpack.c.l.b16 %v7636
  %v7765 = vunpack.c.l.b16 %v7637
  %v7766 = vunpack.c.l.b16 %v7638
  %v7767 = vunpack.c.l.b16 %v7639
  %v7768 = vunpack.c.l.b16 %v7640
  %v7769 = vunpack.c.l.b16 %v7641
  %v7770 = vunpack.c.l.b16 %v7642
  %v7771 = vunpack.c.l.b16 %v7643
  %v7772 = vunpack.c.l.b16 %v7644
  %v7773 = vunpack.c.l.b16 %v7645
  %v7774 = vunpack.c.l.b16 %v7646
  %v7775 = vunpack.c.l.b16 %v7647
  %v7776 = vunpack.c.l.b16 %v7648
  %v7777 = vunpack.c.l.b16 %v7649
  %v7778 = vunpack.c.l.b16 %v7650
  %v7779 = vunpack.c.l.b16 %v7651
  %v7780 = vunpack.c.l.b16 %v7652
  %v7781 = vunpack.c.l.b16 %v7653
  %v7782 = vunpack.c.l.b16 %v7654
  %v7783 = vunpack.c.l.b16 %v7655
  %v7784 = vunpack.c.l.b16 %v7656
  %v7785 = vunpack.c.l.b16 %v7657
  %v7786 = vunpack.c.l.b16 %v7658
  %v7787 = vunpack.c.l.b16 %v7659
  %v7788 = vunpack.c.l.b16 %v7660
  %v7789 = vpack.c.b16 %v7726, %v7725
  %v7790 = vpack.c.b16 %v7728, %v7727
  %v7791 = vpack.c.b16 %v7730, %v7729
  %v7792 = vpack.c.b16 %v7732, %v7731
  %v7793 = vpack.c.b16 %v7734, %v7733
  %v7794 = vpack.c.b16 %v7736, %v7735
  %v7795 = vpack.c.b16 %v7738, %v7737
  %v7796 = vpack.c.b16 %v7740, %v7739
  %v7797 = vpack.c.b16 %v7742, %v7741
  %v7798 = vpack.c.b16 %v7744, %v7743
  %v7799 = vpack.c.b16 %v7746, %v7745
  %v7800 = vpack.c.b16 %v7748, %v7747
  %v7801 = vpack.c.b16 %v7750, %v7749
  %v7802 = vpack.c.b16 %v7752, %v7751
  %v7803 = vpack.c.b16 %v7754, %v7753
  %v7804 = vpack.c.b16 %v7756, %v7755
  %v7805 = vpack.c.b16 %v7758, %v7757
  %v7806 = vpack.c.b16 %v7760, %v7759
  %v7807 = vpack.c.b16 %v7762, %v7761
  %v7808 = vpack.c.b16 %v7764, %v7763
  %v7809 = vpack.c.b16 %v7766, %v7765
  %v7810 = vpack.c.b16 %v7768, %v7767
  %v7811 = vpack.c.b16 %v7770, %v7769
  %v7812 = vpack.c.b16 %v7772, %v7771
  %v7813 = vpack.c.b16 %v7774, %v7773
  %v7814 = vpack.c.b16 %v7776, %v7775
  %v7815 = vpack.c.b16 %v7778, %v7777
  %v7816 = vpack.c.b16 %v7780, %v7779
  %v7817 = vpack.c.b16 %v7782, %v7781
  %v7818 = vpack.c.b16 %v7784, %v7783
  %v7819 = vpack.c.b16 %v7786, %v7785
  %v7820 = vpack.c.b16 %v7788, %v7787
  %7853 = vmatprep.subr.bf16.mxu0 0
  %7854 = vmatpush1.bf16.msra.mxu0 %v7789
  %7855 = vmatprep.subr.bf16.mxu0 0
  %7856 = vmatpush1.bf16.msra.mxu0 %v7790
  %7857 = vmatprep.subr.bf16.mxu0 0
  %7858 = vmatpush1.bf16.msra.mxu0 %v7791
  %7859 = vmatprep.subr.bf16.mxu0 0
  %7860 = vmatpush1.bf16.msra.mxu0 %v7792
  %7861 = vmatprep.subr.bf16.mxu0 0
  %7862 = vmatpush1.bf16.msra.mxu0 %v7793
  %7863 = vmatprep.subr.bf16.mxu0 0
  %7864 = vmatpush1.bf16.msra.mxu0 %v7794
  %7865 = vmatprep.subr.bf16.mxu0 0
  %7866 = vmatpush1.bf16.msra.mxu0 %v7795
  %7867 = vmatprep.subr.bf16.mxu0 0
  %7868 = vmatpush1.bf16.msra.mxu0 %v7796
  %7869 = vmatprep.subr.bf16.mxu0 0
  %7870 = vmatpush1.bf16.msra.mxu0 %v7797
  %7871 = vmatprep.subr.bf16.mxu0 0
  %7872 = vmatpush1.bf16.msra.mxu0 %v7798
  %7873 = vmatprep.subr.bf16.mxu0 0
  %7874 = vmatpush1.bf16.msra.mxu0 %v7799
  %7875 = vmatprep.subr.bf16.mxu0 0
  %7876 = vmatpush1.bf16.msra.mxu0 %v7800
  %7877 = vmatprep.subr.bf16.mxu0 0
  %7878 = vmatpush1.bf16.msra.mxu0 %v7801
  %7879 = vmatprep.subr.bf16.mxu0 0
  %7880 = vmatpush1.bf16.msra.mxu0 %v7802
  %7881 = vmatprep.subr.bf16.mxu0 0
  %7882 = vmatpush1.bf16.msra.mxu0 %v7803
  %7883 = vmatprep.subr.bf16.mxu0 0
  %7884 = vmatpush1.bf16.msra.mxu0 %v7804
  %7885 = vmatprep.mubr.bf16.mxu0 %v6547
  %7886 = vmatmul.mubr.bf16.gmra.mrb[0].mxu0 %v6546
  %v7887 = vpop.f32.mrb[0].mxu0
  %v7888 = vadd.f32 0.0, %v7887
  %v7889 = vpop.f32.mrb[0].mxu0
  %v7890 = vpop.f32.mrb[0].mxu0
  %v7891 = vpop.f32.mrb[0].mxu0
  %7892 = vdwg.mxu0
  %7893 = vmatprep.subr.bf16.mxu0 0
  %7894 = vmatpush1.bf16.msra.mxu0 %v7805
  %7895 = vmatprep.subr.bf16.mxu0 0
  %7896 = vmatpush1.bf16.msra.mxu0 %v7806
  %7897 = vmatprep.subr.bf16.mxu0 0
  %7898 = vmatpush1.bf16.msra.mxu0 %v7807
  %7899 = vmatprep.subr.bf16.mxu0 0
  %7900 = vmatpush1.bf16.msra.mxu0 %v7808
  %7901 = vmatprep.subr.bf16.mxu0 0
  %7902 = vmatpush1.bf16.msra.mxu0 %v7809
  %7903 = vmatprep.subr.bf16.mxu0 0
  %7904 = vmatpush1.bf16.msra.mxu0 %v7810
  %7905 = vmatprep.subr.bf16.mxu0 0
  %7906 = vmatpush1.bf16.msra.mxu0 %v7811
  %7907 = vmatprep.subr.bf16.mxu0 0
  %7908 = vmatpush1.bf16.msra.mxu0 %v7812
  %7909 = vmatprep.subr.bf16.mxu0 0
  %7910 = vmatpush1.bf16.msra.mxu0 %v7813
  %7911 = vmatprep.subr.bf16.mxu0 0
  %7912 = vmatpush1.bf16.msra.mxu0 %v7814
  %7913 = vmatprep.subr.bf16.mxu0 0
  %7914 = vmatpush1.bf16.msra.mxu0 %v7815
  %7915 = vmatprep.subr.bf16.mxu0 0
  %7916 = vmatpush1.bf16.msra.mxu0 %v7816
  %7917 = vmatprep.subr.bf16.mxu0 0
  %7918 = vmatpush1.bf16.msra.mxu0 %v7817
  %7919 = vmatprep.subr.bf16.mxu0 0
  %7920 = vmatpush1.bf16.msra.mxu0 %v7818
  %7921 = vmatprep.subr.bf16.mxu0 0
  %7922 = vmatpush1.bf16.msra.mxu0 %v7819
  %7923 = vmatprep.subr.bf16.mxu0 0
  %7924 = vmatpush1.bf16.msra.mxu0 %v7820
  %7925 = vmatprep.mubr.bf16.mxu0 %v6549
  %7926 = vmatmul.mubr.bf16.gmra.mrb[0].mxu0 %v6548
  %v7927 = vpop.f32.mrb[0].mxu0
  %v7928 = vadd.f32 %v7888, %v7927
  %v7929 = vpop.f32.mrb[0].mxu0
  %v7930 = vpop.f32.mrb[0].mxu0
  %v7931 = vpop.f32.mrb[0].mxu0
  %7932 = vdwg.mxu0
  %v7934 = vrot.slane %v7250, 7
  %v7937 = vrot.slane %v7591, 6
  %v7940 = vrot.slane %v7928, 5
  %vm7942 = vcmask 1040384
  %v7943 = vsel %vm7942, %v6901, %v7934
  %vm7944 = vcmask 1041408
  %v7945 = vsel %vm7944, %v7943, %v7937
  %vm7946 = vcmask 1042432
  %v7947 = vsel %vm7946, %v7945, %v7940
  %v7948 = vld [vmem:[#allocation2] sm:$0x1]
  %v7950 = vlaneseq
  %v7951 = vshrl.u32 %v7950, 7
  %v7952 = vsub.s32 0, %v7951
  %v7953 = vrot.slane %v7948, %v7952
  %7954 = vset.pattern.permute.xlu0 0
  %7955 = vperm.xlu0 %7954, %v7953
  %v7956 = vpop.permute.xlu0 %7955
  %v7958 = vadd.f32 %v7947, %v7956
  %v7959 = vxor.u32 %v7958, 2147483648
  %v7960 = vmul.f32 %v7959, 1.442695
  %v7961 = vpow.pop %v7960
  %v7962 = vadd.f32 %v7961, 1.0
  %v7963 = vrcp.pop %v7962
  %v7964 = vmul.f32 1.0, %v7963
  %7965 = vst [vmem:[%s18] sm:$0xf] %v7964
  // Predicated region
  $region74: #{cnn_autoencoder_forward.1} parent=0 // pred_check
    _
  $region75: #{cnn_autoencoder_forward.1} parent=0 // pred_check_branch
    %7967 = sbr.rel (0) target = $region77
  $region76: #{cnn_autoencoder_forward.1} parent=0 // pred_region
    _
  $region77: #{cnn_autoencoder_forward.1} parent=0 // pred_fallthru
    _
  // Predicated region
  $region78: #{cnn_autoencoder_forward.1} parent=0 // pred_check
    _
  $region79: #{cnn_autoencoder_forward.1} parent=0 // pred_check_branch
    %7969 = sbr.rel (0) target = $region81
  $region80: #{cnn_autoencoder_forward.1} parent=0 // pred_region
    _
  $region81: #{cnn_autoencoder_forward.1} parent=0 // pred_fallthru
    _

</llo_original>
